<compile_context>
chip_gen: v7x
topology: tpu7x:2x2x1
jax: 0.10.0
libtpu: 0.0.40
codegen_flags: <defaults>
</compile_context>

<pallas_src>
import functools
import numpy as np

import jax
import jax.numpy as jnp
from jax.experimental import pallas as pl
from jax.experimental.pallas import tpu as pltpu

NUM_CLASSES = 21
NUM_NEIGHBOR = 9

LANE = 128
_SMALL_M = 64                       # below this, GEMM goes to plain jnp (launch overhead dominates)
_VMEM_BUDGET = 10 * 1024 * 1024     # conservative double-buffered working-set budget
                                    # (fits v5e's 16 MiB / v7x's 32 MiB default scoped VMEM)


def _round_up(x, m):
    return (x + m - 1) // m * m


def _pick_tm(M):
    """Adaptive M tile: single (16-aligned) block up to 512 rows; never split for 'megacore'."""
    Ma = _round_up(M, 16)           # 16-aligned matches bf16 (16,128) sublane packing
    if Ma <= 512:
        return Ma
    # TODO(synk): generation-aware cap for real input sizes (128 on v5e, 256-512 on v6e/v7x).
    return 256


# ----------------------------------------------------------------------------
# Pallas kernels
# ----------------------------------------------------------------------------
def _mm_kernel(x_ref, w_ref, b_ref, o_ref, *, relu):
    """Single K step: fused epilogue, no reduction axis, no scratch."""
    y = jnp.dot(x_ref[...], w_ref[...], preferred_element_type=jnp.float32) + b_ref[...]
    if relu:
        y = jnp.maximum(y, 0.0)
    o_ref[...] = y.astype(o_ref.dtype)


def _mm_kernel_ksplit(x_ref, w_ref, b_ref, o_ref, acc_ref, *, relu, nk):
    """K-split path: f32 VMEM accumulator, bf16 (or f32) store on the last step."""
    k = pl.program_id(2)

    @pl.when(k == 0)
    def _():
        acc_ref[...] = jnp.zeros_like(acc_ref)

    acc_ref[...] += jnp.dot(x_ref[...], w_ref[...], preferred_element_type=jnp.float32)

    @pl.when(k == nk - 1)
    def _():
        y = acc_ref[...] + b_ref[...]
        if relu:
            y = jnp.maximum(y, 0.0)
        o_ref[...] = y.astype(o_ref.dtype)


def _mm2_kernel(x_ref, w1_ref, b1_ref, w2_ref, b2_ref, o_ref):
    """Fused conv-GEMM -> ReLU -> 1x1 head GEMM; hidden activation never leaves VMEM."""
    h = jnp.dot(x_ref[...], w1_ref[...], preferred_element_type=jnp.float32) + b1_ref[...]
    h = jnp.maximum(h, 0.0)
    y = jnp.dot(h.astype(jnp.bfloat16), w2_ref[...],
                preferred_element_type=jnp.float32) + b2_ref[...]
    o_ref[...] = y.astype(o_ref.dtype)


# ----------------------------------------------------------------------------
# GEMM wrapper: Y = act(X @ W + bias), BN scale already folded into W columns.
# ----------------------------------------------------------------------------
def matmul_bias_act(x, w, bias, relu=True, out_dtype=jnp.bfloat16):
    """x: (M,K) bf16, w: (K,N) bf16, bias: (1,N) f32.  Returns (M,N) out_dtype."""
    M, K = x.shape
    K2, N = w.shape
    assert K == K2 and bias.shape == (1, N)

    if M < _SMALL_M:
        # Tiny GEMMs: launch/DMA overhead dominates; let XLA fuse them on the VPU.
        y = jnp.dot(x, w, preferred_element_type=jnp.float32) + bias
        if relu:
            y = jnp.maximum(y, 0.0)
        return y.astype(out_dtype)

    Kp = _round_up(K, LANE)
    Np = _round_up(N, LANE)
    if Kp != K:                     # never triggered on the channel-padded path
        x = jnp.pad(x, ((0, 0), (0, Kp - K)))
        w = jnp.pad(w, ((0, Kp - K), (0, 0)))
    if Np != N:
        w = jnp.pad(w, ((0, 0), (0, Np - N)))
        bias = jnp.pad(bias, ((0, 0), (0, Np - N)))

    TM = _pick_tm(M)
    Mp = _round_up(M, TM)
    if Mp != M:
        x = jnp.pad(x, ((0, Mp - M), (0, 0)))
    TN = 256 if Np % 256 == 0 else LANE
    ob = jnp.dtype(out_dtype).itemsize

    def _ws(tk):  # double-buffered per-step working set (bytes)
        return 2 * (TM * tk + tk * TN) * 2 + 2 * TM * TN * ob

    if _ws(Kp) <= _VMEM_BUDGET:
        TK, nk = Kp, 1
    else:
        units = Kp // LANE
        TK = LANE
        for t in range(units - 1, 0, -1):       # largest 128-mult divisor of Kp that fits
            if units % t == 0 and _ws(t * LANE) <= _VMEM_BUDGET:
                TK = t * LANE
                break
        nk = Kp // TK

    cost = pl.CostEstimate(
        flops=2 * Mp * Np * Kp, transcendentals=0,
        bytes_accessed=Mp * Kp * 2 + Kp * Np * 2 + Mp * Np * ob + Np * 4)

    if nk == 1:
        out = pl.pallas_call(
            functools.partial(_mm_kernel, relu=relu),
            out_shape=jax.ShapeDtypeStruct((Mp, Np), out_dtype),
            grid_spec=pltpu.PrefetchScalarGridSpec(
                num_scalar_prefetch=0,
                grid=(Mp // TM, Np // TN),
                in_specs=[
                    pl.BlockSpec((TM, Kp), lambda i, j: (i, 0)),
                    pl.BlockSpec((Kp, TN), lambda i, j: (0, j)),
                    pl.BlockSpec((1, TN), lambda i, j: (0, j)),
                ],
                out_specs=pl.BlockSpec((TM, TN), lambda i, j: (i, j))),
            compiler_params=pltpu.CompilerParams(
                dimension_semantics=("parallel", "parallel")),
            cost_estimate=cost,
        )(x, w, bias)
    else:
        out = pl.pallas_call(
            functools.partial(_mm_kernel_ksplit, relu=relu, nk=nk),
            out_shape=jax.ShapeDtypeStruct((Mp, Np), out_dtype),
            grid_spec=pltpu.PrefetchScalarGridSpec(
                num_scalar_prefetch=0,
                grid=(Mp // TM, Np // TN, nk),
                in_specs=[
                    pl.BlockSpec((TM, TK), lambda i, j, k: (i, k)),
                    pl.BlockSpec((TK, TN), lambda i, j, k: (k, j)),
                    pl.BlockSpec((1, TN), lambda i, j, k: (0, j)),
                ],
                out_specs=pl.BlockSpec((TM, TN), lambda i, j, k: (i, j)),
                scratch_shapes=[pltpu.VMEM((TM, TN), jnp.float32)]),
            compiler_params=pltpu.CompilerParams(
                dimension_semantics=("parallel", "parallel", "arbitrary")),
            cost_estimate=cost,
        )(x, w, bias)

    return out[:M] if Mp != M else out


# ----------------------------------------------------------------------------
# im2col + conv (+folded BN +ReLU).  Inputs are channel-padded bf16 NHWC tensors.
# ----------------------------------------------------------------------------
def _im2col(x, kh, kw, stride, dilation, Ho, Wo, ph, pw):
    n, H, W, cp = x.shape
    if kh == 1 and kw == 1 and stride == 1 and ph == 0 and pw == 0:
        return x.reshape(n * H * W, cp)
    xp = jnp.pad(x, ((0, 0), (ph, ph), (pw, pw), (0, 0)))
    cols = []
    for i in range(kh):
        for j in range(kw):
            di, dj = i * dilation, j * dilation
            cols.append(xp[:, di:di + (Ho - 1) * stride + 1:stride,
                              dj:dj + (Wo - 1) * stride + 1:stride, :])
    # TODO(synk): for realistic resolutions replace this HBM-materialized im2col with
    # implicit im2col (grid axis over taps, pl.Element row offsets / manual DMA).
    return jnp.concatenate(cols, axis=-1).reshape(n * Ho * Wo, kh * kw * cp)


def conv2d_bn_act(inputs, w, scale, bias, stride=1, dilation=1, relu=True):
    """inputs: list of (x, c_true) -- a virtual channel-concat of channel-padded bf16 NHWC
    tensors.  w: (kh,kw,sum(c_true),cout) f32.  Returns (y_padded NHWC bf16, cout)."""
    kh, kw, cin_total, cout = w.shape
    n, H, W, _ = inputs[0][0].shape
    ph = dilation * (kh - 1) // 2
    pw = dilation * (kw - 1) // 2
    Ho = (H + 2 * ph - dilation * (kh - 1) - 1) // stride + 1
    Wo = (W + 2 * pw - dilation * (kw - 1) - 1) // stride + 1
    coutp = _round_up(cout, LANE)

    w_s = w * scale.reshape(1, 1, 1, cout)          # fold BN scale into weight columns
    bp = jnp.pad(bias.reshape(1, cout).astype(jnp.float32), ((0, 0), (0, coutp - cout)))

    xm_parts, wm_parts, off = [], [], 0
    for x, c in inputs:
        cp = x.shape[-1]
        wi = jnp.pad(w_s[:, :, off:off + c, :],
                     ((0, 0), (0, 0), (0, cp - c), (0, coutp - cout)))
        wm_parts.append(wi.reshape(kh * kw * cp, coutp).astype(jnp.bfloat16))
        xm_parts.append(_im2col(x, kh, kw, stride, dilation, Ho, Wo, ph, pw))
        off += c
    assert off == cin_total
    xm = xm_parts[0] if len(xm_parts) == 1 else jnp.concatenate(xm_parts, axis=-1)
    wm = wm_parts[0] if len(wm_parts) == 1 else jnp.concatenate(wm_parts, axis=0)

    y = matmul_bias_act(xm, wm, bp, relu=relu)
    return y.reshape(n, Ho, Wo, coutp), cout


def conv_head_fused(x_pt, conv_w, conv_scale, conv_bias, head_w, head_b, dilation=1):
    """Fused head: relu(conv3x3(x)*scale+bias) @ head_w + head_b in ONE pallas_call.
    x_pt = (x_padded, c_true).  head_w: (hidden_true, out_true).  Returns f32 NHWC (padded N)."""
    x, c = x_pt
    kh, kw, cin, hidden = conv_w.shape
    assert cin == c
    n, H, W, cp = x.shape
    ph = dilation * (kh - 1) // 2
    pw = dilation * (kw - 1) // 2
    Ho, Wo = H, W                                   # stride 1, 'same' padding
    hp = _round_up(hidden, LANE)
    nout = head_w.shape[1]
    n2p = _round_up(nout, LANE)

    w1 = conv_w * conv_scale.reshape(1, 1, 1, hidden)
    w1 = jnp.pad(w1, ((0, 0), (0, 0), (0, cp - cin), (0, hp - hidden)))
    w1 = w1.reshape(kh * kw * cp, hp).astype(jnp.bfloat16)
    b1 = jnp.pad(conv_bias.reshape(1, hidden).astype(jnp.float32),
                 ((0, 0), (0, hp - hidden)))
    w2 = jnp.pad(head_w.astype(jnp.float32),
                 ((0, hp - hidden), (0, n2p - nout))).astype(jnp.bfloat16)
    b2 = jnp.pad(head_b.reshape(1, nout).astype(jnp.float32), ((0, 0), (0, n2p - nout)))

    xm = _im2col(x, kh, kw, 1, dilation, Ho, Wo, ph, pw)
    M, K = xm.shape

    if M < _SMALL_M:
        h = jnp.maximum(jnp.dot(xm, w1, preferred_element_type=jnp.float32) + b1, 0.0)
        y = jnp.dot(h.astype(jnp.bfloat16), w2, preferred_element_type=jnp.float32) + b2
        return y.reshape(n, Ho, Wo, n2p)

    TM = _pick_tm(M)
    ws = 2 * (TM * K + K * hp) * 2 + hp * n2p * 2 + 2 * TM * n2p * 4
    if ws > _VMEM_BUDGET:
        # K too large to hold in one fused step: fall back to two pallas GEMMs.
        h = matmul_bias_act(xm, w1, b1, relu=True)
        y = matmul_bias_act(h, w2, b2, relu=False, out_dtype=jnp.float32)
        return y.reshape(n, Ho, Wo, n2p)

    Mp = _round_up(M, TM)
    if Mp != M:
        xm = jnp.pad(xm, ((0, Mp - M), (0, 0)))

    cost = pl.CostEstimate(
        flops=2 * Mp * hp * K + 2 * Mp * n2p * hp, transcendentals=0,
        bytes_accessed=Mp * K * 2 + K * hp * 2 + hp * n2p * 2 + Mp * n2p * 4)
    y = pl.pallas_call(
        _mm2_kernel,
        out_shape=jax.ShapeDtypeStruct((Mp, n2p), jnp.float32),
        grid_spec=pltpu.PrefetchScalarGridSpec(
            num_scalar_prefetch=0,
            grid=(Mp // TM,),
            in_specs=[
                pl.BlockSpec((TM, K), lambda i: (i, 0)),
                pl.BlockSpec((K, hp), lambda i: (0, 0)),
                pl.BlockSpec((1, hp), lambda i: (0, 0)),
                pl.BlockSpec((hp, n2p), lambda i: (0, 0)),
                pl.BlockSpec((1, n2p), lambda i: (0, 0)),
            ],
            out_specs=pl.BlockSpec((TM, n2p), lambda i: (i, 0))),
        compiler_params=pltpu.CompilerParams(dimension_semantics=("parallel",)),
        cost_estimate=cost,
    )(xm, w1, b1, w2, b2)
    if Mp != M:
        y = y[:M]
    return y.reshape(n, Ho, Wo, n2p)


def _to_padded(x_nhwc):
    """Pad channels to a multiple of 128 once (lane-dense end-to-end), cast to bf16."""
    cp = _round_up(max(x_nhwc.shape[-1], 1), LANE)
    pad = cp - x_nhwc.shape[-1]
    if pad:
        x_nhwc = jnp.pad(x_nhwc, ((0, 0), (0, 0), (0, 0), (0, pad)))
    return x_nhwc.astype(jnp.bfloat16)


# ----------------------------------------------------------------------------
# Deterministic parameter initialization (synthetic; BN folded to scale/bias)
# ----------------------------------------------------------------------------
def init_params(key):
    ks = iter(jax.random.split(key, 64))

    def conv(kh, kw, cin, cout):
        return jax.random.normal(next(ks), (kh, kw, cin, cout),
                                 jnp.float32) / np.sqrt(kh * kw * cin)

    def bn(c):
        g = 1.0 + 0.1 * jax.random.normal(next(ks), (c,), jnp.float32)
        b = 0.1 * jax.random.normal(next(ks), (c,), jnp.float32)
        return g, b   # running_mean=0, running_var=1 -> scale=gamma, bias=beta

    p = {}
    # backbone (ResNet-like, output_stride=16, last stage dilated)
    p["b_conv1"] = (conv(3, 3, 3, 32),) + bn(32)
    p["b_l1"] = (conv(3, 3, 32, 24),) + bn(24)     # -> e1 (stride 4, low-level)
    p["b_l2"] = (conv(3, 3, 24, 32),) + bn(32)     # -> e2 (stride 8)
    p["b_l3"] = (conv(3, 3, 32, 48),) + bn(48)     # -> e3 (stride 16)
    p["b_l4"] = (conv(3, 3, 48, 64),) + bn(64)     # -> e4 (stride 16, dilation 2)
    # ASPP
    p["aspp1"] = (conv(1, 1, 64, 32),) + bn(32)
    p["aspp2"] = (conv(3, 3, 64, 32),) + bn(32)
    p["aspp3"] = (conv(3, 3, 64, 32),) + bn(32)
    p["aspp_pool"] = (conv(1, 1, 64, 32),) + bn(32)
    p["aspp_proj"] = (conv(1, 1, 128, 64),) + bn(64)
    # decoder
    p["dec_low"] = (conv(1, 1, 24, 16),) + bn(16)
    p["dec_c1"] = (conv(3, 3, 80, 64),) + bn(64)
    p["dec_c2"] = (conv(3, 3, 64, 64),) + bn(64)
    # connect heads
    p["seg_c1"] = (conv(3, 3, 64, 32),) + bn(32)
    p["seg_out_w"] = conv(1, 1, 32, NUM_CLASSES)
    p["seg_out_b"] = 0.1 * jax.random.normal(next(ks), (NUM_CLASSES,), jnp.float32)
    p["con_c1"] = (conv(3, 3, 64, 32),) + bn(32)
    p["con_out_w"] = conv(1, 1, 32, NUM_NEIGHBOR)
    p["con_out_b"] = 0.1 * jax.random.normal(next(ks), (NUM_NEIGHBOR,), jnp.float32)
    p["cond1_c1"] = (conv(3, 3, 64, 32),) + bn(32)
    p["cond1_out_w"] = conv(1, 1, 32, NUM_NEIGHBOR)
    p["cond1_out_b"] = 0.1 * jax.random.normal(next(ks), (NUM_NEIGHBOR,), jnp.float32)
    return p


# ----------------------------------------------------------------------------
# CoANet forward: backbone -> ASPP -> decoder -> connect -> (seg, connect, connect_d1)
# ----------------------------------------------------------------------------
def coanet_forward(params, x_nchw):
    x = _to_padded(jnp.transpose(x_nchw, (0, 2, 3, 1)))   # NCHW -> NHWC, pad C once, bf16
    xc = x_nchw.shape[1]

    def cba(name, t, c, stride=1, dilation=1, relu=True):
        w, g, b = params[name]
        return conv2d_bn_act([(t, c)], w, g, b, stride=stride, dilation=dilation, relu=relu)

    # --- backbone ---
    x0, c0 = cba("b_conv1", x, xc, stride=2)
    e1, c1 = cba("b_l1", x0, c0, stride=2)
    e2, c2 = cba("b_l2", e1, c1, stride=2)
    e3, c3 = cba("b_l3", e2, c2, stride=2)
    e4, c4 = cba("b_l4", e3, c3, stride=1, dilation=2)

    # --- ASPP on e4 (all M<64 here -> fused XLA/VPU path, no pallas launches) ---
    a1, ca1 = cba("aspp1", e4, c4)
    a2, ca2 = cba("aspp2", e4, c4, dilation=2)
    a3, ca3 = cba("aspp3", e4, c4, dilation=3)
    gp = jnp.mean(e4.astype(jnp.float32), axis=(1, 2), keepdims=True).astype(jnp.bfloat16)
    gp, cgp = cba("aspp_pool", gp, c4)
    gp = jnp.broadcast_to(gp, (gp.shape[0], e4.shape[1], e4.shape[2], gp.shape[3]))
    w, g, b = params["aspp_proj"]
    a, ca = conv2d_bn_act([(a1, ca1), (a2, ca2), (a3, ca3), (gp, cgp)], w, g, b)

    # --- decoder (fuse low-level e1 features) ---
    low, cl = cba("dec_low", e1, c1)
    # TODO(synk): PyTorch F.interpolate(align_corners=True) uses a different sampling grid
    # than jax.image.resize's default half-pixel bilinear.
    up = jax.image.resize(a.astype(jnp.float32),
                          (a.shape[0], e1.shape[1], e1.shape[2], a.shape[3]),
                          method="bilinear").astype(jnp.bfloat16)
    w, g, b = params["dec_c1"]
    d, cd = conv2d_bn_act([(up, ca), (low, cl)], w, g, b)
    xfeat, cf = cba("dec_c2", d, cd)

    # --- connect module ---
    # seg_c1 + con_c1 share input and the same 3x3/dil=1 im2col -> one conv (Cout 64);
    # seg_out / con_out become one block-diagonal 64->30 1x1 GEMM, chained in the SAME kernel.
    w_sc = jnp.concatenate([params["seg_c1"][0], params["con_c1"][0]], axis=-1)
    g_sc = jnp.concatenate([params["seg_c1"][1], params["con_c1"][1]], axis=0)
    b_sc = jnp.concatenate([params["seg_c1"][2], params["con_c1"][2]], axis=0)
    w_blk = jnp.zeros((64, NUM_CLASSES + NUM_NEIGHBOR), jnp.float32)
    w_blk = w_blk.at[:32, :NUM_CLASSES].set(params["seg_out_w"].reshape(32, NUM_CLASSES))
    w_blk = w_blk.at[32:, NUM_CLASSES:].set(params["con_out_w"].reshape(32, NUM_NEIGHBOR))
    b_blk = jnp.concatenate([params["seg_out_b"], params["con_out_b"]], axis=0)
    y = conv_head_fused((xfeat, cf), w_sc, g_sc, b_sc, w_blk, b_blk, dilation=1)
    seg = y[..., :NUM_CLASSES]
    con = y[..., NUM_CLASSES:NUM_CLASSES + NUM_NEIGHBOR]

    # d1 connectivity head (dilation 3 -> different im2col pattern, its own fused kernel)
    yd1 = conv_head_fused((xfeat, cf),
                          params["cond1_c1"][0], params["cond1_c1"][1], params["cond1_c1"][2],
                          params["cond1_out_w"].reshape(32, NUM_NEIGHBOR),
                          params["cond1_out_b"], dilation=3)
    con_d1 = yd1[..., :NUM_NEIGHBOR]

    # back to NCHW to match PyTorch output convention
    to_nchw = lambda t: jnp.transpose(t, (0, 3, 1, 2))
    return to_nchw(seg), to_nchw(con), to_nchw(con_d1)


if __name__ == "__main__":
    key = jax.random.PRNGKey(0)
    pkey, xkey = jax.random.split(key)
    params = init_params(pkey)
    x = jax.random.normal(xkey, (2, 3, 32, 32), jnp.float32)  # NCHW input

    seg, con, con_d1 = jax.jit(coanet_forward)(params, x)
    jax.block_until_ready((seg, con, con_d1))

    assert seg.shape == (2, NUM_CLASSES, 8, 8), seg.shape
    assert con.shape == (2, NUM_NEIGHBOR, 8, 8), con.shape
    assert con_d1.shape == (2, NUM_NEIGHBOR, 8, 8), con_d1.shape
    assert bool(jnp.all(jnp.isfinite(seg)))
    assert bool(jnp.all(jnp.isfinite(con)))
    assert bool(jnp.all(jnp.isfinite(con_d1)))
    print("KERNEL_OK")
</pallas_src>

<mosaic_0001>
module attributes {stable_mosaic.version = 11 : i64} {
  func.func @_mm_kernel(%arg0: i32, %arg1: i32, %arg2: memref<512x1152xbf16, #tpu.memory_space<vmem>>, %arg3: memref<1152x128xbf16, #tpu.memory_space<vmem>>, %arg4: memref<1x128xf32, #tpu.memory_space<vmem>>, %arg5: memref<512x128xbf16, #tpu.memory_space<vmem>>) attributes {dimension_semantics = [#tpu.dimension_semantics<parallel>, #tpu.dimension_semantics<parallel>], iteration_bounds = array<i64: 1, 1>, scalar_prefetch = 0 : i64, scratch_operands = 0 : i64, tpu.core_type = #tpu.core_type<tc>, window_params = [{transform_indices = @transform_0, window_bounds = array<i64: 512, 1152>}, {transform_indices = @transform_1, window_bounds = array<i64: 1152, 128>}, {transform_indices = @transform_2, window_bounds = array<i64: 1, 128>}, {transform_indices = @transform_3, window_bounds = array<i64: 512, 128>}]} {
    %c0 = arith.constant 0 : index
    %c0_0 = arith.constant 0 : index
    %0 = vector.load %arg2[%c0, %c0_0] : memref<512x1152xbf16, #tpu.memory_space<vmem>>, vector<512x1152xbf16>
    %c0_1 = arith.constant 0 : index
    %c0_2 = arith.constant 0 : index
    %1 = vector.load %arg3[%c0_1, %c0_2] : memref<1152x128xbf16, #tpu.memory_space<vmem>>, vector<1152x128xbf16>
    %cst = arith.constant dense<0.000000e+00> : vector<512x128xf32>
    %2 = tpu.matmul %0, %1, %cst {dimension_numbers = #tpu.dot_dimension_numbers<[1], [0], [0], [1], [0, 0, 1, 1], [], []>} : vector<512x1152xbf16>, vector<1152x128xbf16>, vector<512x128xf32> -> vector<512x128xf32>
    %c0_3 = arith.constant 0 : index
    %c0_4 = arith.constant 0 : index
    %3 = vector.load %arg4[%c0_3, %c0_4] : memref<1x128xf32, #tpu.memory_space<vmem>>, vector<1x128xf32>
    %4 = vector.broadcast %3 : vector<1x128xf32> to vector<512x128xf32>
    %5 = arith.addf %2, %4 : vector<512x128xf32>
    %cst_5 = arith.constant 0.000000e+00 : f32
    %6 = vector.broadcast %cst_5 : f32 to vector<512x128xf32>
    %7 = arith.maximumf %5, %6 : vector<512x128xf32>
    %8 = arith.truncf %7 : vector<512x128xf32> to vector<512x128xbf16>
    %c0_6 = arith.constant 0 : index
    %c0_7 = arith.constant 0 : index
    %9 = vector.load %arg5[%c0_6, %c0_7] : memref<512x128xbf16, #tpu.memory_space<vmem>>, vector<512x128xbf16>
    tpu.vector_store %arg5[%c0_6, %c0_7], %8 {strides = array<i32>} : memref<512x128xbf16, #tpu.memory_space<vmem>>, vector<512x128xbf16>,
    return
  }
  func.func @transform_0(%arg0: i32, %arg1: i32) -> (i32, i32) {
    %c0_i32 = arith.constant 0 : i32
    %c0_i32_0 = arith.constant 0 : i32
    return %arg0, %c0_i32 : i32, i32
  }
  func.func @transform_1(%arg0: i32, %arg1: i32) -> (i32, i32) {
    %c0_i32 = arith.constant 0 : i32
    %c0_i32_0 = arith.constant 0 : i32
    return %c0_i32, %arg1 : i32, i32
  }
  func.func @transform_2(%arg0: i32, %arg1: i32) -> (i32, i32) {
    %c0_i32 = arith.constant 0 : i32
    %c0_i32_0 = arith.constant 0 : i32
    return %c0_i32, %arg1 : i32, i32
  }
  func.func @transform_3(%arg0: i32, %arg1: i32) -> (i32, i32) {
    %c0_i32 = arith.constant 0 : i32
    return %arg0, %arg1 : i32, i32
  }
}

module attributes {stable_mosaic.version = 11 : i64} {
  func.func @_mm_kernel(%arg0: i32, %arg1: i32, %arg2: memref<128x1152xbf16, #tpu.memory_space<vmem>>, %arg3: memref<1152x128xbf16, #tpu.memory_space<vmem>>, %arg4: memref<1x128xf32, #tpu.memory_space<vmem>>, %arg5: memref<128x128xbf16, #tpu.memory_space<vmem>>) attributes {dimension_semantics = [#tpu.dimension_semantics<parallel>, #tpu.dimension_semantics<parallel>], iteration_bounds = array<i64: 1, 1>, scalar_prefetch = 0 : i64, scratch_operands = 0 : i64, tpu.core_type = #tpu.core_type<tc>, window_params = [{transform_indices = @transform_0, window_bounds = array<i64: 128, 1152>}, {transform_indices = @transform_1, window_bounds = array<i64: 1152, 128>}, {transform_indices = @transform_2, window_bounds = array<i64: 1, 128>}, {transform_indices = @transform_3, window_bounds = array<i64: 128, 128>}]} {
    %c0 = arith.constant 0 : index
    %c0_0 = arith.constant 0 : index
    %0 = vector.load %arg2[%c0, %c0_0] : memref<128x1152xbf16, #tpu.memory_space<vmem>>, vector<128x1152xbf16>
    %c0_1 = arith.constant 0 : index
    %c0_2 = arith.constant 0 : index
    %1 = vector.load %arg3[%c0_1, %c0_2] : memref<1152x128xbf16, #tpu.memory_space<vmem>>, vector<1152x128xbf16>
    %cst = arith.constant dense<0.000000e+00> : vector<128x128xf32>
    %2 = tpu.matmul %0, %1, %cst {dimension_numbers = #tpu.dot_dimension_numbers<[1], [0], [0], [1], [0, 0, 1, 1], [], []>} : vector<128x1152xbf16>, vector<1152x128xbf16>, vector<128x128xf32> -> vector<128x128xf32>
    %c0_3 = arith.constant 0 : index
    %c0_4 = arith.constant 0 : index
    %3 = vector.load %arg4[%c0_3, %c0_4] : memref<1x128xf32, #tpu.memory_space<vmem>>, vector<1x128xf32>
    %4 = vector.broadcast %3 : vector<1x128xf32> to vector<128x128xf32>
    %5 = arith.addf %2, %4 : vector<128x128xf32>
    %cst_5 = arith.constant 0.000000e+00 : f32
    %6 = vector.broadcast %cst_5 : f32 to vector<128x128xf32>
    %7 = arith.maximumf %5, %6 : vector<128x128xf32>
    %8 = arith.truncf %7 : vector<128x128xf32> to vector<128x128xbf16>
    %c0_6 = arith.constant 0 : index
    %c0_7 = arith.constant 0 : index
    %9 = vector.load %arg5[%c0_6, %c0_7] : memref<128x128xbf16, #tpu.memory_space<vmem>>, vector<128x128xbf16>
    tpu.vector_store %arg5[%c0_6, %c0_7], %8 {strides = array<i32>} : memref<128x128xbf16, #tpu.memory_space<vmem>>, vector<128x128xbf16>,
    return
  }
  func.func @transform_0(%arg0: i32, %arg1: i32) -> (i32, i32) {
    %c0_i32 = arith.constant 0 : i32
    %c0_i32_0 = arith.constant 0 : i32
    return %arg0, %c0_i32 : i32, i32
  }
  func.func @transform_1(%arg0: i32, %arg1: i32) -> (i32, i32) {
    %c0_i32 = arith.constant 0 : i32
    %c0_i32_0 = arith.constant 0 : i32
    return %c0_i32, %arg1 : i32, i32
  }
  func.func @transform_2(%arg0: i32, %arg1: i32) -> (i32, i32) {
    %c0_i32 = arith.constant 0 : i32
    %c0_i32_0 = arith.constant 0 : i32
    return %c0_i32, %arg1 : i32, i32
  }
  func.func @transform_3(%arg0: i32, %arg1: i32) -> (i32, i32) {
    %c0_i32 = arith.constant 0 : i32
    return %arg0, %arg1 : i32, i32
  }
}

module attributes {stable_mosaic.version = 11 : i64} {
  func.func @_mm_kernel(%arg0: i32, %arg1: i32, %arg2: memref<128x128xbf16, #tpu.memory_space<vmem>>, %arg3: memref<128x128xbf16, #tpu.memory_space<vmem>>, %arg4: memref<1x128xf32, #tpu.memory_space<vmem>>, %arg5: memref<128x128xbf16, #tpu.memory_space<vmem>>) attributes {dimension_semantics = [#tpu.dimension_semantics<parallel>, #tpu.dimension_semantics<parallel>], iteration_bounds = array<i64: 1, 1>, scalar_prefetch = 0 : i64, scratch_operands = 0 : i64, tpu.core_type = #tpu.core_type<tc>, window_params = [{transform_indices = @transform_0, window_bounds = array<i64: 128, 128>}, {transform_indices = @transform_1, window_bounds = array<i64: 128, 128>}, {transform_indices = @transform_2, window_bounds = array<i64: 1, 128>}, {transform_indices = @transform_3, window_bounds = array<i64: 128, 128>}]} {
    %c0 = arith.constant 0 : index
    %c0_0 = arith.constant 0 : index
    %0 = vector.load %arg2[%c0, %c0_0] : memref<128x128xbf16, #tpu.memory_space<vmem>>, vector<128x128xbf16>
    %c0_1 = arith.constant 0 : index
    %c0_2 = arith.constant 0 : index
    %1 = vector.load %arg3[%c0_1, %c0_2] : memref<128x128xbf16, #tpu.memory_space<vmem>>, vector<128x128xbf16>
    %cst = arith.constant dense<0.000000e+00> : vector<128x128xf32>
    %2 = tpu.matmul %0, %1, %cst {dimension_numbers = #tpu.dot_dimension_numbers<[1], [0], [0], [1], [0, 0, 1, 1], [], []>} : vector<128x128xbf16>, vector<128x128xbf16>, vector<128x128xf32> -> vector<128x128xf32>
    %c0_3 = arith.constant 0 : index
    %c0_4 = arith.constant 0 : index
    %3 = vector.load %arg4[%c0_3, %c0_4] : memref<1x128xf32, #tpu.memory_space<vmem>>, vector<1x128xf32>
    %4 = vector.broadcast %3 : vector<1x128xf32> to vector<128x128xf32>
    %5 = arith.addf %2, %4 : vector<128x128xf32>
    %cst_5 = arith.constant 0.000000e+00 : f32
    %6 = vector.broadcast %cst_5 : f32 to vector<128x128xf32>
    %7 = arith.maximumf %5, %6 : vector<128x128xf32>
    %8 = arith.truncf %7 : vector<128x128xf32> to vector<128x128xbf16>
    %c0_6 = arith.constant 0 : index
    %c0_7 = arith.constant 0 : index
    %9 = vector.load %arg5[%c0_6, %c0_7] : memref<128x128xbf16, #tpu.memory_space<vmem>>, vector<128x128xbf16>
    tpu.vector_store %arg5[%c0_6, %c0_7], %8 {strides = array<i32>} : memref<128x128xbf16, #tpu.memory_space<vmem>>, vector<128x128xbf16>,
    return
  }
  func.func @transform_0(%arg0: i32, %arg1: i32) -> (i32, i32) {
    %c0_i32 = arith.constant 0 : i32
    %c0_i32_0 = arith.constant 0 : i32
    return %arg0, %c0_i32 : i32, i32
  }
  func.func @transform_1(%arg0: i32, %arg1: i32) -> (i32, i32) {
    %c0_i32 = arith.constant 0 : i32
    %c0_i32_0 = arith.constant 0 : i32
    return %c0_i32, %arg1 : i32, i32
  }
  func.func @transform_2(%arg0: i32, %arg1: i32) -> (i32, i32) {
    %c0_i32 = arith.constant 0 : i32
    %c0_i32_0 = arith.constant 0 : i32
    return %c0_i32, %arg1 : i32, i32
  }
  func.func @transform_3(%arg0: i32, %arg1: i32) -> (i32, i32) {
    %c0_i32 = arith.constant 0 : i32
    return %arg0, %arg1 : i32, i32
  }
}

module attributes {stable_mosaic.version = 11 : i64} {
  func.func @_mm_kernel(%arg0: i32, %arg1: i32, %arg2: memref<128x2304xbf16, #tpu.memory_space<vmem>>, %arg3: memref<2304x128xbf16, #tpu.memory_space<vmem>>, %arg4: memref<1x128xf32, #tpu.memory_space<vmem>>, %arg5: memref<128x128xbf16, #tpu.memory_space<vmem>>) attributes {dimension_semantics = [#tpu.dimension_semantics<parallel>, #tpu.dimension_semantics<parallel>], iteration_bounds = array<i64: 1, 1>, scalar_prefetch = 0 : i64, scratch_operands = 0 : i64, tpu.core_type = #tpu.core_type<tc>, window_params = [{transform_indices = @transform_0, window_bounds = array<i64: 128, 2304>}, {transform_indices = @transform_1, window_bounds = array<i64: 2304, 128>}, {transform_indices = @transform_2, window_bounds = array<i64: 1, 128>}, {transform_indices = @transform_3, window_bounds = array<i64: 128, 128>}]} {
    %c0 = arith.constant 0 : index
    %c0_0 = arith.constant 0 : index
    %0 = vector.load %arg2[%c0, %c0_0] : memref<128x2304xbf16, #tpu.memory_space<vmem>>, vector<128x2304xbf16>
    %c0_1 = arith.constant 0 : index
    %c0_2 = arith.constant 0 : index
    %1 = vector.load %arg3[%c0_1, %c0_2] : memref<2304x128xbf16, #tpu.memory_space<vmem>>, vector<2304x128xbf16>
    %cst = arith.constant dense<0.000000e+00> : vector<128x128xf32>
    %2 = tpu.matmul %0, %1, %cst {dimension_numbers = #tpu.dot_dimension_numbers<[1], [0], [0], [1], [0, 0, 1, 1], [], []>} : vector<128x2304xbf16>, vector<2304x128xbf16>, vector<128x128xf32> -> vector<128x128xf32>
    %c0_3 = arith.constant 0 : index
    %c0_4 = arith.constant 0 : index
    %3 = vector.load %arg4[%c0_3, %c0_4] : memref<1x128xf32, #tpu.memory_space<vmem>>, vector<1x128xf32>
    %4 = vector.broadcast %3 : vector<1x128xf32> to vector<128x128xf32>
    %5 = arith.addf %2, %4 : vector<128x128xf32>
    %cst_5 = arith.constant 0.000000e+00 : f32
    %6 = vector.broadcast %cst_5 : f32 to vector<128x128xf32>
    %7 = arith.maximumf %5, %6 : vector<128x128xf32>
    %8 = arith.truncf %7 : vector<128x128xf32> to vector<128x128xbf16>
    %c0_6 = arith.constant 0 : index
    %c0_7 = arith.constant 0 : index
    %9 = vector.load %arg5[%c0_6, %c0_7] : memref<128x128xbf16, #tpu.memory_space<vmem>>, vector<128x128xbf16>
    tpu.vector_store %arg5[%c0_6, %c0_7], %8 {strides = array<i32>} : memref<128x128xbf16, #tpu.memory_space<vmem>>, vector<128x128xbf16>,
    return
  }
  func.func @transform_0(%arg0: i32, %arg1: i32) -> (i32, i32) {
    %c0_i32 = arith.constant 0 : i32
    %c0_i32_0 = arith.constant 0 : i32
    return %arg0, %c0_i32 : i32, i32
  }
  func.func @transform_1(%arg0: i32, %arg1: i32) -> (i32, i32) {
    %c0_i32 = arith.constant 0 : i32
    %c0_i32_0 = arith.constant 0 : i32
    return %c0_i32, %arg1 : i32, i32
  }
  func.func @transform_2(%arg0: i32, %arg1: i32) -> (i32, i32) {
    %c0_i32 = arith.constant 0 : i32
    %c0_i32_0 = arith.constant 0 : i32
    return %c0_i32, %arg1 : i32, i32
  }
  func.func @transform_3(%arg0: i32, %arg1: i32) -> (i32, i32) {
    %c0_i32 = arith.constant 0 : i32
    return %arg0, %arg1 : i32, i32
  }
}

module attributes {stable_mosaic.version = 11 : i64} {
  func.func @_mm2_kernel(%arg0: i32, %arg1: memref<128x1152xbf16, #tpu.memory_space<vmem>>, %arg2: memref<1152x128xbf16, #tpu.memory_space<vmem>>, %arg3: memref<1x128xf32, #tpu.memory_space<vmem>>, %arg4: memref<128x128xbf16, #tpu.memory_space<vmem>>, %arg5: memref<1x128xf32, #tpu.memory_space<vmem>>, %arg6: memref<128x128xf32, #tpu.memory_space<vmem>>) attributes {dimension_semantics = [#tpu.dimension_semantics<parallel>], iteration_bounds = array<i64: 1>, scalar_prefetch = 0 : i64, scratch_operands = 0 : i64, tpu.core_type = #tpu.core_type<tc>, window_params = [{transform_indices = @transform_0, window_bounds = array<i64: 128, 1152>}, {pipeline_mode = #tpu.pipeline_mode<synchronous>, transform_indices = @transform_1, window_bounds = array<i64: 1152, 128>}, {pipeline_mode = #tpu.pipeline_mode<synchronous>, transform_indices = @transform_2, window_bounds = array<i64: 1, 128>}, {pipeline_mode = #tpu.pipeline_mode<synchronous>, transform_indices = @transform_3, window_bounds = array<i64: 128, 128>}, {pipeline_mode = #tpu.pipeline_mode<synchronous>, transform_indices = @transform_4, window_bounds = array<i64: 1, 128>}, {transform_indices = @transform_5, window_bounds = array<i64: 128, 128>}]} {
    %c0 = arith.constant 0 : index
    %c0_0 = arith.constant 0 : index
    %0 = vector.load %arg1[%c0, %c0_0] : memref<128x1152xbf16, #tpu.memory_space<vmem>>, vector<128x1152xbf16>
    %c0_1 = arith.constant 0 : index
    %c0_2 = arith.constant 0 : index
    %1 = vector.load %arg2[%c0_1, %c0_2] : memref<1152x128xbf16, #tpu.memory_space<vmem>>, vector<1152x128xbf16>
    %cst = arith.constant dense<0.000000e+00> : vector<128x128xf32>
    %2 = tpu.matmul %0, %1, %cst {dimension_numbers = #tpu.dot_dimension_numbers<[1], [0], [0], [1], [0, 0, 1, 1], [], []>} : vector<128x1152xbf16>, vector<1152x128xbf16>, vector<128x128xf32> -> vector<128x128xf32>
    %c0_3 = arith.constant 0 : index
    %c0_4 = arith.constant 0 : index
    %3 = vector.load %arg3[%c0_3, %c0_4] : memref<1x128xf32, #tpu.memory_space<vmem>>, vector<1x128xf32>
    %4 = vector.broadcast %3 : vector<1x128xf32> to vector<128x128xf32>
    %5 = arith.addf %2, %4 : vector<128x128xf32>
    %cst_5 = arith.constant 0.000000e+00 : f32
    %6 = vector.broadcast %cst_5 : f32 to vector<128x128xf32>
    %7 = arith.maximumf %5, %6 : vector<128x128xf32>
    %8 = arith.truncf %7 : vector<128x128xf32> to vector<128x128xbf16>
    %c0_6 = arith.constant 0 : index
    %c0_7 = arith.constant 0 : index
    %9 = vector.load %arg4[%c0_6, %c0_7] : memref<128x128xbf16, #tpu.memory_space<vmem>>, vector<128x128xbf16>
    %cst_8 = arith.constant dense<0.000000e+00> : vector<128x128xf32>
    %10 = tpu.matmul %8, %9, %cst_8 {dimension_numbers = #tpu.dot_dimension_numbers<[1], [0], [0], [1], [0, 0, 1, 1], [], []>} : vector<128x128xbf16>, vector<128x128xbf16>, vector<128x128xf32> -> vector<128x128xf32>
    %c0_9 = arith.constant 0 : index
    %c0_10 = arith.constant 0 : index
    %11 = vector.load %arg5[%c0_9, %c0_10] : memref<1x128xf32, #tpu.memory_space<vmem>>, vector<1x128xf32>
    %12 = vector.broadcast %11 : vector<1x128xf32> to vector<128x128xf32>
    %13 = arith.addf %10, %12 : vector<128x128xf32>
    %c0_11 = arith.constant 0 : index
    %c0_12 = arith.constant 0 : index
    %14 = vector.load %arg6[%c0_11, %c0_12] : memref<128x128xf32, #tpu.memory_space<vmem>>, vector<128x128xf32>
    tpu.vector_store %arg6[%c0_11, %c0_12], %13 {strides = array<i32>} : memref<128x128xf32, #tpu.memory_space<vmem>>, vector<128x128xf32>,
    return
  }
  func.func @transform_0(%arg0: i32) -> (i32, i32) {
    %c0_i32 = arith.constant 0 : i32
    %c0_i32_0 = arith.constant 0 : i32
    return %arg0, %c0_i32 : i32, i32
  }
  func.func @transform_1(%arg0: i32) -> (i32, i32) {
    %c0_i32 = arith.constant 0 : i32
    %c0_i32_0 = arith.constant 0 : i32
    %c0_i32_1 = arith.constant 0 : i32
    return %c0_i32, %c0_i32_0 : i32, i32
  }
  func.func @transform_2(%arg0: i32) -> (i32, i32) {
    %c0_i32 = arith.constant 0 : i32
    %c0_i32_0 = arith.constant 0 : i32
    %c0_i32_1 = arith.constant 0 : i32
    return %c0_i32, %c0_i32_0 : i32, i32
  }
  func.func @transform_3(%arg0: i32) -> (i32, i32) {
    %c0_i32 = arith.constant 0 : i32
    %c0_i32_0 = arith.constant 0 : i32
    %c0_i32_1 = arith.constant 0 : i32
    return %c0_i32, %c0_i32_0 : i32, i32
  }
  func.func @transform_4(%arg0: i32) -> (i32, i32) {
    %c0_i32 = arith.constant 0 : i32
    %c0_i32_0 = arith.constant 0 : i32
    %c0_i32_1 = arith.constant 0 : i32
    return %c0_i32, %c0_i32_0 : i32, i32
  }
  func.func @transform_5(%arg0: i32) -> (i32, i32) {
    %c0_i32 = arith.constant 0 : i32
    %c0_i32_0 = arith.constant 0 : i32
    return %arg0, %c0_i32 : i32, i32
  }
}

</mosaic_0001>

<llo_original>
// kernel: coanet_forward.8
$region0: #{coanet_forward.8}
  #allocation0 [shape = 'u32[]', space=smem, size = 0x4, offset = 0x4, fixed_abs, tag = 'smem constant byte address 0x4 - core index']
  #allocation1 [shape = 'u32[144,128]{1,0:T(1,128)}', space=vmem, size = 0x12000, scoped, tag = 'internal scratch']
  %s0 = inlined_call_operand.vmem [shape: bf16[128,1152], index: 0, kind: input, shape index: {}]
  %s1 = inlined_call_operand.vmem [shape: bf16[1152,128], index: 1, kind: input, shape index: {}]
  %s2 = inlined_call_operand.vmem [shape: f32[1,128], index: 2, kind: input, shape index: {}]
  %s3 = inlined_call_operand.vmem [shape: bf16[128,128], index: 3, kind: output, shape index: {}]
  %s4 = sld [smem:[#allocation0]]
  $region22: #{coanet_forward.8} parent=0
    _
  %s6 = ssub.s32 1, %s4
  %s7 = scalar_select 0, %s6, %s4
  // Predicated region
  $region2: #{coanet_forward.8} parent=0 // pred_check
    _
  $region3: #{coanet_forward.8} parent=0 // pred_check_branch
    %9 = sbr.rel (0) target = $region5
  $region4: #{coanet_forward.8} parent=0 // pred_region
    _
  $region5: #{coanet_forward.8} parent=0 // pred_fallthru
    _
  // Predicated region
  $region6: #{coanet_forward.8} parent=0 // pred_check
    _
  $region7: #{coanet_forward.8} parent=0 // pred_check_branch
    %11 = sbr.rel (0) target = $region9
  $region8: #{coanet_forward.8} parent=0 // pred_region
    _
  $region9: #{coanet_forward.8} parent=0 // pred_fallthru
    _
  // Predicated region
  $region10: #{coanet_forward.8} parent=0 // pred_check
    _
  $region11: #{coanet_forward.8} parent=0 // pred_check_branch
    %13 = sbr.rel (0) target = $region13
  $region12: #{coanet_forward.8} parent=0 // pred_region
    _
  $region13: #{coanet_forward.8} parent=0 // pred_fallthru
    _
  %v15 = vld [vmem:[%s0] sm:$0xff]
  %v16 = vld [vmem:[%s0 + $0x8] sm:$0xff]
  %v17 = vld [vmem:[%s0 + $0x10] sm:$0xff]
  %v18 = vld [vmem:[%s0 + $0x18] sm:$0xff]
  %v19 = vld [vmem:[%s0 + $0x20] sm:$0xf]
  %v20 = vld [vmem:[%s0 + $0x24] sm:$0xff]
  %v21 = vld [vmem:[%s0 + $0x2c] sm:$0xff]
  %v22 = vld [vmem:[%s0 + $0x34] sm:$0xff]
  %v23 = vld [vmem:[%s0 + $0x3c] sm:$0xff]
  %v24 = vld [vmem:[%s0 + $0x44] sm:$0xf]
  %v25 = vld [vmem:[%s0 + $0x48] sm:$0xff]
  %v26 = vld [vmem:[%s0 + $0x50] sm:$0xff]
  %v27 = vld [vmem:[%s0 + $0x58] sm:$0xff]
  %v28 = vld [vmem:[%s0 + $0x60] sm:$0xff]
  %v29 = vld [vmem:[%s0 + $0x68] sm:$0xf]
  %v30 = vld [vmem:[%s0 + $0x6c] sm:$0xff]
  %v31 = vld [vmem:[%s0 + $0x74] sm:$0xff]
  %v32 = vld [vmem:[%s0 + $0x7c] sm:$0xff]
  %v33 = vld [vmem:[%s0 + $0x84] sm:$0xff]
  %v34 = vld [vmem:[%s0 + $0x8c] sm:$0xf]
  %v35 = vld [vmem:[%s0 + $0x90] sm:$0xff]
  %v36 = vld [vmem:[%s0 + $0x98] sm:$0xff]
  %v37 = vld [vmem:[%s0 + $0xa0] sm:$0xff]
  %v38 = vld [vmem:[%s0 + $0xa8] sm:$0xff]
  %v39 = vld [vmem:[%s0 + $0xb0] sm:$0xf]
  %v40 = vld [vmem:[%s0 + $0xb4] sm:$0xff]
  %v41 = vld [vmem:[%s0 + $0xbc] sm:$0xff]
  %v42 = vld [vmem:[%s0 + $0xc4] sm:$0xff]
  %v43 = vld [vmem:[%s0 + $0xcc] sm:$0xff]
  %v44 = vld [vmem:[%s0 + $0xd4] sm:$0xf]
  %v45 = vld [vmem:[%s0 + $0xd8] sm:$0xff]
  %v46 = vld [vmem:[%s0 + $0xe0] sm:$0xff]
  %v47 = vld [vmem:[%s0 + $0xe8] sm:$0xff]
  %v48 = vld [vmem:[%s0 + $0xf0] sm:$0xff]
  %v49 = vld [vmem:[%s0 + $0xf8] sm:$0xf]
  %v50 = vld [vmem:[%s0 + $0xfc] sm:$0xff]
  %v51 = vld [vmem:[%s0 + $0x104] sm:$0xff]
  %v52 = vld [vmem:[%s0 + $0x10c] sm:$0xff]
  %v53 = vld [vmem:[%s0 + $0x114] sm:$0xff]
  %v54 = vld [vmem:[%s0 + $0x11c] sm:$0xf]
  %v55 = vld [vmem:[%s0 + $0x120] sm:$0xff]
  %v56 = vld [vmem:[%s0 + $0x128] sm:$0xff]
  %v57 = vld [vmem:[%s0 + $0x130] sm:$0xff]
  %v58 = vld [vmem:[%s0 + $0x138] sm:$0xff]
  %v59 = vld [vmem:[%s0 + $0x140] sm:$0xf]
  %v60 = vld [vmem:[%s0 + $0x144] sm:$0xff]
  %v61 = vld [vmem:[%s0 + $0x14c] sm:$0xff]
  %v62 = vld [vmem:[%s0 + $0x154] sm:$0xff]
  %v63 = vld [vmem:[%s0 + $0x15c] sm:$0xff]
  %v64 = vld [vmem:[%s0 + $0x164] sm:$0xf]
  %v65 = vld [vmem:[%s0 + $0x168] sm:$0xff]
  %v66 = vld [vmem:[%s0 + $0x170] sm:$0xff]
  %v67 = vld [vmem:[%s0 + $0x178] sm:$0xff]
  %v68 = vld [vmem:[%s0 + $0x180] sm:$0xff]
  %v69 = vld [vmem:[%s0 + $0x188] sm:$0xf]
  %v70 = vld [vmem:[%s0 + $0x18c] sm:$0xff]
  %v71 = vld [vmem:[%s0 + $0x194] sm:$0xff]
  %v72 = vld [vmem:[%s0 + $0x19c] sm:$0xff]
  %v73 = vld [vmem:[%s0 + $0x1a4] sm:$0xff]
  %v74 = vld [vmem:[%s0 + $0x1ac] sm:$0xf]
  %v75 = vld [vmem:[%s0 + $0x1b0] sm:$0xff]
  %v76 = vld [vmem:[%s0 + $0x1b8] sm:$0xff]
  %v77 = vld [vmem:[%s0 + $0x1c0] sm:$0xff]
  %v78 = vld [vmem:[%s0 + $0x1c8] sm:$0xff]
  %v79 = vld [vmem:[%s0 + $0x1d0] sm:$0xf]
  %v80 = vld [vmem:[%s0 + $0x1d4] sm:$0xff]
  %v81 = vld [vmem:[%s0 + $0x1dc] sm:$0xff]
  %v82 = vld [vmem:[%s0 + $0x1e4] sm:$0xff]
  %v83 = vld [vmem:[%s0 + $0x1ec] sm:$0xff]
  %v84 = vld [vmem:[%s0 + $0x1f4] sm:$0xf]
  %v85 = vld [vmem:[%s0 + $0x1f8] sm:$0xff]
  %v86 = vld [vmem:[%s0 + $0x200] sm:$0xff]
  %v87 = vld [vmem:[%s0 + $0x208] sm:$0xff]
  %v88 = vld [vmem:[%s0 + $0x210] sm:$0xff]
  %v89 = vld [vmem:[%s0 + $0x218] sm:$0xf]
  %v90 = vld [vmem:[%s0 + $0x21c] sm:$0xff]
  %v91 = vld [vmem:[%s0 + $0x224] sm:$0xff]
  %v92 = vld [vmem:[%s0 + $0x22c] sm:$0xff]
  %v93 = vld [vmem:[%s0 + $0x234] sm:$0xff]
  %v94 = vld [vmem:[%s0 + $0x23c] sm:$0xf]
  %v95 = vld [vmem:[%s1] sm:$0xf]
  %v96 = vld [vmem:[%s1 + $0x4] sm:$0xf]
  %v97 = vld [vmem:[%s1 + $0x8] sm:$0xf]
  %v98 = vld [vmem:[%s1 + $0xc] sm:$0xf]
  %v99 = vld [vmem:[%s1 + $0x10] sm:$0xf]
  %v100 = vld [vmem:[%s1 + $0x14] sm:$0xf]
  %v101 = vld [vmem:[%s1 + $0x18] sm:$0xf]
  %v102 = vld [vmem:[%s1 + $0x1c] sm:$0xf]
  %v103 = vld [vmem:[%s1 + $0x20] sm:$0xf]
  %v104 = vld [vmem:[%s1 + $0x24] sm:$0xf]
  %v105 = vld [vmem:[%s1 + $0x28] sm:$0xf]
  %v106 = vld [vmem:[%s1 + $0x2c] sm:$0xf]
  %v107 = vld [vmem:[%s1 + $0x30] sm:$0xf]
  %v108 = vld [vmem:[%s1 + $0x34] sm:$0xf]
  %v109 = vld [vmem:[%s1 + $0x38] sm:$0xf]
  %v110 = vld [vmem:[%s1 + $0x3c] sm:$0xf]
  %v111 = vld [vmem:[%s1 + $0x40] sm:$0xf]
  %v112 = vld [vmem:[%s1 + $0x44] sm:$0xf]
  %v113 = vld [vmem:[%s1 + $0x48] sm:$0xf]
  %v114 = vld [vmem:[%s1 + $0x4c] sm:$0xf]
  %v115 = vld [vmem:[%s1 + $0x50] sm:$0xf]
  %v116 = vld [vmem:[%s1 + $0x54] sm:$0xf]
  %v117 = vld [vmem:[%s1 + $0x58] sm:$0xf]
  %v118 = vld [vmem:[%s1 + $0x5c] sm:$0xf]
  %v119 = vld [vmem:[%s1 + $0x60] sm:$0xf]
  %v120 = vld [vmem:[%s1 + $0x64] sm:$0xf]
  %v121 = vld [vmem:[%s1 + $0x68] sm:$0xf]
  %v122 = vld [vmem:[%s1 + $0x6c] sm:$0xf]
  %v123 = vld [vmem:[%s1 + $0x70] sm:$0xf]
  %v124 = vld [vmem:[%s1 + $0x74] sm:$0xf]
  %v125 = vld [vmem:[%s1 + $0x78] sm:$0xf]
  %v126 = vld [vmem:[%s1 + $0x7c] sm:$0xf]
  %v127 = vld [vmem:[%s1 + $0x80] sm:$0xf]
  %v128 = vld [vmem:[%s1 + $0x84] sm:$0xf]
  %v129 = vld [vmem:[%s1 + $0x88] sm:$0xf]
  %v130 = vld [vmem:[%s1 + $0x8c] sm:$0xf]
  %v131 = vld [vmem:[%s1 + $0x90] sm:$0xf]
  %v132 = vld [vmem:[%s1 + $0x94] sm:$0xf]
  %v133 = vld [vmem:[%s1 + $0x98] sm:$0xf]
  %v134 = vld [vmem:[%s1 + $0x9c] sm:$0xf]
  %v135 = vld [vmem:[%s1 + $0xa0] sm:$0xf]
  %v136 = vld [vmem:[%s1 + $0xa4] sm:$0xf]
  %v137 = vld [vmem:[%s1 + $0xa8] sm:$0xf]
  %v138 = vld [vmem:[%s1 + $0xac] sm:$0xf]
  %v139 = vld [vmem:[%s1 + $0xb0] sm:$0xf]
  %v140 = vld [vmem:[%s1 + $0xb4] sm:$0xf]
  %v141 = vld [vmem:[%s1 + $0xb8] sm:$0xf]
  %v142 = vld [vmem:[%s1 + $0xbc] sm:$0xf]
  %v143 = vld [vmem:[%s1 + $0xc0] sm:$0xf]
  %v144 = vld [vmem:[%s1 + $0xc4] sm:$0xf]
  %v145 = vld [vmem:[%s1 + $0xc8] sm:$0xf]
  %v146 = vld [vmem:[%s1 + $0xcc] sm:$0xf]
  %v147 = vld [vmem:[%s1 + $0xd0] sm:$0xf]
  %v148 = vld [vmem:[%s1 + $0xd4] sm:$0xf]
  %v149 = vld [vmem:[%s1 + $0xd8] sm:$0xf]
  %v150 = vld [vmem:[%s1 + $0xdc] sm:$0xf]
  %v151 = vld [vmem:[%s1 + $0xe0] sm:$0xf]
  %v152 = vld [vmem:[%s1 + $0xe4] sm:$0xf]
  %v153 = vld [vmem:[%s1 + $0xe8] sm:$0xf]
  %v154 = vld [vmem:[%s1 + $0xec] sm:$0xf]
  %v155 = vld [vmem:[%s1 + $0xf0] sm:$0xf]
  %v156 = vld [vmem:[%s1 + $0xf4] sm:$0xf]
  %v157 = vld [vmem:[%s1 + $0xf8] sm:$0xf]
  %v158 = vld [vmem:[%s1 + $0xfc] sm:$0xf]
  %v159 = vld [vmem:[%s1 + $0x100] sm:$0xf]
  %v160 = vld [vmem:[%s1 + $0x104] sm:$0xf]
  %v161 = vld [vmem:[%s1 + $0x108] sm:$0xf]
  %v162 = vld [vmem:[%s1 + $0x10c] sm:$0xf]
  %v163 = vld [vmem:[%s1 + $0x110] sm:$0xf]
  %v164 = vld [vmem:[%s1 + $0x114] sm:$0xf]
  %v165 = vld [vmem:[%s1 + $0x118] sm:$0xf]
  %v166 = vld [vmem:[%s1 + $0x11c] sm:$0xf]
  %v167 = vld [vmem:[%s1 + $0x120] sm:$0xf]
  %v168 = vld [vmem:[%s1 + $0x124] sm:$0xf]
  %v169 = vld [vmem:[%s1 + $0x128] sm:$0xf]
  %v170 = vld [vmem:[%s1 + $0x12c] sm:$0xf]
  %v171 = vld [vmem:[%s1 + $0x130] sm:$0xf]
  %v172 = vld [vmem:[%s1 + $0x134] sm:$0xf]
  %v173 = vld [vmem:[%s1 + $0x138] sm:$0xf]
  %v174 = vld [vmem:[%s1 + $0x13c] sm:$0xf]
  %v175 = vld [vmem:[%s1 + $0x140] sm:$0xf]
  %v176 = vld [vmem:[%s1 + $0x144] sm:$0xf]
  %v177 = vld [vmem:[%s1 + $0x148] sm:$0xf]
  %v178 = vld [vmem:[%s1 + $0x14c] sm:$0xf]
  %v179 = vld [vmem:[%s1 + $0x150] sm:$0xf]
  %v180 = vld [vmem:[%s1 + $0x154] sm:$0xf]
  %v181 = vld [vmem:[%s1 + $0x158] sm:$0xf]
  %v182 = vld [vmem:[%s1 + $0x15c] sm:$0xf]
  %v183 = vld [vmem:[%s1 + $0x160] sm:$0xf]
  %v184 = vld [vmem:[%s1 + $0x164] sm:$0xf]
  %v185 = vld [vmem:[%s1 + $0x168] sm:$0xf]
  %v186 = vld [vmem:[%s1 + $0x16c] sm:$0xf]
  %v187 = vld [vmem:[%s1 + $0x170] sm:$0xf]
  %v188 = vld [vmem:[%s1 + $0x174] sm:$0xf]
  %v189 = vld [vmem:[%s1 + $0x178] sm:$0xf]
  %v190 = vld [vmem:[%s1 + $0x17c] sm:$0xf]
  %v191 = vld [vmem:[%s1 + $0x180] sm:$0xf]
  %v192 = vld [vmem:[%s1 + $0x184] sm:$0xf]
  %v193 = vld [vmem:[%s1 + $0x188] sm:$0xf]
  %v194 = vld [vmem:[%s1 + $0x18c] sm:$0xf]
  %v195 = vld [vmem:[%s1 + $0x190] sm:$0xf]
  %v196 = vld [vmem:[%s1 + $0x194] sm:$0xf]
  %v197 = vld [vmem:[%s1 + $0x198] sm:$0xf]
  %v198 = vld [vmem:[%s1 + $0x19c] sm:$0xf]
  %v199 = vld [vmem:[%s1 + $0x1a0] sm:$0xf]
  %v200 = vld [vmem:[%s1 + $0x1a4] sm:$0xf]
  %v201 = vld [vmem:[%s1 + $0x1a8] sm:$0xf]
  %v202 = vld [vmem:[%s1 + $0x1ac] sm:$0xf]
  %v203 = vld [vmem:[%s1 + $0x1b0] sm:$0xf]
  %v204 = vld [vmem:[%s1 + $0x1b4] sm:$0xf]
  %v205 = vld [vmem:[%s1 + $0x1b8] sm:$0xf]
  %v206 = vld [vmem:[%s1 + $0x1bc] sm:$0xf]
  %v207 = vld [vmem:[%s1 + $0x1c0] sm:$0xf]
  %v208 = vld [vmem:[%s1 + $0x1c4] sm:$0xf]
  %v209 = vld [vmem:[%s1 + $0x1c8] sm:$0xf]
  %v210 = vld [vmem:[%s1 + $0x1cc] sm:$0xf]
  %v211 = vld [vmem:[%s1 + $0x1d0] sm:$0xf]
  %v212 = vld [vmem:[%s1 + $0x1d4] sm:$0xf]
  %v213 = vld [vmem:[%s1 + $0x1d8] sm:$0xf]
  %v214 = vld [vmem:[%s1 + $0x1dc] sm:$0xf]
  %v215 = vld [vmem:[%s1 + $0x1e0] sm:$0xf]
  %v216 = vld [vmem:[%s1 + $0x1e4] sm:$0xf]
  %v217 = vld [vmem:[%s1 + $0x1e8] sm:$0xf]
  %v218 = vld [vmem:[%s1 + $0x1ec] sm:$0xf]
  %v219 = vld [vmem:[%s1 + $0x1f0] sm:$0xf]
  %v220 = vld [vmem:[%s1 + $0x1f4] sm:$0xf]
  %v221 = vld [vmem:[%s1 + $0x1f8] sm:$0xf]
  %v222 = vld [vmem:[%s1 + $0x1fc] sm:$0xf]
  %v223 = vld [vmem:[%s1 + $0x200] sm:$0xf]
  %v224 = vld [vmem:[%s1 + $0x204] sm:$0xf]
  %v225 = vld [vmem:[%s1 + $0x208] sm:$0xf]
  %v226 = vld [vmem:[%s1 + $0x20c] sm:$0xf]
  %v227 = vld [vmem:[%s1 + $0x210] sm:$0xf]
  %v228 = vld [vmem:[%s1 + $0x214] sm:$0xf]
  %v229 = vld [vmem:[%s1 + $0x218] sm:$0xf]
  %v230 = vld [vmem:[%s1 + $0x21c] sm:$0xf]
  %v231 = vld [vmem:[%s1 + $0x220] sm:$0xf]
  %v232 = vld [vmem:[%s1 + $0x224] sm:$0xf]
  %v233 = vld [vmem:[%s1 + $0x228] sm:$0xf]
  %v234 = vld [vmem:[%s1 + $0x22c] sm:$0xf]
  %v235 = vld [vmem:[%s1 + $0x230] sm:$0xf]
  %v236 = vld [vmem:[%s1 + $0x234] sm:$0xf]
  %v237 = vld [vmem:[%s1 + $0x238] sm:$0xf]
  %v238 = vld [vmem:[%s1 + $0x23c] sm:$0xf]
  %v239 = vld [vmem:[%s2] sm:$0x1]
  %v241 = vlaneseq
  %v242 = vshrl.u32 %v241, 7
  %v243 = vsub.s32 0, %v242
  %v244 = vrot.slane %v239, %v243
  %v326 = vunpack.c.l.b16 %v15
  %v327 = vunpack.c.h.b16 %v15
  %v328 = vunpack.c.l.b16 %v16
  %v329 = vunpack.c.h.b16 %v16
  %v330 = vunpack.c.l.b16 %v17
  %v331 = vunpack.c.h.b16 %v17
  %v332 = vunpack.c.l.b16 %v18
  %v333 = vunpack.c.h.b16 %v18
  %v334 = vunpack.c.l.b16 %v19
  %v335 = vunpack.c.l.b16 %v20
  %v336 = vunpack.c.h.b16 %v20
  %v337 = vunpack.c.l.b16 %v21
  %v338 = vunpack.c.h.b16 %v21
  %v339 = vunpack.c.l.b16 %v22
  %v340 = vunpack.c.h.b16 %v22
  %v341 = vunpack.c.l.b16 %v23
  %v342 = vunpack.c.h.b16 %v23
  %v343 = vunpack.c.l.b16 %v24
  %v344 = vunpack.c.l.b16 %v25
  %v345 = vunpack.c.h.b16 %v25
  %v346 = vunpack.c.l.b16 %v26
  %v347 = vunpack.c.h.b16 %v26
  %v348 = vunpack.c.l.b16 %v27
  %v349 = vunpack.c.h.b16 %v27
  %v350 = vunpack.c.l.b16 %v28
  %v351 = vunpack.c.h.b16 %v28
  %v352 = vunpack.c.l.b16 %v29
  %v353 = vunpack.c.l.b16 %v30
  %v354 = vunpack.c.h.b16 %v30
  %v355 = vunpack.c.l.b16 %v31
  %v356 = vunpack.c.h.b16 %v31
  %v357 = vunpack.c.l.b16 %v32
  %v358 = vunpack.c.h.b16 %v32
  %v359 = vunpack.c.l.b16 %v33
  %v360 = vunpack.c.h.b16 %v33
  %v361 = vunpack.c.l.b16 %v34
  %v362 = vunpack.c.l.b16 %v35
  %v363 = vunpack.c.h.b16 %v35
  %v364 = vunpack.c.l.b16 %v36
  %v365 = vunpack.c.h.b16 %v36
  %v366 = vunpack.c.l.b16 %v37
  %v367 = vunpack.c.h.b16 %v37
  %v368 = vunpack.c.l.b16 %v38
  %v369 = vunpack.c.h.b16 %v38
  %v370 = vunpack.c.l.b16 %v39
  %v371 = vunpack.c.l.b16 %v40
  %v372 = vunpack.c.h.b16 %v40
  %v373 = vunpack.c.l.b16 %v41
  %v374 = vunpack.c.h.b16 %v41
  %v375 = vunpack.c.l.b16 %v42
  %v376 = vunpack.c.h.b16 %v42
  %v377 = vunpack.c.l.b16 %v43
  %v378 = vunpack.c.h.b16 %v43
  %v379 = vunpack.c.l.b16 %v44
  %v380 = vunpack.c.l.b16 %v45
  %v381 = vunpack.c.h.b16 %v45
  %v382 = vunpack.c.l.b16 %v46
  %v383 = vunpack.c.h.b16 %v46
  %v384 = vunpack.c.l.b16 %v47
  %v385 = vunpack.c.h.b16 %v47
  %v386 = vunpack.c.l.b16 %v48
  %v387 = vunpack.c.h.b16 %v48
  %v388 = vunpack.c.l.b16 %v49
  %v389 = vunpack.c.l.b16 %v50
  %v390 = vunpack.c.h.b16 %v50
  %v391 = vunpack.c.l.b16 %v51
  %v392 = vunpack.c.h.b16 %v51
  %v393 = vunpack.c.l.b16 %v52
  %v394 = vunpack.c.h.b16 %v52
  %v395 = vunpack.c.l.b16 %v53
  %v396 = vunpack.c.h.b16 %v53
  %v397 = vunpack.c.l.b16 %v54
  %v398 = vunpack.c.l.b16 %v55
  %v399 = vunpack.c.h.b16 %v55
  %v400 = vunpack.c.l.b16 %v56
  %v401 = vunpack.c.h.b16 %v56
  %v402 = vunpack.c.l.b16 %v57
  %v403 = vunpack.c.h.b16 %v57
  %v404 = vunpack.c.l.b16 %v58
  %v405 = vunpack.c.h.b16 %v58
  %v406 = vunpack.c.l.b16 %v59
  %v407 = vunpack.c.l.b16 %v60
  %v408 = vunpack.c.h.b16 %v60
  %v409 = vunpack.c.l.b16 %v61
  %v410 = vunpack.c.h.b16 %v61
  %v411 = vunpack.c.l.b16 %v62
  %v412 = vunpack.c.h.b16 %v62
  %v413 = vunpack.c.l.b16 %v63
  %v414 = vunpack.c.h.b16 %v63
  %v415 = vunpack.c.l.b16 %v64
  %v416 = vunpack.c.l.b16 %v65
  %v417 = vunpack.c.h.b16 %v65
  %v418 = vunpack.c.l.b16 %v66
  %v419 = vunpack.c.h.b16 %v66
  %v420 = vunpack.c.l.b16 %v67
  %v421 = vunpack.c.h.b16 %v67
  %v422 = vunpack.c.l.b16 %v68
  %v423 = vunpack.c.h.b16 %v68
  %v424 = vunpack.c.l.b16 %v69
  %v425 = vunpack.c.l.b16 %v70
  %v426 = vunpack.c.h.b16 %v70
  %v427 = vunpack.c.l.b16 %v71
  %v428 = vunpack.c.h.b16 %v71
  %v429 = vunpack.c.l.b16 %v72
  %v430 = vunpack.c.h.b16 %v72
  %v431 = vunpack.c.l.b16 %v73
  %v432 = vunpack.c.h.b16 %v73
  %v433 = vunpack.c.l.b16 %v74
  %v434 = vunpack.c.l.b16 %v75
  %v435 = vunpack.c.h.b16 %v75
  %v436 = vunpack.c.l.b16 %v76
  %v437 = vunpack.c.h.b16 %v76
  %v438 = vunpack.c.l.b16 %v77
  %v439 = vunpack.c.h.b16 %v77
  %v440 = vunpack.c.l.b16 %v78
  %v441 = vunpack.c.h.b16 %v78
  %v442 = vunpack.c.l.b16 %v79
  %v443 = vunpack.c.l.b16 %v80
  %v444 = vunpack.c.h.b16 %v80
  %v445 = vunpack.c.l.b16 %v81
  %v446 = vunpack.c.h.b16 %v81
  %v447 = vunpack.c.l.b16 %v82
  %v448 = vunpack.c.h.b16 %v82
  %v449 = vunpack.c.l.b16 %v83
  %v450 = vunpack.c.h.b16 %v83
  %v451 = vunpack.c.l.b16 %v84
  %v452 = vunpack.c.l.b16 %v85
  %v453 = vunpack.c.h.b16 %v85
  %v454 = vunpack.c.l.b16 %v86
  %v455 = vunpack.c.h.b16 %v86
  %v456 = vunpack.c.l.b16 %v87
  %v457 = vunpack.c.h.b16 %v87
  %v458 = vunpack.c.l.b16 %v88
  %v459 = vunpack.c.h.b16 %v88
  %v460 = vunpack.c.l.b16 %v89
  %v461 = vunpack.c.l.b16 %v90
  %v462 = vunpack.c.h.b16 %v90
  %v463 = vunpack.c.l.b16 %v91
  %v464 = vunpack.c.h.b16 %v91
  %v465 = vunpack.c.l.b16 %v92
  %v466 = vunpack.c.h.b16 %v92
  %v467 = vunpack.c.l.b16 %v93
  %v468 = vunpack.c.h.b16 %v93
  %v469 = vunpack.c.l.b16 %v94
  %v470 = vpack.c.b16 %v335, %v326
  %v471 = vpack.c.b16 %v336, %v327
  %v472 = vpack.c.b16 %v337, %v328
  %v473 = vpack.c.b16 %v338, %v329
  %v474 = vpack.c.b16 %v339, %v330
  %v475 = vpack.c.b16 %v340, %v331
  %v476 = vpack.c.b16 %v341, %v332
  %v477 = vpack.c.b16 %v342, %v333
  %v478 = vpack.c.b16 %v343, %v334
  %v479 = vpack.c.b16 %v353, %v344
  %v480 = vpack.c.b16 %v354, %v345
  %v481 = vpack.c.b16 %v355, %v346
  %v482 = vpack.c.b16 %v356, %v347
  %v483 = vpack.c.b16 %v357, %v348
  %v484 = vpack.c.b16 %v358, %v349
  %v485 = vpack.c.b16 %v359, %v350
  %v486 = vpack.c.b16 %v360, %v351
  %v487 = vpack.c.b16 %v361, %v352
  %v488 = vpack.c.b16 %v371, %v362
  %v489 = vpack.c.b16 %v372, %v363
  %v490 = vpack.c.b16 %v373, %v364
  %v491 = vpack.c.b16 %v374, %v365
  %v492 = vpack.c.b16 %v375, %v366
  %v493 = vpack.c.b16 %v376, %v367
  %v494 = vpack.c.b16 %v377, %v368
  %v495 = vpack.c.b16 %v378, %v369
  %v496 = vpack.c.b16 %v379, %v370
  %v497 = vpack.c.b16 %v389, %v380
  %v498 = vpack.c.b16 %v390, %v381
  %v499 = vpack.c.b16 %v391, %v382
  %v500 = vpack.c.b16 %v392, %v383
  %v501 = vpack.c.b16 %v393, %v384
  %v502 = vpack.c.b16 %v394, %v385
  %v503 = vpack.c.b16 %v395, %v386
  %v504 = vpack.c.b16 %v396, %v387
  %v505 = vpack.c.b16 %v397, %v388
  %v506 = vpack.c.b16 %v407, %v398
  %v507 = vpack.c.b16 %v408, %v399
  %v508 = vpack.c.b16 %v409, %v400
  %v509 = vpack.c.b16 %v410, %v401
  %v510 = vpack.c.b16 %v411, %v402
  %v511 = vpack.c.b16 %v412, %v403
  %v512 = vpack.c.b16 %v413, %v404
  %v513 = vpack.c.b16 %v414, %v405
  %v514 = vpack.c.b16 %v415, %v406
  %v515 = vpack.c.b16 %v425, %v416
  %v516 = vpack.c.b16 %v426, %v417
  %v517 = vpack.c.b16 %v427, %v418
  %v518 = vpack.c.b16 %v428, %v419
  %v519 = vpack.c.b16 %v429, %v420
  %v520 = vpack.c.b16 %v430, %v421
  %v521 = vpack.c.b16 %v431, %v422
  %v522 = vpack.c.b16 %v432, %v423
  %v523 = vpack.c.b16 %v433, %v424
  %v524 = vpack.c.b16 %v443, %v434
  %v525 = vpack.c.b16 %v444, %v435
  %v526 = vpack.c.b16 %v445, %v436
  %v527 = vpack.c.b16 %v446, %v437
  %v528 = vpack.c.b16 %v447, %v438
  %v529 = vpack.c.b16 %v448, %v439
  %v530 = vpack.c.b16 %v449, %v440
  %v531 = vpack.c.b16 %v450, %v441
  %v532 = vpack.c.b16 %v451, %v442
  %v533 = vpack.c.b16 %v461, %v452
  %v534 = vpack.c.b16 %v462, %v453
  %v535 = vpack.c.b16 %v463, %v454
  %v536 = vpack.c.b16 %v464, %v455
  %v537 = vpack.c.b16 %v465, %v456
  %v538 = vpack.c.b16 %v466, %v457
  %v539 = vpack.c.b16 %v467, %v458
  %v540 = vpack.c.b16 %v468, %v459
  %v541 = vpack.c.b16 %v469, %v460
  %v758 = vunpack.c.l.b16 %v95
  %v759 = vunpack.c.l.b16 %v96
  %v760 = vunpack.c.l.b16 %v97
  %v761 = vunpack.c.l.b16 %v98
  %v762 = vunpack.c.l.b16 %v99
  %v763 = vunpack.c.l.b16 %v100
  %v764 = vunpack.c.l.b16 %v101
  %v765 = vunpack.c.l.b16 %v102
  %v766 = vunpack.c.l.b16 %v103
  %v767 = vunpack.c.l.b16 %v104
  %v768 = vunpack.c.l.b16 %v105
  %v769 = vunpack.c.l.b16 %v106
  %v770 = vunpack.c.l.b16 %v107
  %v771 = vunpack.c.l.b16 %v108
  %v772 = vunpack.c.l.b16 %v109
  %v773 = vunpack.c.l.b16 %v110
  %v774 = vunpack.c.l.b16 %v111
  %v775 = vunpack.c.l.b16 %v112
  %v776 = vunpack.c.l.b16 %v113
  %v777 = vunpack.c.l.b16 %v114
  %v778 = vunpack.c.l.b16 %v115
  %v779 = vunpack.c.l.b16 %v116
  %v780 = vunpack.c.l.b16 %v117
  %v781 = vunpack.c.l.b16 %v118
  %v782 = vunpack.c.l.b16 %v119
  %v783 = vunpack.c.l.b16 %v120
  %v784 = vunpack.c.l.b16 %v121
  %v785 = vunpack.c.l.b16 %v122
  %v786 = vunpack.c.l.b16 %v123
  %v787 = vunpack.c.l.b16 %v124
  %v788 = vunpack.c.l.b16 %v125
  %v789 = vunpack.c.l.b16 %v126
  %v790 = vunpack.c.l.b16 %v127
  %v791 = vunpack.c.l.b16 %v128
  %v792 = vunpack.c.l.b16 %v129
  %v793 = vunpack.c.l.b16 %v130
  %v794 = vunpack.c.l.b16 %v131
  %v795 = vunpack.c.l.b16 %v132
  %v796 = vunpack.c.l.b16 %v133
  %v797 = vunpack.c.l.b16 %v134
  %v798 = vunpack.c.l.b16 %v135
  %v799 = vunpack.c.l.b16 %v136
  %v800 = vunpack.c.l.b16 %v137
  %v801 = vunpack.c.l.b16 %v138
  %v802 = vunpack.c.l.b16 %v139
  %v803 = vunpack.c.l.b16 %v140
  %v804 = vunpack.c.l.b16 %v141
  %v805 = vunpack.c.l.b16 %v142
  %v806 = vunpack.c.l.b16 %v143
  %v807 = vunpack.c.l.b16 %v144
  %v808 = vunpack.c.l.b16 %v145
  %v809 = vunpack.c.l.b16 %v146
  %v810 = vunpack.c.l.b16 %v147
  %v811 = vunpack.c.l.b16 %v148
  %v812 = vunpack.c.l.b16 %v149
  %v813 = vunpack.c.l.b16 %v150
  %v814 = vunpack.c.l.b16 %v151
  %v815 = vunpack.c.l.b16 %v152
  %v816 = vunpack.c.l.b16 %v153
  %v817 = vunpack.c.l.b16 %v154
  %v818 = vunpack.c.l.b16 %v155
  %v819 = vunpack.c.l.b16 %v156
  %v820 = vunpack.c.l.b16 %v157
  %v821 = vunpack.c.l.b16 %v158
  %v822 = vunpack.c.l.b16 %v159
  %v823 = vunpack.c.l.b16 %v160
  %v824 = vunpack.c.l.b16 %v161
  %v825 = vunpack.c.l.b16 %v162
  %v826 = vunpack.c.l.b16 %v163
  %v827 = vunpack.c.l.b16 %v164
  %v828 = vunpack.c.l.b16 %v165
  %v829 = vunpack.c.l.b16 %v166
  %v830 = vunpack.c.l.b16 %v167
  %v831 = vunpack.c.l.b16 %v168
  %v832 = vunpack.c.l.b16 %v169
  %v833 = vunpack.c.l.b16 %v170
  %v834 = vunpack.c.l.b16 %v171
  %v835 = vunpack.c.l.b16 %v172
  %v836 = vunpack.c.l.b16 %v173
  %v837 = vunpack.c.l.b16 %v174
  %v838 = vunpack.c.l.b16 %v175
  %v839 = vunpack.c.l.b16 %v176
  %v840 = vunpack.c.l.b16 %v177
  %v841 = vunpack.c.l.b16 %v178
  %v842 = vunpack.c.l.b16 %v179
  %v843 = vunpack.c.l.b16 %v180
  %v844 = vunpack.c.l.b16 %v181
  %v845 = vunpack.c.l.b16 %v182
  %v846 = vunpack.c.l.b16 %v183
  %v847 = vunpack.c.l.b16 %v184
  %v848 = vunpack.c.l.b16 %v185
  %v849 = vunpack.c.l.b16 %v186
  %v850 = vunpack.c.l.b16 %v187
  %v851 = vunpack.c.l.b16 %v188
  %v852 = vunpack.c.l.b16 %v189
  %v853 = vunpack.c.l.b16 %v190
  %v854 = vunpack.c.l.b16 %v191
  %v855 = vunpack.c.l.b16 %v192
  %v856 = vunpack.c.l.b16 %v193
  %v857 = vunpack.c.l.b16 %v194
  %v858 = vunpack.c.l.b16 %v195
  %v859 = vunpack.c.l.b16 %v196
  %v860 = vunpack.c.l.b16 %v197
  %v861 = vunpack.c.l.b16 %v198
  %v862 = vunpack.c.l.b16 %v199
  %v863 = vunpack.c.l.b16 %v200
  %v864 = vunpack.c.l.b16 %v201
  %v865 = vunpack.c.l.b16 %v202
  %v866 = vunpack.c.l.b16 %v203
  %v867 = vunpack.c.l.b16 %v204
  %v868 = vunpack.c.l.b16 %v205
  %v869 = vunpack.c.l.b16 %v206
  %v870 = vunpack.c.l.b16 %v207
  %v871 = vunpack.c.l.b16 %v208
  %v872 = vunpack.c.l.b16 %v209
  %v873 = vunpack.c.l.b16 %v210
  %v874 = vunpack.c.l.b16 %v211
  %v875 = vunpack.c.l.b16 %v212
  %v876 = vunpack.c.l.b16 %v213
  %v877 = vunpack.c.l.b16 %v214
  %v878 = vunpack.c.l.b16 %v215
  %v879 = vunpack.c.l.b16 %v216
  %v880 = vunpack.c.l.b16 %v217
  %v881 = vunpack.c.l.b16 %v218
  %v882 = vunpack.c.l.b16 %v219
  %v883 = vunpack.c.l.b16 %v220
  %v884 = vunpack.c.l.b16 %v221
  %v885 = vunpack.c.l.b16 %v222
  %v886 = vunpack.c.l.b16 %v223
  %v887 = vunpack.c.l.b16 %v224
  %v888 = vunpack.c.l.b16 %v225
  %v889 = vunpack.c.l.b16 %v226
  %v890 = vunpack.c.l.b16 %v227
  %v891 = vunpack.c.l.b16 %v228
  %v892 = vunpack.c.l.b16 %v229
  %v893 = vunpack.c.l.b16 %v230
  %v894 = vunpack.c.l.b16 %v231
  %v895 = vunpack.c.l.b16 %v232
  %v896 = vunpack.c.l.b16 %v233
  %v897 = vunpack.c.l.b16 %v234
  %v898 = vunpack.c.l.b16 %v235
  %v899 = vunpack.c.l.b16 %v236
  %v900 = vunpack.c.l.b16 %v237
  %v901 = vunpack.c.l.b16 %v238
  %v902 = vpack.c.b16 %v759, %v758
  %v903 = vpack.c.b16 %v761, %v760
  %v904 = vpack.c.b16 %v763, %v762
  %v905 = vpack.c.b16 %v765, %v764
  %v906 = vpack.c.b16 %v767, %v766
  %v907 = vpack.c.b16 %v769, %v768
  %v908 = vpack.c.b16 %v771, %v770
  %v909 = vpack.c.b16 %v773, %v772
  %v910 = vpack.c.b16 %v775, %v774
  %v911 = vpack.c.b16 %v777, %v776
  %v912 = vpack.c.b16 %v779, %v778
  %v913 = vpack.c.b16 %v781, %v780
  %v914 = vpack.c.b16 %v783, %v782
  %v915 = vpack.c.b16 %v785, %v784
  %v916 = vpack.c.b16 %v787, %v786
  %v917 = vpack.c.b16 %v789, %v788
  %v918 = vpack.c.b16 %v791, %v790
  %v919 = vpack.c.b16 %v793, %v792
  %v920 = vpack.c.b16 %v795, %v794
  %v921 = vpack.c.b16 %v797, %v796
  %v922 = vpack.c.b16 %v799, %v798
  %v923 = vpack.c.b16 %v801, %v800
  %v924 = vpack.c.b16 %v803, %v802
  %v925 = vpack.c.b16 %v805, %v804
  %v926 = vpack.c.b16 %v807, %v806
  %v927 = vpack.c.b16 %v809, %v808
  %v928 = vpack.c.b16 %v811, %v810
  %v929 = vpack.c.b16 %v813, %v812
  %v930 = vpack.c.b16 %v815, %v814
  %v931 = vpack.c.b16 %v817, %v816
  %v932 = vpack.c.b16 %v819, %v818
  %v933 = vpack.c.b16 %v821, %v820
  %v934 = vpack.c.b16 %v823, %v822
  %v935 = vpack.c.b16 %v825, %v824
  %v936 = vpack.c.b16 %v827, %v826
  %v937 = vpack.c.b16 %v829, %v828
  %v938 = vpack.c.b16 %v831, %v830
  %v939 = vpack.c.b16 %v833, %v832
  %v940 = vpack.c.b16 %v835, %v834
  %v941 = vpack.c.b16 %v837, %v836
  %v942 = vpack.c.b16 %v839, %v838
  %v943 = vpack.c.b16 %v841, %v840
  %v944 = vpack.c.b16 %v843, %v842
  %v945 = vpack.c.b16 %v845, %v844
  %v946 = vpack.c.b16 %v847, %v846
  %v947 = vpack.c.b16 %v849, %v848
  %v948 = vpack.c.b16 %v851, %v850
  %v949 = vpack.c.b16 %v853, %v852
  %v950 = vpack.c.b16 %v855, %v854
  %v951 = vpack.c.b16 %v857, %v856
  %v952 = vpack.c.b16 %v859, %v858
  %v953 = vpack.c.b16 %v861, %v860
  %v954 = vpack.c.b16 %v863, %v862
  %v955 = vpack.c.b16 %v865, %v864
  %v956 = vpack.c.b16 %v867, %v866
  %v957 = vpack.c.b16 %v869, %v868
  %v958 = vpack.c.b16 %v871, %v870
  %v959 = vpack.c.b16 %v873, %v872
  %v960 = vpack.c.b16 %v875, %v874
  %v961 = vpack.c.b16 %v877, %v876
  %v962 = vpack.c.b16 %v879, %v878
  %v963 = vpack.c.b16 %v881, %v880
  %v964 = vpack.c.b16 %v883, %v882
  %v965 = vpack.c.b16 %v885, %v884
  %v966 = vpack.c.b16 %v887, %v886
  %v967 = vpack.c.b16 %v889, %v888
  %v968 = vpack.c.b16 %v891, %v890
  %v969 = vpack.c.b16 %v893, %v892
  %v970 = vpack.c.b16 %v895, %v894
  %v971 = vpack.c.b16 %v897, %v896
  %v972 = vpack.c.b16 %v899, %v898
  %v973 = vpack.c.b16 %v901, %v900
  %1046 = vmatprep.subr.bf16.mxu0 0
  %1047 = vmatpush1.bf16.msra.mxu0 %v902
  %1048 = vmatprep.subr.bf16.mxu0 0
  %1049 = vmatpush1.bf16.msra.mxu0 %v903
  %1050 = vmatprep.subr.bf16.mxu0 0
  %1051 = vmatpush1.bf16.msra.mxu0 %v904
  %1052 = vmatprep.subr.bf16.mxu0 0
  %1053 = vmatpush1.bf16.msra.mxu0 %v905
  %1054 = vmatprep.subr.bf16.mxu0 0
  %1055 = vmatpush1.bf16.msra.mxu0 %v906
  %1056 = vmatprep.subr.bf16.mxu0 0
  %1057 = vmatpush1.bf16.msra.mxu0 %v907
  %1058 = vmatprep.subr.bf16.mxu0 0
  %1059 = vmatpush1.bf16.msra.mxu0 %v908
  %1060 = vmatprep.subr.bf16.mxu0 0
  %1061 = vmatpush1.bf16.msra.mxu0 %v909
  %1062 = vmatprep.subr.bf16.mxu0 0
  %1063 = vmatpush1.bf16.msra.mxu0 %v910
  %1064 = vmatprep.subr.bf16.mxu0 0
  %1065 = vmatpush1.bf16.msra.mxu0 %v911
  %1066 = vmatprep.subr.bf16.mxu0 0
  %1067 = vmatpush1.bf16.msra.mxu0 %v912
  %1068 = vmatprep.subr.bf16.mxu0 0
  %1069 = vmatpush1.bf16.msra.mxu0 %v913
  %1070 = vmatprep.subr.bf16.mxu0 0
  %1071 = vmatpush1.bf16.msra.mxu0 %v914
  %1072 = vmatprep.subr.bf16.mxu0 0
  %1073 = vmatpush1.bf16.msra.mxu0 %v915
  %1074 = vmatprep.subr.bf16.mxu0 0
  %1075 = vmatpush1.bf16.msra.mxu0 %v916
  %1076 = vmatprep.subr.bf16.mxu0 0
  %1077 = vmatpush1.bf16.msra.mxu0 %v917
  %1078 = vmatprep.mubr.bf16.mxu0 %v471
  %1079 = vmatmul.mubr.bf16.gmra.mrb[0].mxu0 %v470
  %v1080 = vpop.f32.mrb[0].mxu0
  %v1081 = vadd.f32 %v244, %v1080
  %v1082 = vpop.f32.mrb[0].mxu0
  %v1083 = vpop.f32.mrb[0].mxu0
  %v1084 = vadd.f32 %v244, %v1083
  %v1085 = vpop.f32.mrb[0].mxu0
  %1086 = vmatprep.mubr.bf16.mxu0 %v480
  %1087 = vmatmul.mubr.bf16.gmra.mrb[0].mxu0 %v479
  %v1088 = vpop.f32.mrb[0].mxu0
  %v1089 = vadd.f32 %v244, %v1088
  %v1090 = vpop.f32.mrb[0].mxu0
  %v1091 = vpop.f32.mrb[0].mxu0
  %v1092 = vadd.f32 %v244, %v1091
  %v1093 = vpop.f32.mrb[0].mxu0
  %1094 = vmatprep.mubr.bf16.mxu0 %v489
  %1095 = vmatmul.mubr.bf16.gmra.mrb[0].mxu0 %v488
  %v1096 = vpop.f32.mrb[0].mxu0
  %v1097 = vadd.f32 %v244, %v1096
  %v1098 = vpop.f32.mrb[0].mxu0
  %v1099 = vpop.f32.mrb[0].mxu0
  %v1100 = vadd.f32 %v244, %v1099
  %v1101 = vpop.f32.mrb[0].mxu0
  %1102 = vmatprep.mubr.bf16.mxu0 %v498
  %1103 = vmatmul.mubr.bf16.gmra.mrb[0].mxu0 %v497
  %v1104 = vpop.f32.mrb[0].mxu0
  %v1105 = vadd.f32 %v244, %v1104
  %v1106 = vpop.f32.mrb[0].mxu0
  %v1107 = vpop.f32.mrb[0].mxu0
  %v1108 = vadd.f32 %v244, %v1107
  %v1109 = vpop.f32.mrb[0].mxu0
  %1110 = vmatprep.mubr.bf16.mxu0 %v507
  %1111 = vmatmul.mubr.bf16.gmra.mrb[0].mxu0 %v506
  %v1112 = vpop.f32.mrb[0].mxu0
  %v1113 = vadd.f32 %v244, %v1112
  %v1114 = vpop.f32.mrb[0].mxu0
  %v1115 = vpop.f32.mrb[0].mxu0
  %v1116 = vadd.f32 %v244, %v1115
  %v1117 = vpop.f32.mrb[0].mxu0
  %1118 = vmatprep.mubr.bf16.mxu0 %v516
  %1119 = vmatmul.mubr.bf16.gmra.mrb[0].mxu0 %v515
  %v1120 = vpop.f32.mrb[0].mxu0
  %v1121 = vadd.f32 %v244, %v1120
  %v1122 = vpop.f32.mrb[0].mxu0
  %v1123 = vpop.f32.mrb[0].mxu0
  %v1124 = vadd.f32 %v244, %v1123
  %v1125 = vpop.f32.mrb[0].mxu0
  %1126 = vmatprep.mubr.bf16.mxu0 %v525
  %1127 = vmatmul.mubr.bf16.gmra.mrb[0].mxu0 %v524
  %v1128 = vpop.f32.mrb[0].mxu0
  %v1129 = vadd.f32 %v244, %v1128
  %v1130 = vpop.f32.mrb[0].mxu0
  %v1131 = vpop.f32.mrb[0].mxu0
  %v1132 = vadd.f32 %v244, %v1131
  %v1133 = vpop.f32.mrb[0].mxu0
  %1134 = vmatprep.mubr.bf16.mxu0 %v534
  %1135 = vmatmul.mubr.bf16.gmra.mrb[0].mxu0 %v533
  %v1136 = vpop.f32.mrb[0].mxu0
  %v1137 = vadd.f32 %v244, %v1136
  %v1138 = vpop.f32.mrb[0].mxu0
  %v1139 = vpop.f32.mrb[0].mxu0
  %v1140 = vadd.f32 %v244, %v1139
  %v1141 = vpop.f32.mrb[0].mxu0
  %1142 = vdwg.mxu0
  %1143 = vmatprep.subr.bf16.mxu0 0
  %1144 = vmatpush1.bf16.msra.mxu0 %v918
  %1145 = vmatprep.subr.bf16.mxu0 0
  %1146 = vmatpush1.bf16.msra.mxu0 %v919
  %1147 = vmatprep.subr.bf16.mxu0 0
  %1148 = vmatpush1.bf16.msra.mxu0 %v920
  %1149 = vmatprep.subr.bf16.mxu0 0
  %1150 = vmatpush1.bf16.msra.mxu0 %v921
  %1151 = vmatprep.subr.bf16.mxu0 0
  %1152 = vmatpush1.bf16.msra.mxu0 %v922
  %1153 = vmatprep.subr.bf16.mxu0 0
  %1154 = vmatpush1.bf16.msra.mxu0 %v923
  %1155 = vmatprep.subr.bf16.mxu0 0
  %1156 = vmatpush1.bf16.msra.mxu0 %v924
  %1157 = vmatprep.subr.bf16.mxu0 0
  %1158 = vmatpush1.bf16.msra.mxu0 %v925
  %1159 = vmatprep.subr.bf16.mxu0 0
  %1160 = vmatpush1.bf16.msra.mxu0 %v926
  %1161 = vmatprep.subr.bf16.mxu0 0
  %1162 = vmatpush1.bf16.msra.mxu0 %v927
  %1163 = vmatprep.subr.bf16.mxu0 0
  %1164 = vmatpush1.bf16.msra.mxu0 %v928
  %1165 = vmatprep.subr.bf16.mxu0 0
  %1166 = vmatpush1.bf16.msra.mxu0 %v929
  %1167 = vmatprep.subr.bf16.mxu0 0
  %1168 = vmatpush1.bf16.msra.mxu0 %v930
  %1169 = vmatprep.subr.bf16.mxu0 0
  %1170 = vmatpush1.bf16.msra.mxu0 %v931
  %1171 = vmatprep.subr.bf16.mxu0 0
  %1172 = vmatpush1.bf16.msra.mxu0 %v932
  %1173 = vmatprep.subr.bf16.mxu0 0
  %1174 = vmatpush1.bf16.msra.mxu0 %v933
  %1175 = vmatprep.mubr.bf16.mxu0 %v473
  %1176 = vmatmul.mubr.bf16.gmra.mrb[0].mxu0 %v472
  %v1177 = vpop.f32.mrb[0].mxu0
  %v1178 = vadd.f32 %v1081, %v1177
  %v1179 = vpop.f32.mrb[0].mxu0
  %v1180 = vpop.f32.mrb[0].mxu0
  %v1181 = vadd.f32 %v1084, %v1180
  %v1182 = vpop.f32.mrb[0].mxu0
  %1183 = vmatprep.mubr.bf16.mxu0 %v482
  %1184 = vmatmul.mubr.bf16.gmra.mrb[0].mxu0 %v481
  %v1185 = vpop.f32.mrb[0].mxu0
  %v1186 = vadd.f32 %v1089, %v1185
  %v1187 = vpop.f32.mrb[0].mxu0
  %v1188 = vpop.f32.mrb[0].mxu0
  %v1189 = vadd.f32 %v1092, %v1188
  %v1190 = vpop.f32.mrb[0].mxu0
  %1191 = vmatprep.mubr.bf16.mxu0 %v491
  %1192 = vmatmul.mubr.bf16.gmra.mrb[0].mxu0 %v490
  %v1193 = vpop.f32.mrb[0].mxu0
  %v1194 = vadd.f32 %v1097, %v1193
  %v1195 = vpop.f32.mrb[0].mxu0
  %v1196 = vpop.f32.mrb[0].mxu0
  %v1197 = vadd.f32 %v1100, %v1196
  %v1198 = vpop.f32.mrb[0].mxu0
  %1199 = vmatprep.mubr.bf16.mxu0 %v500
  %1200 = vmatmul.mubr.bf16.gmra.mrb[0].mxu0 %v499
  %v1201 = vpop.f32.mrb[0].mxu0
  %v1202 = vadd.f32 %v1105, %v1201
  %v1203 = vpop.f32.mrb[0].mxu0
  %v1204 = vpop.f32.mrb[0].mxu0
  %v1205 = vadd.f32 %v1108, %v1204
  %v1206 = vpop.f32.mrb[0].mxu0
  %1207 = vmatprep.mubr.bf16.mxu0 %v509
  %1208 = vmatmul.mubr.bf16.gmra.mrb[0].mxu0 %v508
  %v1209 = vpop.f32.mrb[0].mxu0
  %v1210 = vadd.f32 %v1113, %v1209
  %v1211 = vpop.f32.mrb[0].mxu0
  %v1212 = vpop.f32.mrb[0].mxu0
  %v1213 = vadd.f32 %v1116, %v1212
  %v1214 = vpop.f32.mrb[0].mxu0
  %1215 = vmatprep.mubr.bf16.mxu0 %v518
  %1216 = vmatmul.mubr.bf16.gmra.mrb[0].mxu0 %v517
  %v1217 = vpop.f32.mrb[0].mxu0
  %v1218 = vadd.f32 %v1121, %v1217
  %v1219 = vpop.f32.mrb[0].mxu0
  %v1220 = vpop.f32.mrb[0].mxu0
  %v1221 = vadd.f32 %v1124, %v1220
  %v1222 = vpop.f32.mrb[0].mxu0
  %1223 = vmatprep.mubr.bf16.mxu0 %v527
  %1224 = vmatmul.mubr.bf16.gmra.mrb[0].mxu0 %v526
  %v1225 = vpop.f32.mrb[0].mxu0
  %v1226 = vadd.f32 %v1129, %v1225
  %v1227 = vpop.f32.mrb[0].mxu0
  %v1228 = vpop.f32.mrb[0].mxu0
  %v1229 = vadd.f32 %v1132, %v1228
  %v1230 = vpop.f32.mrb[0].mxu0
  %1231 = vmatprep.mubr.bf16.mxu0 %v536
  %1232 = vmatmul.mubr.bf16.gmra.mrb[0].mxu0 %v535
  %v1233 = vpop.f32.mrb[0].mxu0
  %v1234 = vadd.f32 %v1137, %v1233
  %v1235 = vpop.f32.mrb[0].mxu0
  %v1236 = vpop.f32.mrb[0].mxu0
  %v1237 = vadd.f32 %v1140, %v1236
  %v1238 = vpop.f32.mrb[0].mxu0
  %1239 = vdwg.mxu0
  %1240 = vmatprep.subr.bf16.mxu0 0
  %1241 = vmatpush1.bf16.msra.mxu0 %v934
  %1242 = vmatprep.subr.bf16.mxu0 0
  %1243 = vmatpush1.bf16.msra.mxu0 %v935
  %1244 = vmatprep.subr.bf16.mxu0 0
  %1245 = vmatpush1.bf16.msra.mxu0 %v936
  %1246 = vmatprep.subr.bf16.mxu0 0
  %1247 = vmatpush1.bf16.msra.mxu0 %v937
  %1248 = vmatprep.subr.bf16.mxu0 0
  %1249 = vmatpush1.bf16.msra.mxu0 %v938
  %1250 = vmatprep.subr.bf16.mxu0 0
  %1251 = vmatpush1.bf16.msra.mxu0 %v939
  %1252 = vmatprep.subr.bf16.mxu0 0
  %1253 = vmatpush1.bf16.msra.mxu0 %v940
  %1254 = vmatprep.subr.bf16.mxu0 0
  %1255 = vmatpush1.bf16.msra.mxu0 %v941
  %1256 = vmatprep.subr.bf16.mxu0 0
  %1257 = vmatpush1.bf16.msra.mxu0 %v942
  %1258 = vmatprep.subr.bf16.mxu0 0
  %1259 = vmatpush1.bf16.msra.mxu0 %v943
  %1260 = vmatprep.subr.bf16.mxu0 0
  %1261 = vmatpush1.bf16.msra.mxu0 %v944
  %1262 = vmatprep.subr.bf16.mxu0 0
  %1263 = vmatpush1.bf16.msra.mxu0 %v945
  %1264 = vmatprep.subr.bf16.mxu0 0
  %1265 = vmatpush1.bf16.msra.mxu0 %v946
  %1266 = vmatprep.subr.bf16.mxu0 0
  %1267 = vmatpush1.bf16.msra.mxu0 %v947
  %1268 = vmatprep.subr.bf16.mxu0 0
  %1269 = vmatpush1.bf16.msra.mxu0 %v948
  %1270 = vmatprep.subr.bf16.mxu0 0
  %1271 = vmatpush1.bf16.msra.mxu0 %v949
  %1272 = vmatprep.mubr.bf16.mxu0 %v475
  %1273 = vmatmul.mubr.bf16.gmra.mrb[0].mxu0 %v474
  %v1274 = vpop.f32.mrb[0].mxu0
  %v1275 = vadd.f32 %v1178, %v1274
  %v1276 = vpop.f32.mrb[0].mxu0
  %v1277 = vpop.f32.mrb[0].mxu0
  %v1278 = vadd.f32 %v1181, %v1277
  %v1279 = vpop.f32.mrb[0].mxu0
  %1280 = vmatprep.mubr.bf16.mxu0 %v484
  %1281 = vmatmul.mubr.bf16.gmra.mrb[0].mxu0 %v483
  %v1282 = vpop.f32.mrb[0].mxu0
  %v1283 = vadd.f32 %v1186, %v1282
  %v1284 = vpop.f32.mrb[0].mxu0
  %v1285 = vpop.f32.mrb[0].mxu0
  %v1286 = vadd.f32 %v1189, %v1285
  %v1287 = vpop.f32.mrb[0].mxu0
  %1288 = vmatprep.mubr.bf16.mxu0 %v493
  %1289 = vmatmul.mubr.bf16.gmra.mrb[0].mxu0 %v492
  %v1290 = vpop.f32.mrb[0].mxu0
  %v1291 = vadd.f32 %v1194, %v1290
  %v1292 = vpop.f32.mrb[0].mxu0
  %v1293 = vpop.f32.mrb[0].mxu0
  %v1294 = vadd.f32 %v1197, %v1293
  %v1295 = vpop.f32.mrb[0].mxu0
  %1296 = vmatprep.mubr.bf16.mxu0 %v502
  %1297 = vmatmul.mubr.bf16.gmra.mrb[0].mxu0 %v501
  %v1298 = vpop.f32.mrb[0].mxu0
  %v1299 = vadd.f32 %v1202, %v1298
  %v1300 = vpop.f32.mrb[0].mxu0
  %v1301 = vpop.f32.mrb[0].mxu0
  %v1302 = vadd.f32 %v1205, %v1301
  %v1303 = vpop.f32.mrb[0].mxu0
  %1304 = vmatprep.mubr.bf16.mxu0 %v511
  %1305 = vmatmul.mubr.bf16.gmra.mrb[0].mxu0 %v510
  %v1306 = vpop.f32.mrb[0].mxu0
  %v1307 = vadd.f32 %v1210, %v1306
  %v1308 = vpop.f32.mrb[0].mxu0
  %v1309 = vpop.f32.mrb[0].mxu0
  %v1310 = vadd.f32 %v1213, %v1309
  %v1311 = vpop.f32.mrb[0].mxu0
  %1312 = vmatprep.mubr.bf16.mxu0 %v520
  %1313 = vmatmul.mubr.bf16.gmra.mrb[0].mxu0 %v519
  %v1314 = vpop.f32.mrb[0].mxu0
  %v1315 = vadd.f32 %v1218, %v1314
  %v1316 = vpop.f32.mrb[0].mxu0
  %v1317 = vpop.f32.mrb[0].mxu0
  %v1318 = vadd.f32 %v1221, %v1317
  %v1319 = vpop.f32.mrb[0].mxu0
  %1320 = vmatprep.mubr.bf16.mxu0 %v529
  %1321 = vmatmul.mubr.bf16.gmra.mrb[0].mxu0 %v528
  %v1322 = vpop.f32.mrb[0].mxu0
  %v1323 = vadd.f32 %v1226, %v1322
  %v1324 = vpop.f32.mrb[0].mxu0
  %v1325 = vpop.f32.mrb[0].mxu0
  %v1326 = vadd.f32 %v1229, %v1325
  %v1327 = vpop.f32.mrb[0].mxu0
  %1328 = vmatprep.mubr.bf16.mxu0 %v538
  %1329 = vmatmul.mubr.bf16.gmra.mrb[0].mxu0 %v537
  %v1330 = vpop.f32.mrb[0].mxu0
  %v1331 = vadd.f32 %v1234, %v1330
  %v1332 = vpop.f32.mrb[0].mxu0
  %v1333 = vpop.f32.mrb[0].mxu0
  %v1334 = vadd.f32 %v1237, %v1333
  %v1335 = vpop.f32.mrb[0].mxu0
  %1336 = vdwg.mxu0
  %1337 = vmatprep.subr.bf16.mxu0 0
  %1338 = vmatpush1.bf16.msra.mxu0 %v950
  %1339 = vmatprep.subr.bf16.mxu0 0
  %1340 = vmatpush1.bf16.msra.mxu0 %v951
  %1341 = vmatprep.subr.bf16.mxu0 0
  %1342 = vmatpush1.bf16.msra.mxu0 %v952
  %1343 = vmatprep.subr.bf16.mxu0 0
  %1344 = vmatpush1.bf16.msra.mxu0 %v953
  %1345 = vmatprep.subr.bf16.mxu0 0
  %1346 = vmatpush1.bf16.msra.mxu0 %v954
  %1347 = vmatprep.subr.bf16.mxu0 0
  %1348 = vmatpush1.bf16.msra.mxu0 %v955
  %1349 = vmatprep.subr.bf16.mxu0 0
  %1350 = vmatpush1.bf16.msra.mxu0 %v956
  %1351 = vmatprep.subr.bf16.mxu0 0
  %1352 = vmatpush1.bf16.msra.mxu0 %v957
  %1353 = vmatprep.subr.bf16.mxu0 0
  %1354 = vmatpush1.bf16.msra.mxu0 %v958
  %1355 = vmatprep.subr.bf16.mxu0 0
  %1356 = vmatpush1.bf16.msra.mxu0 %v959
  %1357 = vmatprep.subr.bf16.mxu0 0
  %1358 = vmatpush1.bf16.msra.mxu0 %v960
  %1359 = vmatprep.subr.bf16.mxu0 0
  %1360 = vmatpush1.bf16.msra.mxu0 %v961
  %1361 = vmatprep.subr.bf16.mxu0 0
  %1362 = vmatpush1.bf16.msra.mxu0 %v962
  %1363 = vmatprep.subr.bf16.mxu0 0
  %1364 = vmatpush1.bf16.msra.mxu0 %v963
  %1365 = vmatprep.subr.bf16.mxu0 0
  %1366 = vmatpush1.bf16.msra.mxu0 %v964
  %1367 = vmatprep.subr.bf16.mxu0 0
  %1368 = vmatpush1.bf16.msra.mxu0 %v965
  %1369 = vmatprep.mubr.bf16.mxu0 %v477
  %1370 = vmatmul.mubr.bf16.gmra.mrb[0].mxu0 %v476
  %v1371 = vpop.f32.mrb[0].mxu0
  %v1372 = vadd.f32 %v1275, %v1371
  %v1373 = vpop.f32.mrb[0].mxu0
  %v1374 = vpop.f32.mrb[0].mxu0
  %v1375 = vadd.f32 %v1278, %v1374
  %v1376 = vpop.f32.mrb[0].mxu0
  %1377 = vmatprep.mubr.bf16.mxu0 %v486
  %1378 = vmatmul.mubr.bf16.gmra.mrb[0].mxu0 %v485
  %v1379 = vpop.f32.mrb[0].mxu0
  %v1380 = vadd.f32 %v1283, %v1379
  %v1381 = vpop.f32.mrb[0].mxu0
  %v1382 = vpop.f32.mrb[0].mxu0
  %v1383 = vadd.f32 %v1286, %v1382
  %v1384 = vpop.f32.mrb[0].mxu0
  %1385 = vmatprep.mubr.bf16.mxu0 %v495
  %1386 = vmatmul.mubr.bf16.gmra.mrb[0].mxu0 %v494
  %v1387 = vpop.f32.mrb[0].mxu0
  %v1388 = vadd.f32 %v1291, %v1387
  %v1389 = vpop.f32.mrb[0].mxu0
  %v1390 = vpop.f32.mrb[0].mxu0
  %v1391 = vadd.f32 %v1294, %v1390
  %v1392 = vpop.f32.mrb[0].mxu0
  %1393 = vmatprep.mubr.bf16.mxu0 %v504
  %1394 = vmatmul.mubr.bf16.gmra.mrb[0].mxu0 %v503
  %v1395 = vpop.f32.mrb[0].mxu0
  %v1396 = vadd.f32 %v1299, %v1395
  %v1397 = vpop.f32.mrb[0].mxu0
  %v1398 = vpop.f32.mrb[0].mxu0
  %v1399 = vadd.f32 %v1302, %v1398
  %v1400 = vpop.f32.mrb[0].mxu0
  %1401 = vmatprep.mubr.bf16.mxu0 %v513
  %1402 = vmatmul.mubr.bf16.gmra.mrb[0].mxu0 %v512
  %v1403 = vpop.f32.mrb[0].mxu0
  %v1404 = vadd.f32 %v1307, %v1403
  %v1405 = vpop.f32.mrb[0].mxu0
  %v1406 = vpop.f32.mrb[0].mxu0
  %v1407 = vadd.f32 %v1310, %v1406
  %v1408 = vpop.f32.mrb[0].mxu0
  %1409 = vmatprep.mubr.bf16.mxu0 %v522
  %1410 = vmatmul.mubr.bf16.gmra.mrb[0].mxu0 %v521
  %v1411 = vpop.f32.mrb[0].mxu0
  %v1412 = vadd.f32 %v1315, %v1411
  %v1413 = vpop.f32.mrb[0].mxu0
  %v1414 = vpop.f32.mrb[0].mxu0
  %v1415 = vadd.f32 %v1318, %v1414
  %v1416 = vpop.f32.mrb[0].mxu0
  %1417 = vmatprep.mubr.bf16.mxu0 %v531
  %1418 = vmatmul.mubr.bf16.gmra.mrb[0].mxu0 %v530
  %v1419 = vpop.f32.mrb[0].mxu0
  %v1420 = vadd.f32 %v1323, %v1419
  %v1421 = vpop.f32.mrb[0].mxu0
  %v1422 = vpop.f32.mrb[0].mxu0
  %v1423 = vadd.f32 %v1326, %v1422
  %v1424 = vpop.f32.mrb[0].mxu0
  %1425 = vmatprep.mubr.bf16.mxu0 %v540
  %1426 = vmatmul.mubr.bf16.gmra.mrb[0].mxu0 %v539
  %v1427 = vpop.f32.mrb[0].mxu0
  %v1428 = vadd.f32 %v1331, %v1427
  %v1429 = vpop.f32.mrb[0].mxu0
  %v1430 = vpop.f32.mrb[0].mxu0
  %v1431 = vadd.f32 %v1334, %v1430
  %v1432 = vpop.f32.mrb[0].mxu0
  %1433 = vdwg.mxu0
  %1434 = vmatprep.subr.bf16.mxu0 0
  %1435 = vmatpush1.bf16.msra.mxu0 %v966
  %1436 = vmatprep.subr.bf16.mxu0 0
  %1437 = vmatpush1.bf16.msra.mxu0 %v967
  %1438 = vmatprep.subr.bf16.mxu0 0
  %1439 = vmatpush1.bf16.msra.mxu0 %v968
  %1440 = vmatprep.subr.bf16.mxu0 0
  %1441 = vmatpush1.bf16.msra.mxu0 %v969
  %1442 = vmatprep.subr.bf16.mxu0 0
  %1443 = vmatpush1.bf16.msra.mxu0 %v970
  %1444 = vmatprep.subr.bf16.mxu0 0
  %1445 = vmatpush1.bf16.msra.mxu0 %v971
  %1446 = vmatprep.subr.bf16.mxu0 0
  %1447 = vmatpush1.bf16.msra.mxu0 %v972
  %1448 = vmatprep.subr.bf16.mxu0 0
  %1449 = vmatpush1.bf16.msra.mxu0 %v973
  %1450 = vmatprep.subr.bf16.mxu0 0
  %1451 = vmatpush1.bf16.msra.mxu0 0
  %1452 = vmatprep.subr.bf16.mxu0 0
  %1453 = vmatpush1.bf16.msra.mxu0 0
  %1454 = vmatprep.subr.bf16.mxu0 0
  %1455 = vmatpush1.bf16.msra.mxu0 0
  %1456 = vmatprep.subr.bf16.mxu0 0
  %1457 = vmatpush1.bf16.msra.mxu0 0
  %1458 = vmatprep.subr.bf16.mxu0 0
  %1459 = vmatpush1.bf16.msra.mxu0 0
  %1460 = vmatprep.subr.bf16.mxu0 0
  %1461 = vmatpush1.bf16.msra.mxu0 0
  %1462 = vmatprep.subr.bf16.mxu0 0
  %1463 = vmatpush1.bf16.msra.mxu0 0
  %1464 = vmatprep.subr.bf16.mxu0 0
  %1465 = vmatpush1.bf16.msra.mxu0 0
  %1466 = vmatprep.mubr.bf16.mxu0 0
  %1467 = vmatmul.mubr.bf16.gmra.mrb[0].mxu0 %v478
  %v1468 = vpop.f32.mrb[0].mxu0
  %v1469 = vadd.f32 %v1372, %v1468
  %v1470 = vpop.f32.mrb[0].mxu0
  %v1471 = vpop.f32.mrb[0].mxu0
  %v1472 = vadd.f32 %v1375, %v1471
  %v1473 = vpop.f32.mrb[0].mxu0
  %1474 = vmatprep.mubr.bf16.mxu0 0
  %1475 = vmatmul.mubr.bf16.gmra.mrb[0].mxu0 %v487
  %v1476 = vpop.f32.mrb[0].mxu0
  %v1477 = vadd.f32 %v1380, %v1476
  %v1478 = vpop.f32.mrb[0].mxu0
  %v1479 = vpop.f32.mrb[0].mxu0
  %v1480 = vadd.f32 %v1383, %v1479
  %v1481 = vpop.f32.mrb[0].mxu0
  %1482 = vmatprep.mubr.bf16.mxu0 0
  %1483 = vmatmul.mubr.bf16.gmra.mrb[0].mxu0 %v496
  %v1484 = vpop.f32.mrb[0].mxu0
  %v1485 = vadd.f32 %v1388, %v1484
  %v1486 = vpop.f32.mrb[0].mxu0
  %v1487 = vpop.f32.mrb[0].mxu0
  %v1488 = vadd.f32 %v1391, %v1487
  %v1489 = vpop.f32.mrb[0].mxu0
  %1490 = vmatprep.mubr.bf16.mxu0 0
  %1491 = vmatmul.mubr.bf16.gmra.mrb[0].mxu0 %v505
  %v1492 = vpop.f32.mrb[0].mxu0
  %v1493 = vadd.f32 %v1396, %v1492
  %v1494 = vpop.f32.mrb[0].mxu0
  %v1495 = vpop.f32.mrb[0].mxu0
  %v1496 = vadd.f32 %v1399, %v1495
  %v1497 = vpop.f32.mrb[0].mxu0
  %1498 = vmatprep.mubr.bf16.mxu0 0
  %1499 = vmatmul.mubr.bf16.gmra.mrb[0].mxu0 %v514
  %v1500 = vpop.f32.mrb[0].mxu0
  %v1501 = vadd.f32 %v1404, %v1500
  %v1502 = vpop.f32.mrb[0].mxu0
  %v1503 = vpop.f32.mrb[0].mxu0
  %v1504 = vadd.f32 %v1407, %v1503
  %v1505 = vpop.f32.mrb[0].mxu0
  %1506 = vmatprep.mubr.bf16.mxu0 0
  %1507 = vmatmul.mubr.bf16.gmra.mrb[0].mxu0 %v523
  %v1508 = vpop.f32.mrb[0].mxu0
  %v1509 = vadd.f32 %v1412, %v1508
  %v1510 = vpop.f32.mrb[0].mxu0
  %v1511 = vpop.f32.mrb[0].mxu0
  %v1512 = vadd.f32 %v1415, %v1511
  %v1513 = vpop.f32.mrb[0].mxu0
  %1514 = vmatprep.mubr.bf16.mxu0 0
  %1515 = vmatmul.mubr.bf16.gmra.mrb[0].mxu0 %v532
  %v1516 = vpop.f32.mrb[0].mxu0
  %v1517 = vadd.f32 %v1420, %v1516
  %v1518 = vpop.f32.mrb[0].mxu0
  %v1519 = vpop.f32.mrb[0].mxu0
  %v1520 = vadd.f32 %v1423, %v1519
  %v1521 = vpop.f32.mrb[0].mxu0
  %1522 = vmatprep.mubr.bf16.mxu0 0
  %1523 = vmatmul.mubr.bf16.gmra.mrb[0].mxu0 %v541
  %v1524 = vpop.f32.mrb[0].mxu0
  %v1525 = vadd.f32 %v1428, %v1524
  %v1526 = vpop.f32.mrb[0].mxu0
  %v1527 = vpop.f32.mrb[0].mxu0
  %v1528 = vadd.f32 %v1431, %v1527
  %v1529 = vpop.f32.mrb[0].mxu0
  %1530 = vdwg.mxu0
  %v1531 = vmax.f32 %v1469, 0.0
  %v1532 = vmax.f32 %v1472, 0.0
  %v1533 = vmax.f32 %v1477, 0.0
  %v1534 = vmax.f32 %v1480, 0.0
  %v1535 = vmax.f32 %v1485, 0.0
  %v1536 = vmax.f32 %v1488, 0.0
  %v1537 = vmax.f32 %v1493, 0.0
  %v1538 = vmax.f32 %v1496, 0.0
  %v1539 = vmax.f32 %v1501, 0.0
  %v1540 = vmax.f32 %v1504, 0.0
  %v1541 = vmax.f32 %v1509, 0.0
  %v1542 = vmax.f32 %v1512, 0.0
  %v1543 = vmax.f32 %v1517, 0.0
  %v1544 = vmax.f32 %v1520, 0.0
  %v1545 = vmax.f32 %v1525, 0.0
  %v1546 = vmax.f32 %v1528, 0.0
  %v1547 = vpack.c.bf16 %v1532, %v1531
  %v1548 = vpack.c.bf16 %v1534, %v1533
  %v1549 = vpack.c.bf16 %v1536, %v1535
  %v1550 = vpack.c.bf16 %v1538, %v1537
  %v1551 = vpack.c.bf16 %v1540, %v1539
  %v1552 = vpack.c.bf16 %v1542, %v1541
  %v1553 = vpack.c.bf16 %v1544, %v1543
  %v1554 = vpack.c.bf16 %v1546, %v1545
  %v1563 = vunpack.c.l.b16 %v1547
  %v1564 = vunpack.c.h.b16 %v1547
  %v1565 = vunpack.c.l.b16 %v1548
  %v1566 = vunpack.c.h.b16 %v1548
  %v1567 = vunpack.c.l.b16 %v1549
  %v1568 = vunpack.c.h.b16 %v1549
  %v1569 = vunpack.c.l.b16 %v1550
  %v1570 = vunpack.c.h.b16 %v1550
  %v1571 = vunpack.c.l.b16 %v1551
  %v1572 = vunpack.c.h.b16 %v1551
  %v1573 = vunpack.c.l.b16 %v1552
  %v1574 = vunpack.c.h.b16 %v1552
  %v1575 = vunpack.c.l.b16 %v1553
  %v1576 = vunpack.c.h.b16 %v1553
  %v1577 = vunpack.c.l.b16 %v1554
  %v1578 = vunpack.c.h.b16 %v1554
  %v1579 = vpack.c.b16 %v1563, %v1563
  %v1580 = vpack.c.b16 %v1564, %v1564
  %v1581 = vpack.c.b16 %v1565, %v1565
  %v1582 = vpack.c.b16 %v1566, %v1566
  %v1583 = vpack.c.b16 %v1567, %v1567
  %v1584 = vpack.c.b16 %v1568, %v1568
  %v1585 = vpack.c.b16 %v1569, %v1569
  %v1586 = vpack.c.b16 %v1570, %v1570
  %v1587 = vpack.c.b16 %v1571, %v1571
  %v1588 = vpack.c.b16 %v1572, %v1572
  %v1589 = vpack.c.b16 %v1573, %v1573
  %v1590 = vpack.c.b16 %v1574, %v1574
  %v1591 = vpack.c.b16 %v1575, %v1575
  %v1592 = vpack.c.b16 %v1576, %v1576
  %v1593 = vpack.c.b16 %v1577, %v1577
  %v1594 = vpack.c.b16 %v1578, %v1578
  %1611 = vst [vmem:[%s3] sm:$0xf] %v1579
  %1612 = vst [vmem:[%s3 + $0x4] sm:$0xf] %v1580
  %1613 = vst [vmem:[%s3 + $0x8] sm:$0xf] %v1581
  %1614 = vst [vmem:[%s3 + $0xc] sm:$0xf] %v1582
  %1615 = vst [vmem:[%s3 + $0x10] sm:$0xf] %v1583
  %1616 = vst [vmem:[%s3 + $0x14] sm:$0xf] %v1584
  %1617 = vst [vmem:[%s3 + $0x18] sm:$0xf] %v1585
  %1618 = vst [vmem:[%s3 + $0x1c] sm:$0xf] %v1586
  %1619 = vst [vmem:[%s3 + $0x20] sm:$0xf] %v1587
  %1620 = vst [vmem:[%s3 + $0x24] sm:$0xf] %v1588
  %1621 = vst [vmem:[%s3 + $0x28] sm:$0xf] %v1589
  %1622 = vst [vmem:[%s3 + $0x2c] sm:$0xf] %v1590
  %1623 = vst [vmem:[%s3 + $0x30] sm:$0xf] %v1591
  %1624 = vst [vmem:[%s3 + $0x34] sm:$0xf] %v1592
  %1625 = vst [vmem:[%s3 + $0x38] sm:$0xf] %v1593
  %1626 = vst [vmem:[%s3 + $0x3c] sm:$0xf] %v1594
  // Predicated region
  $region14: #{coanet_forward.8} parent=0 // pred_check
    _
  $region15: #{coanet_forward.8} parent=0 // pred_check_branch
    %1628 = sbr.rel (0) target = $region17
  $region16: #{coanet_forward.8} parent=0 // pred_region
    _
  $region17: #{coanet_forward.8} parent=0 // pred_fallthru
    _
  // Predicated region
  $region18: #{coanet_forward.8} parent=0 // pred_check
    _
  $region19: #{coanet_forward.8} parent=0 // pred_check_branch
    %1630 = sbr.rel (0) target = $region21
  $region20: #{coanet_forward.8} parent=0 // pred_region
    _
  $region21: #{coanet_forward.8} parent=0 // pred_fallthru
    _

// kernel: coanet_forward.7
$region0: #{coanet_forward.7}
  #allocation0 [shape = 'u32[]', space=smem, size = 0x4, offset = 0x4, fixed_abs, tag = 'smem constant byte address 0x4 - core index']
  #allocation1 [shape = 'u32[144,128]{1,0:T(1,128)}', space=vmem, size = 0x12000, scoped, tag = 'internal scratch']
  %s0 = inlined_call_operand.vmem [shape: bf16[512,1152], index: 0, kind: input, shape index: {}]
  %s1 = inlined_call_operand.vmem [shape: bf16[1152,128], index: 1, kind: input, shape index: {}]
  %s2 = inlined_call_operand.vmem [shape: f32[1,128], index: 2, kind: input, shape index: {}]
  %s3 = inlined_call_operand.vmem [shape: bf16[512,128], index: 3, kind: output, shape index: {}]
  %s4 = sld [smem:[#allocation0]]
  $region22: #{coanet_forward.7} parent=0
    _
  %s6 = ssub.s32 1, %s4
  %s7 = scalar_select 0, %s6, %s4
  // Predicated region
  $region2: #{coanet_forward.7} parent=0 // pred_check
    _
  $region3: #{coanet_forward.7} parent=0 // pred_check_branch
    %9 = sbr.rel (0) target = $region5
  $region4: #{coanet_forward.7} parent=0 // pred_region
    _
  $region5: #{coanet_forward.7} parent=0 // pred_fallthru
    _
  // Predicated region
  $region6: #{coanet_forward.7} parent=0 // pred_check
    _
  $region7: #{coanet_forward.7} parent=0 // pred_check_branch
    %11 = sbr.rel (0) target = $region9
  $region8: #{coanet_forward.7} parent=0 // pred_region
    _
  $region9: #{coanet_forward.7} parent=0 // pred_fallthru
    _
  // Predicated region
  $region10: #{coanet_forward.7} parent=0 // pred_check
    _
  $region11: #{coanet_forward.7} parent=0 // pred_check_branch
    %13 = sbr.rel (0) target = $region13
  $region12: #{coanet_forward.7} parent=0 // pred_region
    _
  $region13: #{coanet_forward.7} parent=0 // pred_fallthru
    _
  %v15 = vld [vmem:[%s0] sm:$0xff]
  %v16 = vld [vmem:[%s0 + $0x8] sm:$0xff]
  %v17 = vld [vmem:[%s0 + $0x10] sm:$0xff]
  %v18 = vld [vmem:[%s0 + $0x18] sm:$0xff]
  %v19 = vld [vmem:[%s0 + $0x20] sm:$0xf]
  %v20 = vld [vmem:[%s0 + $0x24] sm:$0xff]
  %v21 = vld [vmem:[%s0 + $0x2c] sm:$0xff]
  %v22 = vld [vmem:[%s0 + $0x34] sm:$0xff]
  %v23 = vld [vmem:[%s0 + $0x3c] sm:$0xff]
  %v24 = vld [vmem:[%s0 + $0x44] sm:$0xf]
  %v25 = vld [vmem:[%s0 + $0x48] sm:$0xff]
  %v26 = vld [vmem:[%s0 + $0x50] sm:$0xff]
  %v27 = vld [vmem:[%s0 + $0x58] sm:$0xff]
  %v28 = vld [vmem:[%s0 + $0x60] sm:$0xff]
  %v29 = vld [vmem:[%s0 + $0x68] sm:$0xf]
  %v30 = vld [vmem:[%s0 + $0x6c] sm:$0xff]
  %v31 = vld [vmem:[%s0 + $0x74] sm:$0xff]
  %v32 = vld [vmem:[%s0 + $0x7c] sm:$0xff]
  %v33 = vld [vmem:[%s0 + $0x84] sm:$0xff]
  %v34 = vld [vmem:[%s0 + $0x8c] sm:$0xf]
  %v35 = vld [vmem:[%s0 + $0x90] sm:$0xff]
  %v36 = vld [vmem:[%s0 + $0x98] sm:$0xff]
  %v37 = vld [vmem:[%s0 + $0xa0] sm:$0xff]
  %v38 = vld [vmem:[%s0 + $0xa8] sm:$0xff]
  %v39 = vld [vmem:[%s0 + $0xb0] sm:$0xf]
  %v40 = vld [vmem:[%s0 + $0xb4] sm:$0xff]
  %v41 = vld [vmem:[%s0 + $0xbc] sm:$0xff]
  %v42 = vld [vmem:[%s0 + $0xc4] sm:$0xff]
  %v43 = vld [vmem:[%s0 + $0xcc] sm:$0xff]
  %v44 = vld [vmem:[%s0 + $0xd4] sm:$0xf]
  %v45 = vld [vmem:[%s0 + $0xd8] sm:$0xff]
  %v46 = vld [vmem:[%s0 + $0xe0] sm:$0xff]
  %v47 = vld [vmem:[%s0 + $0xe8] sm:$0xff]
  %v48 = vld [vmem:[%s0 + $0xf0] sm:$0xff]
  %v49 = vld [vmem:[%s0 + $0xf8] sm:$0xf]
  %v50 = vld [vmem:[%s0 + $0xfc] sm:$0xff]
  %v51 = vld [vmem:[%s0 + $0x104] sm:$0xff]
  %v52 = vld [vmem:[%s0 + $0x10c] sm:$0xff]
  %v53 = vld [vmem:[%s0 + $0x114] sm:$0xff]
  %v54 = vld [vmem:[%s0 + $0x11c] sm:$0xf]
  %v55 = vld [vmem:[%s0 + $0x120] sm:$0xff]
  %v56 = vld [vmem:[%s0 + $0x128] sm:$0xff]
  %v57 = vld [vmem:[%s0 + $0x130] sm:$0xff]
  %v58 = vld [vmem:[%s0 + $0x138] sm:$0xff]
  %v59 = vld [vmem:[%s0 + $0x140] sm:$0xf]
  %v60 = vld [vmem:[%s0 + $0x144] sm:$0xff]
  %v61 = vld [vmem:[%s0 + $0x14c] sm:$0xff]
  %v62 = vld [vmem:[%s0 + $0x154] sm:$0xff]
  %v63 = vld [vmem:[%s0 + $0x15c] sm:$0xff]
  %v64 = vld [vmem:[%s0 + $0x164] sm:$0xf]
  %v65 = vld [vmem:[%s0 + $0x168] sm:$0xff]
  %v66 = vld [vmem:[%s0 + $0x170] sm:$0xff]
  %v67 = vld [vmem:[%s0 + $0x178] sm:$0xff]
  %v68 = vld [vmem:[%s0 + $0x180] sm:$0xff]
  %v69 = vld [vmem:[%s0 + $0x188] sm:$0xf]
  %v70 = vld [vmem:[%s0 + $0x18c] sm:$0xff]
  %v71 = vld [vmem:[%s0 + $0x194] sm:$0xff]
  %v72 = vld [vmem:[%s0 + $0x19c] sm:$0xff]
  %v73 = vld [vmem:[%s0 + $0x1a4] sm:$0xff]
  %v74 = vld [vmem:[%s0 + $0x1ac] sm:$0xf]
  %v75 = vld [vmem:[%s0 + $0x1b0] sm:$0xff]
  %v76 = vld [vmem:[%s0 + $0x1b8] sm:$0xff]
  %v77 = vld [vmem:[%s0 + $0x1c0] sm:$0xff]
  %v78 = vld [vmem:[%s0 + $0x1c8] sm:$0xff]
  %v79 = vld [vmem:[%s0 + $0x1d0] sm:$0xf]
  %v80 = vld [vmem:[%s0 + $0x1d4] sm:$0xff]
  %v81 = vld [vmem:[%s0 + $0x1dc] sm:$0xff]
  %v82 = vld [vmem:[%s0 + $0x1e4] sm:$0xff]
  %v83 = vld [vmem:[%s0 + $0x1ec] sm:$0xff]
  %v84 = vld [vmem:[%s0 + $0x1f4] sm:$0xf]
  %v85 = vld [vmem:[%s0 + $0x1f8] sm:$0xff]
  %v86 = vld [vmem:[%s0 + $0x200] sm:$0xff]
  %v87 = vld [vmem:[%s0 + $0x208] sm:$0xff]
  %v88 = vld [vmem:[%s0 + $0x210] sm:$0xff]
  %v89 = vld [vmem:[%s0 + $0x218] sm:$0xf]
  %v90 = vld [vmem:[%s0 + $0x21c] sm:$0xff]
  %v91 = vld [vmem:[%s0 + $0x224] sm:$0xff]
  %v92 = vld [vmem:[%s0 + $0x22c] sm:$0xff]
  %v93 = vld [vmem:[%s0 + $0x234] sm:$0xff]
  %v94 = vld [vmem:[%s0 + $0x23c] sm:$0xf]
  %v95 = vld [vmem:[%s0 + $0x240] sm:$0xff]
  %v96 = vld [vmem:[%s0 + $0x248] sm:$0xff]
  %v97 = vld [vmem:[%s0 + $0x250] sm:$0xff]
  %v98 = vld [vmem:[%s0 + $0x258] sm:$0xff]
  %v99 = vld [vmem:[%s0 + $0x260] sm:$0xf]
  %v100 = vld [vmem:[%s0 + $0x264] sm:$0xff]
  %v101 = vld [vmem:[%s0 + $0x26c] sm:$0xff]
  %v102 = vld [vmem:[%s0 + $0x274] sm:$0xff]
  %v103 = vld [vmem:[%s0 + $0x27c] sm:$0xff]
  %v104 = vld [vmem:[%s0 + $0x284] sm:$0xf]
  %v105 = vld [vmem:[%s0 + $0x288] sm:$0xff]
  %v106 = vld [vmem:[%s0 + $0x290] sm:$0xff]
  %v107 = vld [vmem:[%s0 + $0x298] sm:$0xff]
  %v108 = vld [vmem:[%s0 + $0x2a0] sm:$0xff]
  %v109 = vld [vmem:[%s0 + $0x2a8] sm:$0xf]
  %v110 = vld [vmem:[%s0 + $0x2ac] sm:$0xff]
  %v111 = vld [vmem:[%s0 + $0x2b4] sm:$0xff]
  %v112 = vld [vmem:[%s0 + $0x2bc] sm:$0xff]
  %v113 = vld [vmem:[%s0 + $0x2c4] sm:$0xff]
  %v114 = vld [vmem:[%s0 + $0x2cc] sm:$0xf]
  %v115 = vld [vmem:[%s0 + $0x2d0] sm:$0xff]
  %v116 = vld [vmem:[%s0 + $0x2d8] sm:$0xff]
  %v117 = vld [vmem:[%s0 + $0x2e0] sm:$0xff]
  %v118 = vld [vmem:[%s0 + $0x2e8] sm:$0xff]
  %v119 = vld [vmem:[%s0 + $0x2f0] sm:$0xf]
  %v120 = vld [vmem:[%s0 + $0x2f4] sm:$0xff]
  %v121 = vld [vmem:[%s0 + $0x2fc] sm:$0xff]
  %v122 = vld [vmem:[%s0 + $0x304] sm:$0xff]
  %v123 = vld [vmem:[%s0 + $0x30c] sm:$0xff]
  %v124 = vld [vmem:[%s0 + $0x314] sm:$0xf]
  %v125 = vld [vmem:[%s0 + $0x318] sm:$0xff]
  %v126 = vld [vmem:[%s0 + $0x320] sm:$0xff]
  %v127 = vld [vmem:[%s0 + $0x328] sm:$0xff]
  %v128 = vld [vmem:[%s0 + $0x330] sm:$0xff]
  %v129 = vld [vmem:[%s0 + $0x338] sm:$0xf]
  %v130 = vld [vmem:[%s0 + $0x33c] sm:$0xff]
  %v131 = vld [vmem:[%s0 + $0x344] sm:$0xff]
  %v132 = vld [vmem:[%s0 + $0x34c] sm:$0xff]
  %v133 = vld [vmem:[%s0 + $0x354] sm:$0xff]
  %v134 = vld [vmem:[%s0 + $0x35c] sm:$0xf]
  %v135 = vld [vmem:[%s0 + $0x360] sm:$0xff]
  %v136 = vld [vmem:[%s0 + $0x368] sm:$0xff]
  %v137 = vld [vmem:[%s0 + $0x370] sm:$0xff]
  %v138 = vld [vmem:[%s0 + $0x378] sm:$0xff]
  %v139 = vld [vmem:[%s0 + $0x380] sm:$0xf]
  %v140 = vld [vmem:[%s0 + $0x384] sm:$0xff]
  %v141 = vld [vmem:[%s0 + $0x38c] sm:$0xff]
  %v142 = vld [vmem:[%s0 + $0x394] sm:$0xff]
  %v143 = vld [vmem:[%s0 + $0x39c] sm:$0xff]
  %v144 = vld [vmem:[%s0 + $0x3a4] sm:$0xf]
  %v145 = vld [vmem:[%s0 + $0x3a8] sm:$0xff]
  %v146 = vld [vmem:[%s0 + $0x3b0] sm:$0xff]
  %v147 = vld [vmem:[%s0 + $0x3b8] sm:$0xff]
  %v148 = vld [vmem:[%s0 + $0x3c0] sm:$0xff]
  %v149 = vld [vmem:[%s0 + $0x3c8] sm:$0xf]
  %v150 = vld [vmem:[%s0 + $0x3cc] sm:$0xff]
  %v151 = vld [vmem:[%s0 + $0x3d4] sm:$0xff]
  %v152 = vld [vmem:[%s0 + $0x3dc] sm:$0xff]
  %v153 = vld [vmem:[%s0 + $0x3e4] sm:$0xff]
  %v154 = vld [vmem:[%s0 + $0x3ec] sm:$0xf]
  %v155 = vld [vmem:[%s0 + $0x3f0] sm:$0xff]
  %v156 = vld [vmem:[%s0 + $0x3f8] sm:$0xff]
  %v157 = vld [vmem:[%s0 + $0x400] sm:$0xff]
  %v158 = vld [vmem:[%s0 + $0x408] sm:$0xff]
  %v159 = vld [vmem:[%s0 + $0x410] sm:$0xf]
  %v160 = vld [vmem:[%s0 + $0x414] sm:$0xff]
  %v161 = vld [vmem:[%s0 + $0x41c] sm:$0xff]
  %v162 = vld [vmem:[%s0 + $0x424] sm:$0xff]
  %v163 = vld [vmem:[%s0 + $0x42c] sm:$0xff]
  %v164 = vld [vmem:[%s0 + $0x434] sm:$0xf]
  %v165 = vld [vmem:[%s0 + $0x438] sm:$0xff]
  %v166 = vld [vmem:[%s0 + $0x440] sm:$0xff]
  %v167 = vld [vmem:[%s0 + $0x448] sm:$0xff]
  %v168 = vld [vmem:[%s0 + $0x450] sm:$0xff]
  %v169 = vld [vmem:[%s0 + $0x458] sm:$0xf]
  %v170 = vld [vmem:[%s0 + $0x45c] sm:$0xff]
  %v171 = vld [vmem:[%s0 + $0x464] sm:$0xff]
  %v172 = vld [vmem:[%s0 + $0x46c] sm:$0xff]
  %v173 = vld [vmem:[%s0 + $0x474] sm:$0xff]
  %v174 = vld [vmem:[%s0 + $0x47c] sm:$0xf]
  %v175 = vld [vmem:[%s0 + $0x480] sm:$0xff]
  %v176 = vld [vmem:[%s0 + $0x488] sm:$0xff]
  %v177 = vld [vmem:[%s0 + $0x490] sm:$0xff]
  %v178 = vld [vmem:[%s0 + $0x498] sm:$0xff]
  %v179 = vld [vmem:[%s0 + $0x4a0] sm:$0xf]
  %v180 = vld [vmem:[%s0 + $0x4a4] sm:$0xff]
  %v181 = vld [vmem:[%s0 + $0x4ac] sm:$0xff]
  %v182 = vld [vmem:[%s0 + $0x4b4] sm:$0xff]
  %v183 = vld [vmem:[%s0 + $0x4bc] sm:$0xff]
  %v184 = vld [vmem:[%s0 + $0x4c4] sm:$0xf]
  %v185 = vld [vmem:[%s0 + $0x4c8] sm:$0xff]
  %v186 = vld [vmem:[%s0 + $0x4d0] sm:$0xff]
  %v187 = vld [vmem:[%s0 + $0x4d8] sm:$0xff]
  %v188 = vld [vmem:[%s0 + $0x4e0] sm:$0xff]
  %v189 = vld [vmem:[%s0 + $0x4e8] sm:$0xf]
  %v190 = vld [vmem:[%s0 + $0x4ec] sm:$0xff]
  %v191 = vld [vmem:[%s0 + $0x4f4] sm:$0xff]
  %v192 = vld [vmem:[%s0 + $0x4fc] sm:$0xff]
  %v193 = vld [vmem:[%s0 + $0x504] sm:$0xff]
  %v194 = vld [vmem:[%s0 + $0x50c] sm:$0xf]
  %v195 = vld [vmem:[%s0 + $0x510] sm:$0xff]
  %v196 = vld [vmem:[%s0 + $0x518] sm:$0xff]
  %v197 = vld [vmem:[%s0 + $0x520] sm:$0xff]
  %v198 = vld [vmem:[%s0 + $0x528] sm:$0xff]
  %v199 = vld [vmem:[%s0 + $0x530] sm:$0xf]
  %v200 = vld [vmem:[%s0 + $0x534] sm:$0xff]
  %v201 = vld [vmem:[%s0 + $0x53c] sm:$0xff]
  %v202 = vld [vmem:[%s0 + $0x544] sm:$0xff]
  %v203 = vld [vmem:[%s0 + $0x54c] sm:$0xff]
  %v204 = vld [vmem:[%s0 + $0x554] sm:$0xf]
  %v205 = vld [vmem:[%s0 + $0x558] sm:$0xff]
  %v206 = vld [vmem:[%s0 + $0x560] sm:$0xff]
  %v207 = vld [vmem:[%s0 + $0x568] sm:$0xff]
  %v208 = vld [vmem:[%s0 + $0x570] sm:$0xff]
  %v209 = vld [vmem:[%s0 + $0x578] sm:$0xf]
  %v210 = vld [vmem:[%s0 + $0x57c] sm:$0xff]
  %v211 = vld [vmem:[%s0 + $0x584] sm:$0xff]
  %v212 = vld [vmem:[%s0 + $0x58c] sm:$0xff]
  %v213 = vld [vmem:[%s0 + $0x594] sm:$0xff]
  %v214 = vld [vmem:[%s0 + $0x59c] sm:$0xf]
  %v215 = vld [vmem:[%s0 + $0x5a0] sm:$0xff]
  %v216 = vld [vmem:[%s0 + $0x5a8] sm:$0xff]
  %v217 = vld [vmem:[%s0 + $0x5b0] sm:$0xff]
  %v218 = vld [vmem:[%s0 + $0x5b8] sm:$0xff]
  %v219 = vld [vmem:[%s0 + $0x5c0] sm:$0xf]
  %v220 = vld [vmem:[%s0 + $0x5c4] sm:$0xff]
  %v221 = vld [vmem:[%s0 + $0x5cc] sm:$0xff]
  %v222 = vld [vmem:[%s0 + $0x5d4] sm:$0xff]
  %v223 = vld [vmem:[%s0 + $0x5dc] sm:$0xff]
  %v224 = vld [vmem:[%s0 + $0x5e4] sm:$0xf]
  %v225 = vld [vmem:[%s0 + $0x5e8] sm:$0xff]
  %v226 = vld [vmem:[%s0 + $0x5f0] sm:$0xff]
  %v227 = vld [vmem:[%s0 + $0x5f8] sm:$0xff]
  %v228 = vld [vmem:[%s0 + $0x600] sm:$0xff]
  %v229 = vld [vmem:[%s0 + $0x608] sm:$0xf]
  %v230 = vld [vmem:[%s0 + $0x60c] sm:$0xff]
  %v231 = vld [vmem:[%s0 + $0x614] sm:$0xff]
  %v232 = vld [vmem:[%s0 + $0x61c] sm:$0xff]
  %v233 = vld [vmem:[%s0 + $0x624] sm:$0xff]
  %v234 = vld [vmem:[%s0 + $0x62c] sm:$0xf]
  %v235 = vld [vmem:[%s0 + $0x630] sm:$0xff]
  %v236 = vld [vmem:[%s0 + $0x638] sm:$0xff]
  %v237 = vld [vmem:[%s0 + $0x640] sm:$0xff]
  %v238 = vld [vmem:[%s0 + $0x648] sm:$0xff]
  %v239 = vld [vmem:[%s0 + $0x650] sm:$0xf]
  %v240 = vld [vmem:[%s0 + $0x654] sm:$0xff]
  %v241 = vld [vmem:[%s0 + $0x65c] sm:$0xff]
  %v242 = vld [vmem:[%s0 + $0x664] sm:$0xff]
  %v243 = vld [vmem:[%s0 + $0x66c] sm:$0xff]
  %v244 = vld [vmem:[%s0 + $0x674] sm:$0xf]
  %v245 = vld [vmem:[%s0 + $0x678] sm:$0xff]
  %v246 = vld [vmem:[%s0 + $0x680] sm:$0xff]
  %v247 = vld [vmem:[%s0 + $0x688] sm:$0xff]
  %v248 = vld [vmem:[%s0 + $0x690] sm:$0xff]
  %v249 = vld [vmem:[%s0 + $0x698] sm:$0xf]
  %v250 = vld [vmem:[%s0 + $0x69c] sm:$0xff]
  %v251 = vld [vmem:[%s0 + $0x6a4] sm:$0xff]
  %v252 = vld [vmem:[%s0 + $0x6ac] sm:$0xff]
  %v253 = vld [vmem:[%s0 + $0x6b4] sm:$0xff]
  %v254 = vld [vmem:[%s0 + $0x6bc] sm:$0xf]
  %v255 = vld [vmem:[%s0 + $0x6c0] sm:$0xff]
  %v256 = vld [vmem:[%s0 + $0x6c8] sm:$0xff]
  %v257 = vld [vmem:[%s0 + $0x6d0] sm:$0xff]
  %v258 = vld [vmem:[%s0 + $0x6d8] sm:$0xff]
  %v259 = vld [vmem:[%s0 + $0x6e0] sm:$0xf]
  %v260 = vld [vmem:[%s0 + $0x6e4] sm:$0xff]
  %v261 = vld [vmem:[%s0 + $0x6ec] sm:$0xff]
  %v262 = vld [vmem:[%s0 + $0x6f4] sm:$0xff]
  %v263 = vld [vmem:[%s0 + $0x6fc] sm:$0xff]
  %v264 = vld [vmem:[%s0 + $0x704] sm:$0xf]
  %v265 = vld [vmem:[%s0 + $0x708] sm:$0xff]
  %v266 = vld [vmem:[%s0 + $0x710] sm:$0xff]
  %v267 = vld [vmem:[%s0 + $0x718] sm:$0xff]
  %v268 = vld [vmem:[%s0 + $0x720] sm:$0xff]
  %v269 = vld [vmem:[%s0 + $0x728] sm:$0xf]
  %v270 = vld [vmem:[%s0 + $0x72c] sm:$0xff]
  %v271 = vld [vmem:[%s0 + $0x734] sm:$0xff]
  %v272 = vld [vmem:[%s0 + $0x73c] sm:$0xff]
  %v273 = vld [vmem:[%s0 + $0x744] sm:$0xff]
  %v274 = vld [vmem:[%s0 + $0x74c] sm:$0xf]
  %v275 = vld [vmem:[%s0 + $0x750] sm:$0xff]
  %v276 = vld [vmem:[%s0 + $0x758] sm:$0xff]
  %v277 = vld [vmem:[%s0 + $0x760] sm:$0xff]
  %v278 = vld [vmem:[%s0 + $0x768] sm:$0xff]
  %v279 = vld [vmem:[%s0 + $0x770] sm:$0xf]
  %v280 = vld [vmem:[%s0 + $0x774] sm:$0xff]
  %v281 = vld [vmem:[%s0 + $0x77c] sm:$0xff]
  %v282 = vld [vmem:[%s0 + $0x784] sm:$0xff]
  %v283 = vld [vmem:[%s0 + $0x78c] sm:$0xff]
  %v284 = vld [vmem:[%s0 + $0x794] sm:$0xf]
  %v285 = vld [vmem:[%s0 + $0x798] sm:$0xff]
  %v286 = vld [vmem:[%s0 + $0x7a0] sm:$0xff]
  %v287 = vld [vmem:[%s0 + $0x7a8] sm:$0xff]
  %v288 = vld [vmem:[%s0 + $0x7b0] sm:$0xff]
  %v289 = vld [vmem:[%s0 + $0x7b8] sm:$0xf]
  %v290 = vld [vmem:[%s0 + $0x7bc] sm:$0xff]
  %v291 = vld [vmem:[%s0 + $0x7c4] sm:$0xff]
  %v292 = vld [vmem:[%s0 + $0x7cc] sm:$0xff]
  %v293 = vld [vmem:[%s0 + $0x7d4] sm:$0xff]
  %v294 = vld [vmem:[%s0 + $0x7dc] sm:$0xf]
  %v295 = vld [vmem:[%s0 + $0x7e0] sm:$0xff]
  %v296 = vld [vmem:[%s0 + $0x7e8] sm:$0xff]
  %v297 = vld [vmem:[%s0 + $0x7f0] sm:$0xff]
  %v298 = vld [vmem:[%s0 + $0x7f8] sm:$0xff]
  %v299 = vld [vmem:[%s0 + $0x800] sm:$0xf]
  %v300 = vld [vmem:[%s0 + $0x804] sm:$0xff]
  %v301 = vld [vmem:[%s0 + $0x80c] sm:$0xff]
  %v302 = vld [vmem:[%s0 + $0x814] sm:$0xff]
  %v303 = vld [vmem:[%s0 + $0x81c] sm:$0xff]
  %v304 = vld [vmem:[%s0 + $0x824] sm:$0xf]
  %v305 = vld [vmem:[%s0 + $0x828] sm:$0xff]
  %v306 = vld [vmem:[%s0 + $0x830] sm:$0xff]
  %v307 = vld [vmem:[%s0 + $0x838] sm:$0xff]
  %v308 = vld [vmem:[%s0 + $0x840] sm:$0xff]
  %v309 = vld [vmem:[%s0 + $0x848] sm:$0xf]
  %v310 = vld [vmem:[%s0 + $0x84c] sm:$0xff]
  %v311 = vld [vmem:[%s0 + $0x854] sm:$0xff]
  %v312 = vld [vmem:[%s0 + $0x85c] sm:$0xff]
  %v313 = vld [vmem:[%s0 + $0x864] sm:$0xff]
  %v314 = vld [vmem:[%s0 + $0x86c] sm:$0xf]
  %v315 = vld [vmem:[%s0 + $0x870] sm:$0xff]
  %v316 = vld [vmem:[%s0 + $0x878] sm:$0xff]
  %v317 = vld [vmem:[%s0 + $0x880] sm:$0xff]
  %v318 = vld [vmem:[%s0 + $0x888] sm:$0xff]
  %v319 = vld [vmem:[%s0 + $0x890] sm:$0xf]
  %v320 = vld [vmem:[%s0 + $0x894] sm:$0xff]
  %v321 = vld [vmem:[%s0 + $0x89c] sm:$0xff]
  %v322 = vld [vmem:[%s0 + $0x8a4] sm:$0xff]
  %v323 = vld [vmem:[%s0 + $0x8ac] sm:$0xff]
  %v324 = vld [vmem:[%s0 + $0x8b4] sm:$0xf]
  %v325 = vld [vmem:[%s0 + $0x8b8] sm:$0xff]
  %v326 = vld [vmem:[%s0 + $0x8c0] sm:$0xff]
  %v327 = vld [vmem:[%s0 + $0x8c8] sm:$0xff]
  %v328 = vld [vmem:[%s0 + $0x8d0] sm:$0xff]
  %v329 = vld [vmem:[%s0 + $0x8d8] sm:$0xf]
  %v330 = vld [vmem:[%s0 + $0x8dc] sm:$0xff]
  %v331 = vld [vmem:[%s0 + $0x8e4] sm:$0xff]
  %v332 = vld [vmem:[%s0 + $0x8ec] sm:$0xff]
  %v333 = vld [vmem:[%s0 + $0x8f4] sm:$0xff]
  %v334 = vld [vmem:[%s0 + $0x8fc] sm:$0xf]
  %v335 = vld [vmem:[%s1] sm:$0xf]
  %v336 = vld [vmem:[%s1 + $0x4] sm:$0xf]
  %v337 = vld [vmem:[%s1 + $0x8] sm:$0xf]
  %v338 = vld [vmem:[%s1 + $0xc] sm:$0xf]
  %v339 = vld [vmem:[%s1 + $0x10] sm:$0xf]
  %v340 = vld [vmem:[%s1 + $0x14] sm:$0xf]
  %v341 = vld [vmem:[%s1 + $0x18] sm:$0xf]
  %v342 = vld [vmem:[%s1 + $0x1c] sm:$0xf]
  %v343 = vld [vmem:[%s1 + $0x20] sm:$0xf]
  %v344 = vld [vmem:[%s1 + $0x24] sm:$0xf]
  %v345 = vld [vmem:[%s1 + $0x28] sm:$0xf]
  %v346 = vld [vmem:[%s1 + $0x2c] sm:$0xf]
  %v347 = vld [vmem:[%s1 + $0x30] sm:$0xf]
  %v348 = vld [vmem:[%s1 + $0x34] sm:$0xf]
  %v349 = vld [vmem:[%s1 + $0x38] sm:$0xf]
  %v350 = vld [vmem:[%s1 + $0x3c] sm:$0xf]
  %v351 = vld [vmem:[%s1 + $0x40] sm:$0xf]
  %v352 = vld [vmem:[%s1 + $0x44] sm:$0xf]
  %v353 = vld [vmem:[%s1 + $0x48] sm:$0xf]
  %v354 = vld [vmem:[%s1 + $0x4c] sm:$0xf]
  %v355 = vld [vmem:[%s1 + $0x50] sm:$0xf]
  %v356 = vld [vmem:[%s1 + $0x54] sm:$0xf]
  %v357 = vld [vmem:[%s1 + $0x58] sm:$0xf]
  %v358 = vld [vmem:[%s1 + $0x5c] sm:$0xf]
  %v359 = vld [vmem:[%s1 + $0x60] sm:$0xf]
  %v360 = vld [vmem:[%s1 + $0x64] sm:$0xf]
  %v361 = vld [vmem:[%s1 + $0x68] sm:$0xf]
  %v362 = vld [vmem:[%s1 + $0x6c] sm:$0xf]
  %v363 = vld [vmem:[%s1 + $0x70] sm:$0xf]
  %v364 = vld [vmem:[%s1 + $0x74] sm:$0xf]
  %v365 = vld [vmem:[%s1 + $0x78] sm:$0xf]
  %v366 = vld [vmem:[%s1 + $0x7c] sm:$0xf]
  %v367 = vld [vmem:[%s1 + $0x80] sm:$0xf]
  %v368 = vld [vmem:[%s1 + $0x84] sm:$0xf]
  %v369 = vld [vmem:[%s1 + $0x88] sm:$0xf]
  %v370 = vld [vmem:[%s1 + $0x8c] sm:$0xf]
  %v371 = vld [vmem:[%s1 + $0x90] sm:$0xf]
  %v372 = vld [vmem:[%s1 + $0x94] sm:$0xf]
  %v373 = vld [vmem:[%s1 + $0x98] sm:$0xf]
  %v374 = vld [vmem:[%s1 + $0x9c] sm:$0xf]
  %v375 = vld [vmem:[%s1 + $0xa0] sm:$0xf]
  %v376 = vld [vmem:[%s1 + $0xa4] sm:$0xf]
  %v377 = vld [vmem:[%s1 + $0xa8] sm:$0xf]
  %v378 = vld [vmem:[%s1 + $0xac] sm:$0xf]
  %v379 = vld [vmem:[%s1 + $0xb0] sm:$0xf]
  %v380 = vld [vmem:[%s1 + $0xb4] sm:$0xf]
  %v381 = vld [vmem:[%s1 + $0xb8] sm:$0xf]
  %v382 = vld [vmem:[%s1 + $0xbc] sm:$0xf]
  %v383 = vld [vmem:[%s1 + $0xc0] sm:$0xf]
  %v384 = vld [vmem:[%s1 + $0xc4] sm:$0xf]
  %v385 = vld [vmem:[%s1 + $0xc8] sm:$0xf]
  %v386 = vld [vmem:[%s1 + $0xcc] sm:$0xf]
  %v387 = vld [vmem:[%s1 + $0xd0] sm:$0xf]
  %v388 = vld [vmem:[%s1 + $0xd4] sm:$0xf]
  %v389 = vld [vmem:[%s1 + $0xd8] sm:$0xf]
  %v390 = vld [vmem:[%s1 + $0xdc] sm:$0xf]
  %v391 = vld [vmem:[%s1 + $0xe0] sm:$0xf]
  %v392 = vld [vmem:[%s1 + $0xe4] sm:$0xf]
  %v393 = vld [vmem:[%s1 + $0xe8] sm:$0xf]
  %v394 = vld [vmem:[%s1 + $0xec] sm:$0xf]
  %v395 = vld [vmem:[%s1 + $0xf0] sm:$0xf]
  %v396 = vld [vmem:[%s1 + $0xf4] sm:$0xf]
  %v397 = vld [vmem:[%s1 + $0xf8] sm:$0xf]
  %v398 = vld [vmem:[%s1 + $0xfc] sm:$0xf]
  %v399 = vld [vmem:[%s1 + $0x100] sm:$0xf]
  %v400 = vld [vmem:[%s1 + $0x104] sm:$0xf]
  %v401 = vld [vmem:[%s1 + $0x108] sm:$0xf]
  %v402 = vld [vmem:[%s1 + $0x10c] sm:$0xf]
  %v403 = vld [vmem:[%s1 + $0x110] sm:$0xf]
  %v404 = vld [vmem:[%s1 + $0x114] sm:$0xf]
  %v405 = vld [vmem:[%s1 + $0x118] sm:$0xf]
  %v406 = vld [vmem:[%s1 + $0x11c] sm:$0xf]
  %v407 = vld [vmem:[%s1 + $0x120] sm:$0xf]
  %v408 = vld [vmem:[%s1 + $0x124] sm:$0xf]
  %v409 = vld [vmem:[%s1 + $0x128] sm:$0xf]
  %v410 = vld [vmem:[%s1 + $0x12c] sm:$0xf]
  %v411 = vld [vmem:[%s1 + $0x130] sm:$0xf]
  %v412 = vld [vmem:[%s1 + $0x134] sm:$0xf]
  %v413 = vld [vmem:[%s1 + $0x138] sm:$0xf]
  %v414 = vld [vmem:[%s1 + $0x13c] sm:$0xf]
  %v415 = vld [vmem:[%s1 + $0x140] sm:$0xf]
  %v416 = vld [vmem:[%s1 + $0x144] sm:$0xf]
  %v417 = vld [vmem:[%s1 + $0x148] sm:$0xf]
  %v418 = vld [vmem:[%s1 + $0x14c] sm:$0xf]
  %v419 = vld [vmem:[%s1 + $0x150] sm:$0xf]
  %v420 = vld [vmem:[%s1 + $0x154] sm:$0xf]
  %v421 = vld [vmem:[%s1 + $0x158] sm:$0xf]
  %v422 = vld [vmem:[%s1 + $0x15c] sm:$0xf]
  %v423 = vld [vmem:[%s1 + $0x160] sm:$0xf]
  %v424 = vld [vmem:[%s1 + $0x164] sm:$0xf]
  %v425 = vld [vmem:[%s1 + $0x168] sm:$0xf]
  %v426 = vld [vmem:[%s1 + $0x16c] sm:$0xf]
  %v427 = vld [vmem:[%s1 + $0x170] sm:$0xf]
  %v428 = vld [vmem:[%s1 + $0x174] sm:$0xf]
  %v429 = vld [vmem:[%s1 + $0x178] sm:$0xf]
  %v430 = vld [vmem:[%s1 + $0x17c] sm:$0xf]
  %v431 = vld [vmem:[%s1 + $0x180] sm:$0xf]
  %v432 = vld [vmem:[%s1 + $0x184] sm:$0xf]
  %v433 = vld [vmem:[%s1 + $0x188] sm:$0xf]
  %v434 = vld [vmem:[%s1 + $0x18c] sm:$0xf]
  %v435 = vld [vmem:[%s1 + $0x190] sm:$0xf]
  %v436 = vld [vmem:[%s1 + $0x194] sm:$0xf]
  %v437 = vld [vmem:[%s1 + $0x198] sm:$0xf]
  %v438 = vld [vmem:[%s1 + $0x19c] sm:$0xf]
  %v439 = vld [vmem:[%s1 + $0x1a0] sm:$0xf]
  %v440 = vld [vmem:[%s1 + $0x1a4] sm:$0xf]
  %v441 = vld [vmem:[%s1 + $0x1a8] sm:$0xf]
  %v442 = vld [vmem:[%s1 + $0x1ac] sm:$0xf]
  %v443 = vld [vmem:[%s1 + $0x1b0] sm:$0xf]
  %v444 = vld [vmem:[%s1 + $0x1b4] sm:$0xf]
  %v445 = vld [vmem:[%s1 + $0x1b8] sm:$0xf]
  %v446 = vld [vmem:[%s1 + $0x1bc] sm:$0xf]
  %v447 = vld [vmem:[%s1 + $0x1c0] sm:$0xf]
  %v448 = vld [vmem:[%s1 + $0x1c4] sm:$0xf]
  %v449 = vld [vmem:[%s1 + $0x1c8] sm:$0xf]
  %v450 = vld [vmem:[%s1 + $0x1cc] sm:$0xf]
  %v451 = vld [vmem:[%s1 + $0x1d0] sm:$0xf]
  %v452 = vld [vmem:[%s1 + $0x1d4] sm:$0xf]
  %v453 = vld [vmem:[%s1 + $0x1d8] sm:$0xf]
  %v454 = vld [vmem:[%s1 + $0x1dc] sm:$0xf]
  %v455 = vld [vmem:[%s1 + $0x1e0] sm:$0xf]
  %v456 = vld [vmem:[%s1 + $0x1e4] sm:$0xf]
  %v457 = vld [vmem:[%s1 + $0x1e8] sm:$0xf]
  %v458 = vld [vmem:[%s1 + $0x1ec] sm:$0xf]
  %v459 = vld [vmem:[%s1 + $0x1f0] sm:$0xf]
  %v460 = vld [vmem:[%s1 + $0x1f4] sm:$0xf]
  %v461 = vld [vmem:[%s1 + $0x1f8] sm:$0xf]
  %v462 = vld [vmem:[%s1 + $0x1fc] sm:$0xf]
  %v463 = vld [vmem:[%s1 + $0x200] sm:$0xf]
  %v464 = vld [vmem:[%s1 + $0x204] sm:$0xf]
  %v465 = vld [vmem:[%s1 + $0x208] sm:$0xf]
  %v466 = vld [vmem:[%s1 + $0x20c] sm:$0xf]
  %v467 = vld [vmem:[%s1 + $0x210] sm:$0xf]
  %v468 = vld [vmem:[%s1 + $0x214] sm:$0xf]
  %v469 = vld [vmem:[%s1 + $0x218] sm:$0xf]
  %v470 = vld [vmem:[%s1 + $0x21c] sm:$0xf]
  %v471 = vld [vmem:[%s1 + $0x220] sm:$0xf]
  %v472 = vld [vmem:[%s1 + $0x224] sm:$0xf]
  %v473 = vld [vmem:[%s1 + $0x228] sm:$0xf]
  %v474 = vld [vmem:[%s1 + $0x22c] sm:$0xf]
  %v475 = vld [vmem:[%s1 + $0x230] sm:$0xf]
  %v476 = vld [vmem:[%s1 + $0x234] sm:$0xf]
  %v477 = vld [vmem:[%s1 + $0x238] sm:$0xf]
  %v478 = vld [vmem:[%s1 + $0x23c] sm:$0xf]
  %v479 = vld [vmem:[%s2] sm:$0x1]
  %v481 = vlaneseq
  %v482 = vshrl.u32 %v481, 7
  %v483 = vsub.s32 0, %v482
  %v484 = vrot.slane %v479, %v483
  %v806 = vunpack.c.l.b16 %v15
  %v807 = vunpack.c.h.b16 %v15
  %v808 = vunpack.c.l.b16 %v16
  %v809 = vunpack.c.h.b16 %v16
  %v810 = vunpack.c.l.b16 %v17
  %v811 = vunpack.c.h.b16 %v17
  %v812 = vunpack.c.l.b16 %v18
  %v813 = vunpack.c.h.b16 %v18
  %v814 = vunpack.c.l.b16 %v19
  %v815 = vunpack.c.l.b16 %v20
  %v816 = vunpack.c.h.b16 %v20
  %v817 = vunpack.c.l.b16 %v21
  %v818 = vunpack.c.h.b16 %v21
  %v819 = vunpack.c.l.b16 %v22
  %v820 = vunpack.c.h.b16 %v22
  %v821 = vunpack.c.l.b16 %v23
  %v822 = vunpack.c.h.b16 %v23
  %v823 = vunpack.c.l.b16 %v24
  %v824 = vunpack.c.l.b16 %v25
  %v825 = vunpack.c.h.b16 %v25
  %v826 = vunpack.c.l.b16 %v26
  %v827 = vunpack.c.h.b16 %v26
  %v828 = vunpack.c.l.b16 %v27
  %v829 = vunpack.c.h.b16 %v27
  %v830 = vunpack.c.l.b16 %v28
  %v831 = vunpack.c.h.b16 %v28
  %v832 = vunpack.c.l.b16 %v29
  %v833 = vunpack.c.l.b16 %v30
  %v834 = vunpack.c.h.b16 %v30
  %v835 = vunpack.c.l.b16 %v31
  %v836 = vunpack.c.h.b16 %v31
  %v837 = vunpack.c.l.b16 %v32
  %v838 = vunpack.c.h.b16 %v32
  %v839 = vunpack.c.l.b16 %v33
  %v840 = vunpack.c.h.b16 %v33
  %v841 = vunpack.c.l.b16 %v34
  %v842 = vunpack.c.l.b16 %v35
  %v843 = vunpack.c.h.b16 %v35
  %v844 = vunpack.c.l.b16 %v36
  %v845 = vunpack.c.h.b16 %v36
  %v846 = vunpack.c.l.b16 %v37
  %v847 = vunpack.c.h.b16 %v37
  %v848 = vunpack.c.l.b16 %v38
  %v849 = vunpack.c.h.b16 %v38
  %v850 = vunpack.c.l.b16 %v39
  %v851 = vunpack.c.l.b16 %v40
  %v852 = vunpack.c.h.b16 %v40
  %v853 = vunpack.c.l.b16 %v41
  %v854 = vunpack.c.h.b16 %v41
  %v855 = vunpack.c.l.b16 %v42
  %v856 = vunpack.c.h.b16 %v42
  %v857 = vunpack.c.l.b16 %v43
  %v858 = vunpack.c.h.b16 %v43
  %v859 = vunpack.c.l.b16 %v44
  %v860 = vunpack.c.l.b16 %v45
  %v861 = vunpack.c.h.b16 %v45
  %v862 = vunpack.c.l.b16 %v46
  %v863 = vunpack.c.h.b16 %v46
  %v864 = vunpack.c.l.b16 %v47
  %v865 = vunpack.c.h.b16 %v47
  %v866 = vunpack.c.l.b16 %v48
  %v867 = vunpack.c.h.b16 %v48
  %v868 = vunpack.c.l.b16 %v49
  %v869 = vunpack.c.l.b16 %v50
  %v870 = vunpack.c.h.b16 %v50
  %v871 = vunpack.c.l.b16 %v51
  %v872 = vunpack.c.h.b16 %v51
  %v873 = vunpack.c.l.b16 %v52
  %v874 = vunpack.c.h.b16 %v52
  %v875 = vunpack.c.l.b16 %v53
  %v876 = vunpack.c.h.b16 %v53
  %v877 = vunpack.c.l.b16 %v54
  %v878 = vunpack.c.l.b16 %v55
  %v879 = vunpack.c.h.b16 %v55
  %v880 = vunpack.c.l.b16 %v56
  %v881 = vunpack.c.h.b16 %v56
  %v882 = vunpack.c.l.b16 %v57
  %v883 = vunpack.c.h.b16 %v57
  %v884 = vunpack.c.l.b16 %v58
  %v885 = vunpack.c.h.b16 %v58
  %v886 = vunpack.c.l.b16 %v59
  %v887 = vunpack.c.l.b16 %v60
  %v888 = vunpack.c.h.b16 %v60
  %v889 = vunpack.c.l.b16 %v61
  %v890 = vunpack.c.h.b16 %v61
  %v891 = vunpack.c.l.b16 %v62
  %v892 = vunpack.c.h.b16 %v62
  %v893 = vunpack.c.l.b16 %v63
  %v894 = vunpack.c.h.b16 %v63
  %v895 = vunpack.c.l.b16 %v64
  %v896 = vunpack.c.l.b16 %v65
  %v897 = vunpack.c.h.b16 %v65
  %v898 = vunpack.c.l.b16 %v66
  %v899 = vunpack.c.h.b16 %v66
  %v900 = vunpack.c.l.b16 %v67
  %v901 = vunpack.c.h.b16 %v67
  %v902 = vunpack.c.l.b16 %v68
  %v903 = vunpack.c.h.b16 %v68
  %v904 = vunpack.c.l.b16 %v69
  %v905 = vunpack.c.l.b16 %v70
  %v906 = vunpack.c.h.b16 %v70
  %v907 = vunpack.c.l.b16 %v71
  %v908 = vunpack.c.h.b16 %v71
  %v909 = vunpack.c.l.b16 %v72
  %v910 = vunpack.c.h.b16 %v72
  %v911 = vunpack.c.l.b16 %v73
  %v912 = vunpack.c.h.b16 %v73
  %v913 = vunpack.c.l.b16 %v74
  %v914 = vunpack.c.l.b16 %v75
  %v915 = vunpack.c.h.b16 %v75
  %v916 = vunpack.c.l.b16 %v76
  %v917 = vunpack.c.h.b16 %v76
  %v918 = vunpack.c.l.b16 %v77
  %v919 = vunpack.c.h.b16 %v77
  %v920 = vunpack.c.l.b16 %v78
  %v921 = vunpack.c.h.b16 %v78
  %v922 = vunpack.c.l.b16 %v79
  %v923 = vunpack.c.l.b16 %v80
  %v924 = vunpack.c.h.b16 %v80
  %v925 = vunpack.c.l.b16 %v81
  %v926 = vunpack.c.h.b16 %v81
  %v927 = vunpack.c.l.b16 %v82
  %v928 = vunpack.c.h.b16 %v82
  %v929 = vunpack.c.l.b16 %v83
  %v930 = vunpack.c.h.b16 %v83
  %v931 = vunpack.c.l.b16 %v84
  %v932 = vunpack.c.l.b16 %v85
  %v933 = vunpack.c.h.b16 %v85
  %v934 = vunpack.c.l.b16 %v86
  %v935 = vunpack.c.h.b16 %v86
  %v936 = vunpack.c.l.b16 %v87
  %v937 = vunpack.c.h.b16 %v87
  %v938 = vunpack.c.l.b16 %v88
  %v939 = vunpack.c.h.b16 %v88
  %v940 = vunpack.c.l.b16 %v89
  %v941 = vunpack.c.l.b16 %v90
  %v942 = vunpack.c.h.b16 %v90
  %v943 = vunpack.c.l.b16 %v91
  %v944 = vunpack.c.h.b16 %v91
  %v945 = vunpack.c.l.b16 %v92
  %v946 = vunpack.c.h.b16 %v92
  %v947 = vunpack.c.l.b16 %v93
  %v948 = vunpack.c.h.b16 %v93
  %v949 = vunpack.c.l.b16 %v94
  %v950 = vunpack.c.l.b16 %v95
  %v951 = vunpack.c.h.b16 %v95
  %v952 = vunpack.c.l.b16 %v96
  %v953 = vunpack.c.h.b16 %v96
  %v954 = vunpack.c.l.b16 %v97
  %v955 = vunpack.c.h.b16 %v97
  %v956 = vunpack.c.l.b16 %v98
  %v957 = vunpack.c.h.b16 %v98
  %v958 = vunpack.c.l.b16 %v99
  %v959 = vunpack.c.l.b16 %v100
  %v960 = vunpack.c.h.b16 %v100
  %v961 = vunpack.c.l.b16 %v101
  %v962 = vunpack.c.h.b16 %v101
  %v963 = vunpack.c.l.b16 %v102
  %v964 = vunpack.c.h.b16 %v102
  %v965 = vunpack.c.l.b16 %v103
  %v966 = vunpack.c.h.b16 %v103
  %v967 = vunpack.c.l.b16 %v104
  %v968 = vunpack.c.l.b16 %v105
  %v969 = vunpack.c.h.b16 %v105
  %v970 = vunpack.c.l.b16 %v106
  %v971 = vunpack.c.h.b16 %v106
  %v972 = vunpack.c.l.b16 %v107
  %v973 = vunpack.c.h.b16 %v107
  %v974 = vunpack.c.l.b16 %v108
  %v975 = vunpack.c.h.b16 %v108
  %v976 = vunpack.c.l.b16 %v109
  %v977 = vunpack.c.l.b16 %v110
  %v978 = vunpack.c.h.b16 %v110
  %v979 = vunpack.c.l.b16 %v111
  %v980 = vunpack.c.h.b16 %v111
  %v981 = vunpack.c.l.b16 %v112
  %v982 = vunpack.c.h.b16 %v112
  %v983 = vunpack.c.l.b16 %v113
  %v984 = vunpack.c.h.b16 %v113
  %v985 = vunpack.c.l.b16 %v114
  %v986 = vunpack.c.l.b16 %v115
  %v987 = vunpack.c.h.b16 %v115
  %v988 = vunpack.c.l.b16 %v116
  %v989 = vunpack.c.h.b16 %v116
  %v990 = vunpack.c.l.b16 %v117
  %v991 = vunpack.c.h.b16 %v117
  %v992 = vunpack.c.l.b16 %v118
  %v993 = vunpack.c.h.b16 %v118
  %v994 = vunpack.c.l.b16 %v119
  %v995 = vunpack.c.l.b16 %v120
  %v996 = vunpack.c.h.b16 %v120
  %v997 = vunpack.c.l.b16 %v121
  %v998 = vunpack.c.h.b16 %v121
  %v999 = vunpack.c.l.b16 %v122
  %v1000 = vunpack.c.h.b16 %v122
  %v1001 = vunpack.c.l.b16 %v123
  %v1002 = vunpack.c.h.b16 %v123
  %v1003 = vunpack.c.l.b16 %v124
  %v1004 = vunpack.c.l.b16 %v125
  %v1005 = vunpack.c.h.b16 %v125
  %v1006 = vunpack.c.l.b16 %v126
  %v1007 = vunpack.c.h.b16 %v126
  %v1008 = vunpack.c.l.b16 %v127
  %v1009 = vunpack.c.h.b16 %v127
  %v1010 = vunpack.c.l.b16 %v128
  %v1011 = vunpack.c.h.b16 %v128
  %v1012 = vunpack.c.l.b16 %v129
  %v1013 = vunpack.c.l.b16 %v130
  %v1014 = vunpack.c.h.b16 %v130
  %v1015 = vunpack.c.l.b16 %v131
  %v1016 = vunpack.c.h.b16 %v131
  %v1017 = vunpack.c.l.b16 %v132
  %v1018 = vunpack.c.h.b16 %v132
  %v1019 = vunpack.c.l.b16 %v133
  %v1020 = vunpack.c.h.b16 %v133
  %v1021 = vunpack.c.l.b16 %v134
  %v1022 = vunpack.c.l.b16 %v135
  %v1023 = vunpack.c.h.b16 %v135
  %v1024 = vunpack.c.l.b16 %v136
  %v1025 = vunpack.c.h.b16 %v136
  %v1026 = vunpack.c.l.b16 %v137
  %v1027 = vunpack.c.h.b16 %v137
  %v1028 = vunpack.c.l.b16 %v138
  %v1029 = vunpack.c.h.b16 %v138
  %v1030 = vunpack.c.l.b16 %v139
  %v1031 = vunpack.c.l.b16 %v140
  %v1032 = vunpack.c.h.b16 %v140
  %v1033 = vunpack.c.l.b16 %v141
  %v1034 = vunpack.c.h.b16 %v141
  %v1035 = vunpack.c.l.b16 %v142
  %v1036 = vunpack.c.h.b16 %v142
  %v1037 = vunpack.c.l.b16 %v143
  %v1038 = vunpack.c.h.b16 %v143
  %v1039 = vunpack.c.l.b16 %v144
  %v1040 = vunpack.c.l.b16 %v145
  %v1041 = vunpack.c.h.b16 %v145
  %v1042 = vunpack.c.l.b16 %v146
  %v1043 = vunpack.c.h.b16 %v146
  %v1044 = vunpack.c.l.b16 %v147
  %v1045 = vunpack.c.h.b16 %v147
  %v1046 = vunpack.c.l.b16 %v148
  %v1047 = vunpack.c.h.b16 %v148
  %v1048 = vunpack.c.l.b16 %v149
  %v1049 = vunpack.c.l.b16 %v150
  %v1050 = vunpack.c.h.b16 %v150
  %v1051 = vunpack.c.l.b16 %v151
  %v1052 = vunpack.c.h.b16 %v151
  %v1053 = vunpack.c.l.b16 %v152
  %v1054 = vunpack.c.h.b16 %v152
  %v1055 = vunpack.c.l.b16 %v153
  %v1056 = vunpack.c.h.b16 %v153
  %v1057 = vunpack.c.l.b16 %v154
  %v1058 = vunpack.c.l.b16 %v155
  %v1059 = vunpack.c.h.b16 %v155
  %v1060 = vunpack.c.l.b16 %v156
  %v1061 = vunpack.c.h.b16 %v156
  %v1062 = vunpack.c.l.b16 %v157
  %v1063 = vunpack.c.h.b16 %v157
  %v1064 = vunpack.c.l.b16 %v158
  %v1065 = vunpack.c.h.b16 %v158
  %v1066 = vunpack.c.l.b16 %v159
  %v1067 = vunpack.c.l.b16 %v160
  %v1068 = vunpack.c.h.b16 %v160
  %v1069 = vunpack.c.l.b16 %v161
  %v1070 = vunpack.c.h.b16 %v161
  %v1071 = vunpack.c.l.b16 %v162
  %v1072 = vunpack.c.h.b16 %v162
  %v1073 = vunpack.c.l.b16 %v163
  %v1074 = vunpack.c.h.b16 %v163
  %v1075 = vunpack.c.l.b16 %v164
  %v1076 = vunpack.c.l.b16 %v165
  %v1077 = vunpack.c.h.b16 %v165
  %v1078 = vunpack.c.l.b16 %v166
  %v1079 = vunpack.c.h.b16 %v166
  %v1080 = vunpack.c.l.b16 %v167
  %v1081 = vunpack.c.h.b16 %v167
  %v1082 = vunpack.c.l.b16 %v168
  %v1083 = vunpack.c.h.b16 %v168
  %v1084 = vunpack.c.l.b16 %v169
  %v1085 = vunpack.c.l.b16 %v170
  %v1086 = vunpack.c.h.b16 %v170
  %v1087 = vunpack.c.l.b16 %v171
  %v1088 = vunpack.c.h.b16 %v171
  %v1089 = vunpack.c.l.b16 %v172
  %v1090 = vunpack.c.h.b16 %v172
  %v1091 = vunpack.c.l.b16 %v173
  %v1092 = vunpack.c.h.b16 %v173
  %v1093 = vunpack.c.l.b16 %v174
  %v1094 = vunpack.c.l.b16 %v175
  %v1095 = vunpack.c.h.b16 %v175
  %v1096 = vunpack.c.l.b16 %v176
  %v1097 = vunpack.c.h.b16 %v176
  %v1098 = vunpack.c.l.b16 %v177
  %v1099 = vunpack.c.h.b16 %v177
  %v1100 = vunpack.c.l.b16 %v178
  %v1101 = vunpack.c.h.b16 %v178
  %v1102 = vunpack.c.l.b16 %v179
  %v1103 = vunpack.c.l.b16 %v180
  %v1104 = vunpack.c.h.b16 %v180
  %v1105 = vunpack.c.l.b16 %v181
  %v1106 = vunpack.c.h.b16 %v181
  %v1107 = vunpack.c.l.b16 %v182
  %v1108 = vunpack.c.h.b16 %v182
  %v1109 = vunpack.c.l.b16 %v183
  %v1110 = vunpack.c.h.b16 %v183
  %v1111 = vunpack.c.l.b16 %v184
  %v1112 = vunpack.c.l.b16 %v185
  %v1113 = vunpack.c.h.b16 %v185
  %v1114 = vunpack.c.l.b16 %v186
  %v1115 = vunpack.c.h.b16 %v186
  %v1116 = vunpack.c.l.b16 %v187
  %v1117 = vunpack.c.h.b16 %v187
  %v1118 = vunpack.c.l.b16 %v188
  %v1119 = vunpack.c.h.b16 %v188
  %v1120 = vunpack.c.l.b16 %v189
  %v1121 = vunpack.c.l.b16 %v190
  %v1122 = vunpack.c.h.b16 %v190
  %v1123 = vunpack.c.l.b16 %v191
  %v1124 = vunpack.c.h.b16 %v191
  %v1125 = vunpack.c.l.b16 %v192
  %v1126 = vunpack.c.h.b16 %v192
  %v1127 = vunpack.c.l.b16 %v193
  %v1128 = vunpack.c.h.b16 %v193
  %v1129 = vunpack.c.l.b16 %v194
  %v1130 = vunpack.c.l.b16 %v195
  %v1131 = vunpack.c.h.b16 %v195
  %v1132 = vunpack.c.l.b16 %v196
  %v1133 = vunpack.c.h.b16 %v196
  %v1134 = vunpack.c.l.b16 %v197
  %v1135 = vunpack.c.h.b16 %v197
  %v1136 = vunpack.c.l.b16 %v198
  %v1137 = vunpack.c.h.b16 %v198
  %v1138 = vunpack.c.l.b16 %v199
  %v1139 = vunpack.c.l.b16 %v200
  %v1140 = vunpack.c.h.b16 %v200
  %v1141 = vunpack.c.l.b16 %v201
  %v1142 = vunpack.c.h.b16 %v201
  %v1143 = vunpack.c.l.b16 %v202
  %v1144 = vunpack.c.h.b16 %v202
  %v1145 = vunpack.c.l.b16 %v203
  %v1146 = vunpack.c.h.b16 %v203
  %v1147 = vunpack.c.l.b16 %v204
  %v1148 = vunpack.c.l.b16 %v205
  %v1149 = vunpack.c.h.b16 %v205
  %v1150 = vunpack.c.l.b16 %v206
  %v1151 = vunpack.c.h.b16 %v206
  %v1152 = vunpack.c.l.b16 %v207
  %v1153 = vunpack.c.h.b16 %v207
  %v1154 = vunpack.c.l.b16 %v208
  %v1155 = vunpack.c.h.b16 %v208
  %v1156 = vunpack.c.l.b16 %v209
  %v1157 = vunpack.c.l.b16 %v210
  %v1158 = vunpack.c.h.b16 %v210
  %v1159 = vunpack.c.l.b16 %v211
  %v1160 = vunpack.c.h.b16 %v211
  %v1161 = vunpack.c.l.b16 %v212
  %v1162 = vunpack.c.h.b16 %v212
  %v1163 = vunpack.c.l.b16 %v213
  %v1164 = vunpack.c.h.b16 %v213
  %v1165 = vunpack.c.l.b16 %v214
  %v1166 = vunpack.c.l.b16 %v215
  %v1167 = vunpack.c.h.b16 %v215
  %v1168 = vunpack.c.l.b16 %v216
  %v1169 = vunpack.c.h.b16 %v216
  %v1170 = vunpack.c.l.b16 %v217
  %v1171 = vunpack.c.h.b16 %v217
  %v1172 = vunpack.c.l.b16 %v218
  %v1173 = vunpack.c.h.b16 %v218
  %v1174 = vunpack.c.l.b16 %v219
  %v1175 = vunpack.c.l.b16 %v220
  %v1176 = vunpack.c.h.b16 %v220
  %v1177 = vunpack.c.l.b16 %v221
  %v1178 = vunpack.c.h.b16 %v221
  %v1179 = vunpack.c.l.b16 %v222
  %v1180 = vunpack.c.h.b16 %v222
  %v1181 = vunpack.c.l.b16 %v223
  %v1182 = vunpack.c.h.b16 %v223
  %v1183 = vunpack.c.l.b16 %v224
  %v1184 = vunpack.c.l.b16 %v225
  %v1185 = vunpack.c.h.b16 %v225
  %v1186 = vunpack.c.l.b16 %v226
  %v1187 = vunpack.c.h.b16 %v226
  %v1188 = vunpack.c.l.b16 %v227
  %v1189 = vunpack.c.h.b16 %v227
  %v1190 = vunpack.c.l.b16 %v228
  %v1191 = vunpack.c.h.b16 %v228
  %v1192 = vunpack.c.l.b16 %v229
  %v1193 = vunpack.c.l.b16 %v230
  %v1194 = vunpack.c.h.b16 %v230
  %v1195 = vunpack.c.l.b16 %v231
  %v1196 = vunpack.c.h.b16 %v231
  %v1197 = vunpack.c.l.b16 %v232
  %v1198 = vunpack.c.h.b16 %v232
  %v1199 = vunpack.c.l.b16 %v233
  %v1200 = vunpack.c.h.b16 %v233
  %v1201 = vunpack.c.l.b16 %v234
  %v1202 = vunpack.c.l.b16 %v235
  %v1203 = vunpack.c.h.b16 %v235
  %v1204 = vunpack.c.l.b16 %v236
  %v1205 = vunpack.c.h.b16 %v236
  %v1206 = vunpack.c.l.b16 %v237
  %v1207 = vunpack.c.h.b16 %v237
  %v1208 = vunpack.c.l.b16 %v238
  %v1209 = vunpack.c.h.b16 %v238
  %v1210 = vunpack.c.l.b16 %v239
  %v1211 = vunpack.c.l.b16 %v240
  %v1212 = vunpack.c.h.b16 %v240
  %v1213 = vunpack.c.l.b16 %v241
  %v1214 = vunpack.c.h.b16 %v241
  %v1215 = vunpack.c.l.b16 %v242
  %v1216 = vunpack.c.h.b16 %v242
  %v1217 = vunpack.c.l.b16 %v243
  %v1218 = vunpack.c.h.b16 %v243
  %v1219 = vunpack.c.l.b16 %v244
  %v1220 = vunpack.c.l.b16 %v245
  %v1221 = vunpack.c.h.b16 %v245
  %v1222 = vunpack.c.l.b16 %v246
  %v1223 = vunpack.c.h.b16 %v246
  %v1224 = vunpack.c.l.b16 %v247
  %v1225 = vunpack.c.h.b16 %v247
  %v1226 = vunpack.c.l.b16 %v248
  %v1227 = vunpack.c.h.b16 %v248
  %v1228 = vunpack.c.l.b16 %v249
  %v1229 = vunpack.c.l.b16 %v250
  %v1230 = vunpack.c.h.b16 %v250
  %v1231 = vunpack.c.l.b16 %v251
  %v1232 = vunpack.c.h.b16 %v251
  %v1233 = vunpack.c.l.b16 %v252
  %v1234 = vunpack.c.h.b16 %v252
  %v1235 = vunpack.c.l.b16 %v253
  %v1236 = vunpack.c.h.b16 %v253
  %v1237 = vunpack.c.l.b16 %v254
  %v1238 = vunpack.c.l.b16 %v255
  %v1239 = vunpack.c.h.b16 %v255
  %v1240 = vunpack.c.l.b16 %v256
  %v1241 = vunpack.c.h.b16 %v256
  %v1242 = vunpack.c.l.b16 %v257
  %v1243 = vunpack.c.h.b16 %v257
  %v1244 = vunpack.c.l.b16 %v258
  %v1245 = vunpack.c.h.b16 %v258
  %v1246 = vunpack.c.l.b16 %v259
  %v1247 = vunpack.c.l.b16 %v260
  %v1248 = vunpack.c.h.b16 %v260
  %v1249 = vunpack.c.l.b16 %v261
  %v1250 = vunpack.c.h.b16 %v261
  %v1251 = vunpack.c.l.b16 %v262
  %v1252 = vunpack.c.h.b16 %v262
  %v1253 = vunpack.c.l.b16 %v263
  %v1254 = vunpack.c.h.b16 %v263
  %v1255 = vunpack.c.l.b16 %v264
  %v1256 = vunpack.c.l.b16 %v265
  %v1257 = vunpack.c.h.b16 %v265
  %v1258 = vunpack.c.l.b16 %v266
  %v1259 = vunpack.c.h.b16 %v266
  %v1260 = vunpack.c.l.b16 %v267
  %v1261 = vunpack.c.h.b16 %v267
  %v1262 = vunpack.c.l.b16 %v268
  %v1263 = vunpack.c.h.b16 %v268
  %v1264 = vunpack.c.l.b16 %v269
  %v1265 = vunpack.c.l.b16 %v270
  %v1266 = vunpack.c.h.b16 %v270
  %v1267 = vunpack.c.l.b16 %v271
  %v1268 = vunpack.c.h.b16 %v271
  %v1269 = vunpack.c.l.b16 %v272
  %v1270 = vunpack.c.h.b16 %v272
  %v1271 = vunpack.c.l.b16 %v273
  %v1272 = vunpack.c.h.b16 %v273
  %v1273 = vunpack.c.l.b16 %v274
  %v1274 = vunpack.c.l.b16 %v275
  %v1275 = vunpack.c.h.b16 %v275
  %v1276 = vunpack.c.l.b16 %v276
  %v1277 = vunpack.c.h.b16 %v276
  %v1278 = vunpack.c.l.b16 %v277
  %v1279 = vunpack.c.h.b16 %v277
  %v1280 = vunpack.c.l.b16 %v278
  %v1281 = vunpack.c.h.b16 %v278
  %v1282 = vunpack.c.l.b16 %v279
  %v1283 = vunpack.c.l.b16 %v280
  %v1284 = vunpack.c.h.b16 %v280
  %v1285 = vunpack.c.l.b16 %v281
  %v1286 = vunpack.c.h.b16 %v281
  %v1287 = vunpack.c.l.b16 %v282
  %v1288 = vunpack.c.h.b16 %v282
  %v1289 = vunpack.c.l.b16 %v283
  %v1290 = vunpack.c.h.b16 %v283
  %v1291 = vunpack.c.l.b16 %v284
  %v1292 = vunpack.c.l.b16 %v285
  %v1293 = vunpack.c.h.b16 %v285
  %v1294 = vunpack.c.l.b16 %v286
  %v1295 = vunpack.c.h.b16 %v286
  %v1296 = vunpack.c.l.b16 %v287
  %v1297 = vunpack.c.h.b16 %v287
  %v1298 = vunpack.c.l.b16 %v288
  %v1299 = vunpack.c.h.b16 %v288
  %v1300 = vunpack.c.l.b16 %v289
  %v1301 = vunpack.c.l.b16 %v290
  %v1302 = vunpack.c.h.b16 %v290
  %v1303 = vunpack.c.l.b16 %v291
  %v1304 = vunpack.c.h.b16 %v291
  %v1305 = vunpack.c.l.b16 %v292
  %v1306 = vunpack.c.h.b16 %v292
  %v1307 = vunpack.c.l.b16 %v293
  %v1308 = vunpack.c.h.b16 %v293
  %v1309 = vunpack.c.l.b16 %v294
  %v1310 = vunpack.c.l.b16 %v295
  %v1311 = vunpack.c.h.b16 %v295
  %v1312 = vunpack.c.l.b16 %v296
  %v1313 = vunpack.c.h.b16 %v296
  %v1314 = vunpack.c.l.b16 %v297
  %v1315 = vunpack.c.h.b16 %v297
  %v1316 = vunpack.c.l.b16 %v298
  %v1317 = vunpack.c.h.b16 %v298
  %v1318 = vunpack.c.l.b16 %v299
  %v1319 = vunpack.c.l.b16 %v300
  %v1320 = vunpack.c.h.b16 %v300
  %v1321 = vunpack.c.l.b16 %v301
  %v1322 = vunpack.c.h.b16 %v301
  %v1323 = vunpack.c.l.b16 %v302
  %v1324 = vunpack.c.h.b16 %v302
  %v1325 = vunpack.c.l.b16 %v303
  %v1326 = vunpack.c.h.b16 %v303
  %v1327 = vunpack.c.l.b16 %v304
  %v1328 = vunpack.c.l.b16 %v305
  %v1329 = vunpack.c.h.b16 %v305
  %v1330 = vunpack.c.l.b16 %v306
  %v1331 = vunpack.c.h.b16 %v306
  %v1332 = vunpack.c.l.b16 %v307
  %v1333 = vunpack.c.h.b16 %v307
  %v1334 = vunpack.c.l.b16 %v308
  %v1335 = vunpack.c.h.b16 %v308
  %v1336 = vunpack.c.l.b16 %v309
  %v1337 = vunpack.c.l.b16 %v310
  %v1338 = vunpack.c.h.b16 %v310
  %v1339 = vunpack.c.l.b16 %v311
  %v1340 = vunpack.c.h.b16 %v311
  %v1341 = vunpack.c.l.b16 %v312
  %v1342 = vunpack.c.h.b16 %v312
  %v1343 = vunpack.c.l.b16 %v313
  %v1344 = vunpack.c.h.b16 %v313
  %v1345 = vunpack.c.l.b16 %v314
  %v1346 = vunpack.c.l.b16 %v315
  %v1347 = vunpack.c.h.b16 %v315
  %v1348 = vunpack.c.l.b16 %v316
  %v1349 = vunpack.c.h.b16 %v316
  %v1350 = vunpack.c.l.b16 %v317
  %v1351 = vunpack.c.h.b16 %v317
  %v1352 = vunpack.c.l.b16 %v318
  %v1353 = vunpack.c.h.b16 %v318
  %v1354 = vunpack.c.l.b16 %v319
  %v1355 = vunpack.c.l.b16 %v320
  %v1356 = vunpack.c.h.b16 %v320
  %v1357 = vunpack.c.l.b16 %v321
  %v1358 = vunpack.c.h.b16 %v321
  %v1359 = vunpack.c.l.b16 %v322
  %v1360 = vunpack.c.h.b16 %v322
  %v1361 = vunpack.c.l.b16 %v323
  %v1362 = vunpack.c.h.b16 %v323
  %v1363 = vunpack.c.l.b16 %v324
  %v1364 = vunpack.c.l.b16 %v325
  %v1365 = vunpack.c.h.b16 %v325
  %v1366 = vunpack.c.l.b16 %v326
  %v1367 = vunpack.c.h.b16 %v326
  %v1368 = vunpack.c.l.b16 %v327
  %v1369 = vunpack.c.h.b16 %v327
  %v1370 = vunpack.c.l.b16 %v328
  %v1371 = vunpack.c.h.b16 %v328
  %v1372 = vunpack.c.l.b16 %v329
  %v1373 = vunpack.c.l.b16 %v330
  %v1374 = vunpack.c.h.b16 %v330
  %v1375 = vunpack.c.l.b16 %v331
  %v1376 = vunpack.c.h.b16 %v331
  %v1377 = vunpack.c.l.b16 %v332
  %v1378 = vunpack.c.h.b16 %v332
  %v1379 = vunpack.c.l.b16 %v333
  %v1380 = vunpack.c.h.b16 %v333
  %v1381 = vunpack.c.l.b16 %v334
  %v1382 = vpack.c.b16 %v815, %v806
  %v1383 = vpack.c.b16 %v816, %v807
  %v1384 = vpack.c.b16 %v817, %v808
  %v1385 = vpack.c.b16 %v818, %v809
  %v1386 = vpack.c.b16 %v819, %v810
  %v1387 = vpack.c.b16 %v820, %v811
  %v1388 = vpack.c.b16 %v821, %v812
  %v1389 = vpack.c.b16 %v822, %v813
  %v1390 = vpack.c.b16 %v823, %v814
  %v1391 = vpack.c.b16 %v833, %v824
  %v1392 = vpack.c.b16 %v834, %v825
  %v1393 = vpack.c.b16 %v835, %v826
  %v1394 = vpack.c.b16 %v836, %v827
  %v1395 = vpack.c.b16 %v837, %v828
  %v1396 = vpack.c.b16 %v838, %v829
  %v1397 = vpack.c.b16 %v839, %v830
  %v1398 = vpack.c.b16 %v840, %v831
  %v1399 = vpack.c.b16 %v841, %v832
  %v1400 = vpack.c.b16 %v851, %v842
  %v1401 = vpack.c.b16 %v852, %v843
  %v1402 = vpack.c.b16 %v853, %v844
  %v1403 = vpack.c.b16 %v854, %v845
  %v1404 = vpack.c.b16 %v855, %v846
  %v1405 = vpack.c.b16 %v856, %v847
  %v1406 = vpack.c.b16 %v857, %v848
  %v1407 = vpack.c.b16 %v858, %v849
  %v1408 = vpack.c.b16 %v859, %v850
  %v1409 = vpack.c.b16 %v869, %v860
  %v1410 = vpack.c.b16 %v870, %v861
  %v1411 = vpack.c.b16 %v871, %v862
  %v1412 = vpack.c.b16 %v872, %v863
  %v1413 = vpack.c.b16 %v873, %v864
  %v1414 = vpack.c.b16 %v874, %v865
  %v1415 = vpack.c.b16 %v875, %v866
  %v1416 = vpack.c.b16 %v876, %v867
  %v1417 = vpack.c.b16 %v877, %v868
  %v1418 = vpack.c.b16 %v887, %v878
  %v1419 = vpack.c.b16 %v888, %v879
  %v1420 = vpack.c.b16 %v889, %v880
  %v1421 = vpack.c.b16 %v890, %v881
  %v1422 = vpack.c.b16 %v891, %v882
  %v1423 = vpack.c.b16 %v892, %v883
  %v1424 = vpack.c.b16 %v893, %v884
  %v1425 = vpack.c.b16 %v894, %v885
  %v1426 = vpack.c.b16 %v895, %v886
  %v1427 = vpack.c.b16 %v905, %v896
  %v1428 = vpack.c.b16 %v906, %v897
  %v1429 = vpack.c.b16 %v907, %v898
  %v1430 = vpack.c.b16 %v908, %v899
  %v1431 = vpack.c.b16 %v909, %v900
  %v1432 = vpack.c.b16 %v910, %v901
  %v1433 = vpack.c.b16 %v911, %v902
  %v1434 = vpack.c.b16 %v912, %v903
  %v1435 = vpack.c.b16 %v913, %v904
  %v1436 = vpack.c.b16 %v923, %v914
  %v1437 = vpack.c.b16 %v924, %v915
  %v1438 = vpack.c.b16 %v925, %v916
  %v1439 = vpack.c.b16 %v926, %v917
  %v1440 = vpack.c.b16 %v927, %v918
  %v1441 = vpack.c.b16 %v928, %v919
  %v1442 = vpack.c.b16 %v929, %v920
  %v1443 = vpack.c.b16 %v930, %v921
  %v1444 = vpack.c.b16 %v931, %v922
  %v1445 = vpack.c.b16 %v941, %v932
  %v1446 = vpack.c.b16 %v942, %v933
  %v1447 = vpack.c.b16 %v943, %v934
  %v1448 = vpack.c.b16 %v944, %v935
  %v1449 = vpack.c.b16 %v945, %v936
  %v1450 = vpack.c.b16 %v946, %v937
  %v1451 = vpack.c.b16 %v947, %v938
  %v1452 = vpack.c.b16 %v948, %v939
  %v1453 = vpack.c.b16 %v949, %v940
  %v1454 = vpack.c.b16 %v959, %v950
  %v1455 = vpack.c.b16 %v960, %v951
  %v1456 = vpack.c.b16 %v961, %v952
  %v1457 = vpack.c.b16 %v962, %v953
  %v1458 = vpack.c.b16 %v963, %v954
  %v1459 = vpack.c.b16 %v964, %v955
  %v1460 = vpack.c.b16 %v965, %v956
  %v1461 = vpack.c.b16 %v966, %v957
  %v1462 = vpack.c.b16 %v967, %v958
  %v1463 = vpack.c.b16 %v977, %v968
  %v1464 = vpack.c.b16 %v978, %v969
  %v1465 = vpack.c.b16 %v979, %v970
  %v1466 = vpack.c.b16 %v980, %v971
  %v1467 = vpack.c.b16 %v981, %v972
  %v1468 = vpack.c.b16 %v982, %v973
  %v1469 = vpack.c.b16 %v983, %v974
  %v1470 = vpack.c.b16 %v984, %v975
  %v1471 = vpack.c.b16 %v985, %v976
  %v1472 = vpack.c.b16 %v995, %v986
  %v1473 = vpack.c.b16 %v996, %v987
  %v1474 = vpack.c.b16 %v997, %v988
  %v1475 = vpack.c.b16 %v998, %v989
  %v1476 = vpack.c.b16 %v999, %v990
  %v1477 = vpack.c.b16 %v1000, %v991
  %v1478 = vpack.c.b16 %v1001, %v992
  %v1479 = vpack.c.b16 %v1002, %v993
  %v1480 = vpack.c.b16 %v1003, %v994
  %v1481 = vpack.c.b16 %v1013, %v1004
  %v1482 = vpack.c.b16 %v1014, %v1005
  %v1483 = vpack.c.b16 %v1015, %v1006
  %v1484 = vpack.c.b16 %v1016, %v1007
  %v1485 = vpack.c.b16 %v1017, %v1008
  %v1486 = vpack.c.b16 %v1018, %v1009
  %v1487 = vpack.c.b16 %v1019, %v1010
  %v1488 = vpack.c.b16 %v1020, %v1011
  %v1489 = vpack.c.b16 %v1021, %v1012
  %v1490 = vpack.c.b16 %v1031, %v1022
  %v1491 = vpack.c.b16 %v1032, %v1023
  %v1492 = vpack.c.b16 %v1033, %v1024
  %v1493 = vpack.c.b16 %v1034, %v1025
  %v1494 = vpack.c.b16 %v1035, %v1026
  %v1495 = vpack.c.b16 %v1036, %v1027
  %v1496 = vpack.c.b16 %v1037, %v1028
  %v1497 = vpack.c.b16 %v1038, %v1029
  %v1498 = vpack.c.b16 %v1039, %v1030
  %v1499 = vpack.c.b16 %v1049, %v1040
  %v1500 = vpack.c.b16 %v1050, %v1041
  %v1501 = vpack.c.b16 %v1051, %v1042
  %v1502 = vpack.c.b16 %v1052, %v1043
  %v1503 = vpack.c.b16 %v1053, %v1044
  %v1504 = vpack.c.b16 %v1054, %v1045
  %v1505 = vpack.c.b16 %v1055, %v1046
  %v1506 = vpack.c.b16 %v1056, %v1047
  %v1507 = vpack.c.b16 %v1057, %v1048
  %v1508 = vpack.c.b16 %v1067, %v1058
  %v1509 = vpack.c.b16 %v1068, %v1059
  %v1510 = vpack.c.b16 %v1069, %v1060
  %v1511 = vpack.c.b16 %v1070, %v1061
  %v1512 = vpack.c.b16 %v1071, %v1062
  %v1513 = vpack.c.b16 %v1072, %v1063
  %v1514 = vpack.c.b16 %v1073, %v1064
  %v1515 = vpack.c.b16 %v1074, %v1065
  %v1516 = vpack.c.b16 %v1075, %v1066
  %v1517 = vpack.c.b16 %v1085, %v1076
  %v1518 = vpack.c.b16 %v1086, %v1077
  %v1519 = vpack.c.b16 %v1087, %v1078
  %v1520 = vpack.c.b16 %v1088, %v1079
  %v1521 = vpack.c.b16 %v1089, %v1080
  %v1522 = vpack.c.b16 %v1090, %v1081
  %v1523 = vpack.c.b16 %v1091, %v1082
  %v1524 = vpack.c.b16 %v1092, %v1083
  %v1525 = vpack.c.b16 %v1093, %v1084
  %v1526 = vpack.c.b16 %v1103, %v1094
  %v1527 = vpack.c.b16 %v1104, %v1095
  %v1528 = vpack.c.b16 %v1105, %v1096
  %v1529 = vpack.c.b16 %v1106, %v1097
  %v1530 = vpack.c.b16 %v1107, %v1098
  %v1531 = vpack.c.b16 %v1108, %v1099
  %v1532 = vpack.c.b16 %v1109, %v1100
  %v1533 = vpack.c.b16 %v1110, %v1101
  %v1534 = vpack.c.b16 %v1111, %v1102
  %v1535 = vpack.c.b16 %v1121, %v1112
  %v1536 = vpack.c.b16 %v1122, %v1113
  %v1537 = vpack.c.b16 %v1123, %v1114
  %v1538 = vpack.c.b16 %v1124, %v1115
  %v1539 = vpack.c.b16 %v1125, %v1116
  %v1540 = vpack.c.b16 %v1126, %v1117
  %v1541 = vpack.c.b16 %v1127, %v1118
  %v1542 = vpack.c.b16 %v1128, %v1119
  %v1543 = vpack.c.b16 %v1129, %v1120
  %v1544 = vpack.c.b16 %v1139, %v1130
  %v1545 = vpack.c.b16 %v1140, %v1131
  %v1546 = vpack.c.b16 %v1141, %v1132
  %v1547 = vpack.c.b16 %v1142, %v1133
  %v1548 = vpack.c.b16 %v1143, %v1134
  %v1549 = vpack.c.b16 %v1144, %v1135
  %v1550 = vpack.c.b16 %v1145, %v1136
  %v1551 = vpack.c.b16 %v1146, %v1137
  %v1552 = vpack.c.b16 %v1147, %v1138
  %v1553 = vpack.c.b16 %v1157, %v1148
  %v1554 = vpack.c.b16 %v1158, %v1149
  %v1555 = vpack.c.b16 %v1159, %v1150
  %v1556 = vpack.c.b16 %v1160, %v1151
  %v1557 = vpack.c.b16 %v1161, %v1152
  %v1558 = vpack.c.b16 %v1162, %v1153
  %v1559 = vpack.c.b16 %v1163, %v1154
  %v1560 = vpack.c.b16 %v1164, %v1155
  %v1561 = vpack.c.b16 %v1165, %v1156
  %v1562 = vpack.c.b16 %v1175, %v1166
  %v1563 = vpack.c.b16 %v1176, %v1167
  %v1564 = vpack.c.b16 %v1177, %v1168
  %v1565 = vpack.c.b16 %v1178, %v1169
  %v1566 = vpack.c.b16 %v1179, %v1170
  %v1567 = vpack.c.b16 %v1180, %v1171
  %v1568 = vpack.c.b16 %v1181, %v1172
  %v1569 = vpack.c.b16 %v1182, %v1173
  %v1570 = vpack.c.b16 %v1183, %v1174
  %v1571 = vpack.c.b16 %v1193, %v1184
  %v1572 = vpack.c.b16 %v1194, %v1185
  %v1573 = vpack.c.b16 %v1195, %v1186
  %v1574 = vpack.c.b16 %v1196, %v1187
  %v1575 = vpack.c.b16 %v1197, %v1188
  %v1576 = vpack.c.b16 %v1198, %v1189
  %v1577 = vpack.c.b16 %v1199, %v1190
  %v1578 = vpack.c.b16 %v1200, %v1191
  %v1579 = vpack.c.b16 %v1201, %v1192
  %v1580 = vpack.c.b16 %v1211, %v1202
  %v1581 = vpack.c.b16 %v1212, %v1203
  %v1582 = vpack.c.b16 %v1213, %v1204
  %v1583 = vpack.c.b16 %v1214, %v1205
  %v1584 = vpack.c.b16 %v1215, %v1206
  %v1585 = vpack.c.b16 %v1216, %v1207
  %v1586 = vpack.c.b16 %v1217, %v1208
  %v1587 = vpack.c.b16 %v1218, %v1209
  %v1588 = vpack.c.b16 %v1219, %v1210
  %v1589 = vpack.c.b16 %v1229, %v1220
  %v1590 = vpack.c.b16 %v1230, %v1221
  %v1591 = vpack.c.b16 %v1231, %v1222
  %v1592 = vpack.c.b16 %v1232, %v1223
  %v1593 = vpack.c.b16 %v1233, %v1224
  %v1594 = vpack.c.b16 %v1234, %v1225
  %v1595 = vpack.c.b16 %v1235, %v1226
  %v1596 = vpack.c.b16 %v1236, %v1227
  %v1597 = vpack.c.b16 %v1237, %v1228
  %v1598 = vpack.c.b16 %v1247, %v1238
  %v1599 = vpack.c.b16 %v1248, %v1239
  %v1600 = vpack.c.b16 %v1249, %v1240
  %v1601 = vpack.c.b16 %v1250, %v1241
  %v1602 = vpack.c.b16 %v1251, %v1242
  %v1603 = vpack.c.b16 %v1252, %v1243
  %v1604 = vpack.c.b16 %v1253, %v1244
  %v1605 = vpack.c.b16 %v1254, %v1245
  %v1606 = vpack.c.b16 %v1255, %v1246
  %v1607 = vpack.c.b16 %v1265, %v1256
  %v1608 = vpack.c.b16 %v1266, %v1257
  %v1609 = vpack.c.b16 %v1267, %v1258
  %v1610 = vpack.c.b16 %v1268, %v1259
  %v1611 = vpack.c.b16 %v1269, %v1260
  %v1612 = vpack.c.b16 %v1270, %v1261
  %v1613 = vpack.c.b16 %v1271, %v1262
  %v1614 = vpack.c.b16 %v1272, %v1263
  %v1615 = vpack.c.b16 %v1273, %v1264
  %v1616 = vpack.c.b16 %v1283, %v1274
  %v1617 = vpack.c.b16 %v1284, %v1275
  %v1618 = vpack.c.b16 %v1285, %v1276
  %v1619 = vpack.c.b16 %v1286, %v1277
  %v1620 = vpack.c.b16 %v1287, %v1278
  %v1621 = vpack.c.b16 %v1288, %v1279
  %v1622 = vpack.c.b16 %v1289, %v1280
  %v1623 = vpack.c.b16 %v1290, %v1281
  %v1624 = vpack.c.b16 %v1291, %v1282
  %v1625 = vpack.c.b16 %v1301, %v1292
  %v1626 = vpack.c.b16 %v1302, %v1293
  %v1627 = vpack.c.b16 %v1303, %v1294
  %v1628 = vpack.c.b16 %v1304, %v1295
  %v1629 = vpack.c.b16 %v1305, %v1296
  %v1630 = vpack.c.b16 %v1306, %v1297
  %v1631 = vpack.c.b16 %v1307, %v1298
  %v1632 = vpack.c.b16 %v1308, %v1299
  %v1633 = vpack.c.b16 %v1309, %v1300
  %v1634 = vpack.c.b16 %v1319, %v1310
  %v1635 = vpack.c.b16 %v1320, %v1311
  %v1636 = vpack.c.b16 %v1321, %v1312
  %v1637 = vpack.c.b16 %v1322, %v1313
  %v1638 = vpack.c.b16 %v1323, %v1314
  %v1639 = vpack.c.b16 %v1324, %v1315
  %v1640 = vpack.c.b16 %v1325, %v1316
  %v1641 = vpack.c.b16 %v1326, %v1317
  %v1642 = vpack.c.b16 %v1327, %v1318
  %v1643 = vpack.c.b16 %v1337, %v1328
  %v1644 = vpack.c.b16 %v1338, %v1329
  %v1645 = vpack.c.b16 %v1339, %v1330
  %v1646 = vpack.c.b16 %v1340, %v1331
  %v1647 = vpack.c.b16 %v1341, %v1332
  %v1648 = vpack.c.b16 %v1342, %v1333
  %v1649 = vpack.c.b16 %v1343, %v1334
  %v1650 = vpack.c.b16 %v1344, %v1335
  %v1651 = vpack.c.b16 %v1345, %v1336
  %v1652 = vpack.c.b16 %v1355, %v1346
  %v1653 = vpack.c.b16 %v1356, %v1347
  %v1654 = vpack.c.b16 %v1357, %v1348
  %v1655 = vpack.c.b16 %v1358, %v1349
  %v1656 = vpack.c.b16 %v1359, %v1350
  %v1657 = vpack.c.b16 %v1360, %v1351
  %v1658 = vpack.c.b16 %v1361, %v1352
  %v1659 = vpack.c.b16 %v1362, %v1353
  %v1660 = vpack.c.b16 %v1363, %v1354
  %v1661 = vpack.c.b16 %v1373, %v1364
  %v1662 = vpack.c.b16 %v1374, %v1365
  %v1663 = vpack.c.b16 %v1375, %v1366
  %v1664 = vpack.c.b16 %v1376, %v1367
  %v1665 = vpack.c.b16 %v1377, %v1368
  %v1666 = vpack.c.b16 %v1378, %v1369
  %v1667 = vpack.c.b16 %v1379, %v1370
  %v1668 = vpack.c.b16 %v1380, %v1371
  %v1669 = vpack.c.b16 %v1381, %v1372
  %v2102 = vunpack.c.l.b16 %v335
  %v2103 = vunpack.c.l.b16 %v336
  %v2104 = vunpack.c.l.b16 %v337
  %v2105 = vunpack.c.l.b16 %v338
  %v2106 = vunpack.c.l.b16 %v339
  %v2107 = vunpack.c.l.b16 %v340
  %v2108 = vunpack.c.l.b16 %v341
  %v2109 = vunpack.c.l.b16 %v342
  %v2110 = vunpack.c.l.b16 %v343
  %v2111 = vunpack.c.l.b16 %v344
  %v2112 = vunpack.c.l.b16 %v345
  %v2113 = vunpack.c.l.b16 %v346
  %v2114 = vunpack.c.l.b16 %v347
  %v2115 = vunpack.c.l.b16 %v348
  %v2116 = vunpack.c.l.b16 %v349
  %v2117 = vunpack.c.l.b16 %v350
  %v2118 = vunpack.c.l.b16 %v351
  %v2119 = vunpack.c.l.b16 %v352
  %v2120 = vunpack.c.l.b16 %v353
  %v2121 = vunpack.c.l.b16 %v354
  %v2122 = vunpack.c.l.b16 %v355
  %v2123 = vunpack.c.l.b16 %v356
  %v2124 = vunpack.c.l.b16 %v357
  %v2125 = vunpack.c.l.b16 %v358
  %v2126 = vunpack.c.l.b16 %v359
  %v2127 = vunpack.c.l.b16 %v360
  %v2128 = vunpack.c.l.b16 %v361
  %v2129 = vunpack.c.l.b16 %v362
  %v2130 = vunpack.c.l.b16 %v363
  %v2131 = vunpack.c.l.b16 %v364
  %v2132 = vunpack.c.l.b16 %v365
  %v2133 = vunpack.c.l.b16 %v366
  %v2134 = vunpack.c.l.b16 %v367
  %v2135 = vunpack.c.l.b16 %v368
  %v2136 = vunpack.c.l.b16 %v369
  %v2137 = vunpack.c.l.b16 %v370
  %v2138 = vunpack.c.l.b16 %v371
  %v2139 = vunpack.c.l.b16 %v372
  %v2140 = vunpack.c.l.b16 %v373
  %v2141 = vunpack.c.l.b16 %v374
  %v2142 = vunpack.c.l.b16 %v375
  %v2143 = vunpack.c.l.b16 %v376
  %v2144 = vunpack.c.l.b16 %v377
  %v2145 = vunpack.c.l.b16 %v378
  %v2146 = vunpack.c.l.b16 %v379
  %v2147 = vunpack.c.l.b16 %v380
  %v2148 = vunpack.c.l.b16 %v381
  %v2149 = vunpack.c.l.b16 %v382
  %v2150 = vunpack.c.l.b16 %v383
  %v2151 = vunpack.c.l.b16 %v384
  %v2152 = vunpack.c.l.b16 %v385
  %v2153 = vunpack.c.l.b16 %v386
  %v2154 = vunpack.c.l.b16 %v387
  %v2155 = vunpack.c.l.b16 %v388
  %v2156 = vunpack.c.l.b16 %v389
  %v2157 = vunpack.c.l.b16 %v390
  %v2158 = vunpack.c.l.b16 %v391
  %v2159 = vunpack.c.l.b16 %v392
  %v2160 = vunpack.c.l.b16 %v393
  %v2161 = vunpack.c.l.b16 %v394
  %v2162 = vunpack.c.l.b16 %v395
  %v2163 = vunpack.c.l.b16 %v396
  %v2164 = vunpack.c.l.b16 %v397
  %v2165 = vunpack.c.l.b16 %v398
  %v2166 = vunpack.c.l.b16 %v399
  %v2167 = vunpack.c.l.b16 %v400
  %v2168 = vunpack.c.l.b16 %v401
  %v2169 = vunpack.c.l.b16 %v402
  %v2170 = vunpack.c.l.b16 %v403
  %v2171 = vunpack.c.l.b16 %v404
  %v2172 = vunpack.c.l.b16 %v405
  %v2173 = vunpack.c.l.b16 %v406
  %v2174 = vunpack.c.l.b16 %v407
  %v2175 = vunpack.c.l.b16 %v408
  %v2176 = vunpack.c.l.b16 %v409
  %v2177 = vunpack.c.l.b16 %v410
  %v2178 = vunpack.c.l.b16 %v411
  %v2179 = vunpack.c.l.b16 %v412
  %v2180 = vunpack.c.l.b16 %v413
  %v2181 = vunpack.c.l.b16 %v414
  %v2182 = vunpack.c.l.b16 %v415
  %v2183 = vunpack.c.l.b16 %v416
  %v2184 = vunpack.c.l.b16 %v417
  %v2185 = vunpack.c.l.b16 %v418
  %v2186 = vunpack.c.l.b16 %v419
  %v2187 = vunpack.c.l.b16 %v420
  %v2188 = vunpack.c.l.b16 %v421
  %v2189 = vunpack.c.l.b16 %v422
  %v2190 = vunpack.c.l.b16 %v423
  %v2191 = vunpack.c.l.b16 %v424
  %v2192 = vunpack.c.l.b16 %v425
  %v2193 = vunpack.c.l.b16 %v426
  %v2194 = vunpack.c.l.b16 %v427
  %v2195 = vunpack.c.l.b16 %v428
  %v2196 = vunpack.c.l.b16 %v429
  %v2197 = vunpack.c.l.b16 %v430
  %v2198 = vunpack.c.l.b16 %v431
  %v2199 = vunpack.c.l.b16 %v432
  %v2200 = vunpack.c.l.b16 %v433
  %v2201 = vunpack.c.l.b16 %v434
  %v2202 = vunpack.c.l.b16 %v435
  %v2203 = vunpack.c.l.b16 %v436
  %v2204 = vunpack.c.l.b16 %v437
  %v2205 = vunpack.c.l.b16 %v438
  %v2206 = vunpack.c.l.b16 %v439
  %v2207 = vunpack.c.l.b16 %v440
  %v2208 = vunpack.c.l.b16 %v441
  %v2209 = vunpack.c.l.b16 %v442
  %v2210 = vunpack.c.l.b16 %v443
  %v2211 = vunpack.c.l.b16 %v444
  %v2212 = vunpack.c.l.b16 %v445
  %v2213 = vunpack.c.l.b16 %v446
  %v2214 = vunpack.c.l.b16 %v447
  %v2215 = vunpack.c.l.b16 %v448
  %v2216 = vunpack.c.l.b16 %v449
  %v2217 = vunpack.c.l.b16 %v450
  %v2218 = vunpack.c.l.b16 %v451
  %v2219 = vunpack.c.l.b16 %v452
  %v2220 = vunpack.c.l.b16 %v453
  %v2221 = vunpack.c.l.b16 %v454
  %v2222 = vunpack.c.l.b16 %v455
  %v2223 = vunpack.c.l.b16 %v456
  %v2224 = vunpack.c.l.b16 %v457
  %v2225 = vunpack.c.l.b16 %v458
  %v2226 = vunpack.c.l.b16 %v459
  %v2227 = vunpack.c.l.b16 %v460
  %v2228 = vunpack.c.l.b16 %v461
  %v2229 = vunpack.c.l.b16 %v462
  %v2230 = vunpack.c.l.b16 %v463
  %v2231 = vunpack.c.l.b16 %v464
  %v2232 = vunpack.c.l.b16 %v465
  %v2233 = vunpack.c.l.b16 %v466
  %v2234 = vunpack.c.l.b16 %v467
  %v2235 = vunpack.c.l.b16 %v468
  %v2236 = vunpack.c.l.b16 %v469
  %v2237 = vunpack.c.l.b16 %v470
  %v2238 = vunpack.c.l.b16 %v471
  %v2239 = vunpack.c.l.b16 %v472
  %v2240 = vunpack.c.l.b16 %v473
  %v2241 = vunpack.c.l.b16 %v474
  %v2242 = vunpack.c.l.b16 %v475
  %v2243 = vunpack.c.l.b16 %v476
  %v2244 = vunpack.c.l.b16 %v477
  %v2245 = vunpack.c.l.b16 %v478
  %v2246 = vpack.c.b16 %v2103, %v2102
  %v2247 = vpack.c.b16 %v2105, %v2104
  %v2248 = vpack.c.b16 %v2107, %v2106
  %v2249 = vpack.c.b16 %v2109, %v2108
  %v2250 = vpack.c.b16 %v2111, %v2110
  %v2251 = vpack.c.b16 %v2113, %v2112
  %v2252 = vpack.c.b16 %v2115, %v2114
  %v2253 = vpack.c.b16 %v2117, %v2116
  %v2254 = vpack.c.b16 %v2119, %v2118
  %v2255 = vpack.c.b16 %v2121, %v2120
  %v2256 = vpack.c.b16 %v2123, %v2122
  %v2257 = vpack.c.b16 %v2125, %v2124
  %v2258 = vpack.c.b16 %v2127, %v2126
  %v2259 = vpack.c.b16 %v2129, %v2128
  %v2260 = vpack.c.b16 %v2131, %v2130
  %v2261 = vpack.c.b16 %v2133, %v2132
  %v2262 = vpack.c.b16 %v2135, %v2134
  %v2263 = vpack.c.b16 %v2137, %v2136
  %v2264 = vpack.c.b16 %v2139, %v2138
  %v2265 = vpack.c.b16 %v2141, %v2140
  %v2266 = vpack.c.b16 %v2143, %v2142
  %v2267 = vpack.c.b16 %v2145, %v2144
  %v2268 = vpack.c.b16 %v2147, %v2146
  %v2269 = vpack.c.b16 %v2149, %v2148
  %v2270 = vpack.c.b16 %v2151, %v2150
  %v2271 = vpack.c.b16 %v2153, %v2152
  %v2272 = vpack.c.b16 %v2155, %v2154
  %v2273 = vpack.c.b16 %v2157, %v2156
  %v2274 = vpack.c.b16 %v2159, %v2158
  %v2275 = vpack.c.b16 %v2161, %v2160
  %v2276 = vpack.c.b16 %v2163, %v2162
  %v2277 = vpack.c.b16 %v2165, %v2164
  %v2278 = vpack.c.b16 %v2167, %v2166
  %v2279 = vpack.c.b16 %v2169, %v2168
  %v2280 = vpack.c.b16 %v2171, %v2170
  %v2281 = vpack.c.b16 %v2173, %v2172
  %v2282 = vpack.c.b16 %v2175, %v2174
  %v2283 = vpack.c.b16 %v2177, %v2176
  %v2284 = vpack.c.b16 %v2179, %v2178
  %v2285 = vpack.c.b16 %v2181, %v2180
  %v2286 = vpack.c.b16 %v2183, %v2182
  %v2287 = vpack.c.b16 %v2185, %v2184
  %v2288 = vpack.c.b16 %v2187, %v2186
  %v2289 = vpack.c.b16 %v2189, %v2188
  %v2290 = vpack.c.b16 %v2191, %v2190
  %v2291 = vpack.c.b16 %v2193, %v2192
  %v2292 = vpack.c.b16 %v2195, %v2194
  %v2293 = vpack.c.b16 %v2197, %v2196
  %v2294 = vpack.c.b16 %v2199, %v2198
  %v2295 = vpack.c.b16 %v2201, %v2200
  %v2296 = vpack.c.b16 %v2203, %v2202
  %v2297 = vpack.c.b16 %v2205, %v2204
  %v2298 = vpack.c.b16 %v2207, %v2206
  %v2299 = vpack.c.b16 %v2209, %v2208
  %v2300 = vpack.c.b16 %v2211, %v2210
  %v2301 = vpack.c.b16 %v2213, %v2212
  %v2302 = vpack.c.b16 %v2215, %v2214
  %v2303 = vpack.c.b16 %v2217, %v2216
  %v2304 = vpack.c.b16 %v2219, %v2218
  %v2305 = vpack.c.b16 %v2221, %v2220
  %v2306 = vpack.c.b16 %v2223, %v2222
  %v2307 = vpack.c.b16 %v2225, %v2224
  %v2308 = vpack.c.b16 %v2227, %v2226
  %v2309 = vpack.c.b16 %v2229, %v2228
  %v2310 = vpack.c.b16 %v2231, %v2230
  %v2311 = vpack.c.b16 %v2233, %v2232
  %v2312 = vpack.c.b16 %v2235, %v2234
  %v2313 = vpack.c.b16 %v2237, %v2236
  %v2314 = vpack.c.b16 %v2239, %v2238
  %v2315 = vpack.c.b16 %v2241, %v2240
  %v2316 = vpack.c.b16 %v2243, %v2242
  %v2317 = vpack.c.b16 %v2245, %v2244
  %2390 = vmatprep.subr.bf16.mxu0 0
  %2391 = vmatpush1.bf16.msra.mxu0 %v2246
  %2392 = vmatprep.subr.bf16.mxu0 0
  %2393 = vmatpush1.bf16.msra.mxu0 %v2247
  %2394 = vmatprep.subr.bf16.mxu0 0
  %2395 = vmatpush1.bf16.msra.mxu0 %v2248
  %2396 = vmatprep.subr.bf16.mxu0 0
  %2397 = vmatpush1.bf16.msra.mxu0 %v2249
  %2398 = vmatprep.subr.bf16.mxu0 0
  %2399 = vmatpush1.bf16.msra.mxu0 %v2250
  %2400 = vmatprep.subr.bf16.mxu0 0
  %2401 = vmatpush1.bf16.msra.mxu0 %v2251
  %2402 = vmatprep.subr.bf16.mxu0 0
  %2403 = vmatpush1.bf16.msra.mxu0 %v2252
  %2404 = vmatprep.subr.bf16.mxu0 0
  %2405 = vmatpush1.bf16.msra.mxu0 %v2253
  %2406 = vmatprep.subr.bf16.mxu0 0
  %2407 = vmatpush1.bf16.msra.mxu0 %v2254
  %2408 = vmatprep.subr.bf16.mxu0 0
  %2409 = vmatpush1.bf16.msra.mxu0 %v2255
  %2410 = vmatprep.subr.bf16.mxu0 0
  %2411 = vmatpush1.bf16.msra.mxu0 %v2256
  %2412 = vmatprep.subr.bf16.mxu0 0
  %2413 = vmatpush1.bf16.msra.mxu0 %v2257
  %2414 = vmatprep.subr.bf16.mxu0 0
  %2415 = vmatpush1.bf16.msra.mxu0 %v2258
  %2416 = vmatprep.subr.bf16.mxu0 0
  %2417 = vmatpush1.bf16.msra.mxu0 %v2259
  %2418 = vmatprep.subr.bf16.mxu0 0
  %2419 = vmatpush1.bf16.msra.mxu0 %v2260
  %2420 = vmatprep.subr.bf16.mxu0 0
  %2421 = vmatpush1.bf16.msra.mxu0 %v2261
  %2422 = vmatprep.mubr.bf16.mxu0 %v1383
  %2423 = vmatmul.mubr.bf16.gmra.mrb[0].mxu0 %v1382
  %v2424 = vpop.f32.mrb[0].mxu0
  %v2425 = vadd.f32 %v484, %v2424
  %v2426 = vpop.f32.mrb[0].mxu0
  %v2427 = vpop.f32.mrb[0].mxu0
  %v2428 = vadd.f32 %v484, %v2427
  %v2429 = vpop.f32.mrb[0].mxu0
  %2430 = vmatprep.mubr.bf16.mxu0 %v1392
  %2431 = vmatmul.mubr.bf16.gmra.mrb[0].mxu0 %v1391
  %v2432 = vpop.f32.mrb[0].mxu0
  %v2433 = vadd.f32 %v484, %v2432
  %v2434 = vpop.f32.mrb[0].mxu0
  %v2435 = vpop.f32.mrb[0].mxu0
  %v2436 = vadd.f32 %v484, %v2435
  %v2437 = vpop.f32.mrb[0].mxu0
  %2438 = vmatprep.mubr.bf16.mxu0 %v1401
  %2439 = vmatmul.mubr.bf16.gmra.mrb[0].mxu0 %v1400
  %v2440 = vpop.f32.mrb[0].mxu0
  %v2441 = vadd.f32 %v484, %v2440
  %v2442 = vpop.f32.mrb[0].mxu0
  %v2443 = vpop.f32.mrb[0].mxu0
  %v2444 = vadd.f32 %v484, %v2443
  %v2445 = vpop.f32.mrb[0].mxu0
  %2446 = vmatprep.mubr.bf16.mxu0 %v1410
  %2447 = vmatmul.mubr.bf16.gmra.mrb[0].mxu0 %v1409
  %v2448 = vpop.f32.mrb[0].mxu0
  %v2449 = vadd.f32 %v484, %v2448
  %v2450 = vpop.f32.mrb[0].mxu0
  %v2451 = vpop.f32.mrb[0].mxu0
  %v2452 = vadd.f32 %v484, %v2451
  %v2453 = vpop.f32.mrb[0].mxu0
  %2454 = vmatprep.mubr.bf16.mxu0 %v1419
  %2455 = vmatmul.mubr.bf16.gmra.mrb[0].mxu0 %v1418
  %v2456 = vpop.f32.mrb[0].mxu0
  %v2457 = vadd.f32 %v484, %v2456
  %v2458 = vpop.f32.mrb[0].mxu0
  %v2459 = vpop.f32.mrb[0].mxu0
  %v2460 = vadd.f32 %v484, %v2459
  %v2461 = vpop.f32.mrb[0].mxu0
  %2462 = vmatprep.mubr.bf16.mxu0 %v1428
  %2463 = vmatmul.mubr.bf16.gmra.mrb[0].mxu0 %v1427
  %v2464 = vpop.f32.mrb[0].mxu0
  %v2465 = vadd.f32 %v484, %v2464
  %v2466 = vpop.f32.mrb[0].mxu0
  %v2467 = vpop.f32.mrb[0].mxu0
  %v2468 = vadd.f32 %v484, %v2467
  %v2469 = vpop.f32.mrb[0].mxu0
  %2470 = vmatprep.mubr.bf16.mxu0 %v1437
  %2471 = vmatmul.mubr.bf16.gmra.mrb[0].mxu0 %v1436
  %v2472 = vpop.f32.mrb[0].mxu0
  %v2473 = vadd.f32 %v484, %v2472
  %v2474 = vpop.f32.mrb[0].mxu0
  %v2475 = vpop.f32.mrb[0].mxu0
  %v2476 = vadd.f32 %v484, %v2475
  %v2477 = vpop.f32.mrb[0].mxu0
  %2478 = vmatprep.mubr.bf16.mxu0 %v1446
  %2479 = vmatmul.mubr.bf16.gmra.mrb[0].mxu0 %v1445
  %v2480 = vpop.f32.mrb[0].mxu0
  %v2481 = vadd.f32 %v484, %v2480
  %v2482 = vpop.f32.mrb[0].mxu0
  %v2483 = vpop.f32.mrb[0].mxu0
  %v2484 = vadd.f32 %v484, %v2483
  %v2485 = vpop.f32.mrb[0].mxu0
  %2486 = vmatprep.mubr.bf16.mxu0 %v1455
  %2487 = vmatmul.mubr.bf16.gmra.mrb[0].mxu0 %v1454
  %v2488 = vpop.f32.mrb[0].mxu0
  %v2489 = vadd.f32 %v484, %v2488
  %v2490 = vpop.f32.mrb[0].mxu0
  %v2491 = vpop.f32.mrb[0].mxu0
  %v2492 = vadd.f32 %v484, %v2491
  %v2493 = vpop.f32.mrb[0].mxu0
  %2494 = vmatprep.mubr.bf16.mxu0 %v1464
  %2495 = vmatmul.mubr.bf16.gmra.mrb[0].mxu0 %v1463
  %v2496 = vpop.f32.mrb[0].mxu0
  %v2497 = vadd.f32 %v484, %v2496
  %v2498 = vpop.f32.mrb[0].mxu0
  %v2499 = vpop.f32.mrb[0].mxu0
  %v2500 = vadd.f32 %v484, %v2499
  %v2501 = vpop.f32.mrb[0].mxu0
  %2502 = vmatprep.mubr.bf16.mxu0 %v1473
  %2503 = vmatmul.mubr.bf16.gmra.mrb[0].mxu0 %v1472
  %v2504 = vpop.f32.mrb[0].mxu0
  %v2505 = vadd.f32 %v484, %v2504
  %v2506 = vpop.f32.mrb[0].mxu0
  %v2507 = vpop.f32.mrb[0].mxu0
  %v2508 = vadd.f32 %v484, %v2507
  %v2509 = vpop.f32.mrb[0].mxu0
  %2510 = vmatprep.mubr.bf16.mxu0 %v1482
  %2511 = vmatmul.mubr.bf16.gmra.mrb[0].mxu0 %v1481
  %v2512 = vpop.f32.mrb[0].mxu0
  %v2513 = vadd.f32 %v484, %v2512
  %v2514 = vpop.f32.mrb[0].mxu0
  %v2515 = vpop.f32.mrb[0].mxu0
  %v2516 = vadd.f32 %v484, %v2515
  %v2517 = vpop.f32.mrb[0].mxu0
  %2518 = vmatprep.mubr.bf16.mxu0 %v1491
  %2519 = vmatmul.mubr.bf16.gmra.mrb[0].mxu0 %v1490
  %v2520 = vpop.f32.mrb[0].mxu0
  %v2521 = vadd.f32 %v484, %v2520
  %v2522 = vpop.f32.mrb[0].mxu0
  %v2523 = vpop.f32.mrb[0].mxu0
  %v2524 = vadd.f32 %v484, %v2523
  %v2525 = vpop.f32.mrb[0].mxu0
  %2526 = vmatprep.mubr.bf16.mxu0 %v1500
  %2527 = vmatmul.mubr.bf16.gmra.mrb[0].mxu0 %v1499
  %v2528 = vpop.f32.mrb[0].mxu0
  %v2529 = vadd.f32 %v484, %v2528
  %v2530 = vpop.f32.mrb[0].mxu0
  %v2531 = vpop.f32.mrb[0].mxu0
  %v2532 = vadd.f32 %v484, %v2531
  %v2533 = vpop.f32.mrb[0].mxu0
  %2534 = vmatprep.mubr.bf16.mxu0 %v1509
  %2535 = vmatmul.mubr.bf16.gmra.mrb[0].mxu0 %v1508
  %v2536 = vpop.f32.mrb[0].mxu0
  %v2537 = vadd.f32 %v484, %v2536
  %v2538 = vpop.f32.mrb[0].mxu0
  %v2539 = vpop.f32.mrb[0].mxu0
  %v2540 = vadd.f32 %v484, %v2539
  %v2541 = vpop.f32.mrb[0].mxu0
  %2542 = vmatprep.mubr.bf16.mxu0 %v1518
  %2543 = vmatmul.mubr.bf16.gmra.mrb[0].mxu0 %v1517
  %v2544 = vpop.f32.mrb[0].mxu0
  %v2545 = vadd.f32 %v484, %v2544
  %v2546 = vpop.f32.mrb[0].mxu0
  %v2547 = vpop.f32.mrb[0].mxu0
  %v2548 = vadd.f32 %v484, %v2547
  %v2549 = vpop.f32.mrb[0].mxu0
  %2550 = vmatprep.mubr.bf16.mxu0 %v1527
  %2551 = vmatmul.mubr.bf16.gmra.mrb[0].mxu0 %v1526
  %v2552 = vpop.f32.mrb[0].mxu0
  %v2553 = vadd.f32 %v484, %v2552
  %v2554 = vpop.f32.mrb[0].mxu0
  %v2555 = vpop.f32.mrb[0].mxu0
  %v2556 = vadd.f32 %v484, %v2555
  %v2557 = vpop.f32.mrb[0].mxu0
  %2558 = vmatprep.mubr.bf16.mxu0 %v1536
  %2559 = vmatmul.mubr.bf16.gmra.mrb[0].mxu0 %v1535
  %v2560 = vpop.f32.mrb[0].mxu0
  %v2561 = vadd.f32 %v484, %v2560
  %v2562 = vpop.f32.mrb[0].mxu0
  %v2563 = vpop.f32.mrb[0].mxu0
  %v2564 = vadd.f32 %v484, %v2563
  %v2565 = vpop.f32.mrb[0].mxu0
  %2566 = vmatprep.mubr.bf16.mxu0 %v1545
  %2567 = vmatmul.mubr.bf16.gmra.mrb[0].mxu0 %v1544
  %v2568 = vpop.f32.mrb[0].mxu0
  %v2569 = vadd.f32 %v484, %v2568
  %v2570 = vpop.f32.mrb[0].mxu0
  %v2571 = vpop.f32.mrb[0].mxu0
  %v2572 = vadd.f32 %v484, %v2571
  %v2573 = vpop.f32.mrb[0].mxu0
  %2574 = vmatprep.mubr.bf16.mxu0 %v1554
  %2575 = vmatmul.mubr.bf16.gmra.mrb[0].mxu0 %v1553
  %v2576 = vpop.f32.mrb[0].mxu0
  %v2577 = vadd.f32 %v484, %v2576
  %v2578 = vpop.f32.mrb[0].mxu0
  %v2579 = vpop.f32.mrb[0].mxu0
  %v2580 = vadd.f32 %v484, %v2579
  %v2581 = vpop.f32.mrb[0].mxu0
  %2582 = vmatprep.mubr.bf16.mxu0 %v1563
  %2583 = vmatmul.mubr.bf16.gmra.mrb[0].mxu0 %v1562
  %v2584 = vpop.f32.mrb[0].mxu0
  %v2585 = vadd.f32 %v484, %v2584
  %v2586 = vpop.f32.mrb[0].mxu0
  %v2587 = vpop.f32.mrb[0].mxu0
  %v2588 = vadd.f32 %v484, %v2587
  %v2589 = vpop.f32.mrb[0].mxu0
  %2590 = vmatprep.mubr.bf16.mxu0 %v1572
  %2591 = vmatmul.mubr.bf16.gmra.mrb[0].mxu0 %v1571
  %v2592 = vpop.f32.mrb[0].mxu0
  %v2593 = vadd.f32 %v484, %v2592
  %v2594 = vpop.f32.mrb[0].mxu0
  %v2595 = vpop.f32.mrb[0].mxu0
  %v2596 = vadd.f32 %v484, %v2595
  %v2597 = vpop.f32.mrb[0].mxu0
  %2598 = vmatprep.mubr.bf16.mxu0 %v1581
  %2599 = vmatmul.mubr.bf16.gmra.mrb[0].mxu0 %v1580
  %v2600 = vpop.f32.mrb[0].mxu0
  %v2601 = vadd.f32 %v484, %v2600
  %v2602 = vpop.f32.mrb[0].mxu0
  %v2603 = vpop.f32.mrb[0].mxu0
  %v2604 = vadd.f32 %v484, %v2603
  %v2605 = vpop.f32.mrb[0].mxu0
  %2606 = vmatprep.mubr.bf16.mxu0 %v1590
  %2607 = vmatmul.mubr.bf16.gmra.mrb[0].mxu0 %v1589
  %v2608 = vpop.f32.mrb[0].mxu0
  %v2609 = vadd.f32 %v484, %v2608
  %v2610 = vpop.f32.mrb[0].mxu0
  %v2611 = vpop.f32.mrb[0].mxu0
  %v2612 = vadd.f32 %v484, %v2611
  %v2613 = vpop.f32.mrb[0].mxu0
  %2614 = vmatprep.mubr.bf16.mxu0 %v1599
  %2615 = vmatmul.mubr.bf16.gmra.mrb[0].mxu0 %v1598
  %v2616 = vpop.f32.mrb[0].mxu0
  %v2617 = vadd.f32 %v484, %v2616
  %v2618 = vpop.f32.mrb[0].mxu0
  %v2619 = vpop.f32.mrb[0].mxu0
  %v2620 = vadd.f32 %v484, %v2619
  %v2621 = vpop.f32.mrb[0].mxu0
  %2622 = vmatprep.mubr.bf16.mxu0 %v1608
  %2623 = vmatmul.mubr.bf16.gmra.mrb[0].mxu0 %v1607
  %v2624 = vpop.f32.mrb[0].mxu0
  %v2625 = vadd.f32 %v484, %v2624
  %v2626 = vpop.f32.mrb[0].mxu0
  %v2627 = vpop.f32.mrb[0].mxu0
  %v2628 = vadd.f32 %v484, %v2627
  %v2629 = vpop.f32.mrb[0].mxu0
  %2630 = vmatprep.mubr.bf16.mxu0 %v1617
  %2631 = vmatmul.mubr.bf16.gmra.mrb[0].mxu0 %v1616
  %v2632 = vpop.f32.mrb[0].mxu0
  %v2633 = vadd.f32 %v484, %v2632
  %v2634 = vpop.f32.mrb[0].mxu0
  %v2635 = vpop.f32.mrb[0].mxu0
  %v2636 = vadd.f32 %v484, %v2635
  %v2637 = vpop.f32.mrb[0].mxu0
  %2638 = vmatprep.mubr.bf16.mxu0 %v1626
  %2639 = vmatmul.mubr.bf16.gmra.mrb[0].mxu0 %v1625
  %v2640 = vpop.f32.mrb[0].mxu0
  %v2641 = vadd.f32 %v484, %v2640
  %v2642 = vpop.f32.mrb[0].mxu0
  %v2643 = vpop.f32.mrb[0].mxu0
  %v2644 = vadd.f32 %v484, %v2643
  %v2645 = vpop.f32.mrb[0].mxu0
  %2646 = vmatprep.mubr.bf16.mxu0 %v1635
  %2647 = vmatmul.mubr.bf16.gmra.mrb[0].mxu0 %v1634
  %v2648 = vpop.f32.mrb[0].mxu0
  %v2649 = vadd.f32 %v484, %v2648
  %v2650 = vpop.f32.mrb[0].mxu0
  %v2651 = vpop.f32.mrb[0].mxu0
  %v2652 = vadd.f32 %v484, %v2651
  %v2653 = vpop.f32.mrb[0].mxu0
  %2654 = vmatprep.mubr.bf16.mxu0 %v1644
  %2655 = vmatmul.mubr.bf16.gmra.mrb[0].mxu0 %v1643
  %v2656 = vpop.f32.mrb[0].mxu0
  %v2657 = vadd.f32 %v484, %v2656
  %v2658 = vpop.f32.mrb[0].mxu0
  %v2659 = vpop.f32.mrb[0].mxu0
  %v2660 = vadd.f32 %v484, %v2659
  %v2661 = vpop.f32.mrb[0].mxu0
  %2662 = vmatprep.mubr.bf16.mxu0 %v1653
  %2663 = vmatmul.mubr.bf16.gmra.mrb[0].mxu0 %v1652
  %v2664 = vpop.f32.mrb[0].mxu0
  %v2665 = vadd.f32 %v484, %v2664
  %v2666 = vpop.f32.mrb[0].mxu0
  %v2667 = vpop.f32.mrb[0].mxu0
  %v2668 = vadd.f32 %v484, %v2667
  %v2669 = vpop.f32.mrb[0].mxu0
  %2670 = vmatprep.mubr.bf16.mxu0 %v1662
  %2671 = vmatmul.mubr.bf16.gmra.mrb[0].mxu0 %v1661
  %v2672 = vpop.f32.mrb[0].mxu0
  %v2673 = vadd.f32 %v484, %v2672
  %v2674 = vpop.f32.mrb[0].mxu0
  %v2675 = vpop.f32.mrb[0].mxu0
  %v2676 = vadd.f32 %v484, %v2675
  %v2677 = vpop.f32.mrb[0].mxu0
  %2678 = vdwg.mxu0
  %2679 = vmatprep.subr.bf16.mxu0 0
  %2680 = vmatpush1.bf16.msra.mxu0 %v2262
  %2681 = vmatprep.subr.bf16.mxu0 0
  %2682 = vmatpush1.bf16.msra.mxu0 %v2263
  %2683 = vmatprep.subr.bf16.mxu0 0
  %2684 = vmatpush1.bf16.msra.mxu0 %v2264
  %2685 = vmatprep.subr.bf16.mxu0 0
  %2686 = vmatpush1.bf16.msra.mxu0 %v2265
  %2687 = vmatprep.subr.bf16.mxu0 0
  %2688 = vmatpush1.bf16.msra.mxu0 %v2266
  %2689 = vmatprep.subr.bf16.mxu0 0
  %2690 = vmatpush1.bf16.msra.mxu0 %v2267
  %2691 = vmatprep.subr.bf16.mxu0 0
  %2692 = vmatpush1.bf16.msra.mxu0 %v2268
  %2693 = vmatprep.subr.bf16.mxu0 0
  %2694 = vmatpush1.bf16.msra.mxu0 %v2269
  %2695 = vmatprep.subr.bf16.mxu0 0
  %2696 = vmatpush1.bf16.msra.mxu0 %v2270
  %2697 = vmatprep.subr.bf16.mxu0 0
  %2698 = vmatpush1.bf16.msra.mxu0 %v2271
  %2699 = vmatprep.subr.bf16.mxu0 0
  %2700 = vmatpush1.bf16.msra.mxu0 %v2272
  %2701 = vmatprep.subr.bf16.mxu0 0
  %2702 = vmatpush1.bf16.msra.mxu0 %v2273
  %2703 = vmatprep.subr.bf16.mxu0 0
  %2704 = vmatpush1.bf16.msra.mxu0 %v2274
  %2705 = vmatprep.subr.bf16.mxu0 0
  %2706 = vmatpush1.bf16.msra.mxu0 %v2275
  %2707 = vmatprep.subr.bf16.mxu0 0
  %2708 = vmatpush1.bf16.msra.mxu0 %v2276
  %2709 = vmatprep.subr.bf16.mxu0 0
  %2710 = vmatpush1.bf16.msra.mxu0 %v2277
  %2711 = vmatprep.mubr.bf16.mxu0 %v1385
  %2712 = vmatmul.mubr.bf16.gmra.mrb[0].mxu0 %v1384
  %v2713 = vpop.f32.mrb[0].mxu0
  %v2714 = vadd.f32 %v2425, %v2713
  %v2715 = vpop.f32.mrb[0].mxu0
  %v2716 = vpop.f32.mrb[0].mxu0
  %v2717 = vadd.f32 %v2428, %v2716
  %v2718 = vpop.f32.mrb[0].mxu0
  %2719 = vmatprep.mubr.bf16.mxu0 %v1394
  %2720 = vmatmul.mubr.bf16.gmra.mrb[0].mxu0 %v1393
  %v2721 = vpop.f32.mrb[0].mxu0
  %v2722 = vadd.f32 %v2433, %v2721
  %v2723 = vpop.f32.mrb[0].mxu0
  %v2724 = vpop.f32.mrb[0].mxu0
  %v2725 = vadd.f32 %v2436, %v2724
  %v2726 = vpop.f32.mrb[0].mxu0
  %2727 = vmatprep.mubr.bf16.mxu0 %v1403
  %2728 = vmatmul.mubr.bf16.gmra.mrb[0].mxu0 %v1402
  %v2729 = vpop.f32.mrb[0].mxu0
  %v2730 = vadd.f32 %v2441, %v2729
  %v2731 = vpop.f32.mrb[0].mxu0
  %v2732 = vpop.f32.mrb[0].mxu0
  %v2733 = vadd.f32 %v2444, %v2732
  %v2734 = vpop.f32.mrb[0].mxu0
  %2735 = vmatprep.mubr.bf16.mxu0 %v1412
  %2736 = vmatmul.mubr.bf16.gmra.mrb[0].mxu0 %v1411
  %v2737 = vpop.f32.mrb[0].mxu0
  %v2738 = vadd.f32 %v2449, %v2737
  %v2739 = vpop.f32.mrb[0].mxu0
  %v2740 = vpop.f32.mrb[0].mxu0
  %v2741 = vadd.f32 %v2452, %v2740
  %v2742 = vpop.f32.mrb[0].mxu0
  %2743 = vmatprep.mubr.bf16.mxu0 %v1421
  %2744 = vmatmul.mubr.bf16.gmra.mrb[0].mxu0 %v1420
  %v2745 = vpop.f32.mrb[0].mxu0
  %v2746 = vadd.f32 %v2457, %v2745
  %v2747 = vpop.f32.mrb[0].mxu0
  %v2748 = vpop.f32.mrb[0].mxu0
  %v2749 = vadd.f32 %v2460, %v2748
  %v2750 = vpop.f32.mrb[0].mxu0
  %2751 = vmatprep.mubr.bf16.mxu0 %v1430
  %2752 = vmatmul.mubr.bf16.gmra.mrb[0].mxu0 %v1429
  %v2753 = vpop.f32.mrb[0].mxu0
  %v2754 = vadd.f32 %v2465, %v2753
  %v2755 = vpop.f32.mrb[0].mxu0
  %v2756 = vpop.f32.mrb[0].mxu0
  %v2757 = vadd.f32 %v2468, %v2756
  %v2758 = vpop.f32.mrb[0].mxu0
  %2759 = vmatprep.mubr.bf16.mxu0 %v1439
  %2760 = vmatmul.mubr.bf16.gmra.mrb[0].mxu0 %v1438
  %v2761 = vpop.f32.mrb[0].mxu0
  %v2762 = vadd.f32 %v2473, %v2761
  %v2763 = vpop.f32.mrb[0].mxu0
  %v2764 = vpop.f32.mrb[0].mxu0
  %v2765 = vadd.f32 %v2476, %v2764
  %v2766 = vpop.f32.mrb[0].mxu0
  %2767 = vmatprep.mubr.bf16.mxu0 %v1448
  %2768 = vmatmul.mubr.bf16.gmra.mrb[0].mxu0 %v1447
  %v2769 = vpop.f32.mrb[0].mxu0
  %v2770 = vadd.f32 %v2481, %v2769
  %v2771 = vpop.f32.mrb[0].mxu0
  %v2772 = vpop.f32.mrb[0].mxu0
  %v2773 = vadd.f32 %v2484, %v2772
  %v2774 = vpop.f32.mrb[0].mxu0
  %2775 = vmatprep.mubr.bf16.mxu0 %v1457
  %2776 = vmatmul.mubr.bf16.gmra.mrb[0].mxu0 %v1456
  %v2777 = vpop.f32.mrb[0].mxu0
  %v2778 = vadd.f32 %v2489, %v2777
  %v2779 = vpop.f32.mrb[0].mxu0
  %v2780 = vpop.f32.mrb[0].mxu0
  %v2781 = vadd.f32 %v2492, %v2780
  %v2782 = vpop.f32.mrb[0].mxu0
  %2783 = vmatprep.mubr.bf16.mxu0 %v1466
  %2784 = vmatmul.mubr.bf16.gmra.mrb[0].mxu0 %v1465
  %v2785 = vpop.f32.mrb[0].mxu0
  %v2786 = vadd.f32 %v2497, %v2785
  %v2787 = vpop.f32.mrb[0].mxu0
  %v2788 = vpop.f32.mrb[0].mxu0
  %v2789 = vadd.f32 %v2500, %v2788
  %v2790 = vpop.f32.mrb[0].mxu0
  %2791 = vmatprep.mubr.bf16.mxu0 %v1475
  %2792 = vmatmul.mubr.bf16.gmra.mrb[0].mxu0 %v1474
  %v2793 = vpop.f32.mrb[0].mxu0
  %v2794 = vadd.f32 %v2505, %v2793
  %v2795 = vpop.f32.mrb[0].mxu0
  %v2796 = vpop.f32.mrb[0].mxu0
  %v2797 = vadd.f32 %v2508, %v2796
  %v2798 = vpop.f32.mrb[0].mxu0
  %2799 = vmatprep.mubr.bf16.mxu0 %v1484
  %2800 = vmatmul.mubr.bf16.gmra.mrb[0].mxu0 %v1483
  %v2801 = vpop.f32.mrb[0].mxu0
  %v2802 = vadd.f32 %v2513, %v2801
  %v2803 = vpop.f32.mrb[0].mxu0
  %v2804 = vpop.f32.mrb[0].mxu0
  %v2805 = vadd.f32 %v2516, %v2804
  %v2806 = vpop.f32.mrb[0].mxu0
  %2807 = vmatprep.mubr.bf16.mxu0 %v1493
  %2808 = vmatmul.mubr.bf16.gmra.mrb[0].mxu0 %v1492
  %v2809 = vpop.f32.mrb[0].mxu0
  %v2810 = vadd.f32 %v2521, %v2809
  %v2811 = vpop.f32.mrb[0].mxu0
  %v2812 = vpop.f32.mrb[0].mxu0
  %v2813 = vadd.f32 %v2524, %v2812
  %v2814 = vpop.f32.mrb[0].mxu0
  %2815 = vmatprep.mubr.bf16.mxu0 %v1502
  %2816 = vmatmul.mubr.bf16.gmra.mrb[0].mxu0 %v1501
  %v2817 = vpop.f32.mrb[0].mxu0
  %v2818 = vadd.f32 %v2529, %v2817
  %v2819 = vpop.f32.mrb[0].mxu0
  %v2820 = vpop.f32.mrb[0].mxu0
  %v2821 = vadd.f32 %v2532, %v2820
  %v2822 = vpop.f32.mrb[0].mxu0
  %2823 = vmatprep.mubr.bf16.mxu0 %v1511
  %2824 = vmatmul.mubr.bf16.gmra.mrb[0].mxu0 %v1510
  %v2825 = vpop.f32.mrb[0].mxu0
  %v2826 = vadd.f32 %v2537, %v2825
  %v2827 = vpop.f32.mrb[0].mxu0
  %v2828 = vpop.f32.mrb[0].mxu0
  %v2829 = vadd.f32 %v2540, %v2828
  %v2830 = vpop.f32.mrb[0].mxu0
  %2831 = vmatprep.mubr.bf16.mxu0 %v1520
  %2832 = vmatmul.mubr.bf16.gmra.mrb[0].mxu0 %v1519
  %v2833 = vpop.f32.mrb[0].mxu0
  %v2834 = vadd.f32 %v2545, %v2833
  %v2835 = vpop.f32.mrb[0].mxu0
  %v2836 = vpop.f32.mrb[0].mxu0
  %v2837 = vadd.f32 %v2548, %v2836
  %v2838 = vpop.f32.mrb[0].mxu0
  %2839 = vmatprep.mubr.bf16.mxu0 %v1529
  %2840 = vmatmul.mubr.bf16.gmra.mrb[0].mxu0 %v1528
  %v2841 = vpop.f32.mrb[0].mxu0
  %v2842 = vadd.f32 %v2553, %v2841
  %v2843 = vpop.f32.mrb[0].mxu0
  %v2844 = vpop.f32.mrb[0].mxu0
  %v2845 = vadd.f32 %v2556, %v2844
  %v2846 = vpop.f32.mrb[0].mxu0
  %2847 = vmatprep.mubr.bf16.mxu0 %v1538
  %2848 = vmatmul.mubr.bf16.gmra.mrb[0].mxu0 %v1537
  %v2849 = vpop.f32.mrb[0].mxu0
  %v2850 = vadd.f32 %v2561, %v2849
  %v2851 = vpop.f32.mrb[0].mxu0
  %v2852 = vpop.f32.mrb[0].mxu0
  %v2853 = vadd.f32 %v2564, %v2852
  %v2854 = vpop.f32.mrb[0].mxu0
  %2855 = vmatprep.mubr.bf16.mxu0 %v1547
  %2856 = vmatmul.mubr.bf16.gmra.mrb[0].mxu0 %v1546
  %v2857 = vpop.f32.mrb[0].mxu0
  %v2858 = vadd.f32 %v2569, %v2857
  %v2859 = vpop.f32.mrb[0].mxu0
  %v2860 = vpop.f32.mrb[0].mxu0
  %v2861 = vadd.f32 %v2572, %v2860
  %v2862 = vpop.f32.mrb[0].mxu0
  %2863 = vmatprep.mubr.bf16.mxu0 %v1556
  %2864 = vmatmul.mubr.bf16.gmra.mrb[0].mxu0 %v1555
  %v2865 = vpop.f32.mrb[0].mxu0
  %v2866 = vadd.f32 %v2577, %v2865
  %v2867 = vpop.f32.mrb[0].mxu0
  %v2868 = vpop.f32.mrb[0].mxu0
  %v2869 = vadd.f32 %v2580, %v2868
  %v2870 = vpop.f32.mrb[0].mxu0
  %2871 = vmatprep.mubr.bf16.mxu0 %v1565
  %2872 = vmatmul.mubr.bf16.gmra.mrb[0].mxu0 %v1564
  %v2873 = vpop.f32.mrb[0].mxu0
  %v2874 = vadd.f32 %v2585, %v2873
  %v2875 = vpop.f32.mrb[0].mxu0
  %v2876 = vpop.f32.mrb[0].mxu0
  %v2877 = vadd.f32 %v2588, %v2876
  %v2878 = vpop.f32.mrb[0].mxu0
  %2879 = vmatprep.mubr.bf16.mxu0 %v1574
  %2880 = vmatmul.mubr.bf16.gmra.mrb[0].mxu0 %v1573
  %v2881 = vpop.f32.mrb[0].mxu0
  %v2882 = vadd.f32 %v2593, %v2881
  %v2883 = vpop.f32.mrb[0].mxu0
  %v2884 = vpop.f32.mrb[0].mxu0
  %v2885 = vadd.f32 %v2596, %v2884
  %v2886 = vpop.f32.mrb[0].mxu0
  %2887 = vmatprep.mubr.bf16.mxu0 %v1583
  %2888 = vmatmul.mubr.bf16.gmra.mrb[0].mxu0 %v1582
  %v2889 = vpop.f32.mrb[0].mxu0
  %v2890 = vadd.f32 %v2601, %v2889
  %v2891 = vpop.f32.mrb[0].mxu0
  %v2892 = vpop.f32.mrb[0].mxu0
  %v2893 = vadd.f32 %v2604, %v2892
  %v2894 = vpop.f32.mrb[0].mxu0
  %2895 = vmatprep.mubr.bf16.mxu0 %v1592
  %2896 = vmatmul.mubr.bf16.gmra.mrb[0].mxu0 %v1591
  %v2897 = vpop.f32.mrb[0].mxu0
  %v2898 = vadd.f32 %v2609, %v2897
  %v2899 = vpop.f32.mrb[0].mxu0
  %v2900 = vpop.f32.mrb[0].mxu0
  %v2901 = vadd.f32 %v2612, %v2900
  %v2902 = vpop.f32.mrb[0].mxu0
  %2903 = vmatprep.mubr.bf16.mxu0 %v1601
  %2904 = vmatmul.mubr.bf16.gmra.mrb[0].mxu0 %v1600
  %v2905 = vpop.f32.mrb[0].mxu0
  %v2906 = vadd.f32 %v2617, %v2905
  %v2907 = vpop.f32.mrb[0].mxu0
  %v2908 = vpop.f32.mrb[0].mxu0
  %v2909 = vadd.f32 %v2620, %v2908
  %v2910 = vpop.f32.mrb[0].mxu0
  %2911 = vmatprep.mubr.bf16.mxu0 %v1610
  %2912 = vmatmul.mubr.bf16.gmra.mrb[0].mxu0 %v1609
  %v2913 = vpop.f32.mrb[0].mxu0
  %v2914 = vadd.f32 %v2625, %v2913
  %v2915 = vpop.f32.mrb[0].mxu0
  %v2916 = vpop.f32.mrb[0].mxu0
  %v2917 = vadd.f32 %v2628, %v2916
  %v2918 = vpop.f32.mrb[0].mxu0
  %2919 = vmatprep.mubr.bf16.mxu0 %v1619
  %2920 = vmatmul.mubr.bf16.gmra.mrb[0].mxu0 %v1618
  %v2921 = vpop.f32.mrb[0].mxu0
  %v2922 = vadd.f32 %v2633, %v2921
  %v2923 = vpop.f32.mrb[0].mxu0
  %v2924 = vpop.f32.mrb[0].mxu0
  %v2925 = vadd.f32 %v2636, %v2924
  %v2926 = vpop.f32.mrb[0].mxu0
  %2927 = vmatprep.mubr.bf16.mxu0 %v1628
  %2928 = vmatmul.mubr.bf16.gmra.mrb[0].mxu0 %v1627
  %v2929 = vpop.f32.mrb[0].mxu0
  %v2930 = vadd.f32 %v2641, %v2929
  %v2931 = vpop.f32.mrb[0].mxu0
  %v2932 = vpop.f32.mrb[0].mxu0
  %v2933 = vadd.f32 %v2644, %v2932
  %v2934 = vpop.f32.mrb[0].mxu0
  %2935 = vmatprep.mubr.bf16.mxu0 %v1637
  %2936 = vmatmul.mubr.bf16.gmra.mrb[0].mxu0 %v1636
  %v2937 = vpop.f32.mrb[0].mxu0
  %v2938 = vadd.f32 %v2649, %v2937
  %v2939 = vpop.f32.mrb[0].mxu0
  %v2940 = vpop.f32.mrb[0].mxu0
  %v2941 = vadd.f32 %v2652, %v2940
  %v2942 = vpop.f32.mrb[0].mxu0
  %2943 = vmatprep.mubr.bf16.mxu0 %v1646
  %2944 = vmatmul.mubr.bf16.gmra.mrb[0].mxu0 %v1645
  %v2945 = vpop.f32.mrb[0].mxu0
  %v2946 = vadd.f32 %v2657, %v2945
  %v2947 = vpop.f32.mrb[0].mxu0
  %v2948 = vpop.f32.mrb[0].mxu0
  %v2949 = vadd.f32 %v2660, %v2948
  %v2950 = vpop.f32.mrb[0].mxu0
  %2951 = vmatprep.mubr.bf16.mxu0 %v1655
  %2952 = vmatmul.mubr.bf16.gmra.mrb[0].mxu0 %v1654
  %v2953 = vpop.f32.mrb[0].mxu0
  %v2954 = vadd.f32 %v2665, %v2953
  %v2955 = vpop.f32.mrb[0].mxu0
  %v2956 = vpop.f32.mrb[0].mxu0
  %v2957 = vadd.f32 %v2668, %v2956
  %v2958 = vpop.f32.mrb[0].mxu0
  %2959 = vmatprep.mubr.bf16.mxu0 %v1664
  %2960 = vmatmul.mubr.bf16.gmra.mrb[0].mxu0 %v1663
  %v2961 = vpop.f32.mrb[0].mxu0
  %v2962 = vadd.f32 %v2673, %v2961
  %v2963 = vpop.f32.mrb[0].mxu0
  %v2964 = vpop.f32.mrb[0].mxu0
  %v2965 = vadd.f32 %v2676, %v2964
  %v2966 = vpop.f32.mrb[0].mxu0
  %2967 = vdwg.mxu0
  %2968 = vmatprep.subr.bf16.mxu0 0
  %2969 = vmatpush1.bf16.msra.mxu0 %v2278
  %2970 = vmatprep.subr.bf16.mxu0 0
  %2971 = vmatpush1.bf16.msra.mxu0 %v2279
  %2972 = vmatprep.subr.bf16.mxu0 0
  %2973 = vmatpush1.bf16.msra.mxu0 %v2280
  %2974 = vmatprep.subr.bf16.mxu0 0
  %2975 = vmatpush1.bf16.msra.mxu0 %v2281
  %2976 = vmatprep.subr.bf16.mxu0 0
  %2977 = vmatpush1.bf16.msra.mxu0 %v2282
  %2978 = vmatprep.subr.bf16.mxu0 0
  %2979 = vmatpush1.bf16.msra.mxu0 %v2283
  %2980 = vmatprep.subr.bf16.mxu0 0
  %2981 = vmatpush1.bf16.msra.mxu0 %v2284
  %2982 = vmatprep.subr.bf16.mxu0 0
  %2983 = vmatpush1.bf16.msra.mxu0 %v2285
  %2984 = vmatprep.subr.bf16.mxu0 0
  %2985 = vmatpush1.bf16.msra.mxu0 %v2286
  %2986 = vmatprep.subr.bf16.mxu0 0
  %2987 = vmatpush1.bf16.msra.mxu0 %v2287
  %2988 = vmatprep.subr.bf16.mxu0 0
  %2989 = vmatpush1.bf16.msra.mxu0 %v2288
  %2990 = vmatprep.subr.bf16.mxu0 0
  %2991 = vmatpush1.bf16.msra.mxu0 %v2289
  %2992 = vmatprep.subr.bf16.mxu0 0
  %2993 = vmatpush1.bf16.msra.mxu0 %v2290
  %2994 = vmatprep.subr.bf16.mxu0 0
  %2995 = vmatpush1.bf16.msra.mxu0 %v2291
  %2996 = vmatprep.subr.bf16.mxu0 0
  %2997 = vmatpush1.bf16.msra.mxu0 %v2292
  %2998 = vmatprep.subr.bf16.mxu0 0
  %2999 = vmatpush1.bf16.msra.mxu0 %v2293
  %3000 = vmatprep.mubr.bf16.mxu0 %v1387
  %3001 = vmatmul.mubr.bf16.gmra.mrb[0].mxu0 %v1386
  %v3002 = vpop.f32.mrb[0].mxu0
  %v3003 = vadd.f32 %v2714, %v3002
  %v3004 = vpop.f32.mrb[0].mxu0
  %v3005 = vpop.f32.mrb[0].mxu0
  %v3006 = vadd.f32 %v2717, %v3005
  %v3007 = vpop.f32.mrb[0].mxu0
  %3008 = vmatprep.mubr.bf16.mxu0 %v1396
  %3009 = vmatmul.mubr.bf16.gmra.mrb[0].mxu0 %v1395
  %v3010 = vpop.f32.mrb[0].mxu0
  %v3011 = vadd.f32 %v2722, %v3010
  %v3012 = vpop.f32.mrb[0].mxu0
  %v3013 = vpop.f32.mrb[0].mxu0
  %v3014 = vadd.f32 %v2725, %v3013
  %v3015 = vpop.f32.mrb[0].mxu0
  %3016 = vmatprep.mubr.bf16.mxu0 %v1405
  %3017 = vmatmul.mubr.bf16.gmra.mrb[0].mxu0 %v1404
  %v3018 = vpop.f32.mrb[0].mxu0
  %v3019 = vadd.f32 %v2730, %v3018
  %v3020 = vpop.f32.mrb[0].mxu0
  %v3021 = vpop.f32.mrb[0].mxu0
  %v3022 = vadd.f32 %v2733, %v3021
  %v3023 = vpop.f32.mrb[0].mxu0
  %3024 = vmatprep.mubr.bf16.mxu0 %v1414
  %3025 = vmatmul.mubr.bf16.gmra.mrb[0].mxu0 %v1413
  %v3026 = vpop.f32.mrb[0].mxu0
  %v3027 = vadd.f32 %v2738, %v3026
  %v3028 = vpop.f32.mrb[0].mxu0
  %v3029 = vpop.f32.mrb[0].mxu0
  %v3030 = vadd.f32 %v2741, %v3029
  %v3031 = vpop.f32.mrb[0].mxu0
  %3032 = vmatprep.mubr.bf16.mxu0 %v1423
  %3033 = vmatmul.mubr.bf16.gmra.mrb[0].mxu0 %v1422
  %v3034 = vpop.f32.mrb[0].mxu0
  %v3035 = vadd.f32 %v2746, %v3034
  %v3036 = vpop.f32.mrb[0].mxu0
  %v3037 = vpop.f32.mrb[0].mxu0
  %v3038 = vadd.f32 %v2749, %v3037
  %v3039 = vpop.f32.mrb[0].mxu0
  %3040 = vmatprep.mubr.bf16.mxu0 %v1432
  %3041 = vmatmul.mubr.bf16.gmra.mrb[0].mxu0 %v1431
  %v3042 = vpop.f32.mrb[0].mxu0
  %v3043 = vadd.f32 %v2754, %v3042
  %v3044 = vpop.f32.mrb[0].mxu0
  %v3045 = vpop.f32.mrb[0].mxu0
  %v3046 = vadd.f32 %v2757, %v3045
  %v3047 = vpop.f32.mrb[0].mxu0
  %3048 = vmatprep.mubr.bf16.mxu0 %v1441
  %3049 = vmatmul.mubr.bf16.gmra.mrb[0].mxu0 %v1440
  %v3050 = vpop.f32.mrb[0].mxu0
  %v3051 = vadd.f32 %v2762, %v3050
  %v3052 = vpop.f32.mrb[0].mxu0
  %v3053 = vpop.f32.mrb[0].mxu0
  %v3054 = vadd.f32 %v2765, %v3053
  %v3055 = vpop.f32.mrb[0].mxu0
  %3056 = vmatprep.mubr.bf16.mxu0 %v1450
  %3057 = vmatmul.mubr.bf16.gmra.mrb[0].mxu0 %v1449
  %v3058 = vpop.f32.mrb[0].mxu0
  %v3059 = vadd.f32 %v2770, %v3058
  %v3060 = vpop.f32.mrb[0].mxu0
  %v3061 = vpop.f32.mrb[0].mxu0
  %v3062 = vadd.f32 %v2773, %v3061
  %v3063 = vpop.f32.mrb[0].mxu0
  %3064 = vmatprep.mubr.bf16.mxu0 %v1459
  %3065 = vmatmul.mubr.bf16.gmra.mrb[0].mxu0 %v1458
  %v3066 = vpop.f32.mrb[0].mxu0
  %v3067 = vadd.f32 %v2778, %v3066
  %v3068 = vpop.f32.mrb[0].mxu0
  %v3069 = vpop.f32.mrb[0].mxu0
  %v3070 = vadd.f32 %v2781, %v3069
  %v3071 = vpop.f32.mrb[0].mxu0
  %3072 = vmatprep.mubr.bf16.mxu0 %v1468
  %3073 = vmatmul.mubr.bf16.gmra.mrb[0].mxu0 %v1467
  %v3074 = vpop.f32.mrb[0].mxu0
  %v3075 = vadd.f32 %v2786, %v3074
  %v3076 = vpop.f32.mrb[0].mxu0
  %v3077 = vpop.f32.mrb[0].mxu0
  %v3078 = vadd.f32 %v2789, %v3077
  %v3079 = vpop.f32.mrb[0].mxu0
  %3080 = vmatprep.mubr.bf16.mxu0 %v1477
  %3081 = vmatmul.mubr.bf16.gmra.mrb[0].mxu0 %v1476
  %v3082 = vpop.f32.mrb[0].mxu0
  %v3083 = vadd.f32 %v2794, %v3082
  %v3084 = vpop.f32.mrb[0].mxu0
  %v3085 = vpop.f32.mrb[0].mxu0
  %v3086 = vadd.f32 %v2797, %v3085
  %v3087 = vpop.f32.mrb[0].mxu0
  %3088 = vmatprep.mubr.bf16.mxu0 %v1486
  %3089 = vmatmul.mubr.bf16.gmra.mrb[0].mxu0 %v1485
  %v3090 = vpop.f32.mrb[0].mxu0
  %v3091 = vadd.f32 %v2802, %v3090
  %v3092 = vpop.f32.mrb[0].mxu0
  %v3093 = vpop.f32.mrb[0].mxu0
  %v3094 = vadd.f32 %v2805, %v3093
  %v3095 = vpop.f32.mrb[0].mxu0
  %3096 = vmatprep.mubr.bf16.mxu0 %v1495
  %3097 = vmatmul.mubr.bf16.gmra.mrb[0].mxu0 %v1494
  %v3098 = vpop.f32.mrb[0].mxu0
  %v3099 = vadd.f32 %v2810, %v3098
  %v3100 = vpop.f32.mrb[0].mxu0
  %v3101 = vpop.f32.mrb[0].mxu0
  %v3102 = vadd.f32 %v2813, %v3101
  %v3103 = vpop.f32.mrb[0].mxu0
  %3104 = vmatprep.mubr.bf16.mxu0 %v1504
  %3105 = vmatmul.mubr.bf16.gmra.mrb[0].mxu0 %v1503
  %v3106 = vpop.f32.mrb[0].mxu0
  %v3107 = vadd.f32 %v2818, %v3106
  %v3108 = vpop.f32.mrb[0].mxu0
  %v3109 = vpop.f32.mrb[0].mxu0
  %v3110 = vadd.f32 %v2821, %v3109
  %v3111 = vpop.f32.mrb[0].mxu0
  %3112 = vmatprep.mubr.bf16.mxu0 %v1513
  %3113 = vmatmul.mubr.bf16.gmra.mrb[0].mxu0 %v1512
  %v3114 = vpop.f32.mrb[0].mxu0
  %v3115 = vadd.f32 %v2826, %v3114
  %v3116 = vpop.f32.mrb[0].mxu0
  %v3117 = vpop.f32.mrb[0].mxu0
  %v3118 = vadd.f32 %v2829, %v3117
  %v3119 = vpop.f32.mrb[0].mxu0
  %3120 = vmatprep.mubr.bf16.mxu0 %v1522
  %3121 = vmatmul.mubr.bf16.gmra.mrb[0].mxu0 %v1521
  %v3122 = vpop.f32.mrb[0].mxu0
  %v3123 = vadd.f32 %v2834, %v3122
  %v3124 = vpop.f32.mrb[0].mxu0
  %v3125 = vpop.f32.mrb[0].mxu0
  %v3126 = vadd.f32 %v2837, %v3125
  %v3127 = vpop.f32.mrb[0].mxu0
  %3128 = vmatprep.mubr.bf16.mxu0 %v1531
  %3129 = vmatmul.mubr.bf16.gmra.mrb[0].mxu0 %v1530
  %v3130 = vpop.f32.mrb[0].mxu0
  %v3131 = vadd.f32 %v2842, %v3130
  %v3132 = vpop.f32.mrb[0].mxu0
  %v3133 = vpop.f32.mrb[0].mxu0
  %v3134 = vadd.f32 %v2845, %v3133
  %v3135 = vpop.f32.mrb[0].mxu0
  %3136 = vmatprep.mubr.bf16.mxu0 %v1540
  %3137 = vmatmul.mubr.bf16.gmra.mrb[0].mxu0 %v1539
  %v3138 = vpop.f32.mrb[0].mxu0
  %v3139 = vadd.f32 %v2850, %v3138
  %v3140 = vpop.f32.mrb[0].mxu0
  %v3141 = vpop.f32.mrb[0].mxu0
  %v3142 = vadd.f32 %v2853, %v3141
  %v3143 = vpop.f32.mrb[0].mxu0
  %3144 = vmatprep.mubr.bf16.mxu0 %v1549
  %3145 = vmatmul.mubr.bf16.gmra.mrb[0].mxu0 %v1548
  %v3146 = vpop.f32.mrb[0].mxu0
  %v3147 = vadd.f32 %v2858, %v3146
  %v3148 = vpop.f32.mrb[0].mxu0
  %v3149 = vpop.f32.mrb[0].mxu0
  %v3150 = vadd.f32 %v2861, %v3149
  %v3151 = vpop.f32.mrb[0].mxu0
  %3152 = vmatprep.mubr.bf16.mxu0 %v1558
  %3153 = vmatmul.mubr.bf16.gmra.mrb[0].mxu0 %v1557
  %v3154 = vpop.f32.mrb[0].mxu0
  %v3155 = vadd.f32 %v2866, %v3154
  %v3156 = vpop.f32.mrb[0].mxu0
  %v3157 = vpop.f32.mrb[0].mxu0
  %v3158 = vadd.f32 %v2869, %v3157
  %v3159 = vpop.f32.mrb[0].mxu0
  %3160 = vmatprep.mubr.bf16.mxu0 %v1567
  %3161 = vmatmul.mubr.bf16.gmra.mrb[0].mxu0 %v1566
  %v3162 = vpop.f32.mrb[0].mxu0
  %v3163 = vadd.f32 %v2874, %v3162
  %v3164 = vpop.f32.mrb[0].mxu0
  %v3165 = vpop.f32.mrb[0].mxu0
  %v3166 = vadd.f32 %v2877, %v3165
  %v3167 = vpop.f32.mrb[0].mxu0
  %3168 = vmatprep.mubr.bf16.mxu0 %v1576
  %3169 = vmatmul.mubr.bf16.gmra.mrb[0].mxu0 %v1575
  %v3170 = vpop.f32.mrb[0].mxu0
  %v3171 = vadd.f32 %v2882, %v3170
  %v3172 = vpop.f32.mrb[0].mxu0
  %v3173 = vpop.f32.mrb[0].mxu0
  %v3174 = vadd.f32 %v2885, %v3173
  %v3175 = vpop.f32.mrb[0].mxu0
  %3176 = vmatprep.mubr.bf16.mxu0 %v1585
  %3177 = vmatmul.mubr.bf16.gmra.mrb[0].mxu0 %v1584
  %v3178 = vpop.f32.mrb[0].mxu0
  %v3179 = vadd.f32 %v2890, %v3178
  %v3180 = vpop.f32.mrb[0].mxu0
  %v3181 = vpop.f32.mrb[0].mxu0
  %v3182 = vadd.f32 %v2893, %v3181
  %v3183 = vpop.f32.mrb[0].mxu0
  %3184 = vmatprep.mubr.bf16.mxu0 %v1594
  %3185 = vmatmul.mubr.bf16.gmra.mrb[0].mxu0 %v1593
  %v3186 = vpop.f32.mrb[0].mxu0
  %v3187 = vadd.f32 %v2898, %v3186
  %v3188 = vpop.f32.mrb[0].mxu0
  %v3189 = vpop.f32.mrb[0].mxu0
  %v3190 = vadd.f32 %v2901, %v3189
  %v3191 = vpop.f32.mrb[0].mxu0
  %3192 = vmatprep.mubr.bf16.mxu0 %v1603
  %3193 = vmatmul.mubr.bf16.gmra.mrb[0].mxu0 %v1602
  %v3194 = vpop.f32.mrb[0].mxu0
  %v3195 = vadd.f32 %v2906, %v3194
  %v3196 = vpop.f32.mrb[0].mxu0
  %v3197 = vpop.f32.mrb[0].mxu0
  %v3198 = vadd.f32 %v2909, %v3197
  %v3199 = vpop.f32.mrb[0].mxu0
  %3200 = vmatprep.mubr.bf16.mxu0 %v1612
  %3201 = vmatmul.mubr.bf16.gmra.mrb[0].mxu0 %v1611
  %v3202 = vpop.f32.mrb[0].mxu0
  %v3203 = vadd.f32 %v2914, %v3202
  %v3204 = vpop.f32.mrb[0].mxu0
  %v3205 = vpop.f32.mrb[0].mxu0
  %v3206 = vadd.f32 %v2917, %v3205
  %v3207 = vpop.f32.mrb[0].mxu0
  %3208 = vmatprep.mubr.bf16.mxu0 %v1621
  %3209 = vmatmul.mubr.bf16.gmra.mrb[0].mxu0 %v1620
  %v3210 = vpop.f32.mrb[0].mxu0
  %v3211 = vadd.f32 %v2922, %v3210
  %v3212 = vpop.f32.mrb[0].mxu0
  %v3213 = vpop.f32.mrb[0].mxu0
  %v3214 = vadd.f32 %v2925, %v3213
  %v3215 = vpop.f32.mrb[0].mxu0
  %3216 = vmatprep.mubr.bf16.mxu0 %v1630
  %3217 = vmatmul.mubr.bf16.gmra.mrb[0].mxu0 %v1629
  %v3218 = vpop.f32.mrb[0].mxu0
  %v3219 = vadd.f32 %v2930, %v3218
  %v3220 = vpop.f32.mrb[0].mxu0
  %v3221 = vpop.f32.mrb[0].mxu0
  %v3222 = vadd.f32 %v2933, %v3221
  %v3223 = vpop.f32.mrb[0].mxu0
  %3224 = vmatprep.mubr.bf16.mxu0 %v1639
  %3225 = vmatmul.mubr.bf16.gmra.mrb[0].mxu0 %v1638
  %v3226 = vpop.f32.mrb[0].mxu0
  %v3227 = vadd.f32 %v2938, %v3226
  %v3228 = vpop.f32.mrb[0].mxu0
  %v3229 = vpop.f32.mrb[0].mxu0
  %v3230 = vadd.f32 %v2941, %v3229
  %v3231 = vpop.f32.mrb[0].mxu0
  %3232 = vmatprep.mubr.bf16.mxu0 %v1648
  %3233 = vmatmul.mubr.bf16.gmra.mrb[0].mxu0 %v1647
  %v3234 = vpop.f32.mrb[0].mxu0
  %v3235 = vadd.f32 %v2946, %v3234
  %v3236 = vpop.f32.mrb[0].mxu0
  %v3237 = vpop.f32.mrb[0].mxu0
  %v3238 = vadd.f32 %v2949, %v3237
  %v3239 = vpop.f32.mrb[0].mxu0
  %3240 = vmatprep.mubr.bf16.mxu0 %v1657
  %3241 = vmatmul.mubr.bf16.gmra.mrb[0].mxu0 %v1656
  %v3242 = vpop.f32.mrb[0].mxu0
  %v3243 = vadd.f32 %v2954, %v3242
  %v3244 = vpop.f32.mrb[0].mxu0
  %v3245 = vpop.f32.mrb[0].mxu0
  %v3246 = vadd.f32 %v2957, %v3245
  %v3247 = vpop.f32.mrb[0].mxu0
  %3248 = vmatprep.mubr.bf16.mxu0 %v1666
  %3249 = vmatmul.mubr.bf16.gmra.mrb[0].mxu0 %v1665
  %v3250 = vpop.f32.mrb[0].mxu0
  %v3251 = vadd.f32 %v2962, %v3250
  %v3252 = vpop.f32.mrb[0].mxu0
  %v3253 = vpop.f32.mrb[0].mxu0
  %v3254 = vadd.f32 %v2965, %v3253
  %v3255 = vpop.f32.mrb[0].mxu0
  %3256 = vdwg.mxu0
  %3257 = vmatprep.subr.bf16.mxu0 0
  %3258 = vmatpush1.bf16.msra.mxu0 %v2294
  %3259 = vmatprep.subr.bf16.mxu0 0
  %3260 = vmatpush1.bf16.msra.mxu0 %v2295
  %3261 = vmatprep.subr.bf16.mxu0 0
  %3262 = vmatpush1.bf16.msra.mxu0 %v2296
  %3263 = vmatprep.subr.bf16.mxu0 0
  %3264 = vmatpush1.bf16.msra.mxu0 %v2297
  %3265 = vmatprep.subr.bf16.mxu0 0
  %3266 = vmatpush1.bf16.msra.mxu0 %v2298
  %3267 = vmatprep.subr.bf16.mxu0 0
  %3268 = vmatpush1.bf16.msra.mxu0 %v2299
  %3269 = vmatprep.subr.bf16.mxu0 0
  %3270 = vmatpush1.bf16.msra.mxu0 %v2300
  %3271 = vmatprep.subr.bf16.mxu0 0
  %3272 = vmatpush1.bf16.msra.mxu0 %v2301
  %3273 = vmatprep.subr.bf16.mxu0 0
  %3274 = vmatpush1.bf16.msra.mxu0 %v2302
  %3275 = vmatprep.subr.bf16.mxu0 0
  %3276 = vmatpush1.bf16.msra.mxu0 %v2303
  %3277 = vmatprep.subr.bf16.mxu0 0
  %3278 = vmatpush1.bf16.msra.mxu0 %v2304
  %3279 = vmatprep.subr.bf16.mxu0 0
  %3280 = vmatpush1.bf16.msra.mxu0 %v2305
  %3281 = vmatprep.subr.bf16.mxu0 0
  %3282 = vmatpush1.bf16.msra.mxu0 %v2306
  %3283 = vmatprep.subr.bf16.mxu0 0
  %3284 = vmatpush1.bf16.msra.mxu0 %v2307
  %3285 = vmatprep.subr.bf16.mxu0 0
  %3286 = vmatpush1.bf16.msra.mxu0 %v2308
  %3287 = vmatprep.subr.bf16.mxu0 0
  %3288 = vmatpush1.bf16.msra.mxu0 %v2309
  %3289 = vmatprep.mubr.bf16.mxu0 %v1389
  %3290 = vmatmul.mubr.bf16.gmra.mrb[0].mxu0 %v1388
  %v3291 = vpop.f32.mrb[0].mxu0
  %v3292 = vadd.f32 %v3003, %v3291
  %v3293 = vpop.f32.mrb[0].mxu0
  %v3294 = vpop.f32.mrb[0].mxu0
  %v3295 = vadd.f32 %v3006, %v3294
  %v3296 = vpop.f32.mrb[0].mxu0
  %3297 = vmatprep.mubr.bf16.mxu0 %v1398
  %3298 = vmatmul.mubr.bf16.gmra.mrb[0].mxu0 %v1397
  %v3299 = vpop.f32.mrb[0].mxu0
  %v3300 = vadd.f32 %v3011, %v3299
  %v3301 = vpop.f32.mrb[0].mxu0
  %v3302 = vpop.f32.mrb[0].mxu0
  %v3303 = vadd.f32 %v3014, %v3302
  %v3304 = vpop.f32.mrb[0].mxu0
  %3305 = vmatprep.mubr.bf16.mxu0 %v1407
  %3306 = vmatmul.mubr.bf16.gmra.mrb[0].mxu0 %v1406
  %v3307 = vpop.f32.mrb[0].mxu0
  %v3308 = vadd.f32 %v3019, %v3307
  %v3309 = vpop.f32.mrb[0].mxu0
  %v3310 = vpop.f32.mrb[0].mxu0
  %v3311 = vadd.f32 %v3022, %v3310
  %v3312 = vpop.f32.mrb[0].mxu0
  %3313 = vmatprep.mubr.bf16.mxu0 %v1416
  %3314 = vmatmul.mubr.bf16.gmra.mrb[0].mxu0 %v1415
  %v3315 = vpop.f32.mrb[0].mxu0
  %v3316 = vadd.f32 %v3027, %v3315
  %v3317 = vpop.f32.mrb[0].mxu0
  %v3318 = vpop.f32.mrb[0].mxu0
  %v3319 = vadd.f32 %v3030, %v3318
  %v3320 = vpop.f32.mrb[0].mxu0
  %3321 = vmatprep.mubr.bf16.mxu0 %v1425
  %3322 = vmatmul.mubr.bf16.gmra.mrb[0].mxu0 %v1424
  %v3323 = vpop.f32.mrb[0].mxu0
  %v3324 = vadd.f32 %v3035, %v3323
  %v3325 = vpop.f32.mrb[0].mxu0
  %v3326 = vpop.f32.mrb[0].mxu0
  %v3327 = vadd.f32 %v3038, %v3326
  %v3328 = vpop.f32.mrb[0].mxu0
  %3329 = vmatprep.mubr.bf16.mxu0 %v1434
  %3330 = vmatmul.mubr.bf16.gmra.mrb[0].mxu0 %v1433
  %v3331 = vpop.f32.mrb[0].mxu0
  %v3332 = vadd.f32 %v3043, %v3331
  %v3333 = vpop.f32.mrb[0].mxu0
  %v3334 = vpop.f32.mrb[0].mxu0
  %v3335 = vadd.f32 %v3046, %v3334
  %v3336 = vpop.f32.mrb[0].mxu0
  %3337 = vmatprep.mubr.bf16.mxu0 %v1443
  %3338 = vmatmul.mubr.bf16.gmra.mrb[0].mxu0 %v1442
  %v3339 = vpop.f32.mrb[0].mxu0
  %v3340 = vadd.f32 %v3051, %v3339
  %v3341 = vpop.f32.mrb[0].mxu0
  %v3342 = vpop.f32.mrb[0].mxu0
  %v3343 = vadd.f32 %v3054, %v3342
  %v3344 = vpop.f32.mrb[0].mxu0
  %3345 = vmatprep.mubr.bf16.mxu0 %v1452
  %3346 = vmatmul.mubr.bf16.gmra.mrb[0].mxu0 %v1451
  %v3347 = vpop.f32.mrb[0].mxu0
  %v3348 = vadd.f32 %v3059, %v3347
  %v3349 = vpop.f32.mrb[0].mxu0
  %v3350 = vpop.f32.mrb[0].mxu0
  %v3351 = vadd.f32 %v3062, %v3350
  %v3352 = vpop.f32.mrb[0].mxu0
  %3353 = vmatprep.mubr.bf16.mxu0 %v1461
  %3354 = vmatmul.mubr.bf16.gmra.mrb[0].mxu0 %v1460
  %v3355 = vpop.f32.mrb[0].mxu0
  %v3356 = vadd.f32 %v3067, %v3355
  %v3357 = vpop.f32.mrb[0].mxu0
  %v3358 = vpop.f32.mrb[0].mxu0
  %v3359 = vadd.f32 %v3070, %v3358
  %v3360 = vpop.f32.mrb[0].mxu0
  %3361 = vmatprep.mubr.bf16.mxu0 %v1470
  %3362 = vmatmul.mubr.bf16.gmra.mrb[0].mxu0 %v1469
  %v3363 = vpop.f32.mrb[0].mxu0
  %v3364 = vadd.f32 %v3075, %v3363
  %v3365 = vpop.f32.mrb[0].mxu0
  %v3366 = vpop.f32.mrb[0].mxu0
  %v3367 = vadd.f32 %v3078, %v3366
  %v3368 = vpop.f32.mrb[0].mxu0
  %3369 = vmatprep.mubr.bf16.mxu0 %v1479
  %3370 = vmatmul.mubr.bf16.gmra.mrb[0].mxu0 %v1478
  %v3371 = vpop.f32.mrb[0].mxu0
  %v3372 = vadd.f32 %v3083, %v3371
  %v3373 = vpop.f32.mrb[0].mxu0
  %v3374 = vpop.f32.mrb[0].mxu0
  %v3375 = vadd.f32 %v3086, %v3374
  %v3376 = vpop.f32.mrb[0].mxu0
  %3377 = vmatprep.mubr.bf16.mxu0 %v1488
  %3378 = vmatmul.mubr.bf16.gmra.mrb[0].mxu0 %v1487
  %v3379 = vpop.f32.mrb[0].mxu0
  %v3380 = vadd.f32 %v3091, %v3379
  %v3381 = vpop.f32.mrb[0].mxu0
  %v3382 = vpop.f32.mrb[0].mxu0
  %v3383 = vadd.f32 %v3094, %v3382
  %v3384 = vpop.f32.mrb[0].mxu0
  %3385 = vmatprep.mubr.bf16.mxu0 %v1497
  %3386 = vmatmul.mubr.bf16.gmra.mrb[0].mxu0 %v1496
  %v3387 = vpop.f32.mrb[0].mxu0
  %v3388 = vadd.f32 %v3099, %v3387
  %v3389 = vpop.f32.mrb[0].mxu0
  %v3390 = vpop.f32.mrb[0].mxu0
  %v3391 = vadd.f32 %v3102, %v3390
  %v3392 = vpop.f32.mrb[0].mxu0
  %3393 = vmatprep.mubr.bf16.mxu0 %v1506
  %3394 = vmatmul.mubr.bf16.gmra.mrb[0].mxu0 %v1505
  %v3395 = vpop.f32.mrb[0].mxu0
  %v3396 = vadd.f32 %v3107, %v3395
  %v3397 = vpop.f32.mrb[0].mxu0
  %v3398 = vpop.f32.mrb[0].mxu0
  %v3399 = vadd.f32 %v3110, %v3398
  %v3400 = vpop.f32.mrb[0].mxu0
  %3401 = vmatprep.mubr.bf16.mxu0 %v1515
  %3402 = vmatmul.mubr.bf16.gmra.mrb[0].mxu0 %v1514
  %v3403 = vpop.f32.mrb[0].mxu0
  %v3404 = vadd.f32 %v3115, %v3403
  %v3405 = vpop.f32.mrb[0].mxu0
  %v3406 = vpop.f32.mrb[0].mxu0
  %v3407 = vadd.f32 %v3118, %v3406
  %v3408 = vpop.f32.mrb[0].mxu0
  %3409 = vmatprep.mubr.bf16.mxu0 %v1524
  %3410 = vmatmul.mubr.bf16.gmra.mrb[0].mxu0 %v1523
  %v3411 = vpop.f32.mrb[0].mxu0
  %v3412 = vadd.f32 %v3123, %v3411
  %v3413 = vpop.f32.mrb[0].mxu0
  %v3414 = vpop.f32.mrb[0].mxu0
  %v3415 = vadd.f32 %v3126, %v3414
  %v3416 = vpop.f32.mrb[0].mxu0
  %3417 = vmatprep.mubr.bf16.mxu0 %v1533
  %3418 = vmatmul.mubr.bf16.gmra.mrb[0].mxu0 %v1532
  %v3419 = vpop.f32.mrb[0].mxu0
  %v3420 = vadd.f32 %v3131, %v3419
  %v3421 = vpop.f32.mrb[0].mxu0
  %v3422 = vpop.f32.mrb[0].mxu0
  %v3423 = vadd.f32 %v3134, %v3422
  %v3424 = vpop.f32.mrb[0].mxu0
  %3425 = vmatprep.mubr.bf16.mxu0 %v1542
  %3426 = vmatmul.mubr.bf16.gmra.mrb[0].mxu0 %v1541
  %v3427 = vpop.f32.mrb[0].mxu0
  %v3428 = vadd.f32 %v3139, %v3427
  %v3429 = vpop.f32.mrb[0].mxu0
  %v3430 = vpop.f32.mrb[0].mxu0
  %v3431 = vadd.f32 %v3142, %v3430
  %v3432 = vpop.f32.mrb[0].mxu0
  %3433 = vmatprep.mubr.bf16.mxu0 %v1551
  %3434 = vmatmul.mubr.bf16.gmra.mrb[0].mxu0 %v1550
  %v3435 = vpop.f32.mrb[0].mxu0
  %v3436 = vadd.f32 %v3147, %v3435
  %v3437 = vpop.f32.mrb[0].mxu0
  %v3438 = vpop.f32.mrb[0].mxu0
  %v3439 = vadd.f32 %v3150, %v3438
  %v3440 = vpop.f32.mrb[0].mxu0
  %3441 = vmatprep.mubr.bf16.mxu0 %v1560
  %3442 = vmatmul.mubr.bf16.gmra.mrb[0].mxu0 %v1559
  %v3443 = vpop.f32.mrb[0].mxu0
  %v3444 = vadd.f32 %v3155, %v3443
  %v3445 = vpop.f32.mrb[0].mxu0
  %v3446 = vpop.f32.mrb[0].mxu0
  %v3447 = vadd.f32 %v3158, %v3446
  %v3448 = vpop.f32.mrb[0].mxu0
  %3449 = vmatprep.mubr.bf16.mxu0 %v1569
  %3450 = vmatmul.mubr.bf16.gmra.mrb[0].mxu0 %v1568
  %v3451 = vpop.f32.mrb[0].mxu0
  %v3452 = vadd.f32 %v3163, %v3451
  %v3453 = vpop.f32.mrb[0].mxu0
  %v3454 = vpop.f32.mrb[0].mxu0
  %v3455 = vadd.f32 %v3166, %v3454
  %v3456 = vpop.f32.mrb[0].mxu0
  %3457 = vmatprep.mubr.bf16.mxu0 %v1578
  %3458 = vmatmul.mubr.bf16.gmra.mrb[0].mxu0 %v1577
  %v3459 = vpop.f32.mrb[0].mxu0
  %v3460 = vadd.f32 %v3171, %v3459
  %v3461 = vpop.f32.mrb[0].mxu0
  %v3462 = vpop.f32.mrb[0].mxu0
  %v3463 = vadd.f32 %v3174, %v3462
  %v3464 = vpop.f32.mrb[0].mxu0
  %3465 = vmatprep.mubr.bf16.mxu0 %v1587
  %3466 = vmatmul.mubr.bf16.gmra.mrb[0].mxu0 %v1586
  %v3467 = vpop.f32.mrb[0].mxu0
  %v3468 = vadd.f32 %v3179, %v3467
  %v3469 = vpop.f32.mrb[0].mxu0
  %v3470 = vpop.f32.mrb[0].mxu0
  %v3471 = vadd.f32 %v3182, %v3470
  %v3472 = vpop.f32.mrb[0].mxu0
  %3473 = vmatprep.mubr.bf16.mxu0 %v1596
  %3474 = vmatmul.mubr.bf16.gmra.mrb[0].mxu0 %v1595
  %v3475 = vpop.f32.mrb[0].mxu0
  %v3476 = vadd.f32 %v3187, %v3475
  %v3477 = vpop.f32.mrb[0].mxu0
  %v3478 = vpop.f32.mrb[0].mxu0
  %v3479 = vadd.f32 %v3190, %v3478
  %v3480 = vpop.f32.mrb[0].mxu0
  %3481 = vmatprep.mubr.bf16.mxu0 %v1605
  %3482 = vmatmul.mubr.bf16.gmra.mrb[0].mxu0 %v1604
  %v3483 = vpop.f32.mrb[0].mxu0
  %v3484 = vadd.f32 %v3195, %v3483
  %v3485 = vpop.f32.mrb[0].mxu0
  %v3486 = vpop.f32.mrb[0].mxu0
  %v3487 = vadd.f32 %v3198, %v3486
  %v3488 = vpop.f32.mrb[0].mxu0
  %3489 = vmatprep.mubr.bf16.mxu0 %v1614
  %3490 = vmatmul.mubr.bf16.gmra.mrb[0].mxu0 %v1613
  %v3491 = vpop.f32.mrb[0].mxu0
  %v3492 = vadd.f32 %v3203, %v3491
  %v3493 = vpop.f32.mrb[0].mxu0
  %v3494 = vpop.f32.mrb[0].mxu0
  %v3495 = vadd.f32 %v3206, %v3494
  %v3496 = vpop.f32.mrb[0].mxu0
  %3497 = vmatprep.mubr.bf16.mxu0 %v1623
  %3498 = vmatmul.mubr.bf16.gmra.mrb[0].mxu0 %v1622
  %v3499 = vpop.f32.mrb[0].mxu0
  %v3500 = vadd.f32 %v3211, %v3499
  %v3501 = vpop.f32.mrb[0].mxu0
  %v3502 = vpop.f32.mrb[0].mxu0
  %v3503 = vadd.f32 %v3214, %v3502
  %v3504 = vpop.f32.mrb[0].mxu0
  %3505 = vmatprep.mubr.bf16.mxu0 %v1632
  %3506 = vmatmul.mubr.bf16.gmra.mrb[0].mxu0 %v1631
  %v3507 = vpop.f32.mrb[0].mxu0
  %v3508 = vadd.f32 %v3219, %v3507
  %v3509 = vpop.f32.mrb[0].mxu0
  %v3510 = vpop.f32.mrb[0].mxu0
  %v3511 = vadd.f32 %v3222, %v3510
  %v3512 = vpop.f32.mrb[0].mxu0
  %3513 = vmatprep.mubr.bf16.mxu0 %v1641
  %3514 = vmatmul.mubr.bf16.gmra.mrb[0].mxu0 %v1640
  %v3515 = vpop.f32.mrb[0].mxu0
  %v3516 = vadd.f32 %v3227, %v3515
  %v3517 = vpop.f32.mrb[0].mxu0
  %v3518 = vpop.f32.mrb[0].mxu0
  %v3519 = vadd.f32 %v3230, %v3518
  %v3520 = vpop.f32.mrb[0].mxu0
  %3521 = vmatprep.mubr.bf16.mxu0 %v1650
  %3522 = vmatmul.mubr.bf16.gmra.mrb[0].mxu0 %v1649
  %v3523 = vpop.f32.mrb[0].mxu0
  %v3524 = vadd.f32 %v3235, %v3523
  %v3525 = vpop.f32.mrb[0].mxu0
  %v3526 = vpop.f32.mrb[0].mxu0
  %v3527 = vadd.f32 %v3238, %v3526
  %v3528 = vpop.f32.mrb[0].mxu0
  %3529 = vmatprep.mubr.bf16.mxu0 %v1659
  %3530 = vmatmul.mubr.bf16.gmra.mrb[0].mxu0 %v1658
  %v3531 = vpop.f32.mrb[0].mxu0
  %v3532 = vadd.f32 %v3243, %v3531
  %v3533 = vpop.f32.mrb[0].mxu0
  %v3534 = vpop.f32.mrb[0].mxu0
  %v3535 = vadd.f32 %v3246, %v3534
  %v3536 = vpop.f32.mrb[0].mxu0
  %3537 = vmatprep.mubr.bf16.mxu0 %v1668
  %3538 = vmatmul.mubr.bf16.gmra.mrb[0].mxu0 %v1667
  %v3539 = vpop.f32.mrb[0].mxu0
  %v3540 = vadd.f32 %v3251, %v3539
  %v3541 = vpop.f32.mrb[0].mxu0
  %v3542 = vpop.f32.mrb[0].mxu0
  %v3543 = vadd.f32 %v3254, %v3542
  %v3544 = vpop.f32.mrb[0].mxu0
  %3545 = vdwg.mxu0
  %3546 = vmatprep.subr.bf16.mxu0 0
  %3547 = vmatpush1.bf16.msra.mxu0 %v2310
  %3548 = vmatprep.subr.bf16.mxu0 0
  %3549 = vmatpush1.bf16.msra.mxu0 %v2311
  %3550 = vmatprep.subr.bf16.mxu0 0
  %3551 = vmatpush1.bf16.msra.mxu0 %v2312
  %3552 = vmatprep.subr.bf16.mxu0 0
  %3553 = vmatpush1.bf16.msra.mxu0 %v2313
  %3554 = vmatprep.subr.bf16.mxu0 0
  %3555 = vmatpush1.bf16.msra.mxu0 %v2314
  %3556 = vmatprep.subr.bf16.mxu0 0
  %3557 = vmatpush1.bf16.msra.mxu0 %v2315
  %3558 = vmatprep.subr.bf16.mxu0 0
  %3559 = vmatpush1.bf16.msra.mxu0 %v2316
  %3560 = vmatprep.subr.bf16.mxu0 0
  %3561 = vmatpush1.bf16.msra.mxu0 %v2317
  %3562 = vmatprep.subr.bf16.mxu0 0
  %3563 = vmatpush1.bf16.msra.mxu0 0
  %3564 = vmatprep.subr.bf16.mxu0 0
  %3565 = vmatpush1.bf16.msra.mxu0 0
  %3566 = vmatprep.subr.bf16.mxu0 0
  %3567 = vmatpush1.bf16.msra.mxu0 0
  %3568 = vmatprep.subr.bf16.mxu0 0
  %3569 = vmatpush1.bf16.msra.mxu0 0
  %3570 = vmatprep.subr.bf16.mxu0 0
  %3571 = vmatpush1.bf16.msra.mxu0 0
  %3572 = vmatprep.subr.bf16.mxu0 0
  %3573 = vmatpush1.bf16.msra.mxu0 0
  %3574 = vmatprep.subr.bf16.mxu0 0
  %3575 = vmatpush1.bf16.msra.mxu0 0
  %3576 = vmatprep.subr.bf16.mxu0 0
  %3577 = vmatpush1.bf16.msra.mxu0 0
  %3578 = vmatprep.mubr.bf16.mxu0 0
  %3579 = vmatmul.mubr.bf16.gmra.mrb[0].mxu0 %v1390
  %v3580 = vpop.f32.mrb[0].mxu0
  %v3581 = vadd.f32 %v3292, %v3580
  %v3582 = vpop.f32.mrb[0].mxu0
  %v3583 = vpop.f32.mrb[0].mxu0
  %v3584 = vadd.f32 %v3295, %v3583
  %v3585 = vpop.f32.mrb[0].mxu0
  %3586 = vmatprep.mubr.bf16.mxu0 0
  %3587 = vmatmul.mubr.bf16.gmra.mrb[0].mxu0 %v1399
  %v3588 = vpop.f32.mrb[0].mxu0
  %v3589 = vadd.f32 %v3300, %v3588
  %v3590 = vpop.f32.mrb[0].mxu0
  %v3591 = vpop.f32.mrb[0].mxu0
  %v3592 = vadd.f32 %v3303, %v3591
  %v3593 = vpop.f32.mrb[0].mxu0
  %3594 = vmatprep.mubr.bf16.mxu0 0
  %3595 = vmatmul.mubr.bf16.gmra.mrb[0].mxu0 %v1408
  %v3596 = vpop.f32.mrb[0].mxu0
  %v3597 = vadd.f32 %v3308, %v3596
  %v3598 = vpop.f32.mrb[0].mxu0
  %v3599 = vpop.f32.mrb[0].mxu0
  %v3600 = vadd.f32 %v3311, %v3599
  %v3601 = vpop.f32.mrb[0].mxu0
  %3602 = vmatprep.mubr.bf16.mxu0 0
  %3603 = vmatmul.mubr.bf16.gmra.mrb[0].mxu0 %v1417
  %v3604 = vpop.f32.mrb[0].mxu0
  %v3605 = vadd.f32 %v3316, %v3604
  %v3606 = vpop.f32.mrb[0].mxu0
  %v3607 = vpop.f32.mrb[0].mxu0
  %v3608 = vadd.f32 %v3319, %v3607
  %v3609 = vpop.f32.mrb[0].mxu0
  %3610 = vmatprep.mubr.bf16.mxu0 0
  %3611 = vmatmul.mubr.bf16.gmra.mrb[0].mxu0 %v1426
  %v3612 = vpop.f32.mrb[0].mxu0
  %v3613 = vadd.f32 %v3324, %v3612
  %v3614 = vpop.f32.mrb[0].mxu0
  %v3615 = vpop.f32.mrb[0].mxu0
  %v3616 = vadd.f32 %v3327, %v3615
  %v3617 = vpop.f32.mrb[0].mxu0
  %3618 = vmatprep.mubr.bf16.mxu0 0
  %3619 = vmatmul.mubr.bf16.gmra.mrb[0].mxu0 %v1435
  %v3620 = vpop.f32.mrb[0].mxu0
  %v3621 = vadd.f32 %v3332, %v3620
  %v3622 = vpop.f32.mrb[0].mxu0
  %v3623 = vpop.f32.mrb[0].mxu0
  %v3624 = vadd.f32 %v3335, %v3623
  %v3625 = vpop.f32.mrb[0].mxu0
  %3626 = vmatprep.mubr.bf16.mxu0 0
  %3627 = vmatmul.mubr.bf16.gmra.mrb[0].mxu0 %v1444
  %v3628 = vpop.f32.mrb[0].mxu0
  %v3629 = vadd.f32 %v3340, %v3628
  %v3630 = vpop.f32.mrb[0].mxu0
  %v3631 = vpop.f32.mrb[0].mxu0
  %v3632 = vadd.f32 %v3343, %v3631
  %v3633 = vpop.f32.mrb[0].mxu0
  %3634 = vmatprep.mubr.bf16.mxu0 0
  %3635 = vmatmul.mubr.bf16.gmra.mrb[0].mxu0 %v1453
  %v3636 = vpop.f32.mrb[0].mxu0
  %v3637 = vadd.f32 %v3348, %v3636
  %v3638 = vpop.f32.mrb[0].mxu0
  %v3639 = vpop.f32.mrb[0].mxu0
  %v3640 = vadd.f32 %v3351, %v3639
  %v3641 = vpop.f32.mrb[0].mxu0
  %3642 = vmatprep.mubr.bf16.mxu0 0
  %3643 = vmatmul.mubr.bf16.gmra.mrb[0].mxu0 %v1462
  %v3644 = vpop.f32.mrb[0].mxu0
  %v3645 = vadd.f32 %v3356, %v3644
  %v3646 = vpop.f32.mrb[0].mxu0
  %v3647 = vpop.f32.mrb[0].mxu0
  %v3648 = vadd.f32 %v3359, %v3647
  %v3649 = vpop.f32.mrb[0].mxu0
  %3650 = vmatprep.mubr.bf16.mxu0 0
  %3651 = vmatmul.mubr.bf16.gmra.mrb[0].mxu0 %v1471
  %v3652 = vpop.f32.mrb[0].mxu0
  %v3653 = vadd.f32 %v3364, %v3652
  %v3654 = vpop.f32.mrb[0].mxu0
  %v3655 = vpop.f32.mrb[0].mxu0
  %v3656 = vadd.f32 %v3367, %v3655
  %v3657 = vpop.f32.mrb[0].mxu0
  %3658 = vmatprep.mubr.bf16.mxu0 0
  %3659 = vmatmul.mubr.bf16.gmra.mrb[0].mxu0 %v1480
  %v3660 = vpop.f32.mrb[0].mxu0
  %v3661 = vadd.f32 %v3372, %v3660
  %v3662 = vpop.f32.mrb[0].mxu0
  %v3663 = vpop.f32.mrb[0].mxu0
  %v3664 = vadd.f32 %v3375, %v3663
  %v3665 = vpop.f32.mrb[0].mxu0
  %3666 = vmatprep.mubr.bf16.mxu0 0
  %3667 = vmatmul.mubr.bf16.gmra.mrb[0].mxu0 %v1489
  %v3668 = vpop.f32.mrb[0].mxu0
  %v3669 = vadd.f32 %v3380, %v3668
  %v3670 = vpop.f32.mrb[0].mxu0
  %v3671 = vpop.f32.mrb[0].mxu0
  %v3672 = vadd.f32 %v3383, %v3671
  %v3673 = vpop.f32.mrb[0].mxu0
  %3674 = vmatprep.mubr.bf16.mxu0 0
  %3675 = vmatmul.mubr.bf16.gmra.mrb[0].mxu0 %v1498
  %v3676 = vpop.f32.mrb[0].mxu0
  %v3677 = vadd.f32 %v3388, %v3676
  %v3678 = vpop.f32.mrb[0].mxu0
  %v3679 = vpop.f32.mrb[0].mxu0
  %v3680 = vadd.f32 %v3391, %v3679
  %v3681 = vpop.f32.mrb[0].mxu0
  %3682 = vmatprep.mubr.bf16.mxu0 0
  %3683 = vmatmul.mubr.bf16.gmra.mrb[0].mxu0 %v1507
  %v3684 = vpop.f32.mrb[0].mxu0
  %v3685 = vadd.f32 %v3396, %v3684
  %v3686 = vpop.f32.mrb[0].mxu0
  %v3687 = vpop.f32.mrb[0].mxu0
  %v3688 = vadd.f32 %v3399, %v3687
  %v3689 = vpop.f32.mrb[0].mxu0
  %3690 = vmatprep.mubr.bf16.mxu0 0
  %3691 = vmatmul.mubr.bf16.gmra.mrb[0].mxu0 %v1516
  %v3692 = vpop.f32.mrb[0].mxu0
  %v3693 = vadd.f32 %v3404, %v3692
  %v3694 = vpop.f32.mrb[0].mxu0
  %v3695 = vpop.f32.mrb[0].mxu0
  %v3696 = vadd.f32 %v3407, %v3695
  %v3697 = vpop.f32.mrb[0].mxu0
  %3698 = vmatprep.mubr.bf16.mxu0 0
  %3699 = vmatmul.mubr.bf16.gmra.mrb[0].mxu0 %v1525
  %v3700 = vpop.f32.mrb[0].mxu0
  %v3701 = vadd.f32 %v3412, %v3700
  %v3702 = vpop.f32.mrb[0].mxu0
  %v3703 = vpop.f32.mrb[0].mxu0
  %v3704 = vadd.f32 %v3415, %v3703
  %v3705 = vpop.f32.mrb[0].mxu0
  %3706 = vmatprep.mubr.bf16.mxu0 0
  %3707 = vmatmul.mubr.bf16.gmra.mrb[0].mxu0 %v1534
  %v3708 = vpop.f32.mrb[0].mxu0
  %v3709 = vadd.f32 %v3420, %v3708
  %v3710 = vpop.f32.mrb[0].mxu0
  %v3711 = vpop.f32.mrb[0].mxu0
  %v3712 = vadd.f32 %v3423, %v3711
  %v3713 = vpop.f32.mrb[0].mxu0
  %3714 = vmatprep.mubr.bf16.mxu0 0
  %3715 = vmatmul.mubr.bf16.gmra.mrb[0].mxu0 %v1543
  %v3716 = vpop.f32.mrb[0].mxu0
  %v3717 = vadd.f32 %v3428, %v3716
  %v3718 = vpop.f32.mrb[0].mxu0
  %v3719 = vpop.f32.mrb[0].mxu0
  %v3720 = vadd.f32 %v3431, %v3719
  %v3721 = vpop.f32.mrb[0].mxu0
  %3722 = vmatprep.mubr.bf16.mxu0 0
  %3723 = vmatmul.mubr.bf16.gmra.mrb[0].mxu0 %v1552
  %v3724 = vpop.f32.mrb[0].mxu0
  %v3725 = vadd.f32 %v3436, %v3724
  %v3726 = vpop.f32.mrb[0].mxu0
  %v3727 = vpop.f32.mrb[0].mxu0
  %v3728 = vadd.f32 %v3439, %v3727
  %v3729 = vpop.f32.mrb[0].mxu0
  %3730 = vmatprep.mubr.bf16.mxu0 0
  %3731 = vmatmul.mubr.bf16.gmra.mrb[0].mxu0 %v1561
  %v3732 = vpop.f32.mrb[0].mxu0
  %v3733 = vadd.f32 %v3444, %v3732
  %v3734 = vpop.f32.mrb[0].mxu0
  %v3735 = vpop.f32.mrb[0].mxu0
  %v3736 = vadd.f32 %v3447, %v3735
  %v3737 = vpop.f32.mrb[0].mxu0
  %3738 = vmatprep.mubr.bf16.mxu0 0
  %3739 = vmatmul.mubr.bf16.gmra.mrb[0].mxu0 %v1570
  %v3740 = vpop.f32.mrb[0].mxu0
  %v3741 = vadd.f32 %v3452, %v3740
  %v3742 = vpop.f32.mrb[0].mxu0
  %v3743 = vpop.f32.mrb[0].mxu0
  %v3744 = vadd.f32 %v3455, %v3743
  %v3745 = vpop.f32.mrb[0].mxu0
  %3746 = vmatprep.mubr.bf16.mxu0 0
  %3747 = vmatmul.mubr.bf16.gmra.mrb[0].mxu0 %v1579
  %v3748 = vpop.f32.mrb[0].mxu0
  %v3749 = vadd.f32 %v3460, %v3748
  %v3750 = vpop.f32.mrb[0].mxu0
  %v3751 = vpop.f32.mrb[0].mxu0
  %v3752 = vadd.f32 %v3463, %v3751
  %v3753 = vpop.f32.mrb[0].mxu0
  %3754 = vmatprep.mubr.bf16.mxu0 0
  %3755 = vmatmul.mubr.bf16.gmra.mrb[0].mxu0 %v1588
  %v3756 = vpop.f32.mrb[0].mxu0
  %v3757 = vadd.f32 %v3468, %v3756
  %v3758 = vpop.f32.mrb[0].mxu0
  %v3759 = vpop.f32.mrb[0].mxu0
  %v3760 = vadd.f32 %v3471, %v3759
  %v3761 = vpop.f32.mrb[0].mxu0
  %3762 = vmatprep.mubr.bf16.mxu0 0
  %3763 = vmatmul.mubr.bf16.gmra.mrb[0].mxu0 %v1597
  %v3764 = vpop.f32.mrb[0].mxu0
  %v3765 = vadd.f32 %v3476, %v3764
  %v3766 = vpop.f32.mrb[0].mxu0
  %v3767 = vpop.f32.mrb[0].mxu0
  %v3768 = vadd.f32 %v3479, %v3767
  %v3769 = vpop.f32.mrb[0].mxu0
  %3770 = vmatprep.mubr.bf16.mxu0 0
  %3771 = vmatmul.mubr.bf16.gmra.mrb[0].mxu0 %v1606
  %v3772 = vpop.f32.mrb[0].mxu0
  %v3773 = vadd.f32 %v3484, %v3772
  %v3774 = vpop.f32.mrb[0].mxu0
  %v3775 = vpop.f32.mrb[0].mxu0
  %v3776 = vadd.f32 %v3487, %v3775
  %v3777 = vpop.f32.mrb[0].mxu0
  %3778 = vmatprep.mubr.bf16.mxu0 0
  %3779 = vmatmul.mubr.bf16.gmra.mrb[0].mxu0 %v1615
  %v3780 = vpop.f32.mrb[0].mxu0
  %v3781 = vadd.f32 %v3492, %v3780
  %v3782 = vpop.f32.mrb[0].mxu0
  %v3783 = vpop.f32.mrb[0].mxu0
  %v3784 = vadd.f32 %v3495, %v3783
  %v3785 = vpop.f32.mrb[0].mxu0
  %3786 = vmatprep.mubr.bf16.mxu0 0
  %3787 = vmatmul.mubr.bf16.gmra.mrb[0].mxu0 %v1624
  %v3788 = vpop.f32.mrb[0].mxu0
  %v3789 = vadd.f32 %v3500, %v3788
  %v3790 = vpop.f32.mrb[0].mxu0
  %v3791 = vpop.f32.mrb[0].mxu0
  %v3792 = vadd.f32 %v3503, %v3791
  %v3793 = vpop.f32.mrb[0].mxu0
  %3794 = vmatprep.mubr.bf16.mxu0 0
  %3795 = vmatmul.mubr.bf16.gmra.mrb[0].mxu0 %v1633
  %v3796 = vpop.f32.mrb[0].mxu0
  %v3797 = vadd.f32 %v3508, %v3796
  %v3798 = vpop.f32.mrb[0].mxu0
  %v3799 = vpop.f32.mrb[0].mxu0
  %v3800 = vadd.f32 %v3511, %v3799
  %v3801 = vpop.f32.mrb[0].mxu0
  %3802 = vmatprep.mubr.bf16.mxu0 0
  %3803 = vmatmul.mubr.bf16.gmra.mrb[0].mxu0 %v1642
  %v3804 = vpop.f32.mrb[0].mxu0
  %v3805 = vadd.f32 %v3516, %v3804
  %v3806 = vpop.f32.mrb[0].mxu0
  %v3807 = vpop.f32.mrb[0].mxu0
  %v3808 = vadd.f32 %v3519, %v3807
  %v3809 = vpop.f32.mrb[0].mxu0
  %3810 = vmatprep.mubr.bf16.mxu0 0
  %3811 = vmatmul.mubr.bf16.gmra.mrb[0].mxu0 %v1651
  %v3812 = vpop.f32.mrb[0].mxu0
  %v3813 = vadd.f32 %v3524, %v3812
  %v3814 = vpop.f32.mrb[0].mxu0
  %v3815 = vpop.f32.mrb[0].mxu0
  %v3816 = vadd.f32 %v3527, %v3815
  %v3817 = vpop.f32.mrb[0].mxu0
  %3818 = vmatprep.mubr.bf16.mxu0 0
  %3819 = vmatmul.mubr.bf16.gmra.mrb[0].mxu0 %v1660
  %v3820 = vpop.f32.mrb[0].mxu0
  %v3821 = vadd.f32 %v3532, %v3820
  %v3822 = vpop.f32.mrb[0].mxu0
  %v3823 = vpop.f32.mrb[0].mxu0
  %v3824 = vadd.f32 %v3535, %v3823
  %v3825 = vpop.f32.mrb[0].mxu0
  %3826 = vmatprep.mubr.bf16.mxu0 0
  %3827 = vmatmul.mubr.bf16.gmra.mrb[0].mxu0 %v1669
  %v3828 = vpop.f32.mrb[0].mxu0
  %v3829 = vadd.f32 %v3540, %v3828
  %v3830 = vpop.f32.mrb[0].mxu0
  %v3831 = vpop.f32.mrb[0].mxu0
  %v3832 = vadd.f32 %v3543, %v3831
  %v3833 = vpop.f32.mrb[0].mxu0
  %3834 = vdwg.mxu0
  %v3835 = vmax.f32 %v3581, 0.0
  %v3836 = vmax.f32 %v3584, 0.0
  %v3837 = vmax.f32 %v3589, 0.0
  %v3838 = vmax.f32 %v3592, 0.0
  %v3839 = vmax.f32 %v3597, 0.0
  %v3840 = vmax.f32 %v3600, 0.0
  %v3841 = vmax.f32 %v3605, 0.0
  %v3842 = vmax.f32 %v3608, 0.0
  %v3843 = vmax.f32 %v3613, 0.0
  %v3844 = vmax.f32 %v3616, 0.0
  %v3845 = vmax.f32 %v3621, 0.0
  %v3846 = vmax.f32 %v3624, 0.0
  %v3847 = vmax.f32 %v3629, 0.0
  %v3848 = vmax.f32 %v3632, 0.0
  %v3849 = vmax.f32 %v3637, 0.0
  %v3850 = vmax.f32 %v3640, 0.0
  %v3851 = vmax.f32 %v3645, 0.0
  %v3852 = vmax.f32 %v3648, 0.0
  %v3853 = vmax.f32 %v3653, 0.0
  %v3854 = vmax.f32 %v3656, 0.0
  %v3855 = vmax.f32 %v3661, 0.0
  %v3856 = vmax.f32 %v3664, 0.0
  %v3857 = vmax.f32 %v3669, 0.0
  %v3858 = vmax.f32 %v3672, 0.0
  %v3859 = vmax.f32 %v3677, 0.0
  %v3860 = vmax.f32 %v3680, 0.0
  %v3861 = vmax.f32 %v3685, 0.0
  %v3862 = vmax.f32 %v3688, 0.0
  %v3863 = vmax.f32 %v3693, 0.0
  %v3864 = vmax.f32 %v3696, 0.0
  %v3865 = vmax.f32 %v3701, 0.0
  %v3866 = vmax.f32 %v3704, 0.0
  %v3867 = vmax.f32 %v3709, 0.0
  %v3868 = vmax.f32 %v3712, 0.0
  %v3869 = vmax.f32 %v3717, 0.0
  %v3870 = vmax.f32 %v3720, 0.0
  %v3871 = vmax.f32 %v3725, 0.0
  %v3872 = vmax.f32 %v3728, 0.0
  %v3873 = vmax.f32 %v3733, 0.0
  %v3874 = vmax.f32 %v3736, 0.0
  %v3875 = vmax.f32 %v3741, 0.0
  %v3876 = vmax.f32 %v3744, 0.0
  %v3877 = vmax.f32 %v3749, 0.0
  %v3878 = vmax.f32 %v3752, 0.0
  %v3879 = vmax.f32 %v3757, 0.0
  %v3880 = vmax.f32 %v3760, 0.0
  %v3881 = vmax.f32 %v3765, 0.0
  %v3882 = vmax.f32 %v3768, 0.0
  %v3883 = vmax.f32 %v3773, 0.0
  %v3884 = vmax.f32 %v3776, 0.0
  %v3885 = vmax.f32 %v3781, 0.0
  %v3886 = vmax.f32 %v3784, 0.0
  %v3887 = vmax.f32 %v3789, 0.0
  %v3888 = vmax.f32 %v3792, 0.0
  %v3889 = vmax.f32 %v3797, 0.0
  %v3890 = vmax.f32 %v3800, 0.0
  %v3891 = vmax.f32 %v3805, 0.0
  %v3892 = vmax.f32 %v3808, 0.0
  %v3893 = vmax.f32 %v3813, 0.0
  %v3894 = vmax.f32 %v3816, 0.0
  %v3895 = vmax.f32 %v3821, 0.0
  %v3896 = vmax.f32 %v3824, 0.0
  %v3897 = vmax.f32 %v3829, 0.0
  %v3898 = vmax.f32 %v3832, 0.0
  %v3899 = vpack.c.bf16 %v3836, %v3835
  %v3900 = vpack.c.bf16 %v3838, %v3837
  %v3901 = vpack.c.bf16 %v3840, %v3839
  %v3902 = vpack.c.bf16 %v3842, %v3841
  %v3903 = vpack.c.bf16 %v3844, %v3843
  %v3904 = vpack.c.bf16 %v3846, %v3845
  %v3905 = vpack.c.bf16 %v3848, %v3847
  %v3906 = vpack.c.bf16 %v3850, %v3849
  %v3907 = vpack.c.bf16 %v3852, %v3851
  %v3908 = vpack.c.bf16 %v3854, %v3853
  %v3909 = vpack.c.bf16 %v3856, %v3855
  %v3910 = vpack.c.bf16 %v3858, %v3857
  %v3911 = vpack.c.bf16 %v3860, %v3859
  %v3912 = vpack.c.bf16 %v3862, %v3861
  %v3913 = vpack.c.bf16 %v3864, %v3863
  %v3914 = vpack.c.bf16 %v3866, %v3865
  %v3915 = vpack.c.bf16 %v3868, %v3867
  %v3916 = vpack.c.bf16 %v3870, %v3869
  %v3917 = vpack.c.bf16 %v3872, %v3871
  %v3918 = vpack.c.bf16 %v3874, %v3873
  %v3919 = vpack.c.bf16 %v3876, %v3875
  %v3920 = vpack.c.bf16 %v3878, %v3877
  %v3921 = vpack.c.bf16 %v3880, %v3879
  %v3922 = vpack.c.bf16 %v3882, %v3881
  %v3923 = vpack.c.bf16 %v3884, %v3883
  %v3924 = vpack.c.bf16 %v3886, %v3885
  %v3925 = vpack.c.bf16 %v3888, %v3887
  %v3926 = vpack.c.bf16 %v3890, %v3889
  %v3927 = vpack.c.bf16 %v3892, %v3891
  %v3928 = vpack.c.bf16 %v3894, %v3893
  %v3929 = vpack.c.bf16 %v3896, %v3895
  %v3930 = vpack.c.bf16 %v3898, %v3897
  %v3963 = vunpack.c.l.b16 %v3899
  %v3964 = vunpack.c.h.b16 %v3899
  %v3965 = vunpack.c.l.b16 %v3900
  %v3966 = vunpack.c.h.b16 %v3900
  %v3967 = vunpack.c.l.b16 %v3901
  %v3968 = vunpack.c.h.b16 %v3901
  %v3969 = vunpack.c.l.b16 %v3902
  %v3970 = vunpack.c.h.b16 %v3902
  %v3971 = vunpack.c.l.b16 %v3903
  %v3972 = vunpack.c.h.b16 %v3903
  %v3973 = vunpack.c.l.b16 %v3904
  %v3974 = vunpack.c.h.b16 %v3904
  %v3975 = vunpack.c.l.b16 %v3905
  %v3976 = vunpack.c.h.b16 %v3905
  %v3977 = vunpack.c.l.b16 %v3906
  %v3978 = vunpack.c.h.b16 %v3906
  %v3979 = vunpack.c.l.b16 %v3907
  %v3980 = vunpack.c.h.b16 %v3907
  %v3981 = vunpack.c.l.b16 %v3908
  %v3982 = vunpack.c.h.b16 %v3908
  %v3983 = vunpack.c.l.b16 %v3909
  %v3984 = vunpack.c.h.b16 %v3909
  %v3985 = vunpack.c.l.b16 %v3910
  %v3986 = vunpack.c.h.b16 %v3910
  %v3987 = vunpack.c.l.b16 %v3911
  %v3988 = vunpack.c.h.b16 %v3911
  %v3989 = vunpack.c.l.b16 %v3912
  %v3990 = vunpack.c.h.b16 %v3912
  %v3991 = vunpack.c.l.b16 %v3913
  %v3992 = vunpack.c.h.b16 %v3913
  %v3993 = vunpack.c.l.b16 %v3914
  %v3994 = vunpack.c.h.b16 %v3914
  %v3995 = vunpack.c.l.b16 %v3915
  %v3996 = vunpack.c.h.b16 %v3915
  %v3997 = vunpack.c.l.b16 %v3916
  %v3998 = vunpack.c.h.b16 %v3916
  %v3999 = vunpack.c.l.b16 %v3917
  %v4000 = vunpack.c.h.b16 %v3917
  %v4001 = vunpack.c.l.b16 %v3918
  %v4002 = vunpack.c.h.b16 %v3918
  %v4003 = vunpack.c.l.b16 %v3919
  %v4004 = vunpack.c.h.b16 %v3919
  %v4005 = vunpack.c.l.b16 %v3920
  %v4006 = vunpack.c.h.b16 %v3920
  %v4007 = vunpack.c.l.b16 %v3921
  %v4008 = vunpack.c.h.b16 %v3921
  %v4009 = vunpack.c.l.b16 %v3922
  %v4010 = vunpack.c.h.b16 %v3922
  %v4011 = vunpack.c.l.b16 %v3923
  %v4012 = vunpack.c.h.b16 %v3923
  %v4013 = vunpack.c.l.b16 %v3924
  %v4014 = vunpack.c.h.b16 %v3924
  %v4015 = vunpack.c.l.b16 %v3925
  %v4016 = vunpack.c.h.b16 %v3925
  %v4017 = vunpack.c.l.b16 %v3926
  %v4018 = vunpack.c.h.b16 %v3926
  %v4019 = vunpack.c.l.b16 %v3927
  %v4020 = vunpack.c.h.b16 %v3927
  %v4021 = vunpack.c.l.b16 %v3928
  %v4022 = vunpack.c.h.b16 %v3928
  %v4023 = vunpack.c.l.b16 %v3929
  %v4024 = vunpack.c.h.b16 %v3929
  %v4025 = vunpack.c.l.b16 %v3930
  %v4026 = vunpack.c.h.b16 %v3930
  %v4027 = vpack.c.b16 %v3963, %v3963
  %v4028 = vpack.c.b16 %v3964, %v3964
  %v4029 = vpack.c.b16 %v3965, %v3965
  %v4030 = vpack.c.b16 %v3966, %v3966
  %v4031 = vpack.c.b16 %v3967, %v3967
  %v4032 = vpack.c.b16 %v3968, %v3968
  %v4033 = vpack.c.b16 %v3969, %v3969
  %v4034 = vpack.c.b16 %v3970, %v3970
  %v4035 = vpack.c.b16 %v3971, %v3971
  %v4036 = vpack.c.b16 %v3972, %v3972
  %v4037 = vpack.c.b16 %v3973, %v3973
  %v4038 = vpack.c.b16 %v3974, %v3974
  %v4039 = vpack.c.b16 %v3975, %v3975
  %v4040 = vpack.c.b16 %v3976, %v3976
  %v4041 = vpack.c.b16 %v3977, %v3977
  %v4042 = vpack.c.b16 %v3978, %v3978
  %v4043 = vpack.c.b16 %v3979, %v3979
  %v4044 = vpack.c.b16 %v3980, %v3980
  %v4045 = vpack.c.b16 %v3981, %v3981
  %v4046 = vpack.c.b16 %v3982, %v3982
  %v4047 = vpack.c.b16 %v3983, %v3983
  %v4048 = vpack.c.b16 %v3984, %v3984
  %v4049 = vpack.c.b16 %v3985, %v3985
  %v4050 = vpack.c.b16 %v3986, %v3986
  %v4051 = vpack.c.b16 %v3987, %v3987
  %v4052 = vpack.c.b16 %v3988, %v3988
  %v4053 = vpack.c.b16 %v3989, %v3989
  %v4054 = vpack.c.b16 %v3990, %v3990
  %v4055 = vpack.c.b16 %v3991, %v3991
  %v4056 = vpack.c.b16 %v3992, %v3992
  %v4057 = vpack.c.b16 %v3993, %v3993
  %v4058 = vpack.c.b16 %v3994, %v3994
  %v4059 = vpack.c.b16 %v3995, %v3995
  %v4060 = vpack.c.b16 %v3996, %v3996
  %v4061 = vpack.c.b16 %v3997, %v3997
  %v4062 = vpack.c.b16 %v3998, %v3998
  %v4063 = vpack.c.b16 %v3999, %v3999
  %v4064 = vpack.c.b16 %v4000, %v4000
  %v4065 = vpack.c.b16 %v4001, %v4001
  %v4066 = vpack.c.b16 %v4002, %v4002
  %v4067 = vpack.c.b16 %v4003, %v4003
  %v4068 = vpack.c.b16 %v4004, %v4004
  %v4069 = vpack.c.b16 %v4005, %v4005
  %v4070 = vpack.c.b16 %v4006, %v4006
  %v4071 = vpack.c.b16 %v4007, %v4007
  %v4072 = vpack.c.b16 %v4008, %v4008
  %v4073 = vpack.c.b16 %v4009, %v4009
  %v4074 = vpack.c.b16 %v4010, %v4010
  %v4075 = vpack.c.b16 %v4011, %v4011
  %v4076 = vpack.c.b16 %v4012, %v4012
  %v4077 = vpack.c.b16 %v4013, %v4013
  %v4078 = vpack.c.b16 %v4014, %v4014
  %v4079 = vpack.c.b16 %v4015, %v4015
  %v4080 = vpack.c.b16 %v4016, %v4016
  %v4081 = vpack.c.b16 %v4017, %v4017
  %v4082 = vpack.c.b16 %v4018, %v4018
  %v4083 = vpack.c.b16 %v4019, %v4019
  %v4084 = vpack.c.b16 %v4020, %v4020
  %v4085 = vpack.c.b16 %v4021, %v4021
  %v4086 = vpack.c.b16 %v4022, %v4022
  %v4087 = vpack.c.b16 %v4023, %v4023
  %v4088 = vpack.c.b16 %v4024, %v4024
  %v4089 = vpack.c.b16 %v4025, %v4025
  %v4090 = vpack.c.b16 %v4026, %v4026
  %4155 = vst [vmem:[%s3] sm:$0xf] %v4027
  %4156 = vst [vmem:[%s3 + $0x4] sm:$0xf] %v4028
  %4157 = vst [vmem:[%s3 + $0x8] sm:$0xf] %v4029
  %4158 = vst [vmem:[%s3 + $0xc] sm:$0xf] %v4030
  %4159 = vst [vmem:[%s3 + $0x10] sm:$0xf] %v4031
  %4160 = vst [vmem:[%s3 + $0x14] sm:$0xf] %v4032
  %4161 = vst [vmem:[%s3 + $0x18] sm:$0xf] %v4033
  %4162 = vst [vmem:[%s3 + $0x1c] sm:$0xf] %v4034
  %4163 = vst [vmem:[%s3 + $0x20] sm:$0xf] %v4035
  %4164 = vst [vmem:[%s3 + $0x24] sm:$0xf] %v4036
  %4165 = vst [vmem:[%s3 + $0x28] sm:$0xf] %v4037
  %4166 = vst [vmem:[%s3 + $0x2c] sm:$0xf] %v4038
  %4167 = vst [vmem:[%s3 + $0x30] sm:$0xf] %v4039
  %4168 = vst [vmem:[%s3 + $0x34] sm:$0xf] %v4040
  %4169 = vst [vmem:[%s3 + $0x38] sm:$0xf] %v4041
  %4170 = vst [vmem:[%s3 + $0x3c] sm:$0xf] %v4042
  %4171 = vst [vmem:[%s3 + $0x40] sm:$0xf] %v4043
  %4172 = vst [vmem:[%s3 + $0x44] sm:$0xf] %v4044
  %4173 = vst [vmem:[%s3 + $0x48] sm:$0xf] %v4045
  %4174 = vst [vmem:[%s3 + $0x4c] sm:$0xf] %v4046
  %4175 = vst [vmem:[%s3 + $0x50] sm:$0xf] %v4047
  %4176 = vst [vmem:[%s3 + $0x54] sm:$0xf] %v4048
  %4177 = vst [vmem:[%s3 + $0x58] sm:$0xf] %v4049
  %4178 = vst [vmem:[%s3 + $0x5c] sm:$0xf] %v4050
  %4179 = vst [vmem:[%s3 + $0x60] sm:$0xf] %v4051
  %4180 = vst [vmem:[%s3 + $0x64] sm:$0xf] %v4052
  %4181 = vst [vmem:[%s3 + $0x68] sm:$0xf] %v4053
  %4182 = vst [vmem:[%s3 + $0x6c] sm:$0xf] %v4054
  %4183 = vst [vmem:[%s3 + $0x70] sm:$0xf] %v4055
  %4184 = vst [vmem:[%s3 + $0x74] sm:$0xf] %v4056
  %4185 = vst [vmem:[%s3 + $0x78] sm:$0xf] %v4057
  %4186 = vst [vmem:[%s3 + $0x7c] sm:$0xf] %v4058
  %4187 = vst [vmem:[%s3 + $0x80] sm:$0xf] %v4059
  %4188 = vst [vmem:[%s3 + $0x84] sm:$0xf] %v4060
  %4189 = vst [vmem:[%s3 + $0x88] sm:$0xf] %v4061
  %4190 = vst [vmem:[%s3 + $0x8c] sm:$0xf] %v4062
  %4191 = vst [vmem:[%s3 + $0x90] sm:$0xf] %v4063
  %4192 = vst [vmem:[%s3 + $0x94] sm:$0xf] %v4064
  %4193 = vst [vmem:[%s3 + $0x98] sm:$0xf] %v4065
  %4194 = vst [vmem:[%s3 + $0x9c] sm:$0xf] %v4066
  %4195 = vst [vmem:[%s3 + $0xa0] sm:$0xf] %v4067
  %4196 = vst [vmem:[%s3 + $0xa4] sm:$0xf] %v4068
  %4197 = vst [vmem:[%s3 + $0xa8] sm:$0xf] %v4069
  %4198 = vst [vmem:[%s3 + $0xac] sm:$0xf] %v4070
  %4199 = vst [vmem:[%s3 + $0xb0] sm:$0xf] %v4071
  %4200 = vst [vmem:[%s3 + $0xb4] sm:$0xf] %v4072
  %4201 = vst [vmem:[%s3 + $0xb8] sm:$0xf] %v4073
  %4202 = vst [vmem:[%s3 + $0xbc] sm:$0xf] %v4074
  %4203 = vst [vmem:[%s3 + $0xc0] sm:$0xf] %v4075
  %4204 = vst [vmem:[%s3 + $0xc4] sm:$0xf] %v4076
  %4205 = vst [vmem:[%s3 + $0xc8] sm:$0xf] %v4077
  %4206 = vst [vmem:[%s3 + $0xcc] sm:$0xf] %v4078
  %4207 = vst [vmem:[%s3 + $0xd0] sm:$0xf] %v4079
  %4208 = vst [vmem:[%s3 + $0xd4] sm:$0xf] %v4080
  %4209 = vst [vmem:[%s3 + $0xd8] sm:$0xf] %v4081
  %4210 = vst [vmem:[%s3 + $0xdc] sm:$0xf] %v4082
  %4211 = vst [vmem:[%s3 + $0xe0] sm:$0xf] %v4083
  %4212 = vst [vmem:[%s3 + $0xe4] sm:$0xf] %v4084
  %4213 = vst [vmem:[%s3 + $0xe8] sm:$0xf] %v4085
  %4214 = vst [vmem:[%s3 + $0xec] sm:$0xf] %v4086
  %4215 = vst [vmem:[%s3 + $0xf0] sm:$0xf] %v4087
  %4216 = vst [vmem:[%s3 + $0xf4] sm:$0xf] %v4088
  %4217 = vst [vmem:[%s3 + $0xf8] sm:$0xf] %v4089
  %4218 = vst [vmem:[%s3 + $0xfc] sm:$0xf] %v4090
  // Predicated region
  $region14: #{coanet_forward.7} parent=0 // pred_check
    _
  $region15: #{coanet_forward.7} parent=0 // pred_check_branch
    %4220 = sbr.rel (0) target = $region17
  $region16: #{coanet_forward.7} parent=0 // pred_region
    _
  $region17: #{coanet_forward.7} parent=0 // pred_fallthru
    _
  // Predicated region
  $region18: #{coanet_forward.7} parent=0 // pred_check
    _
  $region19: #{coanet_forward.7} parent=0 // pred_check_branch
    %4222 = sbr.rel (0) target = $region21
  $region20: #{coanet_forward.7} parent=0 // pred_region
    _
  $region21: #{coanet_forward.7} parent=0 // pred_fallthru
    _

// kernel: coanet_forward.9
$region0: #{coanet_forward.9}
  #allocation0 [shape = 'u32[]', space=smem, size = 0x4, offset = 0x4, fixed_abs, tag = 'smem constant byte address 0x4 - core index']
  #allocation1 [shape = 'u32[144,128]{1,0:T(1,128)}', space=vmem, size = 0x12000, scoped, tag = 'internal scratch']
  %s0 = inlined_call_operand.vmem [shape: bf16[128,128], index: 0, kind: input, shape index: {}]
  %s1 = inlined_call_operand.vmem [shape: bf16[128,128], index: 1, kind: input, shape index: {}]
  %s2 = inlined_call_operand.vmem [shape: f32[1,128], index: 2, kind: input, shape index: {}]
  %s3 = inlined_call_operand.vmem [shape: bf16[128,128], index: 3, kind: output, shape index: {}]
  %s4 = sld [smem:[#allocation0]]
  $region22: #{coanet_forward.9} parent=0
    _
  %s6 = ssub.s32 1, %s4
  %s7 = scalar_select 0, %s6, %s4
  // Predicated region
  $region2: #{coanet_forward.9} parent=0 // pred_check
    _
  $region3: #{coanet_forward.9} parent=0 // pred_check_branch
    %9 = sbr.rel (0) target = $region5
  $region4: #{coanet_forward.9} parent=0 // pred_region
    _
  $region5: #{coanet_forward.9} parent=0 // pred_fallthru
    _
  // Predicated region
  $region6: #{coanet_forward.9} parent=0 // pred_check
    _
  $region7: #{coanet_forward.9} parent=0 // pred_check_branch
    %11 = sbr.rel (0) target = $region9
  $region8: #{coanet_forward.9} parent=0 // pred_region
    _
  $region9: #{coanet_forward.9} parent=0 // pred_fallthru
    _
  // Predicated region
  $region10: #{coanet_forward.9} parent=0 // pred_check
    _
  $region11: #{coanet_forward.9} parent=0 // pred_check_branch
    %13 = sbr.rel (0) target = $region13
  $region12: #{coanet_forward.9} parent=0 // pred_region
    _
  $region13: #{coanet_forward.9} parent=0 // pred_fallthru
    _
  %v15 = vld [vmem:[%s0] sm:$0xf]
  %v16 = vld [vmem:[%s0 + $0x4] sm:$0xf]
  %v17 = vld [vmem:[%s0 + $0x8] sm:$0xf]
  %v18 = vld [vmem:[%s0 + $0xc] sm:$0xf]
  %v19 = vld [vmem:[%s0 + $0x10] sm:$0xf]
  %v20 = vld [vmem:[%s0 + $0x14] sm:$0xf]
  %v21 = vld [vmem:[%s0 + $0x18] sm:$0xf]
  %v22 = vld [vmem:[%s0 + $0x1c] sm:$0xf]
  %v23 = vld [vmem:[%s0 + $0x20] sm:$0xf]
  %v24 = vld [vmem:[%s0 + $0x24] sm:$0xf]
  %v25 = vld [vmem:[%s0 + $0x28] sm:$0xf]
  %v26 = vld [vmem:[%s0 + $0x2c] sm:$0xf]
  %v27 = vld [vmem:[%s0 + $0x30] sm:$0xf]
  %v28 = vld [vmem:[%s0 + $0x34] sm:$0xf]
  %v29 = vld [vmem:[%s0 + $0x38] sm:$0xf]
  %v30 = vld [vmem:[%s0 + $0x3c] sm:$0xf]
  %v31 = vld [vmem:[%s1] sm:$0xf]
  %v32 = vld [vmem:[%s1 + $0x4] sm:$0xf]
  %v33 = vld [vmem:[%s1 + $0x8] sm:$0xf]
  %v34 = vld [vmem:[%s1 + $0xc] sm:$0xf]
  %v35 = vld [vmem:[%s1 + $0x10] sm:$0xf]
  %v36 = vld [vmem:[%s1 + $0x14] sm:$0xf]
  %v37 = vld [vmem:[%s1 + $0x18] sm:$0xf]
  %v38 = vld [vmem:[%s1 + $0x1c] sm:$0xf]
  %v39 = vld [vmem:[%s1 + $0x20] sm:$0xf]
  %v40 = vld [vmem:[%s1 + $0x24] sm:$0xf]
  %v41 = vld [vmem:[%s1 + $0x28] sm:$0xf]
  %v42 = vld [vmem:[%s1 + $0x2c] sm:$0xf]
  %v43 = vld [vmem:[%s1 + $0x30] sm:$0xf]
  %v44 = vld [vmem:[%s1 + $0x34] sm:$0xf]
  %v45 = vld [vmem:[%s1 + $0x38] sm:$0xf]
  %v46 = vld [vmem:[%s1 + $0x3c] sm:$0xf]
  %v47 = vld [vmem:[%s2] sm:$0x1]
  %v49 = vlaneseq
  %v50 = vshrl.u32 %v49, 7
  %v51 = vsub.s32 0, %v50
  %v52 = vrot.slane %v47, %v51
  %v70 = vunpack.c.l.b16 %v15
  %v71 = vunpack.c.l.b16 %v16
  %v72 = vunpack.c.l.b16 %v17
  %v73 = vunpack.c.l.b16 %v18
  %v74 = vunpack.c.l.b16 %v19
  %v75 = vunpack.c.l.b16 %v20
  %v76 = vunpack.c.l.b16 %v21
  %v77 = vunpack.c.l.b16 %v22
  %v78 = vunpack.c.l.b16 %v23
  %v79 = vunpack.c.l.b16 %v24
  %v80 = vunpack.c.l.b16 %v25
  %v81 = vunpack.c.l.b16 %v26
  %v82 = vunpack.c.l.b16 %v27
  %v83 = vunpack.c.l.b16 %v28
  %v84 = vunpack.c.l.b16 %v29
  %v85 = vunpack.c.l.b16 %v30
  %v86 = vpack.c.b16 %v71, %v70
  %v87 = vpack.c.b16 %v73, %v72
  %v88 = vpack.c.b16 %v75, %v74
  %v89 = vpack.c.b16 %v77, %v76
  %v90 = vpack.c.b16 %v79, %v78
  %v91 = vpack.c.b16 %v81, %v80
  %v92 = vpack.c.b16 %v83, %v82
  %v93 = vpack.c.b16 %v85, %v84
  %v118 = vunpack.c.l.b16 %v31
  %v119 = vunpack.c.l.b16 %v32
  %v120 = vunpack.c.l.b16 %v33
  %v121 = vunpack.c.l.b16 %v34
  %v122 = vunpack.c.l.b16 %v35
  %v123 = vunpack.c.l.b16 %v36
  %v124 = vunpack.c.l.b16 %v37
  %v125 = vunpack.c.l.b16 %v38
  %v126 = vunpack.c.l.b16 %v39
  %v127 = vunpack.c.l.b16 %v40
  %v128 = vunpack.c.l.b16 %v41
  %v129 = vunpack.c.l.b16 %v42
  %v130 = vunpack.c.l.b16 %v43
  %v131 = vunpack.c.l.b16 %v44
  %v132 = vunpack.c.l.b16 %v45
  %v133 = vunpack.c.l.b16 %v46
  %v134 = vpack.c.b16 %v119, %v118
  %v135 = vpack.c.b16 %v121, %v120
  %v136 = vpack.c.b16 %v123, %v122
  %v137 = vpack.c.b16 %v125, %v124
  %v138 = vpack.c.b16 %v127, %v126
  %v139 = vpack.c.b16 %v129, %v128
  %v140 = vpack.c.b16 %v131, %v130
  %v141 = vpack.c.b16 %v133, %v132
  %150 = vmatprep.subr.bf16.mxu0 0
  %151 = vmatpush1.bf16.msra.mxu0 %v134
  %152 = vmatprep.subr.bf16.mxu0 0
  %153 = vmatpush1.bf16.msra.mxu0 %v135
  %154 = vmatprep.subr.bf16.mxu0 0
  %155 = vmatpush1.bf16.msra.mxu0 %v136
  %156 = vmatprep.subr.bf16.mxu0 0
  %157 = vmatpush1.bf16.msra.mxu0 %v137
  %158 = vmatprep.subr.bf16.mxu0 0
  %159 = vmatpush1.bf16.msra.mxu0 %v138
  %160 = vmatprep.subr.bf16.mxu0 0
  %161 = vmatpush1.bf16.msra.mxu0 %v139
  %162 = vmatprep.subr.bf16.mxu0 0
  %163 = vmatpush1.bf16.msra.mxu0 %v140
  %164 = vmatprep.subr.bf16.mxu0 0
  %165 = vmatpush1.bf16.msra.mxu0 %v141
  %166 = vmatprep.subr.bf16.mxu0 0
  %167 = vmatpush1.bf16.msra.mxu0 0
  %168 = vmatprep.subr.bf16.mxu0 0
  %169 = vmatpush1.bf16.msra.mxu0 0
  %170 = vmatprep.subr.bf16.mxu0 0
  %171 = vmatpush1.bf16.msra.mxu0 0
  %172 = vmatprep.subr.bf16.mxu0 0
  %173 = vmatpush1.bf16.msra.mxu0 0
  %174 = vmatprep.subr.bf16.mxu0 0
  %175 = vmatpush1.bf16.msra.mxu0 0
  %176 = vmatprep.subr.bf16.mxu0 0
  %177 = vmatpush1.bf16.msra.mxu0 0
  %178 = vmatprep.subr.bf16.mxu0 0
  %179 = vmatpush1.bf16.msra.mxu0 0
  %180 = vmatprep.subr.bf16.mxu0 0
  %181 = vmatpush1.bf16.msra.mxu0 0
  %182 = vmatprep.mubr.bf16.mxu0 0
  %183 = vmatmul.mubr.bf16.gmra.mrb[0].mxu0 %v86
  %v184 = vpop.f32.mrb[0].mxu0
  %v185 = vadd.f32 %v52, %v184
  %v186 = vpop.f32.mrb[0].mxu0
  %v187 = vpop.f32.mrb[0].mxu0
  %v188 = vadd.f32 %v52, %v187
  %v189 = vpop.f32.mrb[0].mxu0
  %190 = vmatprep.mubr.bf16.mxu0 0
  %191 = vmatmul.mubr.bf16.gmra.mrb[0].mxu0 %v87
  %v192 = vpop.f32.mrb[0].mxu0
  %v193 = vadd.f32 %v52, %v192
  %v194 = vpop.f32.mrb[0].mxu0
  %v195 = vpop.f32.mrb[0].mxu0
  %v196 = vadd.f32 %v52, %v195
  %v197 = vpop.f32.mrb[0].mxu0
  %198 = vmatprep.mubr.bf16.mxu0 0
  %199 = vmatmul.mubr.bf16.gmra.mrb[0].mxu0 %v88
  %v200 = vpop.f32.mrb[0].mxu0
  %v201 = vadd.f32 %v52, %v200
  %v202 = vpop.f32.mrb[0].mxu0
  %v203 = vpop.f32.mrb[0].mxu0
  %v204 = vadd.f32 %v52, %v203
  %v205 = vpop.f32.mrb[0].mxu0
  %206 = vmatprep.mubr.bf16.mxu0 0
  %207 = vmatmul.mubr.bf16.gmra.mrb[0].mxu0 %v89
  %v208 = vpop.f32.mrb[0].mxu0
  %v209 = vadd.f32 %v52, %v208
  %v210 = vpop.f32.mrb[0].mxu0
  %v211 = vpop.f32.mrb[0].mxu0
  %v212 = vadd.f32 %v52, %v211
  %v213 = vpop.f32.mrb[0].mxu0
  %214 = vmatprep.mubr.bf16.mxu0 0
  %215 = vmatmul.mubr.bf16.gmra.mrb[0].mxu0 %v90
  %v216 = vpop.f32.mrb[0].mxu0
  %v217 = vadd.f32 %v52, %v216
  %v218 = vpop.f32.mrb[0].mxu0
  %v219 = vpop.f32.mrb[0].mxu0
  %v220 = vadd.f32 %v52, %v219
  %v221 = vpop.f32.mrb[0].mxu0
  %222 = vmatprep.mubr.bf16.mxu0 0
  %223 = vmatmul.mubr.bf16.gmra.mrb[0].mxu0 %v91
  %v224 = vpop.f32.mrb[0].mxu0
  %v225 = vadd.f32 %v52, %v224
  %v226 = vpop.f32.mrb[0].mxu0
  %v227 = vpop.f32.mrb[0].mxu0
  %v228 = vadd.f32 %v52, %v227
  %v229 = vpop.f32.mrb[0].mxu0
  %230 = vmatprep.mubr.bf16.mxu0 0
  %231 = vmatmul.mubr.bf16.gmra.mrb[0].mxu0 %v92
  %v232 = vpop.f32.mrb[0].mxu0
  %v233 = vadd.f32 %v52, %v232
  %v234 = vpop.f32.mrb[0].mxu0
  %v235 = vpop.f32.mrb[0].mxu0
  %v236 = vadd.f32 %v52, %v235
  %v237 = vpop.f32.mrb[0].mxu0
  %238 = vmatprep.mubr.bf16.mxu0 0
  %239 = vmatmul.mubr.bf16.gmra.mrb[0].mxu0 %v93
  %v240 = vpop.f32.mrb[0].mxu0
  %v241 = vadd.f32 %v52, %v240
  %v242 = vpop.f32.mrb[0].mxu0
  %v243 = vpop.f32.mrb[0].mxu0
  %v244 = vadd.f32 %v52, %v243
  %v245 = vpop.f32.mrb[0].mxu0
  %246 = vdwg.mxu0
  %v247 = vmax.f32 %v185, 0.0
  %v248 = vmax.f32 %v188, 0.0
  %v249 = vmax.f32 %v193, 0.0
  %v250 = vmax.f32 %v196, 0.0
  %v251 = vmax.f32 %v201, 0.0
  %v252 = vmax.f32 %v204, 0.0
  %v253 = vmax.f32 %v209, 0.0
  %v254 = vmax.f32 %v212, 0.0
  %v255 = vmax.f32 %v217, 0.0
  %v256 = vmax.f32 %v220, 0.0
  %v257 = vmax.f32 %v225, 0.0
  %v258 = vmax.f32 %v228, 0.0
  %v259 = vmax.f32 %v233, 0.0
  %v260 = vmax.f32 %v236, 0.0
  %v261 = vmax.f32 %v241, 0.0
  %v262 = vmax.f32 %v244, 0.0
  %v263 = vpack.c.bf16 %v248, %v247
  %v264 = vpack.c.bf16 %v250, %v249
  %v265 = vpack.c.bf16 %v252, %v251
  %v266 = vpack.c.bf16 %v254, %v253
  %v267 = vpack.c.bf16 %v256, %v255
  %v268 = vpack.c.bf16 %v258, %v257
  %v269 = vpack.c.bf16 %v260, %v259
  %v270 = vpack.c.bf16 %v262, %v261
  %v279 = vunpack.c.l.b16 %v263
  %v280 = vunpack.c.h.b16 %v263
  %v281 = vunpack.c.l.b16 %v264
  %v282 = vunpack.c.h.b16 %v264
  %v283 = vunpack.c.l.b16 %v265
  %v284 = vunpack.c.h.b16 %v265
  %v285 = vunpack.c.l.b16 %v266
  %v286 = vunpack.c.h.b16 %v266
  %v287 = vunpack.c.l.b16 %v267
  %v288 = vunpack.c.h.b16 %v267
  %v289 = vunpack.c.l.b16 %v268
  %v290 = vunpack.c.h.b16 %v268
  %v291 = vunpack.c.l.b16 %v269
  %v292 = vunpack.c.h.b16 %v269
  %v293 = vunpack.c.l.b16 %v270
  %v294 = vunpack.c.h.b16 %v270
  %v295 = vpack.c.b16 %v279, %v279
  %v296 = vpack.c.b16 %v280, %v280
  %v297 = vpack.c.b16 %v281, %v281
  %v298 = vpack.c.b16 %v282, %v282
  %v299 = vpack.c.b16 %v283, %v283
  %v300 = vpack.c.b16 %v284, %v284
  %v301 = vpack.c.b16 %v285, %v285
  %v302 = vpack.c.b16 %v286, %v286
  %v303 = vpack.c.b16 %v287, %v287
  %v304 = vpack.c.b16 %v288, %v288
  %v305 = vpack.c.b16 %v289, %v289
  %v306 = vpack.c.b16 %v290, %v290
  %v307 = vpack.c.b16 %v291, %v291
  %v308 = vpack.c.b16 %v292, %v292
  %v309 = vpack.c.b16 %v293, %v293
  %v310 = vpack.c.b16 %v294, %v294
  %327 = vst [vmem:[%s3] sm:$0xf] %v295
  %328 = vst [vmem:[%s3 + $0x4] sm:$0xf] %v296
  %329 = vst [vmem:[%s3 + $0x8] sm:$0xf] %v297
  %330 = vst [vmem:[%s3 + $0xc] sm:$0xf] %v298
  %331 = vst [vmem:[%s3 + $0x10] sm:$0xf] %v299
  %332 = vst [vmem:[%s3 + $0x14] sm:$0xf] %v300
  %333 = vst [vmem:[%s3 + $0x18] sm:$0xf] %v301
  %334 = vst [vmem:[%s3 + $0x1c] sm:$0xf] %v302
  %335 = vst [vmem:[%s3 + $0x20] sm:$0xf] %v303
  %336 = vst [vmem:[%s3 + $0x24] sm:$0xf] %v304
  %337 = vst [vmem:[%s3 + $0x28] sm:$0xf] %v305
  %338 = vst [vmem:[%s3 + $0x2c] sm:$0xf] %v306
  %339 = vst [vmem:[%s3 + $0x30] sm:$0xf] %v307
  %340 = vst [vmem:[%s3 + $0x34] sm:$0xf] %v308
  %341 = vst [vmem:[%s3 + $0x38] sm:$0xf] %v309
  %342 = vst [vmem:[%s3 + $0x3c] sm:$0xf] %v310
  // Predicated region
  $region14: #{coanet_forward.9} parent=0 // pred_check
    _
  $region15: #{coanet_forward.9} parent=0 // pred_check_branch
    %344 = sbr.rel (0) target = $region17
  $region16: #{coanet_forward.9} parent=0 // pred_region
    _
  $region17: #{coanet_forward.9} parent=0 // pred_fallthru
    _
  // Predicated region
  $region18: #{coanet_forward.9} parent=0 // pred_check
    _
  $region19: #{coanet_forward.9} parent=0 // pred_check_branch
    %346 = sbr.rel (0) target = $region21
  $region20: #{coanet_forward.9} parent=0 // pred_region
    _
  $region21: #{coanet_forward.9} parent=0 // pred_fallthru
    _

// kernel: coanet_forward.13
$region0: #{coanet_forward.13}
  #allocation0 [shape = 'u32[]', space=smem, size = 0x4, offset = 0x4, fixed_abs, tag = 'smem constant byte address 0x4 - core index']
  #allocation1 [shape = 'u32[144,128]{1,0:T(1,128)}', space=vmem, size = 0x12000, scoped, tag = 'internal scratch']
  %s0 = inlined_call_operand.vmem [shape: bf16[128,1152], index: 0, kind: input, shape index: {}]
  %s1 = inlined_call_operand.vmem [shape: bf16[1152,128], index: 1, kind: input, shape index: {}]
  %s2 = inlined_call_operand.vmem [shape: f32[1,128], index: 2, kind: input, shape index: {}]
  %s3 = inlined_call_operand.vmem [shape: bf16[128,128], index: 3, kind: input, shape index: {}]
  %s4 = inlined_call_operand.vmem [shape: f32[1,128], index: 4, kind: input, shape index: {}]
  %s5 = inlined_call_operand.vmem [shape: f32[128,128], index: 5, kind: output, shape index: {}]
  %s6 = sld [smem:[#allocation0]]
  $region30: #{coanet_forward.13} parent=0
    _
  %s8 = ssub.s32 1, %s6
  %s9 = scalar_select 0, %s8, %s6
  // Predicated region
  $region2: #{coanet_forward.13} parent=0 // pred_check
    _
  $region3: #{coanet_forward.13} parent=0 // pred_check_branch
    %11 = sbr.rel (0) target = $region5
  $region4: #{coanet_forward.13} parent=0 // pred_region
    _
  $region5: #{coanet_forward.13} parent=0 // pred_fallthru
    _
  // Predicated region
  $region6: #{coanet_forward.13} parent=0 // pred_check
    _
  $region7: #{coanet_forward.13} parent=0 // pred_check_branch
    %13 = sbr.rel (0) target = $region9
  $region8: #{coanet_forward.13} parent=0 // pred_region
    _
  $region9: #{coanet_forward.13} parent=0 // pred_fallthru
    _
  // Predicated region
  $region10: #{coanet_forward.13} parent=0 // pred_check
    _
  $region11: #{coanet_forward.13} parent=0 // pred_check_branch
    %15 = sbr.rel (0) target = $region13
  $region12: #{coanet_forward.13} parent=0 // pred_region
    _
  $region13: #{coanet_forward.13} parent=0 // pred_fallthru
    _
  // Predicated region
  $region14: #{coanet_forward.13} parent=0 // pred_check
    _
  $region15: #{coanet_forward.13} parent=0 // pred_check_branch
    %17 = sbr.rel (0) target = $region17
  $region16: #{coanet_forward.13} parent=0 // pred_region
    _
  $region17: #{coanet_forward.13} parent=0 // pred_fallthru
    _
  // Predicated region
  $region18: #{coanet_forward.13} parent=0 // pred_check
    _
  $region19: #{coanet_forward.13} parent=0 // pred_check_branch
    %19 = sbr.rel (0) target = $region21
  $region20: #{coanet_forward.13} parent=0 // pred_region
    _
  $region21: #{coanet_forward.13} parent=0 // pred_fallthru
    _
  %v21 = vld [vmem:[%s0] sm:$0xff]
  %v22 = vld [vmem:[%s0 + $0x8] sm:$0xff]
  %v23 = vld [vmem:[%s0 + $0x10] sm:$0xff]
  %v24 = vld [vmem:[%s0 + $0x18] sm:$0xff]
  %v25 = vld [vmem:[%s0 + $0x20] sm:$0xf]
  %v26 = vld [vmem:[%s0 + $0x24] sm:$0xff]
  %v27 = vld [vmem:[%s0 + $0x2c] sm:$0xff]
  %v28 = vld [vmem:[%s0 + $0x34] sm:$0xff]
  %v29 = vld [vmem:[%s0 + $0x3c] sm:$0xff]
  %v30 = vld [vmem:[%s0 + $0x44] sm:$0xf]
  %v31 = vld [vmem:[%s0 + $0x48] sm:$0xff]
  %v32 = vld [vmem:[%s0 + $0x50] sm:$0xff]
  %v33 = vld [vmem:[%s0 + $0x58] sm:$0xff]
  %v34 = vld [vmem:[%s0 + $0x60] sm:$0xff]
  %v35 = vld [vmem:[%s0 + $0x68] sm:$0xf]
  %v36 = vld [vmem:[%s0 + $0x6c] sm:$0xff]
  %v37 = vld [vmem:[%s0 + $0x74] sm:$0xff]
  %v38 = vld [vmem:[%s0 + $0x7c] sm:$0xff]
  %v39 = vld [vmem:[%s0 + $0x84] sm:$0xff]
  %v40 = vld [vmem:[%s0 + $0x8c] sm:$0xf]
  %v41 = vld [vmem:[%s0 + $0x90] sm:$0xff]
  %v42 = vld [vmem:[%s0 + $0x98] sm:$0xff]
  %v43 = vld [vmem:[%s0 + $0xa0] sm:$0xff]
  %v44 = vld [vmem:[%s0 + $0xa8] sm:$0xff]
  %v45 = vld [vmem:[%s0 + $0xb0] sm:$0xf]
  %v46 = vld [vmem:[%s0 + $0xb4] sm:$0xff]
  %v47 = vld [vmem:[%s0 + $0xbc] sm:$0xff]
  %v48 = vld [vmem:[%s0 + $0xc4] sm:$0xff]
  %v49 = vld [vmem:[%s0 + $0xcc] sm:$0xff]
  %v50 = vld [vmem:[%s0 + $0xd4] sm:$0xf]
  %v51 = vld [vmem:[%s0 + $0xd8] sm:$0xff]
  %v52 = vld [vmem:[%s0 + $0xe0] sm:$0xff]
  %v53 = vld [vmem:[%s0 + $0xe8] sm:$0xff]
  %v54 = vld [vmem:[%s0 + $0xf0] sm:$0xff]
  %v55 = vld [vmem:[%s0 + $0xf8] sm:$0xf]
  %v56 = vld [vmem:[%s0 + $0xfc] sm:$0xff]
  %v57 = vld [vmem:[%s0 + $0x104] sm:$0xff]
  %v58 = vld [vmem:[%s0 + $0x10c] sm:$0xff]
  %v59 = vld [vmem:[%s0 + $0x114] sm:$0xff]
  %v60 = vld [vmem:[%s0 + $0x11c] sm:$0xf]
  %v61 = vld [vmem:[%s0 + $0x120] sm:$0xff]
  %v62 = vld [vmem:[%s0 + $0x128] sm:$0xff]
  %v63 = vld [vmem:[%s0 + $0x130] sm:$0xff]
  %v64 = vld [vmem:[%s0 + $0x138] sm:$0xff]
  %v65 = vld [vmem:[%s0 + $0x140] sm:$0xf]
  %v66 = vld [vmem:[%s0 + $0x144] sm:$0xff]
  %v67 = vld [vmem:[%s0 + $0x14c] sm:$0xff]
  %v68 = vld [vmem:[%s0 + $0x154] sm:$0xff]
  %v69 = vld [vmem:[%s0 + $0x15c] sm:$0xff]
  %v70 = vld [vmem:[%s0 + $0x164] sm:$0xf]
  %v71 = vld [vmem:[%s0 + $0x168] sm:$0xff]
  %v72 = vld [vmem:[%s0 + $0x170] sm:$0xff]
  %v73 = vld [vmem:[%s0 + $0x178] sm:$0xff]
  %v74 = vld [vmem:[%s0 + $0x180] sm:$0xff]
  %v75 = vld [vmem:[%s0 + $0x188] sm:$0xf]
  %v76 = vld [vmem:[%s0 + $0x18c] sm:$0xff]
  %v77 = vld [vmem:[%s0 + $0x194] sm:$0xff]
  %v78 = vld [vmem:[%s0 + $0x19c] sm:$0xff]
  %v79 = vld [vmem:[%s0 + $0x1a4] sm:$0xff]
  %v80 = vld [vmem:[%s0 + $0x1ac] sm:$0xf]
  %v81 = vld [vmem:[%s0 + $0x1b0] sm:$0xff]
  %v82 = vld [vmem:[%s0 + $0x1b8] sm:$0xff]
  %v83 = vld [vmem:[%s0 + $0x1c0] sm:$0xff]
  %v84 = vld [vmem:[%s0 + $0x1c8] sm:$0xff]
  %v85 = vld [vmem:[%s0 + $0x1d0] sm:$0xf]
  %v86 = vld [vmem:[%s0 + $0x1d4] sm:$0xff]
  %v87 = vld [vmem:[%s0 + $0x1dc] sm:$0xff]
  %v88 = vld [vmem:[%s0 + $0x1e4] sm:$0xff]
  %v89 = vld [vmem:[%s0 + $0x1ec] sm:$0xff]
  %v90 = vld [vmem:[%s0 + $0x1f4] sm:$0xf]
  %v91 = vld [vmem:[%s0 + $0x1f8] sm:$0xff]
  %v92 = vld [vmem:[%s0 + $0x200] sm:$0xff]
  %v93 = vld [vmem:[%s0 + $0x208] sm:$0xff]
  %v94 = vld [vmem:[%s0 + $0x210] sm:$0xff]
  %v95 = vld [vmem:[%s0 + $0x218] sm:$0xf]
  %v96 = vld [vmem:[%s0 + $0x21c] sm:$0xff]
  %v97 = vld [vmem:[%s0 + $0x224] sm:$0xff]
  %v98 = vld [vmem:[%s0 + $0x22c] sm:$0xff]
  %v99 = vld [vmem:[%s0 + $0x234] sm:$0xff]
  %v100 = vld [vmem:[%s0 + $0x23c] sm:$0xf]
  %v101 = vld [vmem:[%s1] sm:$0xf]
  %v102 = vld [vmem:[%s1 + $0x4] sm:$0xf]
  %v103 = vld [vmem:[%s1 + $0x8] sm:$0xf]
  %v104 = vld [vmem:[%s1 + $0xc] sm:$0xf]
  %v105 = vld [vmem:[%s1 + $0x10] sm:$0xf]
  %v106 = vld [vmem:[%s1 + $0x14] sm:$0xf]
  %v107 = vld [vmem:[%s1 + $0x18] sm:$0xf]
  %v108 = vld [vmem:[%s1 + $0x1c] sm:$0xf]
  %v109 = vld [vmem:[%s1 + $0x20] sm:$0xf]
  %v110 = vld [vmem:[%s1 + $0x24] sm:$0xf]
  %v111 = vld [vmem:[%s1 + $0x28] sm:$0xf]
  %v112 = vld [vmem:[%s1 + $0x2c] sm:$0xf]
  %v113 = vld [vmem:[%s1 + $0x30] sm:$0xf]
  %v114 = vld [vmem:[%s1 + $0x34] sm:$0xf]
  %v115 = vld [vmem:[%s1 + $0x38] sm:$0xf]
  %v116 = vld [vmem:[%s1 + $0x3c] sm:$0xf]
  %v117 = vld [vmem:[%s1 + $0x40] sm:$0xf]
  %v118 = vld [vmem:[%s1 + $0x44] sm:$0xf]
  %v119 = vld [vmem:[%s1 + $0x48] sm:$0xf]
  %v120 = vld [vmem:[%s1 + $0x4c] sm:$0xf]
  %v121 = vld [vmem:[%s1 + $0x50] sm:$0xf]
  %v122 = vld [vmem:[%s1 + $0x54] sm:$0xf]
  %v123 = vld [vmem:[%s1 + $0x58] sm:$0xf]
  %v124 = vld [vmem:[%s1 + $0x5c] sm:$0xf]
  %v125 = vld [vmem:[%s1 + $0x60] sm:$0xf]
  %v126 = vld [vmem:[%s1 + $0x64] sm:$0xf]
  %v127 = vld [vmem:[%s1 + $0x68] sm:$0xf]
  %v128 = vld [vmem:[%s1 + $0x6c] sm:$0xf]
  %v129 = vld [vmem:[%s1 + $0x70] sm:$0xf]
  %v130 = vld [vmem:[%s1 + $0x74] sm:$0xf]
  %v131 = vld [vmem:[%s1 + $0x78] sm:$0xf]
  %v132 = vld [vmem:[%s1 + $0x7c] sm:$0xf]
  %v133 = vld [vmem:[%s1 + $0x80] sm:$0xf]
  %v134 = vld [vmem:[%s1 + $0x84] sm:$0xf]
  %v135 = vld [vmem:[%s1 + $0x88] sm:$0xf]
  %v136 = vld [vmem:[%s1 + $0x8c] sm:$0xf]
  %v137 = vld [vmem:[%s1 + $0x90] sm:$0xf]
  %v138 = vld [vmem:[%s1 + $0x94] sm:$0xf]
  %v139 = vld [vmem:[%s1 + $0x98] sm:$0xf]
  %v140 = vld [vmem:[%s1 + $0x9c] sm:$0xf]
  %v141 = vld [vmem:[%s1 + $0xa0] sm:$0xf]
  %v142 = vld [vmem:[%s1 + $0xa4] sm:$0xf]
  %v143 = vld [vmem:[%s1 + $0xa8] sm:$0xf]
  %v144 = vld [vmem:[%s1 + $0xac] sm:$0xf]
  %v145 = vld [vmem:[%s1 + $0xb0] sm:$0xf]
  %v146 = vld [vmem:[%s1 + $0xb4] sm:$0xf]
  %v147 = vld [vmem:[%s1 + $0xb8] sm:$0xf]
  %v148 = vld [vmem:[%s1 + $0xbc] sm:$0xf]
  %v149 = vld [vmem:[%s1 + $0xc0] sm:$0xf]
  %v150 = vld [vmem:[%s1 + $0xc4] sm:$0xf]
  %v151 = vld [vmem:[%s1 + $0xc8] sm:$0xf]
  %v152 = vld [vmem:[%s1 + $0xcc] sm:$0xf]
  %v153 = vld [vmem:[%s1 + $0xd0] sm:$0xf]
  %v154 = vld [vmem:[%s1 + $0xd4] sm:$0xf]
  %v155 = vld [vmem:[%s1 + $0xd8] sm:$0xf]
  %v156 = vld [vmem:[%s1 + $0xdc] sm:$0xf]
  %v157 = vld [vmem:[%s1 + $0xe0] sm:$0xf]
  %v158 = vld [vmem:[%s1 + $0xe4] sm:$0xf]
  %v159 = vld [vmem:[%s1 + $0xe8] sm:$0xf]
  %v160 = vld [vmem:[%s1 + $0xec] sm:$0xf]
  %v161 = vld [vmem:[%s1 + $0xf0] sm:$0xf]
  %v162 = vld [vmem:[%s1 + $0xf4] sm:$0xf]
  %v163 = vld [vmem:[%s1 + $0xf8] sm:$0xf]
  %v164 = vld [vmem:[%s1 + $0xfc] sm:$0xf]
  %v165 = vld [vmem:[%s1 + $0x100] sm:$0xf]
  %v166 = vld [vmem:[%s1 + $0x104] sm:$0xf]
  %v167 = vld [vmem:[%s1 + $0x108] sm:$0xf]
  %v168 = vld [vmem:[%s1 + $0x10c] sm:$0xf]
  %v169 = vld [vmem:[%s1 + $0x110] sm:$0xf]
  %v170 = vld [vmem:[%s1 + $0x114] sm:$0xf]
  %v171 = vld [vmem:[%s1 + $0x118] sm:$0xf]
  %v172 = vld [vmem:[%s1 + $0x11c] sm:$0xf]
  %v173 = vld [vmem:[%s1 + $0x120] sm:$0xf]
  %v174 = vld [vmem:[%s1 + $0x124] sm:$0xf]
  %v175 = vld [vmem:[%s1 + $0x128] sm:$0xf]
  %v176 = vld [vmem:[%s1 + $0x12c] sm:$0xf]
  %v177 = vld [vmem:[%s1 + $0x130] sm:$0xf]
  %v178 = vld [vmem:[%s1 + $0x134] sm:$0xf]
  %v179 = vld [vmem:[%s1 + $0x138] sm:$0xf]
  %v180 = vld [vmem:[%s1 + $0x13c] sm:$0xf]
  %v181 = vld [vmem:[%s1 + $0x140] sm:$0xf]
  %v182 = vld [vmem:[%s1 + $0x144] sm:$0xf]
  %v183 = vld [vmem:[%s1 + $0x148] sm:$0xf]
  %v184 = vld [vmem:[%s1 + $0x14c] sm:$0xf]
  %v185 = vld [vmem:[%s1 + $0x150] sm:$0xf]
  %v186 = vld [vmem:[%s1 + $0x154] sm:$0xf]
  %v187 = vld [vmem:[%s1 + $0x158] sm:$0xf]
  %v188 = vld [vmem:[%s1 + $0x15c] sm:$0xf]
  %v189 = vld [vmem:[%s1 + $0x160] sm:$0xf]
  %v190 = vld [vmem:[%s1 + $0x164] sm:$0xf]
  %v191 = vld [vmem:[%s1 + $0x168] sm:$0xf]
  %v192 = vld [vmem:[%s1 + $0x16c] sm:$0xf]
  %v193 = vld [vmem:[%s1 + $0x170] sm:$0xf]
  %v194 = vld [vmem:[%s1 + $0x174] sm:$0xf]
  %v195 = vld [vmem:[%s1 + $0x178] sm:$0xf]
  %v196 = vld [vmem:[%s1 + $0x17c] sm:$0xf]
  %v197 = vld [vmem:[%s1 + $0x180] sm:$0xf]
  %v198 = vld [vmem:[%s1 + $0x184] sm:$0xf]
  %v199 = vld [vmem:[%s1 + $0x188] sm:$0xf]
  %v200 = vld [vmem:[%s1 + $0x18c] sm:$0xf]
  %v201 = vld [vmem:[%s1 + $0x190] sm:$0xf]
  %v202 = vld [vmem:[%s1 + $0x194] sm:$0xf]
  %v203 = vld [vmem:[%s1 + $0x198] sm:$0xf]
  %v204 = vld [vmem:[%s1 + $0x19c] sm:$0xf]
  %v205 = vld [vmem:[%s1 + $0x1a0] sm:$0xf]
  %v206 = vld [vmem:[%s1 + $0x1a4] sm:$0xf]
  %v207 = vld [vmem:[%s1 + $0x1a8] sm:$0xf]
  %v208 = vld [vmem:[%s1 + $0x1ac] sm:$0xf]
  %v209 = vld [vmem:[%s1 + $0x1b0] sm:$0xf]
  %v210 = vld [vmem:[%s1 + $0x1b4] sm:$0xf]
  %v211 = vld [vmem:[%s1 + $0x1b8] sm:$0xf]
  %v212 = vld [vmem:[%s1 + $0x1bc] sm:$0xf]
  %v213 = vld [vmem:[%s1 + $0x1c0] sm:$0xf]
  %v214 = vld [vmem:[%s1 + $0x1c4] sm:$0xf]
  %v215 = vld [vmem:[%s1 + $0x1c8] sm:$0xf]
  %v216 = vld [vmem:[%s1 + $0x1cc] sm:$0xf]
  %v217 = vld [vmem:[%s1 + $0x1d0] sm:$0xf]
  %v218 = vld [vmem:[%s1 + $0x1d4] sm:$0xf]
  %v219 = vld [vmem:[%s1 + $0x1d8] sm:$0xf]
  %v220 = vld [vmem:[%s1 + $0x1dc] sm:$0xf]
  %v221 = vld [vmem:[%s1 + $0x1e0] sm:$0xf]
  %v222 = vld [vmem:[%s1 + $0x1e4] sm:$0xf]
  %v223 = vld [vmem:[%s1 + $0x1e8] sm:$0xf]
  %v224 = vld [vmem:[%s1 + $0x1ec] sm:$0xf]
  %v225 = vld [vmem:[%s1 + $0x1f0] sm:$0xf]
  %v226 = vld [vmem:[%s1 + $0x1f4] sm:$0xf]
  %v227 = vld [vmem:[%s1 + $0x1f8] sm:$0xf]
  %v228 = vld [vmem:[%s1 + $0x1fc] sm:$0xf]
  %v229 = vld [vmem:[%s1 + $0x200] sm:$0xf]
  %v230 = vld [vmem:[%s1 + $0x204] sm:$0xf]
  %v231 = vld [vmem:[%s1 + $0x208] sm:$0xf]
  %v232 = vld [vmem:[%s1 + $0x20c] sm:$0xf]
  %v233 = vld [vmem:[%s1 + $0x210] sm:$0xf]
  %v234 = vld [vmem:[%s1 + $0x214] sm:$0xf]
  %v235 = vld [vmem:[%s1 + $0x218] sm:$0xf]
  %v236 = vld [vmem:[%s1 + $0x21c] sm:$0xf]
  %v237 = vld [vmem:[%s1 + $0x220] sm:$0xf]
  %v238 = vld [vmem:[%s1 + $0x224] sm:$0xf]
  %v239 = vld [vmem:[%s1 + $0x228] sm:$0xf]
  %v240 = vld [vmem:[%s1 + $0x22c] sm:$0xf]
  %v241 = vld [vmem:[%s1 + $0x230] sm:$0xf]
  %v242 = vld [vmem:[%s1 + $0x234] sm:$0xf]
  %v243 = vld [vmem:[%s1 + $0x238] sm:$0xf]
  %v244 = vld [vmem:[%s1 + $0x23c] sm:$0xf]
  %v245 = vld [vmem:[%s2] sm:$0x1]
  %v247 = vlaneseq
  %v248 = vshrl.u32 %v247, 7
  %v249 = vsub.s32 0, %v248
  %v250 = vrot.slane %v245, %v249
  %v332 = vunpack.c.l.b16 %v21
  %v333 = vunpack.c.h.b16 %v21
  %v334 = vunpack.c.l.b16 %v22
  %v335 = vunpack.c.h.b16 %v22
  %v336 = vunpack.c.l.b16 %v23
  %v337 = vunpack.c.h.b16 %v23
  %v338 = vunpack.c.l.b16 %v24
  %v339 = vunpack.c.h.b16 %v24
  %v340 = vunpack.c.l.b16 %v25
  %v341 = vunpack.c.l.b16 %v26
  %v342 = vunpack.c.h.b16 %v26
  %v343 = vunpack.c.l.b16 %v27
  %v344 = vunpack.c.h.b16 %v27
  %v345 = vunpack.c.l.b16 %v28
  %v346 = vunpack.c.h.b16 %v28
  %v347 = vunpack.c.l.b16 %v29
  %v348 = vunpack.c.h.b16 %v29
  %v349 = vunpack.c.l.b16 %v30
  %v350 = vunpack.c.l.b16 %v31
  %v351 = vunpack.c.h.b16 %v31
  %v352 = vunpack.c.l.b16 %v32
  %v353 = vunpack.c.h.b16 %v32
  %v354 = vunpack.c.l.b16 %v33
  %v355 = vunpack.c.h.b16 %v33
  %v356 = vunpack.c.l.b16 %v34
  %v357 = vunpack.c.h.b16 %v34
  %v358 = vunpack.c.l.b16 %v35
  %v359 = vunpack.c.l.b16 %v36
  %v360 = vunpack.c.h.b16 %v36
  %v361 = vunpack.c.l.b16 %v37
  %v362 = vunpack.c.h.b16 %v37
  %v363 = vunpack.c.l.b16 %v38
  %v364 = vunpack.c.h.b16 %v38
  %v365 = vunpack.c.l.b16 %v39
  %v366 = vunpack.c.h.b16 %v39
  %v367 = vunpack.c.l.b16 %v40
  %v368 = vunpack.c.l.b16 %v41
  %v369 = vunpack.c.h.b16 %v41
  %v370 = vunpack.c.l.b16 %v42
  %v371 = vunpack.c.h.b16 %v42
  %v372 = vunpack.c.l.b16 %v43
  %v373 = vunpack.c.h.b16 %v43
  %v374 = vunpack.c.l.b16 %v44
  %v375 = vunpack.c.h.b16 %v44
  %v376 = vunpack.c.l.b16 %v45
  %v377 = vunpack.c.l.b16 %v46
  %v378 = vunpack.c.h.b16 %v46
  %v379 = vunpack.c.l.b16 %v47
  %v380 = vunpack.c.h.b16 %v47
  %v381 = vunpack.c.l.b16 %v48
  %v382 = vunpack.c.h.b16 %v48
  %v383 = vunpack.c.l.b16 %v49
  %v384 = vunpack.c.h.b16 %v49
  %v385 = vunpack.c.l.b16 %v50
  %v386 = vunpack.c.l.b16 %v51
  %v387 = vunpack.c.h.b16 %v51
  %v388 = vunpack.c.l.b16 %v52
  %v389 = vunpack.c.h.b16 %v52
  %v390 = vunpack.c.l.b16 %v53
  %v391 = vunpack.c.h.b16 %v53
  %v392 = vunpack.c.l.b16 %v54
  %v393 = vunpack.c.h.b16 %v54
  %v394 = vunpack.c.l.b16 %v55
  %v395 = vunpack.c.l.b16 %v56
  %v396 = vunpack.c.h.b16 %v56
  %v397 = vunpack.c.l.b16 %v57
  %v398 = vunpack.c.h.b16 %v57
  %v399 = vunpack.c.l.b16 %v58
  %v400 = vunpack.c.h.b16 %v58
  %v401 = vunpack.c.l.b16 %v59
  %v402 = vunpack.c.h.b16 %v59
  %v403 = vunpack.c.l.b16 %v60
  %v404 = vunpack.c.l.b16 %v61
  %v405 = vunpack.c.h.b16 %v61
  %v406 = vunpack.c.l.b16 %v62
  %v407 = vunpack.c.h.b16 %v62
  %v408 = vunpack.c.l.b16 %v63
  %v409 = vunpack.c.h.b16 %v63
  %v410 = vunpack.c.l.b16 %v64
  %v411 = vunpack.c.h.b16 %v64
  %v412 = vunpack.c.l.b16 %v65
  %v413 = vunpack.c.l.b16 %v66
  %v414 = vunpack.c.h.b16 %v66
  %v415 = vunpack.c.l.b16 %v67
  %v416 = vunpack.c.h.b16 %v67
  %v417 = vunpack.c.l.b16 %v68
  %v418 = vunpack.c.h.b16 %v68
  %v419 = vunpack.c.l.b16 %v69
  %v420 = vunpack.c.h.b16 %v69
  %v421 = vunpack.c.l.b16 %v70
  %v422 = vunpack.c.l.b16 %v71
  %v423 = vunpack.c.h.b16 %v71
  %v424 = vunpack.c.l.b16 %v72
  %v425 = vunpack.c.h.b16 %v72
  %v426 = vunpack.c.l.b16 %v73
  %v427 = vunpack.c.h.b16 %v73
  %v428 = vunpack.c.l.b16 %v74
  %v429 = vunpack.c.h.b16 %v74
  %v430 = vunpack.c.l.b16 %v75
  %v431 = vunpack.c.l.b16 %v76
  %v432 = vunpack.c.h.b16 %v76
  %v433 = vunpack.c.l.b16 %v77
  %v434 = vunpack.c.h.b16 %v77
  %v435 = vunpack.c.l.b16 %v78
  %v436 = vunpack.c.h.b16 %v78
  %v437 = vunpack.c.l.b16 %v79
  %v438 = vunpack.c.h.b16 %v79
  %v439 = vunpack.c.l.b16 %v80
  %v440 = vunpack.c.l.b16 %v81
  %v441 = vunpack.c.h.b16 %v81
  %v442 = vunpack.c.l.b16 %v82
  %v443 = vunpack.c.h.b16 %v82
  %v444 = vunpack.c.l.b16 %v83
  %v445 = vunpack.c.h.b16 %v83
  %v446 = vunpack.c.l.b16 %v84
  %v447 = vunpack.c.h.b16 %v84
  %v448 = vunpack.c.l.b16 %v85
  %v449 = vunpack.c.l.b16 %v86
  %v450 = vunpack.c.h.b16 %v86
  %v451 = vunpack.c.l.b16 %v87
  %v452 = vunpack.c.h.b16 %v87
  %v453 = vunpack.c.l.b16 %v88
  %v454 = vunpack.c.h.b16 %v88
  %v455 = vunpack.c.l.b16 %v89
  %v456 = vunpack.c.h.b16 %v89
  %v457 = vunpack.c.l.b16 %v90
  %v458 = vunpack.c.l.b16 %v91
  %v459 = vunpack.c.h.b16 %v91
  %v460 = vunpack.c.l.b16 %v92
  %v461 = vunpack.c.h.b16 %v92
  %v462 = vunpack.c.l.b16 %v93
  %v463 = vunpack.c.h.b16 %v93
  %v464 = vunpack.c.l.b16 %v94
  %v465 = vunpack.c.h.b16 %v94
  %v466 = vunpack.c.l.b16 %v95
  %v467 = vunpack.c.l.b16 %v96
  %v468 = vunpack.c.h.b16 %v96
  %v469 = vunpack.c.l.b16 %v97
  %v470 = vunpack.c.h.b16 %v97
  %v471 = vunpack.c.l.b16 %v98
  %v472 = vunpack.c.h.b16 %v98
  %v473 = vunpack.c.l.b16 %v99
  %v474 = vunpack.c.h.b16 %v99
  %v475 = vunpack.c.l.b16 %v100
  %v476 = vpack.c.b16 %v341, %v332
  %v477 = vpack.c.b16 %v342, %v333
  %v478 = vpack.c.b16 %v343, %v334
  %v479 = vpack.c.b16 %v344, %v335
  %v480 = vpack.c.b16 %v345, %v336
  %v481 = vpack.c.b16 %v346, %v337
  %v482 = vpack.c.b16 %v347, %v338
  %v483 = vpack.c.b16 %v348, %v339
  %v484 = vpack.c.b16 %v349, %v340
  %v485 = vpack.c.b16 %v359, %v350
  %v486 = vpack.c.b16 %v360, %v351
  %v487 = vpack.c.b16 %v361, %v352
  %v488 = vpack.c.b16 %v362, %v353
  %v489 = vpack.c.b16 %v363, %v354
  %v490 = vpack.c.b16 %v364, %v355
  %v491 = vpack.c.b16 %v365, %v356
  %v492 = vpack.c.b16 %v366, %v357
  %v493 = vpack.c.b16 %v367, %v358
  %v494 = vpack.c.b16 %v377, %v368
  %v495 = vpack.c.b16 %v378, %v369
  %v496 = vpack.c.b16 %v379, %v370
  %v497 = vpack.c.b16 %v380, %v371
  %v498 = vpack.c.b16 %v381, %v372
  %v499 = vpack.c.b16 %v382, %v373
  %v500 = vpack.c.b16 %v383, %v374
  %v501 = vpack.c.b16 %v384, %v375
  %v502 = vpack.c.b16 %v385, %v376
  %v503 = vpack.c.b16 %v395, %v386
  %v504 = vpack.c.b16 %v396, %v387
  %v505 = vpack.c.b16 %v397, %v388
  %v506 = vpack.c.b16 %v398, %v389
  %v507 = vpack.c.b16 %v399, %v390
  %v508 = vpack.c.b16 %v400, %v391
  %v509 = vpack.c.b16 %v401, %v392
  %v510 = vpack.c.b16 %v402, %v393
  %v511 = vpack.c.b16 %v403, %v394
  %v512 = vpack.c.b16 %v413, %v404
  %v513 = vpack.c.b16 %v414, %v405
  %v514 = vpack.c.b16 %v415, %v406
  %v515 = vpack.c.b16 %v416, %v407
  %v516 = vpack.c.b16 %v417, %v408
  %v517 = vpack.c.b16 %v418, %v409
  %v518 = vpack.c.b16 %v419, %v410
  %v519 = vpack.c.b16 %v420, %v411
  %v520 = vpack.c.b16 %v421, %v412
  %v521 = vpack.c.b16 %v431, %v422
  %v522 = vpack.c.b16 %v432, %v423
  %v523 = vpack.c.b16 %v433, %v424
  %v524 = vpack.c.b16 %v434, %v425
  %v525 = vpack.c.b16 %v435, %v426
  %v526 = vpack.c.b16 %v436, %v427
  %v527 = vpack.c.b16 %v437, %v428
  %v528 = vpack.c.b16 %v438, %v429
  %v529 = vpack.c.b16 %v439, %v430
  %v530 = vpack.c.b16 %v449, %v440
  %v531 = vpack.c.b16 %v450, %v441
  %v532 = vpack.c.b16 %v451, %v442
  %v533 = vpack.c.b16 %v452, %v443
  %v534 = vpack.c.b16 %v453, %v444
  %v535 = vpack.c.b16 %v454, %v445
  %v536 = vpack.c.b16 %v455, %v446
  %v537 = vpack.c.b16 %v456, %v447
  %v538 = vpack.c.b16 %v457, %v448
  %v539 = vpack.c.b16 %v467, %v458
  %v540 = vpack.c.b16 %v468, %v459
  %v541 = vpack.c.b16 %v469, %v460
  %v542 = vpack.c.b16 %v470, %v461
  %v543 = vpack.c.b16 %v471, %v462
  %v544 = vpack.c.b16 %v472, %v463
  %v545 = vpack.c.b16 %v473, %v464
  %v546 = vpack.c.b16 %v474, %v465
  %v547 = vpack.c.b16 %v475, %v466
  %v764 = vunpack.c.l.b16 %v101
  %v765 = vunpack.c.l.b16 %v102
  %v766 = vunpack.c.l.b16 %v103
  %v767 = vunpack.c.l.b16 %v104
  %v768 = vunpack.c.l.b16 %v105
  %v769 = vunpack.c.l.b16 %v106
  %v770 = vunpack.c.l.b16 %v107
  %v771 = vunpack.c.l.b16 %v108
  %v772 = vunpack.c.l.b16 %v109
  %v773 = vunpack.c.l.b16 %v110
  %v774 = vunpack.c.l.b16 %v111
  %v775 = vunpack.c.l.b16 %v112
  %v776 = vunpack.c.l.b16 %v113
  %v777 = vunpack.c.l.b16 %v114
  %v778 = vunpack.c.l.b16 %v115
  %v779 = vunpack.c.l.b16 %v116
  %v780 = vunpack.c.l.b16 %v117
  %v781 = vunpack.c.l.b16 %v118
  %v782 = vunpack.c.l.b16 %v119
  %v783 = vunpack.c.l.b16 %v120
  %v784 = vunpack.c.l.b16 %v121
  %v785 = vunpack.c.l.b16 %v122
  %v786 = vunpack.c.l.b16 %v123
  %v787 = vunpack.c.l.b16 %v124
  %v788 = vunpack.c.l.b16 %v125
  %v789 = vunpack.c.l.b16 %v126
  %v790 = vunpack.c.l.b16 %v127
  %v791 = vunpack.c.l.b16 %v128
  %v792 = vunpack.c.l.b16 %v129
  %v793 = vunpack.c.l.b16 %v130
  %v794 = vunpack.c.l.b16 %v131
  %v795 = vunpack.c.l.b16 %v132
  %v796 = vunpack.c.l.b16 %v133
  %v797 = vunpack.c.l.b16 %v134
  %v798 = vunpack.c.l.b16 %v135
  %v799 = vunpack.c.l.b16 %v136
  %v800 = vunpack.c.l.b16 %v137
  %v801 = vunpack.c.l.b16 %v138
  %v802 = vunpack.c.l.b16 %v139
  %v803 = vunpack.c.l.b16 %v140
  %v804 = vunpack.c.l.b16 %v141
  %v805 = vunpack.c.l.b16 %v142
  %v806 = vunpack.c.l.b16 %v143
  %v807 = vunpack.c.l.b16 %v144
  %v808 = vunpack.c.l.b16 %v145
  %v809 = vunpack.c.l.b16 %v146
  %v810 = vunpack.c.l.b16 %v147
  %v811 = vunpack.c.l.b16 %v148
  %v812 = vunpack.c.l.b16 %v149
  %v813 = vunpack.c.l.b16 %v150
  %v814 = vunpack.c.l.b16 %v151
  %v815 = vunpack.c.l.b16 %v152
  %v816 = vunpack.c.l.b16 %v153
  %v817 = vunpack.c.l.b16 %v154
  %v818 = vunpack.c.l.b16 %v155
  %v819 = vunpack.c.l.b16 %v156
  %v820 = vunpack.c.l.b16 %v157
  %v821 = vunpack.c.l.b16 %v158
  %v822 = vunpack.c.l.b16 %v159
  %v823 = vunpack.c.l.b16 %v160
  %v824 = vunpack.c.l.b16 %v161
  %v825 = vunpack.c.l.b16 %v162
  %v826 = vunpack.c.l.b16 %v163
  %v827 = vunpack.c.l.b16 %v164
  %v828 = vunpack.c.l.b16 %v165
  %v829 = vunpack.c.l.b16 %v166
  %v830 = vunpack.c.l.b16 %v167
  %v831 = vunpack.c.l.b16 %v168
  %v832 = vunpack.c.l.b16 %v169
  %v833 = vunpack.c.l.b16 %v170
  %v834 = vunpack.c.l.b16 %v171
  %v835 = vunpack.c.l.b16 %v172
  %v836 = vunpack.c.l.b16 %v173
  %v837 = vunpack.c.l.b16 %v174
  %v838 = vunpack.c.l.b16 %v175
  %v839 = vunpack.c.l.b16 %v176
  %v840 = vunpack.c.l.b16 %v177
  %v841 = vunpack.c.l.b16 %v178
  %v842 = vunpack.c.l.b16 %v179
  %v843 = vunpack.c.l.b16 %v180
  %v844 = vunpack.c.l.b16 %v181
  %v845 = vunpack.c.l.b16 %v182
  %v846 = vunpack.c.l.b16 %v183
  %v847 = vunpack.c.l.b16 %v184
  %v848 = vunpack.c.l.b16 %v185
  %v849 = vunpack.c.l.b16 %v186
  %v850 = vunpack.c.l.b16 %v187
  %v851 = vunpack.c.l.b16 %v188
  %v852 = vunpack.c.l.b16 %v189
  %v853 = vunpack.c.l.b16 %v190
  %v854 = vunpack.c.l.b16 %v191
  %v855 = vunpack.c.l.b16 %v192
  %v856 = vunpack.c.l.b16 %v193
  %v857 = vunpack.c.l.b16 %v194
  %v858 = vunpack.c.l.b16 %v195
  %v859 = vunpack.c.l.b16 %v196
  %v860 = vunpack.c.l.b16 %v197
  %v861 = vunpack.c.l.b16 %v198
  %v862 = vunpack.c.l.b16 %v199
  %v863 = vunpack.c.l.b16 %v200
  %v864 = vunpack.c.l.b16 %v201
  %v865 = vunpack.c.l.b16 %v202
  %v866 = vunpack.c.l.b16 %v203
  %v867 = vunpack.c.l.b16 %v204
  %v868 = vunpack.c.l.b16 %v205
  %v869 = vunpack.c.l.b16 %v206
  %v870 = vunpack.c.l.b16 %v207
  %v871 = vunpack.c.l.b16 %v208
  %v872 = vunpack.c.l.b16 %v209
  %v873 = vunpack.c.l.b16 %v210
  %v874 = vunpack.c.l.b16 %v211
  %v875 = vunpack.c.l.b16 %v212
  %v876 = vunpack.c.l.b16 %v213
  %v877 = vunpack.c.l.b16 %v214
  %v878 = vunpack.c.l.b16 %v215
  %v879 = vunpack.c.l.b16 %v216
  %v880 = vunpack.c.l.b16 %v217
  %v881 = vunpack.c.l.b16 %v218
  %v882 = vunpack.c.l.b16 %v219
  %v883 = vunpack.c.l.b16 %v220
  %v884 = vunpack.c.l.b16 %v221
  %v885 = vunpack.c.l.b16 %v222
  %v886 = vunpack.c.l.b16 %v223
  %v887 = vunpack.c.l.b16 %v224
  %v888 = vunpack.c.l.b16 %v225
  %v889 = vunpack.c.l.b16 %v226
  %v890 = vunpack.c.l.b16 %v227
  %v891 = vunpack.c.l.b16 %v228
  %v892 = vunpack.c.l.b16 %v229
  %v893 = vunpack.c.l.b16 %v230
  %v894 = vunpack.c.l.b16 %v231
  %v895 = vunpack.c.l.b16 %v232
  %v896 = vunpack.c.l.b16 %v233
  %v897 = vunpack.c.l.b16 %v234
  %v898 = vunpack.c.l.b16 %v235
  %v899 = vunpack.c.l.b16 %v236
  %v900 = vunpack.c.l.b16 %v237
  %v901 = vunpack.c.l.b16 %v238
  %v902 = vunpack.c.l.b16 %v239
  %v903 = vunpack.c.l.b16 %v240
  %v904 = vunpack.c.l.b16 %v241
  %v905 = vunpack.c.l.b16 %v242
  %v906 = vunpack.c.l.b16 %v243
  %v907 = vunpack.c.l.b16 %v244
  %v908 = vpack.c.b16 %v765, %v764
  %v909 = vpack.c.b16 %v767, %v766
  %v910 = vpack.c.b16 %v769, %v768
  %v911 = vpack.c.b16 %v771, %v770
  %v912 = vpack.c.b16 %v773, %v772
  %v913 = vpack.c.b16 %v775, %v774
  %v914 = vpack.c.b16 %v777, %v776
  %v915 = vpack.c.b16 %v779, %v778
  %v916 = vpack.c.b16 %v781, %v780
  %v917 = vpack.c.b16 %v783, %v782
  %v918 = vpack.c.b16 %v785, %v784
  %v919 = vpack.c.b16 %v787, %v786
  %v920 = vpack.c.b16 %v789, %v788
  %v921 = vpack.c.b16 %v791, %v790
  %v922 = vpack.c.b16 %v793, %v792
  %v923 = vpack.c.b16 %v795, %v794
  %v924 = vpack.c.b16 %v797, %v796
  %v925 = vpack.c.b16 %v799, %v798
  %v926 = vpack.c.b16 %v801, %v800
  %v927 = vpack.c.b16 %v803, %v802
  %v928 = vpack.c.b16 %v805, %v804
  %v929 = vpack.c.b16 %v807, %v806
  %v930 = vpack.c.b16 %v809, %v808
  %v931 = vpack.c.b16 %v811, %v810
  %v932 = vpack.c.b16 %v813, %v812
  %v933 = vpack.c.b16 %v815, %v814
  %v934 = vpack.c.b16 %v817, %v816
  %v935 = vpack.c.b16 %v819, %v818
  %v936 = vpack.c.b16 %v821, %v820
  %v937 = vpack.c.b16 %v823, %v822
  %v938 = vpack.c.b16 %v825, %v824
  %v939 = vpack.c.b16 %v827, %v826
  %v940 = vpack.c.b16 %v829, %v828
  %v941 = vpack.c.b16 %v831, %v830
  %v942 = vpack.c.b16 %v833, %v832
  %v943 = vpack.c.b16 %v835, %v834
  %v944 = vpack.c.b16 %v837, %v836
  %v945 = vpack.c.b16 %v839, %v838
  %v946 = vpack.c.b16 %v841, %v840
  %v947 = vpack.c.b16 %v843, %v842
  %v948 = vpack.c.b16 %v845, %v844
  %v949 = vpack.c.b16 %v847, %v846
  %v950 = vpack.c.b16 %v849, %v848
  %v951 = vpack.c.b16 %v851, %v850
  %v952 = vpack.c.b16 %v853, %v852
  %v953 = vpack.c.b16 %v855, %v854
  %v954 = vpack.c.b16 %v857, %v856
  %v955 = vpack.c.b16 %v859, %v858
  %v956 = vpack.c.b16 %v861, %v860
  %v957 = vpack.c.b16 %v863, %v862
  %v958 = vpack.c.b16 %v865, %v864
  %v959 = vpack.c.b16 %v867, %v866
  %v960 = vpack.c.b16 %v869, %v868
  %v961 = vpack.c.b16 %v871, %v870
  %v962 = vpack.c.b16 %v873, %v872
  %v963 = vpack.c.b16 %v875, %v874
  %v964 = vpack.c.b16 %v877, %v876
  %v965 = vpack.c.b16 %v879, %v878
  %v966 = vpack.c.b16 %v881, %v880
  %v967 = vpack.c.b16 %v883, %v882
  %v968 = vpack.c.b16 %v885, %v884
  %v969 = vpack.c.b16 %v887, %v886
  %v970 = vpack.c.b16 %v889, %v888
  %v971 = vpack.c.b16 %v891, %v890
  %v972 = vpack.c.b16 %v893, %v892
  %v973 = vpack.c.b16 %v895, %v894
  %v974 = vpack.c.b16 %v897, %v896
  %v975 = vpack.c.b16 %v899, %v898
  %v976 = vpack.c.b16 %v901, %v900
  %v977 = vpack.c.b16 %v903, %v902
  %v978 = vpack.c.b16 %v905, %v904
  %v979 = vpack.c.b16 %v907, %v906
  %1052 = vmatprep.subr.bf16.mxu0 0
  %1053 = vmatpush1.bf16.msra.mxu0 %v908
  %1054 = vmatprep.subr.bf16.mxu0 0
  %1055 = vmatpush1.bf16.msra.mxu0 %v909
  %1056 = vmatprep.subr.bf16.mxu0 0
  %1057 = vmatpush1.bf16.msra.mxu0 %v910
  %1058 = vmatprep.subr.bf16.mxu0 0
  %1059 = vmatpush1.bf16.msra.mxu0 %v911
  %1060 = vmatprep.subr.bf16.mxu0 0
  %1061 = vmatpush1.bf16.msra.mxu0 %v912
  %1062 = vmatprep.subr.bf16.mxu0 0
  %1063 = vmatpush1.bf16.msra.mxu0 %v913
  %1064 = vmatprep.subr.bf16.mxu0 0
  %1065 = vmatpush1.bf16.msra.mxu0 %v914
  %1066 = vmatprep.subr.bf16.mxu0 0
  %1067 = vmatpush1.bf16.msra.mxu0 %v915
  %1068 = vmatprep.subr.bf16.mxu0 0
  %1069 = vmatpush1.bf16.msra.mxu0 %v916
  %1070 = vmatprep.subr.bf16.mxu0 0
  %1071 = vmatpush1.bf16.msra.mxu0 %v917
  %1072 = vmatprep.subr.bf16.mxu0 0
  %1073 = vmatpush1.bf16.msra.mxu0 %v918
  %1074 = vmatprep.subr.bf16.mxu0 0
  %1075 = vmatpush1.bf16.msra.mxu0 %v919
  %1076 = vmatprep.subr.bf16.mxu0 0
  %1077 = vmatpush1.bf16.msra.mxu0 %v920
  %1078 = vmatprep.subr.bf16.mxu0 0
  %1079 = vmatpush1.bf16.msra.mxu0 %v921
  %1080 = vmatprep.subr.bf16.mxu0 0
  %1081 = vmatpush1.bf16.msra.mxu0 %v922
  %1082 = vmatprep.subr.bf16.mxu0 0
  %1083 = vmatpush1.bf16.msra.mxu0 %v923
  %1084 = vmatprep.mubr.bf16.mxu0 %v477
  %1085 = vmatmul.mubr.bf16.gmra.mrb[0].mxu0 %v476
  %v1086 = vpop.f32.mrb[0].mxu0
  %v1087 = vadd.f32 %v250, %v1086
  %v1088 = vpop.f32.mrb[0].mxu0
  %v1089 = vpop.f32.mrb[0].mxu0
  %v1090 = vadd.f32 %v250, %v1089
  %v1091 = vpop.f32.mrb[0].mxu0
  %1092 = vmatprep.mubr.bf16.mxu0 %v486
  %1093 = vmatmul.mubr.bf16.gmra.mrb[0].mxu0 %v485
  %v1094 = vpop.f32.mrb[0].mxu0
  %v1095 = vadd.f32 %v250, %v1094
  %v1096 = vpop.f32.mrb[0].mxu0
  %v1097 = vpop.f32.mrb[0].mxu0
  %v1098 = vadd.f32 %v250, %v1097
  %v1099 = vpop.f32.mrb[0].mxu0
  %1100 = vmatprep.mubr.bf16.mxu0 %v495
  %1101 = vmatmul.mubr.bf16.gmra.mrb[0].mxu0 %v494
  %v1102 = vpop.f32.mrb[0].mxu0
  %v1103 = vadd.f32 %v250, %v1102
  %v1104 = vpop.f32.mrb[0].mxu0
  %v1105 = vpop.f32.mrb[0].mxu0
  %v1106 = vadd.f32 %v250, %v1105
  %v1107 = vpop.f32.mrb[0].mxu0
  %1108 = vmatprep.mubr.bf16.mxu0 %v504
  %1109 = vmatmul.mubr.bf16.gmra.mrb[0].mxu0 %v503
  %v1110 = vpop.f32.mrb[0].mxu0
  %v1111 = vadd.f32 %v250, %v1110
  %v1112 = vpop.f32.mrb[0].mxu0
  %v1113 = vpop.f32.mrb[0].mxu0
  %v1114 = vadd.f32 %v250, %v1113
  %v1115 = vpop.f32.mrb[0].mxu0
  %1116 = vmatprep.mubr.bf16.mxu0 %v513
  %1117 = vmatmul.mubr.bf16.gmra.mrb[0].mxu0 %v512
  %v1118 = vpop.f32.mrb[0].mxu0
  %v1119 = vadd.f32 %v250, %v1118
  %v1120 = vpop.f32.mrb[0].mxu0
  %v1121 = vpop.f32.mrb[0].mxu0
  %v1122 = vadd.f32 %v250, %v1121
  %v1123 = vpop.f32.mrb[0].mxu0
  %1124 = vmatprep.mubr.bf16.mxu0 %v522
  %1125 = vmatmul.mubr.bf16.gmra.mrb[0].mxu0 %v521
  %v1126 = vpop.f32.mrb[0].mxu0
  %v1127 = vadd.f32 %v250, %v1126
  %v1128 = vpop.f32.mrb[0].mxu0
  %v1129 = vpop.f32.mrb[0].mxu0
  %v1130 = vadd.f32 %v250, %v1129
  %v1131 = vpop.f32.mrb[0].mxu0
  %1132 = vmatprep.mubr.bf16.mxu0 %v531
  %1133 = vmatmul.mubr.bf16.gmra.mrb[0].mxu0 %v530
  %v1134 = vpop.f32.mrb[0].mxu0
  %v1135 = vadd.f32 %v250, %v1134
  %v1136 = vpop.f32.mrb[0].mxu0
  %v1137 = vpop.f32.mrb[0].mxu0
  %v1138 = vadd.f32 %v250, %v1137
  %v1139 = vpop.f32.mrb[0].mxu0
  %1140 = vmatprep.mubr.bf16.mxu0 %v540
  %1141 = vmatmul.mubr.bf16.gmra.mrb[0].mxu0 %v539
  %v1142 = vpop.f32.mrb[0].mxu0
  %v1143 = vadd.f32 %v250, %v1142
  %v1144 = vpop.f32.mrb[0].mxu0
  %v1145 = vpop.f32.mrb[0].mxu0
  %v1146 = vadd.f32 %v250, %v1145
  %v1147 = vpop.f32.mrb[0].mxu0
  %1148 = vdwg.mxu0
  %1149 = vmatprep.subr.bf16.mxu0 0
  %1150 = vmatpush1.bf16.msra.mxu0 %v924
  %1151 = vmatprep.subr.bf16.mxu0 0
  %1152 = vmatpush1.bf16.msra.mxu0 %v925
  %1153 = vmatprep.subr.bf16.mxu0 0
  %1154 = vmatpush1.bf16.msra.mxu0 %v926
  %1155 = vmatprep.subr.bf16.mxu0 0
  %1156 = vmatpush1.bf16.msra.mxu0 %v927
  %1157 = vmatprep.subr.bf16.mxu0 0
  %1158 = vmatpush1.bf16.msra.mxu0 %v928
  %1159 = vmatprep.subr.bf16.mxu0 0
  %1160 = vmatpush1.bf16.msra.mxu0 %v929
  %1161 = vmatprep.subr.bf16.mxu0 0
  %1162 = vmatpush1.bf16.msra.mxu0 %v930
  %1163 = vmatprep.subr.bf16.mxu0 0
  %1164 = vmatpush1.bf16.msra.mxu0 %v931
  %1165 = vmatprep.subr.bf16.mxu0 0
  %1166 = vmatpush1.bf16.msra.mxu0 %v932
  %1167 = vmatprep.subr.bf16.mxu0 0
  %1168 = vmatpush1.bf16.msra.mxu0 %v933
  %1169 = vmatprep.subr.bf16.mxu0 0
  %1170 = vmatpush1.bf16.msra.mxu0 %v934
  %1171 = vmatprep.subr.bf16.mxu0 0
  %1172 = vmatpush1.bf16.msra.mxu0 %v935
  %1173 = vmatprep.subr.bf16.mxu0 0
  %1174 = vmatpush1.bf16.msra.mxu0 %v936
  %1175 = vmatprep.subr.bf16.mxu0 0
  %1176 = vmatpush1.bf16.msra.mxu0 %v937
  %1177 = vmatprep.subr.bf16.mxu0 0
  %1178 = vmatpush1.bf16.msra.mxu0 %v938
  %1179 = vmatprep.subr.bf16.mxu0 0
  %1180 = vmatpush1.bf16.msra.mxu0 %v939
  %1181 = vmatprep.mubr.bf16.mxu0 %v479
  %1182 = vmatmul.mubr.bf16.gmra.mrb[0].mxu0 %v478
  %v1183 = vpop.f32.mrb[0].mxu0
  %v1184 = vadd.f32 %v1087, %v1183
  %v1185 = vpop.f32.mrb[0].mxu0
  %v1186 = vpop.f32.mrb[0].mxu0
  %v1187 = vadd.f32 %v1090, %v1186
  %v1188 = vpop.f32.mrb[0].mxu0
  %1189 = vmatprep.mubr.bf16.mxu0 %v488
  %1190 = vmatmul.mubr.bf16.gmra.mrb[0].mxu0 %v487
  %v1191 = vpop.f32.mrb[0].mxu0
  %v1192 = vadd.f32 %v1095, %v1191
  %v1193 = vpop.f32.mrb[0].mxu0
  %v1194 = vpop.f32.mrb[0].mxu0
  %v1195 = vadd.f32 %v1098, %v1194
  %v1196 = vpop.f32.mrb[0].mxu0
  %1197 = vmatprep.mubr.bf16.mxu0 %v497
  %1198 = vmatmul.mubr.bf16.gmra.mrb[0].mxu0 %v496
  %v1199 = vpop.f32.mrb[0].mxu0
  %v1200 = vadd.f32 %v1103, %v1199
  %v1201 = vpop.f32.mrb[0].mxu0
  %v1202 = vpop.f32.mrb[0].mxu0
  %v1203 = vadd.f32 %v1106, %v1202
  %v1204 = vpop.f32.mrb[0].mxu0
  %1205 = vmatprep.mubr.bf16.mxu0 %v506
  %1206 = vmatmul.mubr.bf16.gmra.mrb[0].mxu0 %v505
  %v1207 = vpop.f32.mrb[0].mxu0
  %v1208 = vadd.f32 %v1111, %v1207
  %v1209 = vpop.f32.mrb[0].mxu0
  %v1210 = vpop.f32.mrb[0].mxu0
  %v1211 = vadd.f32 %v1114, %v1210
  %v1212 = vpop.f32.mrb[0].mxu0
  %1213 = vmatprep.mubr.bf16.mxu0 %v515
  %1214 = vmatmul.mubr.bf16.gmra.mrb[0].mxu0 %v514
  %v1215 = vpop.f32.mrb[0].mxu0
  %v1216 = vadd.f32 %v1119, %v1215
  %v1217 = vpop.f32.mrb[0].mxu0
  %v1218 = vpop.f32.mrb[0].mxu0
  %v1219 = vadd.f32 %v1122, %v1218
  %v1220 = vpop.f32.mrb[0].mxu0
  %1221 = vmatprep.mubr.bf16.mxu0 %v524
  %1222 = vmatmul.mubr.bf16.gmra.mrb[0].mxu0 %v523
  %v1223 = vpop.f32.mrb[0].mxu0
  %v1224 = vadd.f32 %v1127, %v1223
  %v1225 = vpop.f32.mrb[0].mxu0
  %v1226 = vpop.f32.mrb[0].mxu0
  %v1227 = vadd.f32 %v1130, %v1226
  %v1228 = vpop.f32.mrb[0].mxu0
  %1229 = vmatprep.mubr.bf16.mxu0 %v533
  %1230 = vmatmul.mubr.bf16.gmra.mrb[0].mxu0 %v532
  %v1231 = vpop.f32.mrb[0].mxu0
  %v1232 = vadd.f32 %v1135, %v1231
  %v1233 = vpop.f32.mrb[0].mxu0
  %v1234 = vpop.f32.mrb[0].mxu0
  %v1235 = vadd.f32 %v1138, %v1234
  %v1236 = vpop.f32.mrb[0].mxu0
  %1237 = vmatprep.mubr.bf16.mxu0 %v542
  %1238 = vmatmul.mubr.bf16.gmra.mrb[0].mxu0 %v541
  %v1239 = vpop.f32.mrb[0].mxu0
  %v1240 = vadd.f32 %v1143, %v1239
  %v1241 = vpop.f32.mrb[0].mxu0
  %v1242 = vpop.f32.mrb[0].mxu0
  %v1243 = vadd.f32 %v1146, %v1242
  %v1244 = vpop.f32.mrb[0].mxu0
  %1245 = vdwg.mxu0
  %1246 = vmatprep.subr.bf16.mxu0 0
  %1247 = vmatpush1.bf16.msra.mxu0 %v940
  %1248 = vmatprep.subr.bf16.mxu0 0
  %1249 = vmatpush1.bf16.msra.mxu0 %v941
  %1250 = vmatprep.subr.bf16.mxu0 0
  %1251 = vmatpush1.bf16.msra.mxu0 %v942
  %1252 = vmatprep.subr.bf16.mxu0 0
  %1253 = vmatpush1.bf16.msra.mxu0 %v943
  %1254 = vmatprep.subr.bf16.mxu0 0
  %1255 = vmatpush1.bf16.msra.mxu0 %v944
  %1256 = vmatprep.subr.bf16.mxu0 0
  %1257 = vmatpush1.bf16.msra.mxu0 %v945
  %1258 = vmatprep.subr.bf16.mxu0 0
  %1259 = vmatpush1.bf16.msra.mxu0 %v946
  %1260 = vmatprep.subr.bf16.mxu0 0
  %1261 = vmatpush1.bf16.msra.mxu0 %v947
  %1262 = vmatprep.subr.bf16.mxu0 0
  %1263 = vmatpush1.bf16.msra.mxu0 %v948
  %1264 = vmatprep.subr.bf16.mxu0 0
  %1265 = vmatpush1.bf16.msra.mxu0 %v949
  %1266 = vmatprep.subr.bf16.mxu0 0
  %1267 = vmatpush1.bf16.msra.mxu0 %v950
  %1268 = vmatprep.subr.bf16.mxu0 0
  %1269 = vmatpush1.bf16.msra.mxu0 %v951
  %1270 = vmatprep.subr.bf16.mxu0 0
  %1271 = vmatpush1.bf16.msra.mxu0 %v952
  %1272 = vmatprep.subr.bf16.mxu0 0
  %1273 = vmatpush1.bf16.msra.mxu0 %v953
  %1274 = vmatprep.subr.bf16.mxu0 0
  %1275 = vmatpush1.bf16.msra.mxu0 %v954
  %1276 = vmatprep.subr.bf16.mxu0 0
  %1277 = vmatpush1.bf16.msra.mxu0 %v955
  %1278 = vmatprep.mubr.bf16.mxu0 %v481
  %1279 = vmatmul.mubr.bf16.gmra.mrb[0].mxu0 %v480
  %v1280 = vpop.f32.mrb[0].mxu0
  %v1281 = vadd.f32 %v1184, %v1280
  %v1282 = vpop.f32.mrb[0].mxu0
  %v1283 = vpop.f32.mrb[0].mxu0
  %v1284 = vadd.f32 %v1187, %v1283
  %v1285 = vpop.f32.mrb[0].mxu0
  %1286 = vmatprep.mubr.bf16.mxu0 %v490
  %1287 = vmatmul.mubr.bf16.gmra.mrb[0].mxu0 %v489
  %v1288 = vpop.f32.mrb[0].mxu0
  %v1289 = vadd.f32 %v1192, %v1288
  %v1290 = vpop.f32.mrb[0].mxu0
  %v1291 = vpop.f32.mrb[0].mxu0
  %v1292 = vadd.f32 %v1195, %v1291
  %v1293 = vpop.f32.mrb[0].mxu0
  %1294 = vmatprep.mubr.bf16.mxu0 %v499
  %1295 = vmatmul.mubr.bf16.gmra.mrb[0].mxu0 %v498
  %v1296 = vpop.f32.mrb[0].mxu0
  %v1297 = vadd.f32 %v1200, %v1296
  %v1298 = vpop.f32.mrb[0].mxu0
  %v1299 = vpop.f32.mrb[0].mxu0
  %v1300 = vadd.f32 %v1203, %v1299
  %v1301 = vpop.f32.mrb[0].mxu0
  %1302 = vmatprep.mubr.bf16.mxu0 %v508
  %1303 = vmatmul.mubr.bf16.gmra.mrb[0].mxu0 %v507
  %v1304 = vpop.f32.mrb[0].mxu0
  %v1305 = vadd.f32 %v1208, %v1304
  %v1306 = vpop.f32.mrb[0].mxu0
  %v1307 = vpop.f32.mrb[0].mxu0
  %v1308 = vadd.f32 %v1211, %v1307
  %v1309 = vpop.f32.mrb[0].mxu0
  %1310 = vmatprep.mubr.bf16.mxu0 %v517
  %1311 = vmatmul.mubr.bf16.gmra.mrb[0].mxu0 %v516
  %v1312 = vpop.f32.mrb[0].mxu0
  %v1313 = vadd.f32 %v1216, %v1312
  %v1314 = vpop.f32.mrb[0].mxu0
  %v1315 = vpop.f32.mrb[0].mxu0
  %v1316 = vadd.f32 %v1219, %v1315
  %v1317 = vpop.f32.mrb[0].mxu0
  %1318 = vmatprep.mubr.bf16.mxu0 %v526
  %1319 = vmatmul.mubr.bf16.gmra.mrb[0].mxu0 %v525
  %v1320 = vpop.f32.mrb[0].mxu0
  %v1321 = vadd.f32 %v1224, %v1320
  %v1322 = vpop.f32.mrb[0].mxu0
  %v1323 = vpop.f32.mrb[0].mxu0
  %v1324 = vadd.f32 %v1227, %v1323
  %v1325 = vpop.f32.mrb[0].mxu0
  %1326 = vmatprep.mubr.bf16.mxu0 %v535
  %1327 = vmatmul.mubr.bf16.gmra.mrb[0].mxu0 %v534
  %v1328 = vpop.f32.mrb[0].mxu0
  %v1329 = vadd.f32 %v1232, %v1328
  %v1330 = vpop.f32.mrb[0].mxu0
  %v1331 = vpop.f32.mrb[0].mxu0
  %v1332 = vadd.f32 %v1235, %v1331
  %v1333 = vpop.f32.mrb[0].mxu0
  %1334 = vmatprep.mubr.bf16.mxu0 %v544
  %1335 = vmatmul.mubr.bf16.gmra.mrb[0].mxu0 %v543
  %v1336 = vpop.f32.mrb[0].mxu0
  %v1337 = vadd.f32 %v1240, %v1336
  %v1338 = vpop.f32.mrb[0].mxu0
  %v1339 = vpop.f32.mrb[0].mxu0
  %v1340 = vadd.f32 %v1243, %v1339
  %v1341 = vpop.f32.mrb[0].mxu0
  %1342 = vdwg.mxu0
  %1343 = vmatprep.subr.bf16.mxu0 0
  %1344 = vmatpush1.bf16.msra.mxu0 %v956
  %1345 = vmatprep.subr.bf16.mxu0 0
  %1346 = vmatpush1.bf16.msra.mxu0 %v957
  %1347 = vmatprep.subr.bf16.mxu0 0
  %1348 = vmatpush1.bf16.msra.mxu0 %v958
  %1349 = vmatprep.subr.bf16.mxu0 0
  %1350 = vmatpush1.bf16.msra.mxu0 %v959
  %1351 = vmatprep.subr.bf16.mxu0 0
  %1352 = vmatpush1.bf16.msra.mxu0 %v960
  %1353 = vmatprep.subr.bf16.mxu0 0
  %1354 = vmatpush1.bf16.msra.mxu0 %v961
  %1355 = vmatprep.subr.bf16.mxu0 0
  %1356 = vmatpush1.bf16.msra.mxu0 %v962
  %1357 = vmatprep.subr.bf16.mxu0 0
  %1358 = vmatpush1.bf16.msra.mxu0 %v963
  %1359 = vmatprep.subr.bf16.mxu0 0
  %1360 = vmatpush1.bf16.msra.mxu0 %v964
  %1361 = vmatprep.subr.bf16.mxu0 0
  %1362 = vmatpush1.bf16.msra.mxu0 %v965
  %1363 = vmatprep.subr.bf16.mxu0 0
  %1364 = vmatpush1.bf16.msra.mxu0 %v966
  %1365 = vmatprep.subr.bf16.mxu0 0
  %1366 = vmatpush1.bf16.msra.mxu0 %v967
  %1367 = vmatprep.subr.bf16.mxu0 0
  %1368 = vmatpush1.bf16.msra.mxu0 %v968
  %1369 = vmatprep.subr.bf16.mxu0 0
  %1370 = vmatpush1.bf16.msra.mxu0 %v969
  %1371 = vmatprep.subr.bf16.mxu0 0
  %1372 = vmatpush1.bf16.msra.mxu0 %v970
  %1373 = vmatprep.subr.bf16.mxu0 0
  %1374 = vmatpush1.bf16.msra.mxu0 %v971
  %1375 = vmatprep.mubr.bf16.mxu0 %v483
  %1376 = vmatmul.mubr.bf16.gmra.mrb[0].mxu0 %v482
  %v1377 = vpop.f32.mrb[0].mxu0
  %v1378 = vadd.f32 %v1281, %v1377
  %v1379 = vpop.f32.mrb[0].mxu0
  %v1380 = vpop.f32.mrb[0].mxu0
  %v1381 = vadd.f32 %v1284, %v1380
  %v1382 = vpop.f32.mrb[0].mxu0
  %1383 = vmatprep.mubr.bf16.mxu0 %v492
  %1384 = vmatmul.mubr.bf16.gmra.mrb[0].mxu0 %v491
  %v1385 = vpop.f32.mrb[0].mxu0
  %v1386 = vadd.f32 %v1289, %v1385
  %v1387 = vpop.f32.mrb[0].mxu0
  %v1388 = vpop.f32.mrb[0].mxu0
  %v1389 = vadd.f32 %v1292, %v1388
  %v1390 = vpop.f32.mrb[0].mxu0
  %1391 = vmatprep.mubr.bf16.mxu0 %v501
  %1392 = vmatmul.mubr.bf16.gmra.mrb[0].mxu0 %v500
  %v1393 = vpop.f32.mrb[0].mxu0
  %v1394 = vadd.f32 %v1297, %v1393
  %v1395 = vpop.f32.mrb[0].mxu0
  %v1396 = vpop.f32.mrb[0].mxu0
  %v1397 = vadd.f32 %v1300, %v1396
  %v1398 = vpop.f32.mrb[0].mxu0
  %1399 = vmatprep.mubr.bf16.mxu0 %v510
  %1400 = vmatmul.mubr.bf16.gmra.mrb[0].mxu0 %v509
  %v1401 = vpop.f32.mrb[0].mxu0
  %v1402 = vadd.f32 %v1305, %v1401
  %v1403 = vpop.f32.mrb[0].mxu0
  %v1404 = vpop.f32.mrb[0].mxu0
  %v1405 = vadd.f32 %v1308, %v1404
  %v1406 = vpop.f32.mrb[0].mxu0
  %1407 = vmatprep.mubr.bf16.mxu0 %v519
  %1408 = vmatmul.mubr.bf16.gmra.mrb[0].mxu0 %v518
  %v1409 = vpop.f32.mrb[0].mxu0
  %v1410 = vadd.f32 %v1313, %v1409
  %v1411 = vpop.f32.mrb[0].mxu0
  %v1412 = vpop.f32.mrb[0].mxu0
  %v1413 = vadd.f32 %v1316, %v1412
  %v1414 = vpop.f32.mrb[0].mxu0
  %1415 = vmatprep.mubr.bf16.mxu0 %v528
  %1416 = vmatmul.mubr.bf16.gmra.mrb[0].mxu0 %v527
  %v1417 = vpop.f32.mrb[0].mxu0
  %v1418 = vadd.f32 %v1321, %v1417
  %v1419 = vpop.f32.mrb[0].mxu0
  %v1420 = vpop.f32.mrb[0].mxu0
  %v1421 = vadd.f32 %v1324, %v1420
  %v1422 = vpop.f32.mrb[0].mxu0
  %1423 = vmatprep.mubr.bf16.mxu0 %v537
  %1424 = vmatmul.mubr.bf16.gmra.mrb[0].mxu0 %v536
  %v1425 = vpop.f32.mrb[0].mxu0
  %v1426 = vadd.f32 %v1329, %v1425
  %v1427 = vpop.f32.mrb[0].mxu0
  %v1428 = vpop.f32.mrb[0].mxu0
  %v1429 = vadd.f32 %v1332, %v1428
  %v1430 = vpop.f32.mrb[0].mxu0
  %1431 = vmatprep.mubr.bf16.mxu0 %v546
  %1432 = vmatmul.mubr.bf16.gmra.mrb[0].mxu0 %v545
  %v1433 = vpop.f32.mrb[0].mxu0
  %v1434 = vadd.f32 %v1337, %v1433
  %v1435 = vpop.f32.mrb[0].mxu0
  %v1436 = vpop.f32.mrb[0].mxu0
  %v1437 = vadd.f32 %v1340, %v1436
  %v1438 = vpop.f32.mrb[0].mxu0
  %1439 = vdwg.mxu0
  %1440 = vmatprep.subr.bf16.mxu0 0
  %1441 = vmatpush1.bf16.msra.mxu0 %v972
  %1442 = vmatprep.subr.bf16.mxu0 0
  %1443 = vmatpush1.bf16.msra.mxu0 %v973
  %1444 = vmatprep.subr.bf16.mxu0 0
  %1445 = vmatpush1.bf16.msra.mxu0 %v974
  %1446 = vmatprep.subr.bf16.mxu0 0
  %1447 = vmatpush1.bf16.msra.mxu0 %v975
  %1448 = vmatprep.subr.bf16.mxu0 0
  %1449 = vmatpush1.bf16.msra.mxu0 %v976
  %1450 = vmatprep.subr.bf16.mxu0 0
  %1451 = vmatpush1.bf16.msra.mxu0 %v977
  %1452 = vmatprep.subr.bf16.mxu0 0
  %1453 = vmatpush1.bf16.msra.mxu0 %v978
  %1454 = vmatprep.subr.bf16.mxu0 0
  %1455 = vmatpush1.bf16.msra.mxu0 %v979
  %1456 = vmatprep.subr.bf16.mxu0 0
  %1457 = vmatpush1.bf16.msra.mxu0 0
  %1458 = vmatprep.subr.bf16.mxu0 0
  %1459 = vmatpush1.bf16.msra.mxu0 0
  %1460 = vmatprep.subr.bf16.mxu0 0
  %1461 = vmatpush1.bf16.msra.mxu0 0
  %1462 = vmatprep.subr.bf16.mxu0 0
  %1463 = vmatpush1.bf16.msra.mxu0 0
  %1464 = vmatprep.subr.bf16.mxu0 0
  %1465 = vmatpush1.bf16.msra.mxu0 0
  %1466 = vmatprep.subr.bf16.mxu0 0
  %1467 = vmatpush1.bf16.msra.mxu0 0
  %1468 = vmatprep.subr.bf16.mxu0 0
  %1469 = vmatpush1.bf16.msra.mxu0 0
  %1470 = vmatprep.subr.bf16.mxu0 0
  %1471 = vmatpush1.bf16.msra.mxu0 0
  %1472 = vmatprep.mubr.bf16.mxu0 0
  %1473 = vmatmul.mubr.bf16.gmra.mrb[0].mxu0 %v484
  %v1474 = vpop.f32.mrb[0].mxu0
  %v1475 = vadd.f32 %v1378, %v1474
  %v1476 = vpop.f32.mrb[0].mxu0
  %v1477 = vpop.f32.mrb[0].mxu0
  %v1478 = vadd.f32 %v1381, %v1477
  %v1479 = vpop.f32.mrb[0].mxu0
  %1480 = vmatprep.mubr.bf16.mxu0 0
  %1481 = vmatmul.mubr.bf16.gmra.mrb[0].mxu0 %v493
  %v1482 = vpop.f32.mrb[0].mxu0
  %v1483 = vadd.f32 %v1386, %v1482
  %v1484 = vpop.f32.mrb[0].mxu0
  %v1485 = vpop.f32.mrb[0].mxu0
  %v1486 = vadd.f32 %v1389, %v1485
  %v1487 = vpop.f32.mrb[0].mxu0
  %1488 = vmatprep.mubr.bf16.mxu0 0
  %1489 = vmatmul.mubr.bf16.gmra.mrb[0].mxu0 %v502
  %v1490 = vpop.f32.mrb[0].mxu0
  %v1491 = vadd.f32 %v1394, %v1490
  %v1492 = vpop.f32.mrb[0].mxu0
  %v1493 = vpop.f32.mrb[0].mxu0
  %v1494 = vadd.f32 %v1397, %v1493
  %v1495 = vpop.f32.mrb[0].mxu0
  %1496 = vmatprep.mubr.bf16.mxu0 0
  %1497 = vmatmul.mubr.bf16.gmra.mrb[0].mxu0 %v511
  %v1498 = vpop.f32.mrb[0].mxu0
  %v1499 = vadd.f32 %v1402, %v1498
  %v1500 = vpop.f32.mrb[0].mxu0
  %v1501 = vpop.f32.mrb[0].mxu0
  %v1502 = vadd.f32 %v1405, %v1501
  %v1503 = vpop.f32.mrb[0].mxu0
  %1504 = vmatprep.mubr.bf16.mxu0 0
  %1505 = vmatmul.mubr.bf16.gmra.mrb[0].mxu0 %v520
  %v1506 = vpop.f32.mrb[0].mxu0
  %v1507 = vadd.f32 %v1410, %v1506
  %v1508 = vpop.f32.mrb[0].mxu0
  %v1509 = vpop.f32.mrb[0].mxu0
  %v1510 = vadd.f32 %v1413, %v1509
  %v1511 = vpop.f32.mrb[0].mxu0
  %1512 = vmatprep.mubr.bf16.mxu0 0
  %1513 = vmatmul.mubr.bf16.gmra.mrb[0].mxu0 %v529
  %v1514 = vpop.f32.mrb[0].mxu0
  %v1515 = vadd.f32 %v1418, %v1514
  %v1516 = vpop.f32.mrb[0].mxu0
  %v1517 = vpop.f32.mrb[0].mxu0
  %v1518 = vadd.f32 %v1421, %v1517
  %v1519 = vpop.f32.mrb[0].mxu0
  %1520 = vmatprep.mubr.bf16.mxu0 0
  %1521 = vmatmul.mubr.bf16.gmra.mrb[0].mxu0 %v538
  %v1522 = vpop.f32.mrb[0].mxu0
  %v1523 = vadd.f32 %v1426, %v1522
  %v1524 = vpop.f32.mrb[0].mxu0
  %v1525 = vpop.f32.mrb[0].mxu0
  %v1526 = vadd.f32 %v1429, %v1525
  %v1527 = vpop.f32.mrb[0].mxu0
  %1528 = vmatprep.mubr.bf16.mxu0 0
  %1529 = vmatmul.mubr.bf16.gmra.mrb[0].mxu0 %v547
  %v1530 = vpop.f32.mrb[0].mxu0
  %v1531 = vadd.f32 %v1434, %v1530
  %v1532 = vpop.f32.mrb[0].mxu0
  %v1533 = vpop.f32.mrb[0].mxu0
  %v1534 = vadd.f32 %v1437, %v1533
  %v1535 = vpop.f32.mrb[0].mxu0
  %1536 = vdwg.mxu0
  %v1537 = vmax.f32 %v1475, 0.0
  %v1538 = vmax.f32 %v1478, 0.0
  %v1539 = vmax.f32 %v1483, 0.0
  %v1540 = vmax.f32 %v1486, 0.0
  %v1541 = vmax.f32 %v1491, 0.0
  %v1542 = vmax.f32 %v1494, 0.0
  %v1543 = vmax.f32 %v1499, 0.0
  %v1544 = vmax.f32 %v1502, 0.0
  %v1545 = vmax.f32 %v1507, 0.0
  %v1546 = vmax.f32 %v1510, 0.0
  %v1547 = vmax.f32 %v1515, 0.0
  %v1548 = vmax.f32 %v1518, 0.0
  %v1549 = vmax.f32 %v1523, 0.0
  %v1550 = vmax.f32 %v1526, 0.0
  %v1551 = vmax.f32 %v1531, 0.0
  %v1552 = vmax.f32 %v1534, 0.0
  %v1553 = vpack.c.bf16 %v1538, %v1537
  %v1554 = vpack.c.bf16 %v1540, %v1539
  %v1555 = vpack.c.bf16 %v1542, %v1541
  %v1556 = vpack.c.bf16 %v1544, %v1543
  %v1557 = vpack.c.bf16 %v1546, %v1545
  %v1558 = vpack.c.bf16 %v1548, %v1547
  %v1559 = vpack.c.bf16 %v1550, %v1549
  %v1560 = vpack.c.bf16 %v1552, %v1551
  %v1561 = vld [vmem:[%s3] sm:$0xf]
  %v1562 = vld [vmem:[%s3 + $0x4] sm:$0xf]
  %v1563 = vld [vmem:[%s3 + $0x8] sm:$0xf]
  %v1564 = vld [vmem:[%s3 + $0xc] sm:$0xf]
  %v1565 = vld [vmem:[%s3 + $0x10] sm:$0xf]
  %v1566 = vld [vmem:[%s3 + $0x14] sm:$0xf]
  %v1567 = vld [vmem:[%s3 + $0x18] sm:$0xf]
  %v1568 = vld [vmem:[%s3 + $0x1c] sm:$0xf]
  %v1569 = vld [vmem:[%s3 + $0x20] sm:$0xf]
  %v1570 = vld [vmem:[%s3 + $0x24] sm:$0xf]
  %v1571 = vld [vmem:[%s3 + $0x28] sm:$0xf]
  %v1572 = vld [vmem:[%s3 + $0x2c] sm:$0xf]
  %v1573 = vld [vmem:[%s3 + $0x30] sm:$0xf]
  %v1574 = vld [vmem:[%s3 + $0x34] sm:$0xf]
  %v1575 = vld [vmem:[%s3 + $0x38] sm:$0xf]
  %v1576 = vld [vmem:[%s3 + $0x3c] sm:$0xf]
  %v1577 = vld [vmem:[%s4] sm:$0x1]
  %v1579 = vlaneseq
  %v1580 = vshrl.u32 %v1579, 7
  %v1581 = vsub.s32 0, %v1580
  %v1582 = vrot.slane %v1577, %v1581
  %v1600 = vunpack.c.l.b16 %v1561
  %v1601 = vunpack.c.l.b16 %v1562
  %v1602 = vunpack.c.l.b16 %v1563
  %v1603 = vunpack.c.l.b16 %v1564
  %v1604 = vunpack.c.l.b16 %v1565
  %v1605 = vunpack.c.l.b16 %v1566
  %v1606 = vunpack.c.l.b16 %v1567
  %v1607 = vunpack.c.l.b16 %v1568
  %v1608 = vunpack.c.l.b16 %v1569
  %v1609 = vunpack.c.l.b16 %v1570
  %v1610 = vunpack.c.l.b16 %v1571
  %v1611 = vunpack.c.l.b16 %v1572
  %v1612 = vunpack.c.l.b16 %v1573
  %v1613 = vunpack.c.l.b16 %v1574
  %v1614 = vunpack.c.l.b16 %v1575
  %v1615 = vunpack.c.l.b16 %v1576
  %v1616 = vpack.c.b16 %v1601, %v1600
  %v1617 = vpack.c.b16 %v1603, %v1602
  %v1618 = vpack.c.b16 %v1605, %v1604
  %v1619 = vpack.c.b16 %v1607, %v1606
  %v1620 = vpack.c.b16 %v1609, %v1608
  %v1621 = vpack.c.b16 %v1611, %v1610
  %v1622 = vpack.c.b16 %v1613, %v1612
  %v1623 = vpack.c.b16 %v1615, %v1614
  %1632 = vmatprep.subr.bf16.mxu0 0
  %1633 = vmatpush1.bf16.msra.mxu0 %v1616
  %1634 = vmatprep.subr.bf16.mxu0 0
  %1635 = vmatpush1.bf16.msra.mxu0 %v1617
  %1636 = vmatprep.subr.bf16.mxu0 0
  %1637 = vmatpush1.bf16.msra.mxu0 %v1618
  %1638 = vmatprep.subr.bf16.mxu0 0
  %1639 = vmatpush1.bf16.msra.mxu0 %v1619
  %1640 = vmatprep.subr.bf16.mxu0 0
  %1641 = vmatpush1.bf16.msra.mxu0 %v1620
  %1642 = vmatprep.subr.bf16.mxu0 0
  %1643 = vmatpush1.bf16.msra.mxu0 %v1621
  %1644 = vmatprep.subr.bf16.mxu0 0
  %1645 = vmatpush1.bf16.msra.mxu0 %v1622
  %1646 = vmatprep.subr.bf16.mxu0 0
  %1647 = vmatpush1.bf16.msra.mxu0 %v1623
  %1648 = vmatprep.subr.bf16.mxu0 0
  %1649 = vmatpush1.bf16.msra.mxu0 0
  %1650 = vmatprep.subr.bf16.mxu0 0
  %1651 = vmatpush1.bf16.msra.mxu0 0
  %1652 = vmatprep.subr.bf16.mxu0 0
  %1653 = vmatpush1.bf16.msra.mxu0 0
  %1654 = vmatprep.subr.bf16.mxu0 0
  %1655 = vmatpush1.bf16.msra.mxu0 0
  %1656 = vmatprep.subr.bf16.mxu0 0
  %1657 = vmatpush1.bf16.msra.mxu0 0
  %1658 = vmatprep.subr.bf16.mxu0 0
  %1659 = vmatpush1.bf16.msra.mxu0 0
  %1660 = vmatprep.subr.bf16.mxu0 0
  %1661 = vmatpush1.bf16.msra.mxu0 0
  %1662 = vmatprep.subr.bf16.mxu0 0
  %1663 = vmatpush1.bf16.msra.mxu0 0
  %1664 = vmatprep.mubr.bf16.mxu0 0
  %1665 = vmatmul.mubr.bf16.gmra.mrb[0].mxu0 %v1553
  %v1666 = vpop.f32.mrb[0].mxu0
  %v1667 = vadd.f32 %v1582, %v1666
  %v1668 = vpop.f32.mrb[0].mxu0
  %v1669 = vpop.f32.mrb[0].mxu0
  %v1670 = vadd.f32 %v1582, %v1669
  %v1671 = vpop.f32.mrb[0].mxu0
  %1672 = vmatprep.mubr.bf16.mxu0 0
  %1673 = vmatmul.mubr.bf16.gmra.mrb[0].mxu0 %v1554
  %v1674 = vpop.f32.mrb[0].mxu0
  %v1675 = vadd.f32 %v1582, %v1674
  %v1676 = vpop.f32.mrb[0].mxu0
  %v1677 = vpop.f32.mrb[0].mxu0
  %v1678 = vadd.f32 %v1582, %v1677
  %v1679 = vpop.f32.mrb[0].mxu0
  %1680 = vmatprep.mubr.bf16.mxu0 0
  %1681 = vmatmul.mubr.bf16.gmra.mrb[0].mxu0 %v1555
  %v1682 = vpop.f32.mrb[0].mxu0
  %v1683 = vadd.f32 %v1582, %v1682
  %v1684 = vpop.f32.mrb[0].mxu0
  %v1685 = vpop.f32.mrb[0].mxu0
  %v1686 = vadd.f32 %v1582, %v1685
  %v1687 = vpop.f32.mrb[0].mxu0
  %1688 = vmatprep.mubr.bf16.mxu0 0
  %1689 = vmatmul.mubr.bf16.gmra.mrb[0].mxu0 %v1556
  %v1690 = vpop.f32.mrb[0].mxu0
  %v1691 = vadd.f32 %v1582, %v1690
  %v1692 = vpop.f32.mrb[0].mxu0
  %v1693 = vpop.f32.mrb[0].mxu0
  %v1694 = vadd.f32 %v1582, %v1693
  %v1695 = vpop.f32.mrb[0].mxu0
  %1696 = vmatprep.mubr.bf16.mxu0 0
  %1697 = vmatmul.mubr.bf16.gmra.mrb[0].mxu0 %v1557
  %v1698 = vpop.f32.mrb[0].mxu0
  %v1699 = vadd.f32 %v1582, %v1698
  %v1700 = vpop.f32.mrb[0].mxu0
  %v1701 = vpop.f32.mrb[0].mxu0
  %v1702 = vadd.f32 %v1582, %v1701
  %v1703 = vpop.f32.mrb[0].mxu0
  %1704 = vmatprep.mubr.bf16.mxu0 0
  %1705 = vmatmul.mubr.bf16.gmra.mrb[0].mxu0 %v1558
  %v1706 = vpop.f32.mrb[0].mxu0
  %v1707 = vadd.f32 %v1582, %v1706
  %v1708 = vpop.f32.mrb[0].mxu0
  %v1709 = vpop.f32.mrb[0].mxu0
  %v1710 = vadd.f32 %v1582, %v1709
  %v1711 = vpop.f32.mrb[0].mxu0
  %1712 = vmatprep.mubr.bf16.mxu0 0
  %1713 = vmatmul.mubr.bf16.gmra.mrb[0].mxu0 %v1559
  %v1714 = vpop.f32.mrb[0].mxu0
  %v1715 = vadd.f32 %v1582, %v1714
  %v1716 = vpop.f32.mrb[0].mxu0
  %v1717 = vpop.f32.mrb[0].mxu0
  %v1718 = vadd.f32 %v1582, %v1717
  %v1719 = vpop.f32.mrb[0].mxu0
  %1720 = vmatprep.mubr.bf16.mxu0 0
  %1721 = vmatmul.mubr.bf16.gmra.mrb[0].mxu0 %v1560
  %v1722 = vpop.f32.mrb[0].mxu0
  %v1723 = vadd.f32 %v1582, %v1722
  %v1724 = vpop.f32.mrb[0].mxu0
  %v1725 = vpop.f32.mrb[0].mxu0
  %v1726 = vadd.f32 %v1582, %v1725
  %v1727 = vpop.f32.mrb[0].mxu0
  %1728 = vdwg.mxu0
  %1729 = vst [vmem:[%s5] sm:$0xff] %v1667
  %1730 = vst [vmem:[%s5 + $0x8] sm:$0xff] %v1670
  %1731 = vst [vmem:[%s5 + $0x10] sm:$0xff] %v1675
  %1732 = vst [vmem:[%s5 + $0x18] sm:$0xff] %v1678
  %1733 = vst [vmem:[%s5 + $0x20] sm:$0xff] %v1683
  %1734 = vst [vmem:[%s5 + $0x28] sm:$0xff] %v1686
  %1735 = vst [vmem:[%s5 + $0x30] sm:$0xff] %v1691
  %1736 = vst [vmem:[%s5 + $0x38] sm:$0xff] %v1694
  %1737 = vst [vmem:[%s5 + $0x40] sm:$0xff] %v1699
  %1738 = vst [vmem:[%s5 + $0x48] sm:$0xff] %v1702
  %1739 = vst [vmem:[%s5 + $0x50] sm:$0xff] %v1707
  %1740 = vst [vmem:[%s5 + $0x58] sm:$0xff] %v1710
  %1741 = vst [vmem:[%s5 + $0x60] sm:$0xff] %v1715
  %1742 = vst [vmem:[%s5 + $0x68] sm:$0xff] %v1718
  %1743 = vst [vmem:[%s5 + $0x70] sm:$0xff] %v1723
  %1744 = vst [vmem:[%s5 + $0x78] sm:$0xff] %v1726
  // Predicated region
  $region22: #{coanet_forward.13} parent=0 // pred_check
    _
  $region23: #{coanet_forward.13} parent=0 // pred_check_branch
    %1746 = sbr.rel (0) target = $region25
  $region24: #{coanet_forward.13} parent=0 // pred_region
    _
  $region25: #{coanet_forward.13} parent=0 // pred_fallthru
    _
  // Predicated region
  $region26: #{coanet_forward.13} parent=0 // pred_check
    _
  $region27: #{coanet_forward.13} parent=0 // pred_check_branch
    %1748 = sbr.rel (0) target = $region29
  $region28: #{coanet_forward.13} parent=0 // pred_region
    _
  $region29: #{coanet_forward.13} parent=0 // pred_fallthru
    _

// kernel: coanet_forward.10
$region0: #{coanet_forward.10}
  #allocation0 [shape = 'u32[]', space=smem, size = 0x4, offset = 0x4, fixed_abs, tag = 'smem constant byte address 0x4 - core index']
  #allocation1 [shape = 'u32[144,128]{1,0:T(1,128)}', space=vmem, size = 0x12000, scoped, tag = 'internal scratch']
  %s0 = inlined_call_operand.vmem [shape: bf16[128,2304], index: 0, kind: input, shape index: {}]
  %s1 = inlined_call_operand.vmem [shape: bf16[2304,128], index: 1, kind: input, shape index: {}]
  %s2 = inlined_call_operand.vmem [shape: f32[1,128], index: 2, kind: input, shape index: {}]
  %s3 = inlined_call_operand.vmem [shape: bf16[128,128], index: 3, kind: output, shape index: {}]
  %s4 = sld [smem:[#allocation0]]
  $region22: #{coanet_forward.10} parent=0
    _
  %s6 = ssub.s32 1, %s4
  %s7 = scalar_select 0, %s6, %s4
  // Predicated region
  $region2: #{coanet_forward.10} parent=0 // pred_check
    _
  $region3: #{coanet_forward.10} parent=0 // pred_check_branch
    %9 = sbr.rel (0) target = $region5
  $region4: #{coanet_forward.10} parent=0 // pred_region
    _
  $region5: #{coanet_forward.10} parent=0 // pred_fallthru
    _
  // Predicated region
  $region6: #{coanet_forward.10} parent=0 // pred_check
    _
  $region7: #{coanet_forward.10} parent=0 // pred_check_branch
    %11 = sbr.rel (0) target = $region9
  $region8: #{coanet_forward.10} parent=0 // pred_region
    _
  $region9: #{coanet_forward.10} parent=0 // pred_fallthru
    _
  // Predicated region
  $region10: #{coanet_forward.10} parent=0 // pred_check
    _
  $region11: #{coanet_forward.10} parent=0 // pred_check_branch
    %13 = sbr.rel (0) target = $region13
  $region12: #{coanet_forward.10} parent=0 // pred_region
    _
  $region13: #{coanet_forward.10} parent=0 // pred_fallthru
    _
  %v15 = vld [vmem:[%s0] sm:$0xff]
  %v16 = vld [vmem:[%s0 + $0x8] sm:$0xff]
  %v17 = vld [vmem:[%s0 + $0x10] sm:$0xff]
  %v18 = vld [vmem:[%s0 + $0x18] sm:$0xff]
  %v19 = vld [vmem:[%s0 + $0x20] sm:$0xff]
  %v20 = vld [vmem:[%s0 + $0x28] sm:$0xff]
  %v21 = vld [vmem:[%s0 + $0x30] sm:$0xff]
  %v22 = vld [vmem:[%s0 + $0x38] sm:$0xff]
  %v23 = vld [vmem:[%s0 + $0x40] sm:$0xff]
  %v24 = vld [vmem:[%s0 + $0x48] sm:$0xff]
  %v25 = vld [vmem:[%s0 + $0x50] sm:$0xff]
  %v26 = vld [vmem:[%s0 + $0x58] sm:$0xff]
  %v27 = vld [vmem:[%s0 + $0x60] sm:$0xff]
  %v28 = vld [vmem:[%s0 + $0x68] sm:$0xff]
  %v29 = vld [vmem:[%s0 + $0x70] sm:$0xff]
  %v30 = vld [vmem:[%s0 + $0x78] sm:$0xff]
  %v31 = vld [vmem:[%s0 + $0x80] sm:$0xff]
  %v32 = vld [vmem:[%s0 + $0x88] sm:$0xff]
  %v33 = vld [vmem:[%s0 + $0x90] sm:$0xff]
  %v34 = vld [vmem:[%s0 + $0x98] sm:$0xff]
  %v35 = vld [vmem:[%s0 + $0xa0] sm:$0xff]
  %v36 = vld [vmem:[%s0 + $0xa8] sm:$0xff]
  %v37 = vld [vmem:[%s0 + $0xb0] sm:$0xff]
  %v38 = vld [vmem:[%s0 + $0xb8] sm:$0xff]
  %v39 = vld [vmem:[%s0 + $0xc0] sm:$0xff]
  %v40 = vld [vmem:[%s0 + $0xc8] sm:$0xff]
  %v41 = vld [vmem:[%s0 + $0xd0] sm:$0xff]
  %v42 = vld [vmem:[%s0 + $0xd8] sm:$0xff]
  %v43 = vld [vmem:[%s0 + $0xe0] sm:$0xff]
  %v44 = vld [vmem:[%s0 + $0xe8] sm:$0xff]
  %v45 = vld [vmem:[%s0 + $0xf0] sm:$0xff]
  %v46 = vld [vmem:[%s0 + $0xf8] sm:$0xff]
  %v47 = vld [vmem:[%s0 + $0x100] sm:$0xff]
  %v48 = vld [vmem:[%s0 + $0x108] sm:$0xff]
  %v49 = vld [vmem:[%s0 + $0x110] sm:$0xff]
  %v50 = vld [vmem:[%s0 + $0x118] sm:$0xff]
  %v51 = vld [vmem:[%s0 + $0x120] sm:$0xff]
  %v52 = vld [vmem:[%s0 + $0x128] sm:$0xff]
  %v53 = vld [vmem:[%s0 + $0x130] sm:$0xff]
  %v54 = vld [vmem:[%s0 + $0x138] sm:$0xff]
  %v55 = vld [vmem:[%s0 + $0x140] sm:$0xff]
  %v56 = vld [vmem:[%s0 + $0x148] sm:$0xff]
  %v57 = vld [vmem:[%s0 + $0x150] sm:$0xff]
  %v58 = vld [vmem:[%s0 + $0x158] sm:$0xff]
  %v59 = vld [vmem:[%s0 + $0x160] sm:$0xff]
  %v60 = vld [vmem:[%s0 + $0x168] sm:$0xff]
  %v61 = vld [vmem:[%s0 + $0x170] sm:$0xff]
  %v62 = vld [vmem:[%s0 + $0x178] sm:$0xff]
  %v63 = vld [vmem:[%s0 + $0x180] sm:$0xff]
  %v64 = vld [vmem:[%s0 + $0x188] sm:$0xff]
  %v65 = vld [vmem:[%s0 + $0x190] sm:$0xff]
  %v66 = vld [vmem:[%s0 + $0x198] sm:$0xff]
  %v67 = vld [vmem:[%s0 + $0x1a0] sm:$0xff]
  %v68 = vld [vmem:[%s0 + $0x1a8] sm:$0xff]
  %v69 = vld [vmem:[%s0 + $0x1b0] sm:$0xff]
  %v70 = vld [vmem:[%s0 + $0x1b8] sm:$0xff]
  %v71 = vld [vmem:[%s0 + $0x1c0] sm:$0xff]
  %v72 = vld [vmem:[%s0 + $0x1c8] sm:$0xff]
  %v73 = vld [vmem:[%s0 + $0x1d0] sm:$0xff]
  %v74 = vld [vmem:[%s0 + $0x1d8] sm:$0xff]
  %v75 = vld [vmem:[%s0 + $0x1e0] sm:$0xff]
  %v76 = vld [vmem:[%s0 + $0x1e8] sm:$0xff]
  %v77 = vld [vmem:[%s0 + $0x1f0] sm:$0xff]
  %v78 = vld [vmem:[%s0 + $0x1f8] sm:$0xff]
  %v79 = vld [vmem:[%s0 + $0x200] sm:$0xff]
  %v80 = vld [vmem:[%s0 + $0x208] sm:$0xff]
  %v81 = vld [vmem:[%s0 + $0x210] sm:$0xff]
  %v82 = vld [vmem:[%s0 + $0x218] sm:$0xff]
  %v83 = vld [vmem:[%s0 + $0x220] sm:$0xff]
  %v84 = vld [vmem:[%s0 + $0x228] sm:$0xff]
  %v85 = vld [vmem:[%s0 + $0x230] sm:$0xff]
  %v86 = vld [vmem:[%s0 + $0x238] sm:$0xff]
  %v87 = vld [vmem:[%s0 + $0x240] sm:$0xff]
  %v88 = vld [vmem:[%s0 + $0x248] sm:$0xff]
  %v89 = vld [vmem:[%s0 + $0x250] sm:$0xff]
  %v90 = vld [vmem:[%s0 + $0x258] sm:$0xff]
  %v91 = vld [vmem:[%s0 + $0x260] sm:$0xff]
  %v92 = vld [vmem:[%s0 + $0x268] sm:$0xff]
  %v93 = vld [vmem:[%s0 + $0x270] sm:$0xff]
  %v94 = vld [vmem:[%s0 + $0x278] sm:$0xff]
  %v95 = vld [vmem:[%s0 + $0x280] sm:$0xff]
  %v96 = vld [vmem:[%s0 + $0x288] sm:$0xff]
  %v97 = vld [vmem:[%s0 + $0x290] sm:$0xff]
  %v98 = vld [vmem:[%s0 + $0x298] sm:$0xff]
  %v99 = vld [vmem:[%s0 + $0x2a0] sm:$0xff]
  %v100 = vld [vmem:[%s0 + $0x2a8] sm:$0xff]
  %v101 = vld [vmem:[%s0 + $0x2b0] sm:$0xff]
  %v102 = vld [vmem:[%s0 + $0x2b8] sm:$0xff]
  %v103 = vld [vmem:[%s0 + $0x2c0] sm:$0xff]
  %v104 = vld [vmem:[%s0 + $0x2c8] sm:$0xff]
  %v105 = vld [vmem:[%s0 + $0x2d0] sm:$0xff]
  %v106 = vld [vmem:[%s0 + $0x2d8] sm:$0xff]
  %v107 = vld [vmem:[%s0 + $0x2e0] sm:$0xff]
  %v108 = vld [vmem:[%s0 + $0x2e8] sm:$0xff]
  %v109 = vld [vmem:[%s0 + $0x2f0] sm:$0xff]
  %v110 = vld [vmem:[%s0 + $0x2f8] sm:$0xff]
  %v111 = vld [vmem:[%s0 + $0x300] sm:$0xff]
  %v112 = vld [vmem:[%s0 + $0x308] sm:$0xff]
  %v113 = vld [vmem:[%s0 + $0x310] sm:$0xff]
  %v114 = vld [vmem:[%s0 + $0x318] sm:$0xff]
  %v115 = vld [vmem:[%s0 + $0x320] sm:$0xff]
  %v116 = vld [vmem:[%s0 + $0x328] sm:$0xff]
  %v117 = vld [vmem:[%s0 + $0x330] sm:$0xff]
  %v118 = vld [vmem:[%s0 + $0x338] sm:$0xff]
  %v119 = vld [vmem:[%s0 + $0x340] sm:$0xff]
  %v120 = vld [vmem:[%s0 + $0x348] sm:$0xff]
  %v121 = vld [vmem:[%s0 + $0x350] sm:$0xff]
  %v122 = vld [vmem:[%s0 + $0x358] sm:$0xff]
  %v123 = vld [vmem:[%s0 + $0x360] sm:$0xff]
  %v124 = vld [vmem:[%s0 + $0x368] sm:$0xff]
  %v125 = vld [vmem:[%s0 + $0x370] sm:$0xff]
  %v126 = vld [vmem:[%s0 + $0x378] sm:$0xff]
  %v127 = vld [vmem:[%s0 + $0x380] sm:$0xff]
  %v128 = vld [vmem:[%s0 + $0x388] sm:$0xff]
  %v129 = vld [vmem:[%s0 + $0x390] sm:$0xff]
  %v130 = vld [vmem:[%s0 + $0x398] sm:$0xff]
  %v131 = vld [vmem:[%s0 + $0x3a0] sm:$0xff]
  %v132 = vld [vmem:[%s0 + $0x3a8] sm:$0xff]
  %v133 = vld [vmem:[%s0 + $0x3b0] sm:$0xff]
  %v134 = vld [vmem:[%s0 + $0x3b8] sm:$0xff]
  %v135 = vld [vmem:[%s0 + $0x3c0] sm:$0xff]
  %v136 = vld [vmem:[%s0 + $0x3c8] sm:$0xff]
  %v137 = vld [vmem:[%s0 + $0x3d0] sm:$0xff]
  %v138 = vld [vmem:[%s0 + $0x3d8] sm:$0xff]
  %v139 = vld [vmem:[%s0 + $0x3e0] sm:$0xff]
  %v140 = vld [vmem:[%s0 + $0x3e8] sm:$0xff]
  %v141 = vld [vmem:[%s0 + $0x3f0] sm:$0xff]
  %v142 = vld [vmem:[%s0 + $0x3f8] sm:$0xff]
  %v143 = vld [vmem:[%s0 + $0x400] sm:$0xff]
  %v144 = vld [vmem:[%s0 + $0x408] sm:$0xff]
  %v145 = vld [vmem:[%s0 + $0x410] sm:$0xff]
  %v146 = vld [vmem:[%s0 + $0x418] sm:$0xff]
  %v147 = vld [vmem:[%s0 + $0x420] sm:$0xff]
  %v148 = vld [vmem:[%s0 + $0x428] sm:$0xff]
  %v149 = vld [vmem:[%s0 + $0x430] sm:$0xff]
  %v150 = vld [vmem:[%s0 + $0x438] sm:$0xff]
  %v151 = vld [vmem:[%s0 + $0x440] sm:$0xff]
  %v152 = vld [vmem:[%s0 + $0x448] sm:$0xff]
  %v153 = vld [vmem:[%s0 + $0x450] sm:$0xff]
  %v154 = vld [vmem:[%s0 + $0x458] sm:$0xff]
  %v155 = vld [vmem:[%s0 + $0x460] sm:$0xff]
  %v156 = vld [vmem:[%s0 + $0x468] sm:$0xff]
  %v157 = vld [vmem:[%s0 + $0x470] sm:$0xff]
  %v158 = vld [vmem:[%s0 + $0x478] sm:$0xff]
  %v159 = vld [vmem:[%s1] sm:$0xf]
  %v160 = vld [vmem:[%s1 + $0x4] sm:$0xf]
  %v161 = vld [vmem:[%s1 + $0x8] sm:$0xf]
  %v162 = vld [vmem:[%s1 + $0xc] sm:$0xf]
  %v163 = vld [vmem:[%s1 + $0x10] sm:$0xf]
  %v164 = vld [vmem:[%s1 + $0x14] sm:$0xf]
  %v165 = vld [vmem:[%s1 + $0x18] sm:$0xf]
  %v166 = vld [vmem:[%s1 + $0x1c] sm:$0xf]
  %v167 = vld [vmem:[%s1 + $0x20] sm:$0xf]
  %v168 = vld [vmem:[%s1 + $0x24] sm:$0xf]
  %v169 = vld [vmem:[%s1 + $0x28] sm:$0xf]
  %v170 = vld [vmem:[%s1 + $0x2c] sm:$0xf]
  %v171 = vld [vmem:[%s1 + $0x30] sm:$0xf]
  %v172 = vld [vmem:[%s1 + $0x34] sm:$0xf]
  %v173 = vld [vmem:[%s1 + $0x38] sm:$0xf]
  %v174 = vld [vmem:[%s1 + $0x3c] sm:$0xf]
  %v175 = vld [vmem:[%s1 + $0x40] sm:$0xf]
  %v176 = vld [vmem:[%s1 + $0x44] sm:$0xf]
  %v177 = vld [vmem:[%s1 + $0x48] sm:$0xf]
  %v178 = vld [vmem:[%s1 + $0x4c] sm:$0xf]
  %v179 = vld [vmem:[%s1 + $0x50] sm:$0xf]
  %v180 = vld [vmem:[%s1 + $0x54] sm:$0xf]
  %v181 = vld [vmem:[%s1 + $0x58] sm:$0xf]
  %v182 = vld [vmem:[%s1 + $0x5c] sm:$0xf]
  %v183 = vld [vmem:[%s1 + $0x60] sm:$0xf]
  %v184 = vld [vmem:[%s1 + $0x64] sm:$0xf]
  %v185 = vld [vmem:[%s1 + $0x68] sm:$0xf]
  %v186 = vld [vmem:[%s1 + $0x6c] sm:$0xf]
  %v187 = vld [vmem:[%s1 + $0x70] sm:$0xf]
  %v188 = vld [vmem:[%s1 + $0x74] sm:$0xf]
  %v189 = vld [vmem:[%s1 + $0x78] sm:$0xf]
  %v190 = vld [vmem:[%s1 + $0x7c] sm:$0xf]
  %v191 = vld [vmem:[%s1 + $0x80] sm:$0xf]
  %v192 = vld [vmem:[%s1 + $0x84] sm:$0xf]
  %v193 = vld [vmem:[%s1 + $0x88] sm:$0xf]
  %v194 = vld [vmem:[%s1 + $0x8c] sm:$0xf]
  %v195 = vld [vmem:[%s1 + $0x90] sm:$0xf]
  %v196 = vld [vmem:[%s1 + $0x94] sm:$0xf]
  %v197 = vld [vmem:[%s1 + $0x98] sm:$0xf]
  %v198 = vld [vmem:[%s1 + $0x9c] sm:$0xf]
  %v199 = vld [vmem:[%s1 + $0xa0] sm:$0xf]
  %v200 = vld [vmem:[%s1 + $0xa4] sm:$0xf]
  %v201 = vld [vmem:[%s1 + $0xa8] sm:$0xf]
  %v202 = vld [vmem:[%s1 + $0xac] sm:$0xf]
  %v203 = vld [vmem:[%s1 + $0xb0] sm:$0xf]
  %v204 = vld [vmem:[%s1 + $0xb4] sm:$0xf]
  %v205 = vld [vmem:[%s1 + $0xb8] sm:$0xf]
  %v206 = vld [vmem:[%s1 + $0xbc] sm:$0xf]
  %v207 = vld [vmem:[%s1 + $0xc0] sm:$0xf]
  %v208 = vld [vmem:[%s1 + $0xc4] sm:$0xf]
  %v209 = vld [vmem:[%s1 + $0xc8] sm:$0xf]
  %v210 = vld [vmem:[%s1 + $0xcc] sm:$0xf]
  %v211 = vld [vmem:[%s1 + $0xd0] sm:$0xf]
  %v212 = vld [vmem:[%s1 + $0xd4] sm:$0xf]
  %v213 = vld [vmem:[%s1 + $0xd8] sm:$0xf]
  %v214 = vld [vmem:[%s1 + $0xdc] sm:$0xf]
  %v215 = vld [vmem:[%s1 + $0xe0] sm:$0xf]
  %v216 = vld [vmem:[%s1 + $0xe4] sm:$0xf]
  %v217 = vld [vmem:[%s1 + $0xe8] sm:$0xf]
  %v218 = vld [vmem:[%s1 + $0xec] sm:$0xf]
  %v219 = vld [vmem:[%s1 + $0xf0] sm:$0xf]
  %v220 = vld [vmem:[%s1 + $0xf4] sm:$0xf]
  %v221 = vld [vmem:[%s1 + $0xf8] sm:$0xf]
  %v222 = vld [vmem:[%s1 + $0xfc] sm:$0xf]
  %v223 = vld [vmem:[%s1 + $0x100] sm:$0xf]
  %v224 = vld [vmem:[%s1 + $0x104] sm:$0xf]
  %v225 = vld [vmem:[%s1 + $0x108] sm:$0xf]
  %v226 = vld [vmem:[%s1 + $0x10c] sm:$0xf]
  %v227 = vld [vmem:[%s1 + $0x110] sm:$0xf]
  %v228 = vld [vmem:[%s1 + $0x114] sm:$0xf]
  %v229 = vld [vmem:[%s1 + $0x118] sm:$0xf]
  %v230 = vld [vmem:[%s1 + $0x11c] sm:$0xf]
  %v231 = vld [vmem:[%s1 + $0x120] sm:$0xf]
  %v232 = vld [vmem:[%s1 + $0x124] sm:$0xf]
  %v233 = vld [vmem:[%s1 + $0x128] sm:$0xf]
  %v234 = vld [vmem:[%s1 + $0x12c] sm:$0xf]
  %v235 = vld [vmem:[%s1 + $0x130] sm:$0xf]
  %v236 = vld [vmem:[%s1 + $0x134] sm:$0xf]
  %v237 = vld [vmem:[%s1 + $0x138] sm:$0xf]
  %v238 = vld [vmem:[%s1 + $0x13c] sm:$0xf]
  %v239 = vld [vmem:[%s1 + $0x140] sm:$0xf]
  %v240 = vld [vmem:[%s1 + $0x144] sm:$0xf]
  %v241 = vld [vmem:[%s1 + $0x148] sm:$0xf]
  %v242 = vld [vmem:[%s1 + $0x14c] sm:$0xf]
  %v243 = vld [vmem:[%s1 + $0x150] sm:$0xf]
  %v244 = vld [vmem:[%s1 + $0x154] sm:$0xf]
  %v245 = vld [vmem:[%s1 + $0x158] sm:$0xf]
  %v246 = vld [vmem:[%s1 + $0x15c] sm:$0xf]
  %v247 = vld [vmem:[%s1 + $0x160] sm:$0xf]
  %v248 = vld [vmem:[%s1 + $0x164] sm:$0xf]
  %v249 = vld [vmem:[%s1 + $0x168] sm:$0xf]
  %v250 = vld [vmem:[%s1 + $0x16c] sm:$0xf]
  %v251 = vld [vmem:[%s1 + $0x170] sm:$0xf]
  %v252 = vld [vmem:[%s1 + $0x174] sm:$0xf]
  %v253 = vld [vmem:[%s1 + $0x178] sm:$0xf]
  %v254 = vld [vmem:[%s1 + $0x17c] sm:$0xf]
  %v255 = vld [vmem:[%s1 + $0x180] sm:$0xf]
  %v256 = vld [vmem:[%s1 + $0x184] sm:$0xf]
  %v257 = vld [vmem:[%s1 + $0x188] sm:$0xf]
  %v258 = vld [vmem:[%s1 + $0x18c] sm:$0xf]
  %v259 = vld [vmem:[%s1 + $0x190] sm:$0xf]
  %v260 = vld [vmem:[%s1 + $0x194] sm:$0xf]
  %v261 = vld [vmem:[%s1 + $0x198] sm:$0xf]
  %v262 = vld [vmem:[%s1 + $0x19c] sm:$0xf]
  %v263 = vld [vmem:[%s1 + $0x1a0] sm:$0xf]
  %v264 = vld [vmem:[%s1 + $0x1a4] sm:$0xf]
  %v265 = vld [vmem:[%s1 + $0x1a8] sm:$0xf]
  %v266 = vld [vmem:[%s1 + $0x1ac] sm:$0xf]
  %v267 = vld [vmem:[%s1 + $0x1b0] sm:$0xf]
  %v268 = vld [vmem:[%s1 + $0x1b4] sm:$0xf]
  %v269 = vld [vmem:[%s1 + $0x1b8] sm:$0xf]
  %v270 = vld [vmem:[%s1 + $0x1bc] sm:$0xf]
  %v271 = vld [vmem:[%s1 + $0x1c0] sm:$0xf]
  %v272 = vld [vmem:[%s1 + $0x1c4] sm:$0xf]
  %v273 = vld [vmem:[%s1 + $0x1c8] sm:$0xf]
  %v274 = vld [vmem:[%s1 + $0x1cc] sm:$0xf]
  %v275 = vld [vmem:[%s1 + $0x1d0] sm:$0xf]
  %v276 = vld [vmem:[%s1 + $0x1d4] sm:$0xf]
  %v277 = vld [vmem:[%s1 + $0x1d8] sm:$0xf]
  %v278 = vld [vmem:[%s1 + $0x1dc] sm:$0xf]
  %v279 = vld [vmem:[%s1 + $0x1e0] sm:$0xf]
  %v280 = vld [vmem:[%s1 + $0x1e4] sm:$0xf]
  %v281 = vld [vmem:[%s1 + $0x1e8] sm:$0xf]
  %v282 = vld [vmem:[%s1 + $0x1ec] sm:$0xf]
  %v283 = vld [vmem:[%s1 + $0x1f0] sm:$0xf]
  %v284 = vld [vmem:[%s1 + $0x1f4] sm:$0xf]
  %v285 = vld [vmem:[%s1 + $0x1f8] sm:$0xf]
  %v286 = vld [vmem:[%s1 + $0x1fc] sm:$0xf]
  %v287 = vld [vmem:[%s1 + $0x200] sm:$0xf]
  %v288 = vld [vmem:[%s1 + $0x204] sm:$0xf]
  %v289 = vld [vmem:[%s1 + $0x208] sm:$0xf]
  %v290 = vld [vmem:[%s1 + $0x20c] sm:$0xf]
  %v291 = vld [vmem:[%s1 + $0x210] sm:$0xf]
  %v292 = vld [vmem:[%s1 + $0x214] sm:$0xf]
  %v293 = vld [vmem:[%s1 + $0x218] sm:$0xf]
  %v294 = vld [vmem:[%s1 + $0x21c] sm:$0xf]
  %v295 = vld [vmem:[%s1 + $0x220] sm:$0xf]
  %v296 = vld [vmem:[%s1 + $0x224] sm:$0xf]
  %v297 = vld [vmem:[%s1 + $0x228] sm:$0xf]
  %v298 = vld [vmem:[%s1 + $0x22c] sm:$0xf]
  %v299 = vld [vmem:[%s1 + $0x230] sm:$0xf]
  %v300 = vld [vmem:[%s1 + $0x234] sm:$0xf]
  %v301 = vld [vmem:[%s1 + $0x238] sm:$0xf]
  %v302 = vld [vmem:[%s1 + $0x23c] sm:$0xf]
  %v303 = vld [vmem:[%s1 + $0x240] sm:$0xf]
  %v304 = vld [vmem:[%s1 + $0x244] sm:$0xf]
  %v305 = vld [vmem:[%s1 + $0x248] sm:$0xf]
  %v306 = vld [vmem:[%s1 + $0x24c] sm:$0xf]
  %v307 = vld [vmem:[%s1 + $0x250] sm:$0xf]
  %v308 = vld [vmem:[%s1 + $0x254] sm:$0xf]
  %v309 = vld [vmem:[%s1 + $0x258] sm:$0xf]
  %v310 = vld [vmem:[%s1 + $0x25c] sm:$0xf]
  %v311 = vld [vmem:[%s1 + $0x260] sm:$0xf]
  %v312 = vld [vmem:[%s1 + $0x264] sm:$0xf]
  %v313 = vld [vmem:[%s1 + $0x268] sm:$0xf]
  %v314 = vld [vmem:[%s1 + $0x26c] sm:$0xf]
  %v315 = vld [vmem:[%s1 + $0x270] sm:$0xf]
  %v316 = vld [vmem:[%s1 + $0x274] sm:$0xf]
  %v317 = vld [vmem:[%s1 + $0x278] sm:$0xf]
  %v318 = vld [vmem:[%s1 + $0x27c] sm:$0xf]
  %v319 = vld [vmem:[%s1 + $0x280] sm:$0xf]
  %v320 = vld [vmem:[%s1 + $0x284] sm:$0xf]
  %v321 = vld [vmem:[%s1 + $0x288] sm:$0xf]
  %v322 = vld [vmem:[%s1 + $0x28c] sm:$0xf]
  %v323 = vld [vmem:[%s1 + $0x290] sm:$0xf]
  %v324 = vld [vmem:[%s1 + $0x294] sm:$0xf]
  %v325 = vld [vmem:[%s1 + $0x298] sm:$0xf]
  %v326 = vld [vmem:[%s1 + $0x29c] sm:$0xf]
  %v327 = vld [vmem:[%s1 + $0x2a0] sm:$0xf]
  %v328 = vld [vmem:[%s1 + $0x2a4] sm:$0xf]
  %v329 = vld [vmem:[%s1 + $0x2a8] sm:$0xf]
  %v330 = vld [vmem:[%s1 + $0x2ac] sm:$0xf]
  %v331 = vld [vmem:[%s1 + $0x2b0] sm:$0xf]
  %v332 = vld [vmem:[%s1 + $0x2b4] sm:$0xf]
  %v333 = vld [vmem:[%s1 + $0x2b8] sm:$0xf]
  %v334 = vld [vmem:[%s1 + $0x2bc] sm:$0xf]
  %v335 = vld [vmem:[%s1 + $0x2c0] sm:$0xf]
  %v336 = vld [vmem:[%s1 + $0x2c4] sm:$0xf]
  %v337 = vld [vmem:[%s1 + $0x2c8] sm:$0xf]
  %v338 = vld [vmem:[%s1 + $0x2cc] sm:$0xf]
  %v339 = vld [vmem:[%s1 + $0x2d0] sm:$0xf]
  %v340 = vld [vmem:[%s1 + $0x2d4] sm:$0xf]
  %v341 = vld [vmem:[%s1 + $0x2d8] sm:$0xf]
  %v342 = vld [vmem:[%s1 + $0x2dc] sm:$0xf]
  %v343 = vld [vmem:[%s1 + $0x2e0] sm:$0xf]
  %v344 = vld [vmem:[%s1 + $0x2e4] sm:$0xf]
  %v345 = vld [vmem:[%s1 + $0x2e8] sm:$0xf]
  %v346 = vld [vmem:[%s1 + $0x2ec] sm:$0xf]
  %v347 = vld [vmem:[%s1 + $0x2f0] sm:$0xf]
  %v348 = vld [vmem:[%s1 + $0x2f4] sm:$0xf]
  %v349 = vld [vmem:[%s1 + $0x2f8] sm:$0xf]
  %v350 = vld [vmem:[%s1 + $0x2fc] sm:$0xf]
  %v351 = vld [vmem:[%s1 + $0x300] sm:$0xf]
  %v352 = vld [vmem:[%s1 + $0x304] sm:$0xf]
  %v353 = vld [vmem:[%s1 + $0x308] sm:$0xf]
  %v354 = vld [vmem:[%s1 + $0x30c] sm:$0xf]
  %v355 = vld [vmem:[%s1 + $0x310] sm:$0xf]
  %v356 = vld [vmem:[%s1 + $0x314] sm:$0xf]
  %v357 = vld [vmem:[%s1 + $0x318] sm:$0xf]
  %v358 = vld [vmem:[%s1 + $0x31c] sm:$0xf]
  %v359 = vld [vmem:[%s1 + $0x320] sm:$0xf]
  %v360 = vld [vmem:[%s1 + $0x324] sm:$0xf]
  %v361 = vld [vmem:[%s1 + $0x328] sm:$0xf]
  %v362 = vld [vmem:[%s1 + $0x32c] sm:$0xf]
  %v363 = vld [vmem:[%s1 + $0x330] sm:$0xf]
  %v364 = vld [vmem:[%s1 + $0x334] sm:$0xf]
  %v365 = vld [vmem:[%s1 + $0x338] sm:$0xf]
  %v366 = vld [vmem:[%s1 + $0x33c] sm:$0xf]
  %v367 = vld [vmem:[%s1 + $0x340] sm:$0xf]
  %v368 = vld [vmem:[%s1 + $0x344] sm:$0xf]
  %v369 = vld [vmem:[%s1 + $0x348] sm:$0xf]
  %v370 = vld [vmem:[%s1 + $0x34c] sm:$0xf]
  %v371 = vld [vmem:[%s1 + $0x350] sm:$0xf]
  %v372 = vld [vmem:[%s1 + $0x354] sm:$0xf]
  %v373 = vld [vmem:[%s1 + $0x358] sm:$0xf]
  %v374 = vld [vmem:[%s1 + $0x35c] sm:$0xf]
  %v375 = vld [vmem:[%s1 + $0x360] sm:$0xf]
  %v376 = vld [vmem:[%s1 + $0x364] sm:$0xf]
  %v377 = vld [vmem:[%s1 + $0x368] sm:$0xf]
  %v378 = vld [vmem:[%s1 + $0x36c] sm:$0xf]
  %v379 = vld [vmem:[%s1 + $0x370] sm:$0xf]
  %v380 = vld [vmem:[%s1 + $0x374] sm:$0xf]
  %v381 = vld [vmem:[%s1 + $0x378] sm:$0xf]
  %v382 = vld [vmem:[%s1 + $0x37c] sm:$0xf]
  %v383 = vld [vmem:[%s1 + $0x380] sm:$0xf]
  %v384 = vld [vmem:[%s1 + $0x384] sm:$0xf]
  %v385 = vld [vmem:[%s1 + $0x388] sm:$0xf]
  %v386 = vld [vmem:[%s1 + $0x38c] sm:$0xf]
  %v387 = vld [vmem:[%s1 + $0x390] sm:$0xf]
  %v388 = vld [vmem:[%s1 + $0x394] sm:$0xf]
  %v389 = vld [vmem:[%s1 + $0x398] sm:$0xf]
  %v390 = vld [vmem:[%s1 + $0x39c] sm:$0xf]
  %v391 = vld [vmem:[%s1 + $0x3a0] sm:$0xf]
  %v392 = vld [vmem:[%s1 + $0x3a4] sm:$0xf]
  %v393 = vld [vmem:[%s1 + $0x3a8] sm:$0xf]
  %v394 = vld [vmem:[%s1 + $0x3ac] sm:$0xf]
  %v395 = vld [vmem:[%s1 + $0x3b0] sm:$0xf]
  %v396 = vld [vmem:[%s1 + $0x3b4] sm:$0xf]
  %v397 = vld [vmem:[%s1 + $0x3b8] sm:$0xf]
  %v398 = vld [vmem:[%s1 + $0x3bc] sm:$0xf]
  %v399 = vld [vmem:[%s1 + $0x3c0] sm:$0xf]
  %v400 = vld [vmem:[%s1 + $0x3c4] sm:$0xf]
  %v401 = vld [vmem:[%s1 + $0x3c8] sm:$0xf]
  %v402 = vld [vmem:[%s1 + $0x3cc] sm:$0xf]
  %v403 = vld [vmem:[%s1 + $0x3d0] sm:$0xf]
  %v404 = vld [vmem:[%s1 + $0x3d4] sm:$0xf]
  %v405 = vld [vmem:[%s1 + $0x3d8] sm:$0xf]
  %v406 = vld [vmem:[%s1 + $0x3dc] sm:$0xf]
  %v407 = vld [vmem:[%s1 + $0x3e0] sm:$0xf]
  %v408 = vld [vmem:[%s1 + $0x3e4] sm:$0xf]
  %v409 = vld [vmem:[%s1 + $0x3e8] sm:$0xf]
  %v410 = vld [vmem:[%s1 + $0x3ec] sm:$0xf]
  %v411 = vld [vmem:[%s1 + $0x3f0] sm:$0xf]
  %v412 = vld [vmem:[%s1 + $0x3f4] sm:$0xf]
  %v413 = vld [vmem:[%s1 + $0x3f8] sm:$0xf]
  %v414 = vld [vmem:[%s1 + $0x3fc] sm:$0xf]
  %v415 = vld [vmem:[%s1 + $0x400] sm:$0xf]
  %v416 = vld [vmem:[%s1 + $0x404] sm:$0xf]
  %v417 = vld [vmem:[%s1 + $0x408] sm:$0xf]
  %v418 = vld [vmem:[%s1 + $0x40c] sm:$0xf]
  %v419 = vld [vmem:[%s1 + $0x410] sm:$0xf]
  %v420 = vld [vmem:[%s1 + $0x414] sm:$0xf]
  %v421 = vld [vmem:[%s1 + $0x418] sm:$0xf]
  %v422 = vld [vmem:[%s1 + $0x41c] sm:$0xf]
  %v423 = vld [vmem:[%s1 + $0x420] sm:$0xf]
  %v424 = vld [vmem:[%s1 + $0x424] sm:$0xf]
  %v425 = vld [vmem:[%s1 + $0x428] sm:$0xf]
  %v426 = vld [vmem:[%s1 + $0x42c] sm:$0xf]
  %v427 = vld [vmem:[%s1 + $0x430] sm:$0xf]
  %v428 = vld [vmem:[%s1 + $0x434] sm:$0xf]
  %v429 = vld [vmem:[%s1 + $0x438] sm:$0xf]
  %v430 = vld [vmem:[%s1 + $0x43c] sm:$0xf]
  %v431 = vld [vmem:[%s1 + $0x440] sm:$0xf]
  %v432 = vld [vmem:[%s1 + $0x444] sm:$0xf]
  %v433 = vld [vmem:[%s1 + $0x448] sm:$0xf]
  %v434 = vld [vmem:[%s1 + $0x44c] sm:$0xf]
  %v435 = vld [vmem:[%s1 + $0x450] sm:$0xf]
  %v436 = vld [vmem:[%s1 + $0x454] sm:$0xf]
  %v437 = vld [vmem:[%s1 + $0x458] sm:$0xf]
  %v438 = vld [vmem:[%s1 + $0x45c] sm:$0xf]
  %v439 = vld [vmem:[%s1 + $0x460] sm:$0xf]
  %v440 = vld [vmem:[%s1 + $0x464] sm:$0xf]
  %v441 = vld [vmem:[%s1 + $0x468] sm:$0xf]
  %v442 = vld [vmem:[%s1 + $0x46c] sm:$0xf]
  %v443 = vld [vmem:[%s1 + $0x470] sm:$0xf]
  %v444 = vld [vmem:[%s1 + $0x474] sm:$0xf]
  %v445 = vld [vmem:[%s1 + $0x478] sm:$0xf]
  %v446 = vld [vmem:[%s1 + $0x47c] sm:$0xf]
  %v447 = vld [vmem:[%s2] sm:$0x1]
  %v449 = vlaneseq
  %v450 = vshrl.u32 %v449, 7
  %v451 = vsub.s32 0, %v450
  %v452 = vrot.slane %v447, %v451
  %v598 = vunpack.c.l.b16 %v15
  %v599 = vunpack.c.h.b16 %v15
  %v600 = vunpack.c.l.b16 %v16
  %v601 = vunpack.c.h.b16 %v16
  %v602 = vunpack.c.l.b16 %v17
  %v603 = vunpack.c.h.b16 %v17
  %v604 = vunpack.c.l.b16 %v18
  %v605 = vunpack.c.h.b16 %v18
  %v606 = vunpack.c.l.b16 %v19
  %v607 = vunpack.c.h.b16 %v19
  %v608 = vunpack.c.l.b16 %v20
  %v609 = vunpack.c.h.b16 %v20
  %v610 = vunpack.c.l.b16 %v21
  %v611 = vunpack.c.h.b16 %v21
  %v612 = vunpack.c.l.b16 %v22
  %v613 = vunpack.c.h.b16 %v22
  %v614 = vunpack.c.l.b16 %v23
  %v615 = vunpack.c.h.b16 %v23
  %v616 = vunpack.c.l.b16 %v24
  %v617 = vunpack.c.h.b16 %v24
  %v618 = vunpack.c.l.b16 %v25
  %v619 = vunpack.c.h.b16 %v25
  %v620 = vunpack.c.l.b16 %v26
  %v621 = vunpack.c.h.b16 %v26
  %v622 = vunpack.c.l.b16 %v27
  %v623 = vunpack.c.h.b16 %v27
  %v624 = vunpack.c.l.b16 %v28
  %v625 = vunpack.c.h.b16 %v28
  %v626 = vunpack.c.l.b16 %v29
  %v627 = vunpack.c.h.b16 %v29
  %v628 = vunpack.c.l.b16 %v30
  %v629 = vunpack.c.h.b16 %v30
  %v630 = vunpack.c.l.b16 %v31
  %v631 = vunpack.c.h.b16 %v31
  %v632 = vunpack.c.l.b16 %v32
  %v633 = vunpack.c.h.b16 %v32
  %v634 = vunpack.c.l.b16 %v33
  %v635 = vunpack.c.h.b16 %v33
  %v636 = vunpack.c.l.b16 %v34
  %v637 = vunpack.c.h.b16 %v34
  %v638 = vunpack.c.l.b16 %v35
  %v639 = vunpack.c.h.b16 %v35
  %v640 = vunpack.c.l.b16 %v36
  %v641 = vunpack.c.h.b16 %v36
  %v642 = vunpack.c.l.b16 %v37
  %v643 = vunpack.c.h.b16 %v37
  %v644 = vunpack.c.l.b16 %v38
  %v645 = vunpack.c.h.b16 %v38
  %v646 = vunpack.c.l.b16 %v39
  %v647 = vunpack.c.h.b16 %v39
  %v648 = vunpack.c.l.b16 %v40
  %v649 = vunpack.c.h.b16 %v40
  %v650 = vunpack.c.l.b16 %v41
  %v651 = vunpack.c.h.b16 %v41
  %v652 = vunpack.c.l.b16 %v42
  %v653 = vunpack.c.h.b16 %v42
  %v654 = vunpack.c.l.b16 %v43
  %v655 = vunpack.c.h.b16 %v43
  %v656 = vunpack.c.l.b16 %v44
  %v657 = vunpack.c.h.b16 %v44
  %v658 = vunpack.c.l.b16 %v45
  %v659 = vunpack.c.h.b16 %v45
  %v660 = vunpack.c.l.b16 %v46
  %v661 = vunpack.c.h.b16 %v46
  %v662 = vunpack.c.l.b16 %v47
  %v663 = vunpack.c.h.b16 %v47
  %v664 = vunpack.c.l.b16 %v48
  %v665 = vunpack.c.h.b16 %v48
  %v666 = vunpack.c.l.b16 %v49
  %v667 = vunpack.c.h.b16 %v49
  %v668 = vunpack.c.l.b16 %v50
  %v669 = vunpack.c.h.b16 %v50
  %v670 = vunpack.c.l.b16 %v51
  %v671 = vunpack.c.h.b16 %v51
  %v672 = vunpack.c.l.b16 %v52
  %v673 = vunpack.c.h.b16 %v52
  %v674 = vunpack.c.l.b16 %v53
  %v675 = vunpack.c.h.b16 %v53
  %v676 = vunpack.c.l.b16 %v54
  %v677 = vunpack.c.h.b16 %v54
  %v678 = vunpack.c.l.b16 %v55
  %v679 = vunpack.c.h.b16 %v55
  %v680 = vunpack.c.l.b16 %v56
  %v681 = vunpack.c.h.b16 %v56
  %v682 = vunpack.c.l.b16 %v57
  %v683 = vunpack.c.h.b16 %v57
  %v684 = vunpack.c.l.b16 %v58
  %v685 = vunpack.c.h.b16 %v58
  %v686 = vunpack.c.l.b16 %v59
  %v687 = vunpack.c.h.b16 %v59
  %v688 = vunpack.c.l.b16 %v60
  %v689 = vunpack.c.h.b16 %v60
  %v690 = vunpack.c.l.b16 %v61
  %v691 = vunpack.c.h.b16 %v61
  %v692 = vunpack.c.l.b16 %v62
  %v693 = vunpack.c.h.b16 %v62
  %v694 = vunpack.c.l.b16 %v63
  %v695 = vunpack.c.h.b16 %v63
  %v696 = vunpack.c.l.b16 %v64
  %v697 = vunpack.c.h.b16 %v64
  %v698 = vunpack.c.l.b16 %v65
  %v699 = vunpack.c.h.b16 %v65
  %v700 = vunpack.c.l.b16 %v66
  %v701 = vunpack.c.h.b16 %v66
  %v702 = vunpack.c.l.b16 %v67
  %v703 = vunpack.c.h.b16 %v67
  %v704 = vunpack.c.l.b16 %v68
  %v705 = vunpack.c.h.b16 %v68
  %v706 = vunpack.c.l.b16 %v69
  %v707 = vunpack.c.h.b16 %v69
  %v708 = vunpack.c.l.b16 %v70
  %v709 = vunpack.c.h.b16 %v70
  %v710 = vunpack.c.l.b16 %v71
  %v711 = vunpack.c.h.b16 %v71
  %v712 = vunpack.c.l.b16 %v72
  %v713 = vunpack.c.h.b16 %v72
  %v714 = vunpack.c.l.b16 %v73
  %v715 = vunpack.c.h.b16 %v73
  %v716 = vunpack.c.l.b16 %v74
  %v717 = vunpack.c.h.b16 %v74
  %v718 = vunpack.c.l.b16 %v75
  %v719 = vunpack.c.h.b16 %v75
  %v720 = vunpack.c.l.b16 %v76
  %v721 = vunpack.c.h.b16 %v76
  %v722 = vunpack.c.l.b16 %v77
  %v723 = vunpack.c.h.b16 %v77
  %v724 = vunpack.c.l.b16 %v78
  %v725 = vunpack.c.h.b16 %v78
  %v726 = vunpack.c.l.b16 %v79
  %v727 = vunpack.c.h.b16 %v79
  %v728 = vunpack.c.l.b16 %v80
  %v729 = vunpack.c.h.b16 %v80
  %v730 = vunpack.c.l.b16 %v81
  %v731 = vunpack.c.h.b16 %v81
  %v732 = vunpack.c.l.b16 %v82
  %v733 = vunpack.c.h.b16 %v82
  %v734 = vunpack.c.l.b16 %v83
  %v735 = vunpack.c.h.b16 %v83
  %v736 = vunpack.c.l.b16 %v84
  %v737 = vunpack.c.h.b16 %v84
  %v738 = vunpack.c.l.b16 %v85
  %v739 = vunpack.c.h.b16 %v85
  %v740 = vunpack.c.l.b16 %v86
  %v741 = vunpack.c.h.b16 %v86
  %v742 = vunpack.c.l.b16 %v87
  %v743 = vunpack.c.h.b16 %v87
  %v744 = vunpack.c.l.b16 %v88
  %v745 = vunpack.c.h.b16 %v88
  %v746 = vunpack.c.l.b16 %v89
  %v747 = vunpack.c.h.b16 %v89
  %v748 = vunpack.c.l.b16 %v90
  %v749 = vunpack.c.h.b16 %v90
  %v750 = vunpack.c.l.b16 %v91
  %v751 = vunpack.c.h.b16 %v91
  %v752 = vunpack.c.l.b16 %v92
  %v753 = vunpack.c.h.b16 %v92
  %v754 = vunpack.c.l.b16 %v93
  %v755 = vunpack.c.h.b16 %v93
  %v756 = vunpack.c.l.b16 %v94
  %v757 = vunpack.c.h.b16 %v94
  %v758 = vunpack.c.l.b16 %v95
  %v759 = vunpack.c.h.b16 %v95
  %v760 = vunpack.c.l.b16 %v96
  %v761 = vunpack.c.h.b16 %v96
  %v762 = vunpack.c.l.b16 %v97
  %v763 = vunpack.c.h.b16 %v97
  %v764 = vunpack.c.l.b16 %v98
  %v765 = vunpack.c.h.b16 %v98
  %v766 = vunpack.c.l.b16 %v99
  %v767 = vunpack.c.h.b16 %v99
  %v768 = vunpack.c.l.b16 %v100
  %v769 = vunpack.c.h.b16 %v100
  %v770 = vunpack.c.l.b16 %v101
  %v771 = vunpack.c.h.b16 %v101
  %v772 = vunpack.c.l.b16 %v102
  %v773 = vunpack.c.h.b16 %v102
  %v774 = vunpack.c.l.b16 %v103
  %v775 = vunpack.c.h.b16 %v103
  %v776 = vunpack.c.l.b16 %v104
  %v777 = vunpack.c.h.b16 %v104
  %v778 = vunpack.c.l.b16 %v105
  %v779 = vunpack.c.h.b16 %v105
  %v780 = vunpack.c.l.b16 %v106
  %v781 = vunpack.c.h.b16 %v106
  %v782 = vunpack.c.l.b16 %v107
  %v783 = vunpack.c.h.b16 %v107
  %v784 = vunpack.c.l.b16 %v108
  %v785 = vunpack.c.h.b16 %v108
  %v786 = vunpack.c.l.b16 %v109
  %v787 = vunpack.c.h.b16 %v109
  %v788 = vunpack.c.l.b16 %v110
  %v789 = vunpack.c.h.b16 %v110
  %v790 = vunpack.c.l.b16 %v111
  %v791 = vunpack.c.h.b16 %v111
  %v792 = vunpack.c.l.b16 %v112
  %v793 = vunpack.c.h.b16 %v112
  %v794 = vunpack.c.l.b16 %v113
  %v795 = vunpack.c.h.b16 %v113
  %v796 = vunpack.c.l.b16 %v114
  %v797 = vunpack.c.h.b16 %v114
  %v798 = vunpack.c.l.b16 %v115
  %v799 = vunpack.c.h.b16 %v115
  %v800 = vunpack.c.l.b16 %v116
  %v801 = vunpack.c.h.b16 %v116
  %v802 = vunpack.c.l.b16 %v117
  %v803 = vunpack.c.h.b16 %v117
  %v804 = vunpack.c.l.b16 %v118
  %v805 = vunpack.c.h.b16 %v118
  %v806 = vunpack.c.l.b16 %v119
  %v807 = vunpack.c.h.b16 %v119
  %v808 = vunpack.c.l.b16 %v120
  %v809 = vunpack.c.h.b16 %v120
  %v810 = vunpack.c.l.b16 %v121
  %v811 = vunpack.c.h.b16 %v121
  %v812 = vunpack.c.l.b16 %v122
  %v813 = vunpack.c.h.b16 %v122
  %v814 = vunpack.c.l.b16 %v123
  %v815 = vunpack.c.h.b16 %v123
  %v816 = vunpack.c.l.b16 %v124
  %v817 = vunpack.c.h.b16 %v124
  %v818 = vunpack.c.l.b16 %v125
  %v819 = vunpack.c.h.b16 %v125
  %v820 = vunpack.c.l.b16 %v126
  %v821 = vunpack.c.h.b16 %v126
  %v822 = vunpack.c.l.b16 %v127
  %v823 = vunpack.c.h.b16 %v127
  %v824 = vunpack.c.l.b16 %v128
  %v825 = vunpack.c.h.b16 %v128
  %v826 = vunpack.c.l.b16 %v129
  %v827 = vunpack.c.h.b16 %v129
  %v828 = vunpack.c.l.b16 %v130
  %v829 = vunpack.c.h.b16 %v130
  %v830 = vunpack.c.l.b16 %v131
  %v831 = vunpack.c.h.b16 %v131
  %v832 = vunpack.c.l.b16 %v132
  %v833 = vunpack.c.h.b16 %v132
  %v834 = vunpack.c.l.b16 %v133
  %v835 = vunpack.c.h.b16 %v133
  %v836 = vunpack.c.l.b16 %v134
  %v837 = vunpack.c.h.b16 %v134
  %v838 = vunpack.c.l.b16 %v135
  %v839 = vunpack.c.h.b16 %v135
  %v840 = vunpack.c.l.b16 %v136
  %v841 = vunpack.c.h.b16 %v136
  %v842 = vunpack.c.l.b16 %v137
  %v843 = vunpack.c.h.b16 %v137
  %v844 = vunpack.c.l.b16 %v138
  %v845 = vunpack.c.h.b16 %v138
  %v846 = vunpack.c.l.b16 %v139
  %v847 = vunpack.c.h.b16 %v139
  %v848 = vunpack.c.l.b16 %v140
  %v849 = vunpack.c.h.b16 %v140
  %v850 = vunpack.c.l.b16 %v141
  %v851 = vunpack.c.h.b16 %v141
  %v852 = vunpack.c.l.b16 %v142
  %v853 = vunpack.c.h.b16 %v142
  %v854 = vunpack.c.l.b16 %v143
  %v855 = vunpack.c.h.b16 %v143
  %v856 = vunpack.c.l.b16 %v144
  %v857 = vunpack.c.h.b16 %v144
  %v858 = vunpack.c.l.b16 %v145
  %v859 = vunpack.c.h.b16 %v145
  %v860 = vunpack.c.l.b16 %v146
  %v861 = vunpack.c.h.b16 %v146
  %v862 = vunpack.c.l.b16 %v147
  %v863 = vunpack.c.h.b16 %v147
  %v864 = vunpack.c.l.b16 %v148
  %v865 = vunpack.c.h.b16 %v148
  %v866 = vunpack.c.l.b16 %v149
  %v867 = vunpack.c.h.b16 %v149
  %v868 = vunpack.c.l.b16 %v150
  %v869 = vunpack.c.h.b16 %v150
  %v870 = vunpack.c.l.b16 %v151
  %v871 = vunpack.c.h.b16 %v151
  %v872 = vunpack.c.l.b16 %v152
  %v873 = vunpack.c.h.b16 %v152
  %v874 = vunpack.c.l.b16 %v153
  %v875 = vunpack.c.h.b16 %v153
  %v876 = vunpack.c.l.b16 %v154
  %v877 = vunpack.c.h.b16 %v154
  %v878 = vunpack.c.l.b16 %v155
  %v879 = vunpack.c.h.b16 %v155
  %v880 = vunpack.c.l.b16 %v156
  %v881 = vunpack.c.h.b16 %v156
  %v882 = vunpack.c.l.b16 %v157
  %v883 = vunpack.c.h.b16 %v157
  %v884 = vunpack.c.l.b16 %v158
  %v885 = vunpack.c.h.b16 %v158
  %v886 = vpack.c.b16 %v616, %v598
  %v887 = vpack.c.b16 %v617, %v599
  %v888 = vpack.c.b16 %v618, %v600
  %v889 = vpack.c.b16 %v619, %v601
  %v890 = vpack.c.b16 %v620, %v602
  %v891 = vpack.c.b16 %v621, %v603
  %v892 = vpack.c.b16 %v622, %v604
  %v893 = vpack.c.b16 %v623, %v605
  %v894 = vpack.c.b16 %v624, %v606
  %v895 = vpack.c.b16 %v625, %v607
  %v896 = vpack.c.b16 %v626, %v608
  %v897 = vpack.c.b16 %v627, %v609
  %v898 = vpack.c.b16 %v628, %v610
  %v899 = vpack.c.b16 %v629, %v611
  %v900 = vpack.c.b16 %v630, %v612
  %v901 = vpack.c.b16 %v631, %v613
  %v902 = vpack.c.b16 %v632, %v614
  %v903 = vpack.c.b16 %v633, %v615
  %v904 = vpack.c.b16 %v652, %v634
  %v905 = vpack.c.b16 %v653, %v635
  %v906 = vpack.c.b16 %v654, %v636
  %v907 = vpack.c.b16 %v655, %v637
  %v908 = vpack.c.b16 %v656, %v638
  %v909 = vpack.c.b16 %v657, %v639
  %v910 = vpack.c.b16 %v658, %v640
  %v911 = vpack.c.b16 %v659, %v641
  %v912 = vpack.c.b16 %v660, %v642
  %v913 = vpack.c.b16 %v661, %v643
  %v914 = vpack.c.b16 %v662, %v644
  %v915 = vpack.c.b16 %v663, %v645
  %v916 = vpack.c.b16 %v664, %v646
  %v917 = vpack.c.b16 %v665, %v647
  %v918 = vpack.c.b16 %v666, %v648
  %v919 = vpack.c.b16 %v667, %v649
  %v920 = vpack.c.b16 %v668, %v650
  %v921 = vpack.c.b16 %v669, %v651
  %v922 = vpack.c.b16 %v688, %v670
  %v923 = vpack.c.b16 %v689, %v671
  %v924 = vpack.c.b16 %v690, %v672
  %v925 = vpack.c.b16 %v691, %v673
  %v926 = vpack.c.b16 %v692, %v674
  %v927 = vpack.c.b16 %v693, %v675
  %v928 = vpack.c.b16 %v694, %v676
  %v929 = vpack.c.b16 %v695, %v677
  %v930 = vpack.c.b16 %v696, %v678
  %v931 = vpack.c.b16 %v697, %v679
  %v932 = vpack.c.b16 %v698, %v680
  %v933 = vpack.c.b16 %v699, %v681
  %v934 = vpack.c.b16 %v700, %v682
  %v935 = vpack.c.b16 %v701, %v683
  %v936 = vpack.c.b16 %v702, %v684
  %v937 = vpack.c.b16 %v703, %v685
  %v938 = vpack.c.b16 %v704, %v686
  %v939 = vpack.c.b16 %v705, %v687
  %v940 = vpack.c.b16 %v724, %v706
  %v941 = vpack.c.b16 %v725, %v707
  %v942 = vpack.c.b16 %v726, %v708
  %v943 = vpack.c.b16 %v727, %v709
  %v944 = vpack.c.b16 %v728, %v710
  %v945 = vpack.c.b16 %v729, %v711
  %v946 = vpack.c.b16 %v730, %v712
  %v947 = vpack.c.b16 %v731, %v713
  %v948 = vpack.c.b16 %v732, %v714
  %v949 = vpack.c.b16 %v733, %v715
  %v950 = vpack.c.b16 %v734, %v716
  %v951 = vpack.c.b16 %v735, %v717
  %v952 = vpack.c.b16 %v736, %v718
  %v953 = vpack.c.b16 %v737, %v719
  %v954 = vpack.c.b16 %v738, %v720
  %v955 = vpack.c.b16 %v739, %v721
  %v956 = vpack.c.b16 %v740, %v722
  %v957 = vpack.c.b16 %v741, %v723
  %v958 = vpack.c.b16 %v760, %v742
  %v959 = vpack.c.b16 %v761, %v743
  %v960 = vpack.c.b16 %v762, %v744
  %v961 = vpack.c.b16 %v763, %v745
  %v962 = vpack.c.b16 %v764, %v746
  %v963 = vpack.c.b16 %v765, %v747
  %v964 = vpack.c.b16 %v766, %v748
  %v965 = vpack.c.b16 %v767, %v749
  %v966 = vpack.c.b16 %v768, %v750
  %v967 = vpack.c.b16 %v769, %v751
  %v968 = vpack.c.b16 %v770, %v752
  %v969 = vpack.c.b16 %v771, %v753
  %v970 = vpack.c.b16 %v772, %v754
  %v971 = vpack.c.b16 %v773, %v755
  %v972 = vpack.c.b16 %v774, %v756
  %v973 = vpack.c.b16 %v775, %v757
  %v974 = vpack.c.b16 %v776, %v758
  %v975 = vpack.c.b16 %v777, %v759
  %v976 = vpack.c.b16 %v796, %v778
  %v977 = vpack.c.b16 %v797, %v779
  %v978 = vpack.c.b16 %v798, %v780
  %v979 = vpack.c.b16 %v799, %v781
  %v980 = vpack.c.b16 %v800, %v782
  %v981 = vpack.c.b16 %v801, %v783
  %v982 = vpack.c.b16 %v802, %v784
  %v983 = vpack.c.b16 %v803, %v785
  %v984 = vpack.c.b16 %v804, %v786
  %v985 = vpack.c.b16 %v805, %v787
  %v986 = vpack.c.b16 %v806, %v788
  %v987 = vpack.c.b16 %v807, %v789
  %v988 = vpack.c.b16 %v808, %v790
  %v989 = vpack.c.b16 %v809, %v791
  %v990 = vpack.c.b16 %v810, %v792
  %v991 = vpack.c.b16 %v811, %v793
  %v992 = vpack.c.b16 %v812, %v794
  %v993 = vpack.c.b16 %v813, %v795
  %v994 = vpack.c.b16 %v832, %v814
  %v995 = vpack.c.b16 %v833, %v815
  %v996 = vpack.c.b16 %v834, %v816
  %v997 = vpack.c.b16 %v835, %v817
  %v998 = vpack.c.b16 %v836, %v818
  %v999 = vpack.c.b16 %v837, %v819
  %v1000 = vpack.c.b16 %v838, %v820
  %v1001 = vpack.c.b16 %v839, %v821
  %v1002 = vpack.c.b16 %v840, %v822
  %v1003 = vpack.c.b16 %v841, %v823
  %v1004 = vpack.c.b16 %v842, %v824
  %v1005 = vpack.c.b16 %v843, %v825
  %v1006 = vpack.c.b16 %v844, %v826
  %v1007 = vpack.c.b16 %v845, %v827
  %v1008 = vpack.c.b16 %v846, %v828
  %v1009 = vpack.c.b16 %v847, %v829
  %v1010 = vpack.c.b16 %v848, %v830
  %v1011 = vpack.c.b16 %v849, %v831
  %v1012 = vpack.c.b16 %v868, %v850
  %v1013 = vpack.c.b16 %v869, %v851
  %v1014 = vpack.c.b16 %v870, %v852
  %v1015 = vpack.c.b16 %v871, %v853
  %v1016 = vpack.c.b16 %v872, %v854
  %v1017 = vpack.c.b16 %v873, %v855
  %v1018 = vpack.c.b16 %v874, %v856
  %v1019 = vpack.c.b16 %v875, %v857
  %v1020 = vpack.c.b16 %v876, %v858
  %v1021 = vpack.c.b16 %v877, %v859
  %v1022 = vpack.c.b16 %v878, %v860
  %v1023 = vpack.c.b16 %v879, %v861
  %v1024 = vpack.c.b16 %v880, %v862
  %v1025 = vpack.c.b16 %v881, %v863
  %v1026 = vpack.c.b16 %v882, %v864
  %v1027 = vpack.c.b16 %v883, %v865
  %v1028 = vpack.c.b16 %v884, %v866
  %v1029 = vpack.c.b16 %v885, %v867
  %v1462 = vunpack.c.l.b16 %v159
  %v1463 = vunpack.c.l.b16 %v160
  %v1464 = vunpack.c.l.b16 %v161
  %v1465 = vunpack.c.l.b16 %v162
  %v1466 = vunpack.c.l.b16 %v163
  %v1467 = vunpack.c.l.b16 %v164
  %v1468 = vunpack.c.l.b16 %v165
  %v1469 = vunpack.c.l.b16 %v166
  %v1470 = vunpack.c.l.b16 %v167
  %v1471 = vunpack.c.l.b16 %v168
  %v1472 = vunpack.c.l.b16 %v169
  %v1473 = vunpack.c.l.b16 %v170
  %v1474 = vunpack.c.l.b16 %v171
  %v1475 = vunpack.c.l.b16 %v172
  %v1476 = vunpack.c.l.b16 %v173
  %v1477 = vunpack.c.l.b16 %v174
  %v1478 = vunpack.c.l.b16 %v175
  %v1479 = vunpack.c.l.b16 %v176
  %v1480 = vunpack.c.l.b16 %v177
  %v1481 = vunpack.c.l.b16 %v178
  %v1482 = vunpack.c.l.b16 %v179
  %v1483 = vunpack.c.l.b16 %v180
  %v1484 = vunpack.c.l.b16 %v181
  %v1485 = vunpack.c.l.b16 %v182
  %v1486 = vunpack.c.l.b16 %v183
  %v1487 = vunpack.c.l.b16 %v184
  %v1488 = vunpack.c.l.b16 %v185
  %v1489 = vunpack.c.l.b16 %v186
  %v1490 = vunpack.c.l.b16 %v187
  %v1491 = vunpack.c.l.b16 %v188
  %v1492 = vunpack.c.l.b16 %v189
  %v1493 = vunpack.c.l.b16 %v190
  %v1494 = vunpack.c.l.b16 %v191
  %v1495 = vunpack.c.l.b16 %v192
  %v1496 = vunpack.c.l.b16 %v193
  %v1497 = vunpack.c.l.b16 %v194
  %v1498 = vunpack.c.l.b16 %v195
  %v1499 = vunpack.c.l.b16 %v196
  %v1500 = vunpack.c.l.b16 %v197
  %v1501 = vunpack.c.l.b16 %v198
  %v1502 = vunpack.c.l.b16 %v199
  %v1503 = vunpack.c.l.b16 %v200
  %v1504 = vunpack.c.l.b16 %v201
  %v1505 = vunpack.c.l.b16 %v202
  %v1506 = vunpack.c.l.b16 %v203
  %v1507 = vunpack.c.l.b16 %v204
  %v1508 = vunpack.c.l.b16 %v205
  %v1509 = vunpack.c.l.b16 %v206
  %v1510 = vunpack.c.l.b16 %v207
  %v1511 = vunpack.c.l.b16 %v208
  %v1512 = vunpack.c.l.b16 %v209
  %v1513 = vunpack.c.l.b16 %v210
  %v1514 = vunpack.c.l.b16 %v211
  %v1515 = vunpack.c.l.b16 %v212
  %v1516 = vunpack.c.l.b16 %v213
  %v1517 = vunpack.c.l.b16 %v214
  %v1518 = vunpack.c.l.b16 %v215
  %v1519 = vunpack.c.l.b16 %v216
  %v1520 = vunpack.c.l.b16 %v217
  %v1521 = vunpack.c.l.b16 %v218
  %v1522 = vunpack.c.l.b16 %v219
  %v1523 = vunpack.c.l.b16 %v220
  %v1524 = vunpack.c.l.b16 %v221
  %v1525 = vunpack.c.l.b16 %v222
  %v1526 = vunpack.c.l.b16 %v223
  %v1527 = vunpack.c.l.b16 %v224
  %v1528 = vunpack.c.l.b16 %v225
  %v1529 = vunpack.c.l.b16 %v226
  %v1530 = vunpack.c.l.b16 %v227
  %v1531 = vunpack.c.l.b16 %v228
  %v1532 = vunpack.c.l.b16 %v229
  %v1533 = vunpack.c.l.b16 %v230
  %v1534 = vunpack.c.l.b16 %v231
  %v1535 = vunpack.c.l.b16 %v232
  %v1536 = vunpack.c.l.b16 %v233
  %v1537 = vunpack.c.l.b16 %v234
  %v1538 = vunpack.c.l.b16 %v235
  %v1539 = vunpack.c.l.b16 %v236
  %v1540 = vunpack.c.l.b16 %v237
  %v1541 = vunpack.c.l.b16 %v238
  %v1542 = vunpack.c.l.b16 %v239
  %v1543 = vunpack.c.l.b16 %v240
  %v1544 = vunpack.c.l.b16 %v241
  %v1545 = vunpack.c.l.b16 %v242
  %v1546 = vunpack.c.l.b16 %v243
  %v1547 = vunpack.c.l.b16 %v244
  %v1548 = vunpack.c.l.b16 %v245
  %v1549 = vunpack.c.l.b16 %v246
  %v1550 = vunpack.c.l.b16 %v247
  %v1551 = vunpack.c.l.b16 %v248
  %v1552 = vunpack.c.l.b16 %v249
  %v1553 = vunpack.c.l.b16 %v250
  %v1554 = vunpack.c.l.b16 %v251
  %v1555 = vunpack.c.l.b16 %v252
  %v1556 = vunpack.c.l.b16 %v253
  %v1557 = vunpack.c.l.b16 %v254
  %v1558 = vunpack.c.l.b16 %v255
  %v1559 = vunpack.c.l.b16 %v256
  %v1560 = vunpack.c.l.b16 %v257
  %v1561 = vunpack.c.l.b16 %v258
  %v1562 = vunpack.c.l.b16 %v259
  %v1563 = vunpack.c.l.b16 %v260
  %v1564 = vunpack.c.l.b16 %v261
  %v1565 = vunpack.c.l.b16 %v262
  %v1566 = vunpack.c.l.b16 %v263
  %v1567 = vunpack.c.l.b16 %v264
  %v1568 = vunpack.c.l.b16 %v265
  %v1569 = vunpack.c.l.b16 %v266
  %v1570 = vunpack.c.l.b16 %v267
  %v1571 = vunpack.c.l.b16 %v268
  %v1572 = vunpack.c.l.b16 %v269
  %v1573 = vunpack.c.l.b16 %v270
  %v1574 = vunpack.c.l.b16 %v271
  %v1575 = vunpack.c.l.b16 %v272
  %v1576 = vunpack.c.l.b16 %v273
  %v1577 = vunpack.c.l.b16 %v274
  %v1578 = vunpack.c.l.b16 %v275
  %v1579 = vunpack.c.l.b16 %v276
  %v1580 = vunpack.c.l.b16 %v277
  %v1581 = vunpack.c.l.b16 %v278
  %v1582 = vunpack.c.l.b16 %v279
  %v1583 = vunpack.c.l.b16 %v280
  %v1584 = vunpack.c.l.b16 %v281
  %v1585 = vunpack.c.l.b16 %v282
  %v1586 = vunpack.c.l.b16 %v283
  %v1587 = vunpack.c.l.b16 %v284
  %v1588 = vunpack.c.l.b16 %v285
  %v1589 = vunpack.c.l.b16 %v286
  %v1590 = vunpack.c.l.b16 %v287
  %v1591 = vunpack.c.l.b16 %v288
  %v1592 = vunpack.c.l.b16 %v289
  %v1593 = vunpack.c.l.b16 %v290
  %v1594 = vunpack.c.l.b16 %v291
  %v1595 = vunpack.c.l.b16 %v292
  %v1596 = vunpack.c.l.b16 %v293
  %v1597 = vunpack.c.l.b16 %v294
  %v1598 = vunpack.c.l.b16 %v295
  %v1599 = vunpack.c.l.b16 %v296
  %v1600 = vunpack.c.l.b16 %v297
  %v1601 = vunpack.c.l.b16 %v298
  %v1602 = vunpack.c.l.b16 %v299
  %v1603 = vunpack.c.l.b16 %v300
  %v1604 = vunpack.c.l.b16 %v301
  %v1605 = vunpack.c.l.b16 %v302
  %v1606 = vunpack.c.l.b16 %v303
  %v1607 = vunpack.c.l.b16 %v304
  %v1608 = vunpack.c.l.b16 %v305
  %v1609 = vunpack.c.l.b16 %v306
  %v1610 = vunpack.c.l.b16 %v307
  %v1611 = vunpack.c.l.b16 %v308
  %v1612 = vunpack.c.l.b16 %v309
  %v1613 = vunpack.c.l.b16 %v310
  %v1614 = vunpack.c.l.b16 %v311
  %v1615 = vunpack.c.l.b16 %v312
  %v1616 = vunpack.c.l.b16 %v313
  %v1617 = vunpack.c.l.b16 %v314
  %v1618 = vunpack.c.l.b16 %v315
  %v1619 = vunpack.c.l.b16 %v316
  %v1620 = vunpack.c.l.b16 %v317
  %v1621 = vunpack.c.l.b16 %v318
  %v1622 = vunpack.c.l.b16 %v319
  %v1623 = vunpack.c.l.b16 %v320
  %v1624 = vunpack.c.l.b16 %v321
  %v1625 = vunpack.c.l.b16 %v322
  %v1626 = vunpack.c.l.b16 %v323
  %v1627 = vunpack.c.l.b16 %v324
  %v1628 = vunpack.c.l.b16 %v325
  %v1629 = vunpack.c.l.b16 %v326
  %v1630 = vunpack.c.l.b16 %v327
  %v1631 = vunpack.c.l.b16 %v328
  %v1632 = vunpack.c.l.b16 %v329
  %v1633 = vunpack.c.l.b16 %v330
  %v1634 = vunpack.c.l.b16 %v331
  %v1635 = vunpack.c.l.b16 %v332
  %v1636 = vunpack.c.l.b16 %v333
  %v1637 = vunpack.c.l.b16 %v334
  %v1638 = vunpack.c.l.b16 %v335
  %v1639 = vunpack.c.l.b16 %v336
  %v1640 = vunpack.c.l.b16 %v337
  %v1641 = vunpack.c.l.b16 %v338
  %v1642 = vunpack.c.l.b16 %v339
  %v1643 = vunpack.c.l.b16 %v340
  %v1644 = vunpack.c.l.b16 %v341
  %v1645 = vunpack.c.l.b16 %v342
  %v1646 = vunpack.c.l.b16 %v343
  %v1647 = vunpack.c.l.b16 %v344
  %v1648 = vunpack.c.l.b16 %v345
  %v1649 = vunpack.c.l.b16 %v346
  %v1650 = vunpack.c.l.b16 %v347
  %v1651 = vunpack.c.l.b16 %v348
  %v1652 = vunpack.c.l.b16 %v349
  %v1653 = vunpack.c.l.b16 %v350
  %v1654 = vunpack.c.l.b16 %v351
  %v1655 = vunpack.c.l.b16 %v352
  %v1656 = vunpack.c.l.b16 %v353
  %v1657 = vunpack.c.l.b16 %v354
  %v1658 = vunpack.c.l.b16 %v355
  %v1659 = vunpack.c.l.b16 %v356
  %v1660 = vunpack.c.l.b16 %v357
  %v1661 = vunpack.c.l.b16 %v358
  %v1662 = vunpack.c.l.b16 %v359
  %v1663 = vunpack.c.l.b16 %v360
  %v1664 = vunpack.c.l.b16 %v361
  %v1665 = vunpack.c.l.b16 %v362
  %v1666 = vunpack.c.l.b16 %v363
  %v1667 = vunpack.c.l.b16 %v364
  %v1668 = vunpack.c.l.b16 %v365
  %v1669 = vunpack.c.l.b16 %v366
  %v1670 = vunpack.c.l.b16 %v367
  %v1671 = vunpack.c.l.b16 %v368
  %v1672 = vunpack.c.l.b16 %v369
  %v1673 = vunpack.c.l.b16 %v370
  %v1674 = vunpack.c.l.b16 %v371
  %v1675 = vunpack.c.l.b16 %v372
  %v1676 = vunpack.c.l.b16 %v373
  %v1677 = vunpack.c.l.b16 %v374
  %v1678 = vunpack.c.l.b16 %v375
  %v1679 = vunpack.c.l.b16 %v376
  %v1680 = vunpack.c.l.b16 %v377
  %v1681 = vunpack.c.l.b16 %v378
  %v1682 = vunpack.c.l.b16 %v379
  %v1683 = vunpack.c.l.b16 %v380
  %v1684 = vunpack.c.l.b16 %v381
  %v1685 = vunpack.c.l.b16 %v382
  %v1686 = vunpack.c.l.b16 %v383
  %v1687 = vunpack.c.l.b16 %v384
  %v1688 = vunpack.c.l.b16 %v385
  %v1689 = vunpack.c.l.b16 %v386
  %v1690 = vunpack.c.l.b16 %v387
  %v1691 = vunpack.c.l.b16 %v388
  %v1692 = vunpack.c.l.b16 %v389
  %v1693 = vunpack.c.l.b16 %v390
  %v1694 = vunpack.c.l.b16 %v391
  %v1695 = vunpack.c.l.b16 %v392
  %v1696 = vunpack.c.l.b16 %v393
  %v1697 = vunpack.c.l.b16 %v394
  %v1698 = vunpack.c.l.b16 %v395
  %v1699 = vunpack.c.l.b16 %v396
  %v1700 = vunpack.c.l.b16 %v397
  %v1701 = vunpack.c.l.b16 %v398
  %v1702 = vunpack.c.l.b16 %v399
  %v1703 = vunpack.c.l.b16 %v400
  %v1704 = vunpack.c.l.b16 %v401
  %v1705 = vunpack.c.l.b16 %v402
  %v1706 = vunpack.c.l.b16 %v403
  %v1707 = vunpack.c.l.b16 %v404
  %v1708 = vunpack.c.l.b16 %v405
  %v1709 = vunpack.c.l.b16 %v406
  %v1710 = vunpack.c.l.b16 %v407
  %v1711 = vunpack.c.l.b16 %v408
  %v1712 = vunpack.c.l.b16 %v409
  %v1713 = vunpack.c.l.b16 %v410
  %v1714 = vunpack.c.l.b16 %v411
  %v1715 = vunpack.c.l.b16 %v412
  %v1716 = vunpack.c.l.b16 %v413
  %v1717 = vunpack.c.l.b16 %v414
  %v1718 = vunpack.c.l.b16 %v415
  %v1719 = vunpack.c.l.b16 %v416
  %v1720 = vunpack.c.l.b16 %v417
  %v1721 = vunpack.c.l.b16 %v418
  %v1722 = vunpack.c.l.b16 %v419
  %v1723 = vunpack.c.l.b16 %v420
  %v1724 = vunpack.c.l.b16 %v421
  %v1725 = vunpack.c.l.b16 %v422
  %v1726 = vunpack.c.l.b16 %v423
  %v1727 = vunpack.c.l.b16 %v424
  %v1728 = vunpack.c.l.b16 %v425
  %v1729 = vunpack.c.l.b16 %v426
  %v1730 = vunpack.c.l.b16 %v427
  %v1731 = vunpack.c.l.b16 %v428
  %v1732 = vunpack.c.l.b16 %v429
  %v1733 = vunpack.c.l.b16 %v430
  %v1734 = vunpack.c.l.b16 %v431
  %v1735 = vunpack.c.l.b16 %v432
  %v1736 = vunpack.c.l.b16 %v433
  %v1737 = vunpack.c.l.b16 %v434
  %v1738 = vunpack.c.l.b16 %v435
  %v1739 = vunpack.c.l.b16 %v436
  %v1740 = vunpack.c.l.b16 %v437
  %v1741 = vunpack.c.l.b16 %v438
  %v1742 = vunpack.c.l.b16 %v439
  %v1743 = vunpack.c.l.b16 %v440
  %v1744 = vunpack.c.l.b16 %v441
  %v1745 = vunpack.c.l.b16 %v442
  %v1746 = vunpack.c.l.b16 %v443
  %v1747 = vunpack.c.l.b16 %v444
  %v1748 = vunpack.c.l.b16 %v445
  %v1749 = vunpack.c.l.b16 %v446
  %v1750 = vpack.c.b16 %v1463, %v1462
  %v1751 = vpack.c.b16 %v1465, %v1464
  %v1752 = vpack.c.b16 %v1467, %v1466
  %v1753 = vpack.c.b16 %v1469, %v1468
  %v1754 = vpack.c.b16 %v1471, %v1470
  %v1755 = vpack.c.b16 %v1473, %v1472
  %v1756 = vpack.c.b16 %v1475, %v1474
  %v1757 = vpack.c.b16 %v1477, %v1476
  %v1758 = vpack.c.b16 %v1479, %v1478
  %v1759 = vpack.c.b16 %v1481, %v1480
  %v1760 = vpack.c.b16 %v1483, %v1482
  %v1761 = vpack.c.b16 %v1485, %v1484
  %v1762 = vpack.c.b16 %v1487, %v1486
  %v1763 = vpack.c.b16 %v1489, %v1488
  %v1764 = vpack.c.b16 %v1491, %v1490
  %v1765 = vpack.c.b16 %v1493, %v1492
  %v1766 = vpack.c.b16 %v1495, %v1494
  %v1767 = vpack.c.b16 %v1497, %v1496
  %v1768 = vpack.c.b16 %v1499, %v1498
  %v1769 = vpack.c.b16 %v1501, %v1500
  %v1770 = vpack.c.b16 %v1503, %v1502
  %v1771 = vpack.c.b16 %v1505, %v1504
  %v1772 = vpack.c.b16 %v1507, %v1506
  %v1773 = vpack.c.b16 %v1509, %v1508
  %v1774 = vpack.c.b16 %v1511, %v1510
  %v1775 = vpack.c.b16 %v1513, %v1512
  %v1776 = vpack.c.b16 %v1515, %v1514
  %v1777 = vpack.c.b16 %v1517, %v1516
  %v1778 = vpack.c.b16 %v1519, %v1518
  %v1779 = vpack.c.b16 %v1521, %v1520
  %v1780 = vpack.c.b16 %v1523, %v1522
  %v1781 = vpack.c.b16 %v1525, %v1524
  %v1782 = vpack.c.b16 %v1527, %v1526
  %v1783 = vpack.c.b16 %v1529, %v1528
  %v1784 = vpack.c.b16 %v1531, %v1530
  %v1785 = vpack.c.b16 %v1533, %v1532
  %v1786 = vpack.c.b16 %v1535, %v1534
  %v1787 = vpack.c.b16 %v1537, %v1536
  %v1788 = vpack.c.b16 %v1539, %v1538
  %v1789 = vpack.c.b16 %v1541, %v1540
  %v1790 = vpack.c.b16 %v1543, %v1542
  %v1791 = vpack.c.b16 %v1545, %v1544
  %v1792 = vpack.c.b16 %v1547, %v1546
  %v1793 = vpack.c.b16 %v1549, %v1548
  %v1794 = vpack.c.b16 %v1551, %v1550
  %v1795 = vpack.c.b16 %v1553, %v1552
  %v1796 = vpack.c.b16 %v1555, %v1554
  %v1797 = vpack.c.b16 %v1557, %v1556
  %v1798 = vpack.c.b16 %v1559, %v1558
  %v1799 = vpack.c.b16 %v1561, %v1560
  %v1800 = vpack.c.b16 %v1563, %v1562
  %v1801 = vpack.c.b16 %v1565, %v1564
  %v1802 = vpack.c.b16 %v1567, %v1566
  %v1803 = vpack.c.b16 %v1569, %v1568
  %v1804 = vpack.c.b16 %v1571, %v1570
  %v1805 = vpack.c.b16 %v1573, %v1572
  %v1806 = vpack.c.b16 %v1575, %v1574
  %v1807 = vpack.c.b16 %v1577, %v1576
  %v1808 = vpack.c.b16 %v1579, %v1578
  %v1809 = vpack.c.b16 %v1581, %v1580
  %v1810 = vpack.c.b16 %v1583, %v1582
  %v1811 = vpack.c.b16 %v1585, %v1584
  %v1812 = vpack.c.b16 %v1587, %v1586
  %v1813 = vpack.c.b16 %v1589, %v1588
  %v1814 = vpack.c.b16 %v1591, %v1590
  %v1815 = vpack.c.b16 %v1593, %v1592
  %v1816 = vpack.c.b16 %v1595, %v1594
  %v1817 = vpack.c.b16 %v1597, %v1596
  %v1818 = vpack.c.b16 %v1599, %v1598
  %v1819 = vpack.c.b16 %v1601, %v1600
  %v1820 = vpack.c.b16 %v1603, %v1602
  %v1821 = vpack.c.b16 %v1605, %v1604
  %v1822 = vpack.c.b16 %v1607, %v1606
  %v1823 = vpack.c.b16 %v1609, %v1608
  %v1824 = vpack.c.b16 %v1611, %v1610
  %v1825 = vpack.c.b16 %v1613, %v1612
  %v1826 = vpack.c.b16 %v1615, %v1614
  %v1827 = vpack.c.b16 %v1617, %v1616
  %v1828 = vpack.c.b16 %v1619, %v1618
  %v1829 = vpack.c.b16 %v1621, %v1620
  %v1830 = vpack.c.b16 %v1623, %v1622
  %v1831 = vpack.c.b16 %v1625, %v1624
  %v1832 = vpack.c.b16 %v1627, %v1626
  %v1833 = vpack.c.b16 %v1629, %v1628
  %v1834 = vpack.c.b16 %v1631, %v1630
  %v1835 = vpack.c.b16 %v1633, %v1632
  %v1836 = vpack.c.b16 %v1635, %v1634
  %v1837 = vpack.c.b16 %v1637, %v1636
  %v1838 = vpack.c.b16 %v1639, %v1638
  %v1839 = vpack.c.b16 %v1641, %v1640
  %v1840 = vpack.c.b16 %v1643, %v1642
  %v1841 = vpack.c.b16 %v1645, %v1644
  %v1842 = vpack.c.b16 %v1647, %v1646
  %v1843 = vpack.c.b16 %v1649, %v1648
  %v1844 = vpack.c.b16 %v1651, %v1650
  %v1845 = vpack.c.b16 %v1653, %v1652
  %v1846 = vpack.c.b16 %v1655, %v1654
  %v1847 = vpack.c.b16 %v1657, %v1656
  %v1848 = vpack.c.b16 %v1659, %v1658
  %v1849 = vpack.c.b16 %v1661, %v1660
  %v1850 = vpack.c.b16 %v1663, %v1662
  %v1851 = vpack.c.b16 %v1665, %v1664
  %v1852 = vpack.c.b16 %v1667, %v1666
  %v1853 = vpack.c.b16 %v1669, %v1668
  %v1854 = vpack.c.b16 %v1671, %v1670
  %v1855 = vpack.c.b16 %v1673, %v1672
  %v1856 = vpack.c.b16 %v1675, %v1674
  %v1857 = vpack.c.b16 %v1677, %v1676
  %v1858 = vpack.c.b16 %v1679, %v1678
  %v1859 = vpack.c.b16 %v1681, %v1680
  %v1860 = vpack.c.b16 %v1683, %v1682
  %v1861 = vpack.c.b16 %v1685, %v1684
  %v1862 = vpack.c.b16 %v1687, %v1686
  %v1863 = vpack.c.b16 %v1689, %v1688
  %v1864 = vpack.c.b16 %v1691, %v1690
  %v1865 = vpack.c.b16 %v1693, %v1692
  %v1866 = vpack.c.b16 %v1695, %v1694
  %v1867 = vpack.c.b16 %v1697, %v1696
  %v1868 = vpack.c.b16 %v1699, %v1698
  %v1869 = vpack.c.b16 %v1701, %v1700
  %v1870 = vpack.c.b16 %v1703, %v1702
  %v1871 = vpack.c.b16 %v1705, %v1704
  %v1872 = vpack.c.b16 %v1707, %v1706
  %v1873 = vpack.c.b16 %v1709, %v1708
  %v1874 = vpack.c.b16 %v1711, %v1710
  %v1875 = vpack.c.b16 %v1713, %v1712
  %v1876 = vpack.c.b16 %v1715, %v1714
  %v1877 = vpack.c.b16 %v1717, %v1716
  %v1878 = vpack.c.b16 %v1719, %v1718
  %v1879 = vpack.c.b16 %v1721, %v1720
  %v1880 = vpack.c.b16 %v1723, %v1722
  %v1881 = vpack.c.b16 %v1725, %v1724
  %v1882 = vpack.c.b16 %v1727, %v1726
  %v1883 = vpack.c.b16 %v1729, %v1728
  %v1884 = vpack.c.b16 %v1731, %v1730
  %v1885 = vpack.c.b16 %v1733, %v1732
  %v1886 = vpack.c.b16 %v1735, %v1734
  %v1887 = vpack.c.b16 %v1737, %v1736
  %v1888 = vpack.c.b16 %v1739, %v1738
  %v1889 = vpack.c.b16 %v1741, %v1740
  %v1890 = vpack.c.b16 %v1743, %v1742
  %v1891 = vpack.c.b16 %v1745, %v1744
  %v1892 = vpack.c.b16 %v1747, %v1746
  %v1893 = vpack.c.b16 %v1749, %v1748
  %2038 = vmatprep.subr.bf16.mxu0 0
  %2039 = vmatpush1.bf16.msra.mxu0 %v1750
  %2040 = vmatprep.subr.bf16.mxu0 0
  %2041 = vmatpush1.bf16.msra.mxu0 %v1751
  %2042 = vmatprep.subr.bf16.mxu0 0
  %2043 = vmatpush1.bf16.msra.mxu0 %v1752
  %2044 = vmatprep.subr.bf16.mxu0 0
  %2045 = vmatpush1.bf16.msra.mxu0 %v1753
  %2046 = vmatprep.subr.bf16.mxu0 0
  %2047 = vmatpush1.bf16.msra.mxu0 %v1754
  %2048 = vmatprep.subr.bf16.mxu0 0
  %2049 = vmatpush1.bf16.msra.mxu0 %v1755
  %2050 = vmatprep.subr.bf16.mxu0 0
  %2051 = vmatpush1.bf16.msra.mxu0 %v1756
  %2052 = vmatprep.subr.bf16.mxu0 0
  %2053 = vmatpush1.bf16.msra.mxu0 %v1757
  %2054 = vmatprep.subr.bf16.mxu0 0
  %2055 = vmatpush1.bf16.msra.mxu0 %v1758
  %2056 = vmatprep.subr.bf16.mxu0 0
  %2057 = vmatpush1.bf16.msra.mxu0 %v1759
  %2058 = vmatprep.subr.bf16.mxu0 0
  %2059 = vmatpush1.bf16.msra.mxu0 %v1760
  %2060 = vmatprep.subr.bf16.mxu0 0
  %2061 = vmatpush1.bf16.msra.mxu0 %v1761
  %2062 = vmatprep.subr.bf16.mxu0 0
  %2063 = vmatpush1.bf16.msra.mxu0 %v1762
  %2064 = vmatprep.subr.bf16.mxu0 0
  %2065 = vmatpush1.bf16.msra.mxu0 %v1763
  %2066 = vmatprep.subr.bf16.mxu0 0
  %2067 = vmatpush1.bf16.msra.mxu0 %v1764
  %2068 = vmatprep.subr.bf16.mxu0 0
  %2069 = vmatpush1.bf16.msra.mxu0 %v1765
  %2070 = vmatprep.mubr.bf16.mxu0 %v887
  %2071 = vmatmul.mubr.bf16.gmra.mrb[0].mxu0 %v886
  %v2072 = vpop.f32.mrb[0].mxu0
  %v2073 = vadd.f32 %v452, %v2072
  %v2074 = vpop.f32.mrb[0].mxu0
  %v2075 = vpop.f32.mrb[0].mxu0
  %v2076 = vadd.f32 %v452, %v2075
  %v2077 = vpop.f32.mrb[0].mxu0
  %2078 = vmatprep.mubr.bf16.mxu0 %v905
  %2079 = vmatmul.mubr.bf16.gmra.mrb[0].mxu0 %v904
  %v2080 = vpop.f32.mrb[0].mxu0
  %v2081 = vadd.f32 %v452, %v2080
  %v2082 = vpop.f32.mrb[0].mxu0
  %v2083 = vpop.f32.mrb[0].mxu0
  %v2084 = vadd.f32 %v452, %v2083
  %v2085 = vpop.f32.mrb[0].mxu0
  %2086 = vmatprep.mubr.bf16.mxu0 %v923
  %2087 = vmatmul.mubr.bf16.gmra.mrb[0].mxu0 %v922
  %v2088 = vpop.f32.mrb[0].mxu0
  %v2089 = vadd.f32 %v452, %v2088
  %v2090 = vpop.f32.mrb[0].mxu0
  %v2091 = vpop.f32.mrb[0].mxu0
  %v2092 = vadd.f32 %v452, %v2091
  %v2093 = vpop.f32.mrb[0].mxu0
  %2094 = vmatprep.mubr.bf16.mxu0 %v941
  %2095 = vmatmul.mubr.bf16.gmra.mrb[0].mxu0 %v940
  %v2096 = vpop.f32.mrb[0].mxu0
  %v2097 = vadd.f32 %v452, %v2096
  %v2098 = vpop.f32.mrb[0].mxu0
  %v2099 = vpop.f32.mrb[0].mxu0
  %v2100 = vadd.f32 %v452, %v2099
  %v2101 = vpop.f32.mrb[0].mxu0
  %2102 = vmatprep.mubr.bf16.mxu0 %v959
  %2103 = vmatmul.mubr.bf16.gmra.mrb[0].mxu0 %v958
  %v2104 = vpop.f32.mrb[0].mxu0
  %v2105 = vadd.f32 %v452, %v2104
  %v2106 = vpop.f32.mrb[0].mxu0
  %v2107 = vpop.f32.mrb[0].mxu0
  %v2108 = vadd.f32 %v452, %v2107
  %v2109 = vpop.f32.mrb[0].mxu0
  %2110 = vmatprep.mubr.bf16.mxu0 %v977
  %2111 = vmatmul.mubr.bf16.gmra.mrb[0].mxu0 %v976
  %v2112 = vpop.f32.mrb[0].mxu0
  %v2113 = vadd.f32 %v452, %v2112
  %v2114 = vpop.f32.mrb[0].mxu0
  %v2115 = vpop.f32.mrb[0].mxu0
  %v2116 = vadd.f32 %v452, %v2115
  %v2117 = vpop.f32.mrb[0].mxu0
  %2118 = vmatprep.mubr.bf16.mxu0 %v995
  %2119 = vmatmul.mubr.bf16.gmra.mrb[0].mxu0 %v994
  %v2120 = vpop.f32.mrb[0].mxu0
  %v2121 = vadd.f32 %v452, %v2120
  %v2122 = vpop.f32.mrb[0].mxu0
  %v2123 = vpop.f32.mrb[0].mxu0
  %v2124 = vadd.f32 %v452, %v2123
  %v2125 = vpop.f32.mrb[0].mxu0
  %2126 = vmatprep.mubr.bf16.mxu0 %v1013
  %2127 = vmatmul.mubr.bf16.gmra.mrb[0].mxu0 %v1012
  %v2128 = vpop.f32.mrb[0].mxu0
  %v2129 = vadd.f32 %v452, %v2128
  %v2130 = vpop.f32.mrb[0].mxu0
  %v2131 = vpop.f32.mrb[0].mxu0
  %v2132 = vadd.f32 %v452, %v2131
  %v2133 = vpop.f32.mrb[0].mxu0
  %2134 = vdwg.mxu0
  %2135 = vmatprep.subr.bf16.mxu0 0
  %2136 = vmatpush1.bf16.msra.mxu0 %v1766
  %2137 = vmatprep.subr.bf16.mxu0 0
  %2138 = vmatpush1.bf16.msra.mxu0 %v1767
  %2139 = vmatprep.subr.bf16.mxu0 0
  %2140 = vmatpush1.bf16.msra.mxu0 %v1768
  %2141 = vmatprep.subr.bf16.mxu0 0
  %2142 = vmatpush1.bf16.msra.mxu0 %v1769
  %2143 = vmatprep.subr.bf16.mxu0 0
  %2144 = vmatpush1.bf16.msra.mxu0 %v1770
  %2145 = vmatprep.subr.bf16.mxu0 0
  %2146 = vmatpush1.bf16.msra.mxu0 %v1771
  %2147 = vmatprep.subr.bf16.mxu0 0
  %2148 = vmatpush1.bf16.msra.mxu0 %v1772
  %2149 = vmatprep.subr.bf16.mxu0 0
  %2150 = vmatpush1.bf16.msra.mxu0 %v1773
  %2151 = vmatprep.subr.bf16.mxu0 0
  %2152 = vmatpush1.bf16.msra.mxu0 %v1774
  %2153 = vmatprep.subr.bf16.mxu0 0
  %2154 = vmatpush1.bf16.msra.mxu0 %v1775
  %2155 = vmatprep.subr.bf16.mxu0 0
  %2156 = vmatpush1.bf16.msra.mxu0 %v1776
  %2157 = vmatprep.subr.bf16.mxu0 0
  %2158 = vmatpush1.bf16.msra.mxu0 %v1777
  %2159 = vmatprep.subr.bf16.mxu0 0
  %2160 = vmatpush1.bf16.msra.mxu0 %v1778
  %2161 = vmatprep.subr.bf16.mxu0 0
  %2162 = vmatpush1.bf16.msra.mxu0 %v1779
  %2163 = vmatprep.subr.bf16.mxu0 0
  %2164 = vmatpush1.bf16.msra.mxu0 %v1780
  %2165 = vmatprep.subr.bf16.mxu0 0
  %2166 = vmatpush1.bf16.msra.mxu0 %v1781
  %2167 = vmatprep.mubr.bf16.mxu0 %v889
  %2168 = vmatmul.mubr.bf16.gmra.mrb[0].mxu0 %v888
  %v2169 = vpop.f32.mrb[0].mxu0
  %v2170 = vadd.f32 %v2073, %v2169
  %v2171 = vpop.f32.mrb[0].mxu0
  %v2172 = vpop.f32.mrb[0].mxu0
  %v2173 = vadd.f32 %v2076, %v2172
  %v2174 = vpop.f32.mrb[0].mxu0
  %2175 = vmatprep.mubr.bf16.mxu0 %v907
  %2176 = vmatmul.mubr.bf16.gmra.mrb[0].mxu0 %v906
  %v2177 = vpop.f32.mrb[0].mxu0
  %v2178 = vadd.f32 %v2081, %v2177
  %v2179 = vpop.f32.mrb[0].mxu0
  %v2180 = vpop.f32.mrb[0].mxu0
  %v2181 = vadd.f32 %v2084, %v2180
  %v2182 = vpop.f32.mrb[0].mxu0
  %2183 = vmatprep.mubr.bf16.mxu0 %v925
  %2184 = vmatmul.mubr.bf16.gmra.mrb[0].mxu0 %v924
  %v2185 = vpop.f32.mrb[0].mxu0
  %v2186 = vadd.f32 %v2089, %v2185
  %v2187 = vpop.f32.mrb[0].mxu0
  %v2188 = vpop.f32.mrb[0].mxu0
  %v2189 = vadd.f32 %v2092, %v2188
  %v2190 = vpop.f32.mrb[0].mxu0
  %2191 = vmatprep.mubr.bf16.mxu0 %v943
  %2192 = vmatmul.mubr.bf16.gmra.mrb[0].mxu0 %v942
  %v2193 = vpop.f32.mrb[0].mxu0
  %v2194 = vadd.f32 %v2097, %v2193
  %v2195 = vpop.f32.mrb[0].mxu0
  %v2196 = vpop.f32.mrb[0].mxu0
  %v2197 = vadd.f32 %v2100, %v2196
  %v2198 = vpop.f32.mrb[0].mxu0
  %2199 = vmatprep.mubr.bf16.mxu0 %v961
  %2200 = vmatmul.mubr.bf16.gmra.mrb[0].mxu0 %v960
  %v2201 = vpop.f32.mrb[0].mxu0
  %v2202 = vadd.f32 %v2105, %v2201
  %v2203 = vpop.f32.mrb[0].mxu0
  %v2204 = vpop.f32.mrb[0].mxu0
  %v2205 = vadd.f32 %v2108, %v2204
  %v2206 = vpop.f32.mrb[0].mxu0
  %2207 = vmatprep.mubr.bf16.mxu0 %v979
  %2208 = vmatmul.mubr.bf16.gmra.mrb[0].mxu0 %v978
  %v2209 = vpop.f32.mrb[0].mxu0
  %v2210 = vadd.f32 %v2113, %v2209
  %v2211 = vpop.f32.mrb[0].mxu0
  %v2212 = vpop.f32.mrb[0].mxu0
  %v2213 = vadd.f32 %v2116, %v2212
  %v2214 = vpop.f32.mrb[0].mxu0
  %2215 = vmatprep.mubr.bf16.mxu0 %v997
  %2216 = vmatmul.mubr.bf16.gmra.mrb[0].mxu0 %v996
  %v2217 = vpop.f32.mrb[0].mxu0
  %v2218 = vadd.f32 %v2121, %v2217
  %v2219 = vpop.f32.mrb[0].mxu0
  %v2220 = vpop.f32.mrb[0].mxu0
  %v2221 = vadd.f32 %v2124, %v2220
  %v2222 = vpop.f32.mrb[0].mxu0
  %2223 = vmatprep.mubr.bf16.mxu0 %v1015
  %2224 = vmatmul.mubr.bf16.gmra.mrb[0].mxu0 %v1014
  %v2225 = vpop.f32.mrb[0].mxu0
  %v2226 = vadd.f32 %v2129, %v2225
  %v2227 = vpop.f32.mrb[0].mxu0
  %v2228 = vpop.f32.mrb[0].mxu0
  %v2229 = vadd.f32 %v2132, %v2228
  %v2230 = vpop.f32.mrb[0].mxu0
  %2231 = vdwg.mxu0
  %2232 = vmatprep.subr.bf16.mxu0 0
  %2233 = vmatpush1.bf16.msra.mxu0 %v1782
  %2234 = vmatprep.subr.bf16.mxu0 0
  %2235 = vmatpush1.bf16.msra.mxu0 %v1783
  %2236 = vmatprep.subr.bf16.mxu0 0
  %2237 = vmatpush1.bf16.msra.mxu0 %v1784
  %2238 = vmatprep.subr.bf16.mxu0 0
  %2239 = vmatpush1.bf16.msra.mxu0 %v1785
  %2240 = vmatprep.subr.bf16.mxu0 0
  %2241 = vmatpush1.bf16.msra.mxu0 %v1786
  %2242 = vmatprep.subr.bf16.mxu0 0
  %2243 = vmatpush1.bf16.msra.mxu0 %v1787
  %2244 = vmatprep.subr.bf16.mxu0 0
  %2245 = vmatpush1.bf16.msra.mxu0 %v1788
  %2246 = vmatprep.subr.bf16.mxu0 0
  %2247 = vmatpush1.bf16.msra.mxu0 %v1789
  %2248 = vmatprep.subr.bf16.mxu0 0
  %2249 = vmatpush1.bf16.msra.mxu0 %v1790
  %2250 = vmatprep.subr.bf16.mxu0 0
  %2251 = vmatpush1.bf16.msra.mxu0 %v1791
  %2252 = vmatprep.subr.bf16.mxu0 0
  %2253 = vmatpush1.bf16.msra.mxu0 %v1792
  %2254 = vmatprep.subr.bf16.mxu0 0
  %2255 = vmatpush1.bf16.msra.mxu0 %v1793
  %2256 = vmatprep.subr.bf16.mxu0 0
  %2257 = vmatpush1.bf16.msra.mxu0 %v1794
  %2258 = vmatprep.subr.bf16.mxu0 0
  %2259 = vmatpush1.bf16.msra.mxu0 %v1795
  %2260 = vmatprep.subr.bf16.mxu0 0
  %2261 = vmatpush1.bf16.msra.mxu0 %v1796
  %2262 = vmatprep.subr.bf16.mxu0 0
  %2263 = vmatpush1.bf16.msra.mxu0 %v1797
  %2264 = vmatprep.mubr.bf16.mxu0 %v891
  %2265 = vmatmul.mubr.bf16.gmra.mrb[0].mxu0 %v890
  %v2266 = vpop.f32.mrb[0].mxu0
  %v2267 = vadd.f32 %v2170, %v2266
  %v2268 = vpop.f32.mrb[0].mxu0
  %v2269 = vpop.f32.mrb[0].mxu0
  %v2270 = vadd.f32 %v2173, %v2269
  %v2271 = vpop.f32.mrb[0].mxu0
  %2272 = vmatprep.mubr.bf16.mxu0 %v909
  %2273 = vmatmul.mubr.bf16.gmra.mrb[0].mxu0 %v908
  %v2274 = vpop.f32.mrb[0].mxu0
  %v2275 = vadd.f32 %v2178, %v2274
  %v2276 = vpop.f32.mrb[0].mxu0
  %v2277 = vpop.f32.mrb[0].mxu0
  %v2278 = vadd.f32 %v2181, %v2277
  %v2279 = vpop.f32.mrb[0].mxu0
  %2280 = vmatprep.mubr.bf16.mxu0 %v927
  %2281 = vmatmul.mubr.bf16.gmra.mrb[0].mxu0 %v926
  %v2282 = vpop.f32.mrb[0].mxu0
  %v2283 = vadd.f32 %v2186, %v2282
  %v2284 = vpop.f32.mrb[0].mxu0
  %v2285 = vpop.f32.mrb[0].mxu0
  %v2286 = vadd.f32 %v2189, %v2285
  %v2287 = vpop.f32.mrb[0].mxu0
  %2288 = vmatprep.mubr.bf16.mxu0 %v945
  %2289 = vmatmul.mubr.bf16.gmra.mrb[0].mxu0 %v944
  %v2290 = vpop.f32.mrb[0].mxu0
  %v2291 = vadd.f32 %v2194, %v2290
  %v2292 = vpop.f32.mrb[0].mxu0
  %v2293 = vpop.f32.mrb[0].mxu0
  %v2294 = vadd.f32 %v2197, %v2293
  %v2295 = vpop.f32.mrb[0].mxu0
  %2296 = vmatprep.mubr.bf16.mxu0 %v963
  %2297 = vmatmul.mubr.bf16.gmra.mrb[0].mxu0 %v962
  %v2298 = vpop.f32.mrb[0].mxu0
  %v2299 = vadd.f32 %v2202, %v2298
  %v2300 = vpop.f32.mrb[0].mxu0
  %v2301 = vpop.f32.mrb[0].mxu0
  %v2302 = vadd.f32 %v2205, %v2301
  %v2303 = vpop.f32.mrb[0].mxu0
  %2304 = vmatprep.mubr.bf16.mxu0 %v981
  %2305 = vmatmul.mubr.bf16.gmra.mrb[0].mxu0 %v980
  %v2306 = vpop.f32.mrb[0].mxu0
  %v2307 = vadd.f32 %v2210, %v2306
  %v2308 = vpop.f32.mrb[0].mxu0
  %v2309 = vpop.f32.mrb[0].mxu0
  %v2310 = vadd.f32 %v2213, %v2309
  %v2311 = vpop.f32.mrb[0].mxu0
  %2312 = vmatprep.mubr.bf16.mxu0 %v999
  %2313 = vmatmul.mubr.bf16.gmra.mrb[0].mxu0 %v998
  %v2314 = vpop.f32.mrb[0].mxu0
  %v2315 = vadd.f32 %v2218, %v2314
  %v2316 = vpop.f32.mrb[0].mxu0
  %v2317 = vpop.f32.mrb[0].mxu0
  %v2318 = vadd.f32 %v2221, %v2317
  %v2319 = vpop.f32.mrb[0].mxu0
  %2320 = vmatprep.mubr.bf16.mxu0 %v1017
  %2321 = vmatmul.mubr.bf16.gmra.mrb[0].mxu0 %v1016
  %v2322 = vpop.f32.mrb[0].mxu0
  %v2323 = vadd.f32 %v2226, %v2322
  %v2324 = vpop.f32.mrb[0].mxu0
  %v2325 = vpop.f32.mrb[0].mxu0
  %v2326 = vadd.f32 %v2229, %v2325
  %v2327 = vpop.f32.mrb[0].mxu0
  %2328 = vdwg.mxu0
  %2329 = vmatprep.subr.bf16.mxu0 0
  %2330 = vmatpush1.bf16.msra.mxu0 %v1798
  %2331 = vmatprep.subr.bf16.mxu0 0
  %2332 = vmatpush1.bf16.msra.mxu0 %v1799
  %2333 = vmatprep.subr.bf16.mxu0 0
  %2334 = vmatpush1.bf16.msra.mxu0 %v1800
  %2335 = vmatprep.subr.bf16.mxu0 0
  %2336 = vmatpush1.bf16.msra.mxu0 %v1801
  %2337 = vmatprep.subr.bf16.mxu0 0
  %2338 = vmatpush1.bf16.msra.mxu0 %v1802
  %2339 = vmatprep.subr.bf16.mxu0 0
  %2340 = vmatpush1.bf16.msra.mxu0 %v1803
  %2341 = vmatprep.subr.bf16.mxu0 0
  %2342 = vmatpush1.bf16.msra.mxu0 %v1804
  %2343 = vmatprep.subr.bf16.mxu0 0
  %2344 = vmatpush1.bf16.msra.mxu0 %v1805
  %2345 = vmatprep.subr.bf16.mxu0 0
  %2346 = vmatpush1.bf16.msra.mxu0 %v1806
  %2347 = vmatprep.subr.bf16.mxu0 0
  %2348 = vmatpush1.bf16.msra.mxu0 %v1807
  %2349 = vmatprep.subr.bf16.mxu0 0
  %2350 = vmatpush1.bf16.msra.mxu0 %v1808
  %2351 = vmatprep.subr.bf16.mxu0 0
  %2352 = vmatpush1.bf16.msra.mxu0 %v1809
  %2353 = vmatprep.subr.bf16.mxu0 0
  %2354 = vmatpush1.bf16.msra.mxu0 %v1810
  %2355 = vmatprep.subr.bf16.mxu0 0
  %2356 = vmatpush1.bf16.msra.mxu0 %v1811
  %2357 = vmatprep.subr.bf16.mxu0 0
  %2358 = vmatpush1.bf16.msra.mxu0 %v1812
  %2359 = vmatprep.subr.bf16.mxu0 0
  %2360 = vmatpush1.bf16.msra.mxu0 %v1813
  %2361 = vmatprep.mubr.bf16.mxu0 %v893
  %2362 = vmatmul.mubr.bf16.gmra.mrb[0].mxu0 %v892
  %v2363 = vpop.f32.mrb[0].mxu0
  %v2364 = vadd.f32 %v2267, %v2363
  %v2365 = vpop.f32.mrb[0].mxu0
  %v2366 = vpop.f32.mrb[0].mxu0
  %v2367 = vadd.f32 %v2270, %v2366
  %v2368 = vpop.f32.mrb[0].mxu0
  %2369 = vmatprep.mubr.bf16.mxu0 %v911
  %2370 = vmatmul.mubr.bf16.gmra.mrb[0].mxu0 %v910
  %v2371 = vpop.f32.mrb[0].mxu0
  %v2372 = vadd.f32 %v2275, %v2371
  %v2373 = vpop.f32.mrb[0].mxu0
  %v2374 = vpop.f32.mrb[0].mxu0
  %v2375 = vadd.f32 %v2278, %v2374
  %v2376 = vpop.f32.mrb[0].mxu0
  %2377 = vmatprep.mubr.bf16.mxu0 %v929
  %2378 = vmatmul.mubr.bf16.gmra.mrb[0].mxu0 %v928
  %v2379 = vpop.f32.mrb[0].mxu0
  %v2380 = vadd.f32 %v2283, %v2379
  %v2381 = vpop.f32.mrb[0].mxu0
  %v2382 = vpop.f32.mrb[0].mxu0
  %v2383 = vadd.f32 %v2286, %v2382
  %v2384 = vpop.f32.mrb[0].mxu0
  %2385 = vmatprep.mubr.bf16.mxu0 %v947
  %2386 = vmatmul.mubr.bf16.gmra.mrb[0].mxu0 %v946
  %v2387 = vpop.f32.mrb[0].mxu0
  %v2388 = vadd.f32 %v2291, %v2387
  %v2389 = vpop.f32.mrb[0].mxu0
  %v2390 = vpop.f32.mrb[0].mxu0
  %v2391 = vadd.f32 %v2294, %v2390
  %v2392 = vpop.f32.mrb[0].mxu0
  %2393 = vmatprep.mubr.bf16.mxu0 %v965
  %2394 = vmatmul.mubr.bf16.gmra.mrb[0].mxu0 %v964
  %v2395 = vpop.f32.mrb[0].mxu0
  %v2396 = vadd.f32 %v2299, %v2395
  %v2397 = vpop.f32.mrb[0].mxu0
  %v2398 = vpop.f32.mrb[0].mxu0
  %v2399 = vadd.f32 %v2302, %v2398
  %v2400 = vpop.f32.mrb[0].mxu0
  %2401 = vmatprep.mubr.bf16.mxu0 %v983
  %2402 = vmatmul.mubr.bf16.gmra.mrb[0].mxu0 %v982
  %v2403 = vpop.f32.mrb[0].mxu0
  %v2404 = vadd.f32 %v2307, %v2403
  %v2405 = vpop.f32.mrb[0].mxu0
  %v2406 = vpop.f32.mrb[0].mxu0
  %v2407 = vadd.f32 %v2310, %v2406
  %v2408 = vpop.f32.mrb[0].mxu0
  %2409 = vmatprep.mubr.bf16.mxu0 %v1001
  %2410 = vmatmul.mubr.bf16.gmra.mrb[0].mxu0 %v1000
  %v2411 = vpop.f32.mrb[0].mxu0
  %v2412 = vadd.f32 %v2315, %v2411
  %v2413 = vpop.f32.mrb[0].mxu0
  %v2414 = vpop.f32.mrb[0].mxu0
  %v2415 = vadd.f32 %v2318, %v2414
  %v2416 = vpop.f32.mrb[0].mxu0
  %2417 = vmatprep.mubr.bf16.mxu0 %v1019
  %2418 = vmatmul.mubr.bf16.gmra.mrb[0].mxu0 %v1018
  %v2419 = vpop.f32.mrb[0].mxu0
  %v2420 = vadd.f32 %v2323, %v2419
  %v2421 = vpop.f32.mrb[0].mxu0
  %v2422 = vpop.f32.mrb[0].mxu0
  %v2423 = vadd.f32 %v2326, %v2422
  %v2424 = vpop.f32.mrb[0].mxu0
  %2425 = vdwg.mxu0
  %2426 = vmatprep.subr.bf16.mxu0 0
  %2427 = vmatpush1.bf16.msra.mxu0 %v1814
  %2428 = vmatprep.subr.bf16.mxu0 0
  %2429 = vmatpush1.bf16.msra.mxu0 %v1815
  %2430 = vmatprep.subr.bf16.mxu0 0
  %2431 = vmatpush1.bf16.msra.mxu0 %v1816
  %2432 = vmatprep.subr.bf16.mxu0 0
  %2433 = vmatpush1.bf16.msra.mxu0 %v1817
  %2434 = vmatprep.subr.bf16.mxu0 0
  %2435 = vmatpush1.bf16.msra.mxu0 %v1818
  %2436 = vmatprep.subr.bf16.mxu0 0
  %2437 = vmatpush1.bf16.msra.mxu0 %v1819
  %2438 = vmatprep.subr.bf16.mxu0 0
  %2439 = vmatpush1.bf16.msra.mxu0 %v1820
  %2440 = vmatprep.subr.bf16.mxu0 0
  %2441 = vmatpush1.bf16.msra.mxu0 %v1821
  %2442 = vmatprep.subr.bf16.mxu0 0
  %2443 = vmatpush1.bf16.msra.mxu0 %v1822
  %2444 = vmatprep.subr.bf16.mxu0 0
  %2445 = vmatpush1.bf16.msra.mxu0 %v1823
  %2446 = vmatprep.subr.bf16.mxu0 0
  %2447 = vmatpush1.bf16.msra.mxu0 %v1824
  %2448 = vmatprep.subr.bf16.mxu0 0
  %2449 = vmatpush1.bf16.msra.mxu0 %v1825
  %2450 = vmatprep.subr.bf16.mxu0 0
  %2451 = vmatpush1.bf16.msra.mxu0 %v1826
  %2452 = vmatprep.subr.bf16.mxu0 0
  %2453 = vmatpush1.bf16.msra.mxu0 %v1827
  %2454 = vmatprep.subr.bf16.mxu0 0
  %2455 = vmatpush1.bf16.msra.mxu0 %v1828
  %2456 = vmatprep.subr.bf16.mxu0 0
  %2457 = vmatpush1.bf16.msra.mxu0 %v1829
  %2458 = vmatprep.mubr.bf16.mxu0 %v895
  %2459 = vmatmul.mubr.bf16.gmra.mrb[0].mxu0 %v894
  %v2460 = vpop.f32.mrb[0].mxu0
  %v2461 = vadd.f32 %v2364, %v2460
  %v2462 = vpop.f32.mrb[0].mxu0
  %v2463 = vpop.f32.mrb[0].mxu0
  %v2464 = vadd.f32 %v2367, %v2463
  %v2465 = vpop.f32.mrb[0].mxu0
  %2466 = vmatprep.mubr.bf16.mxu0 %v913
  %2467 = vmatmul.mubr.bf16.gmra.mrb[0].mxu0 %v912
  %v2468 = vpop.f32.mrb[0].mxu0
  %v2469 = vadd.f32 %v2372, %v2468
  %v2470 = vpop.f32.mrb[0].mxu0
  %v2471 = vpop.f32.mrb[0].mxu0
  %v2472 = vadd.f32 %v2375, %v2471
  %v2473 = vpop.f32.mrb[0].mxu0
  %2474 = vmatprep.mubr.bf16.mxu0 %v931
  %2475 = vmatmul.mubr.bf16.gmra.mrb[0].mxu0 %v930
  %v2476 = vpop.f32.mrb[0].mxu0
  %v2477 = vadd.f32 %v2380, %v2476
  %v2478 = vpop.f32.mrb[0].mxu0
  %v2479 = vpop.f32.mrb[0].mxu0
  %v2480 = vadd.f32 %v2383, %v2479
  %v2481 = vpop.f32.mrb[0].mxu0
  %2482 = vmatprep.mubr.bf16.mxu0 %v949
  %2483 = vmatmul.mubr.bf16.gmra.mrb[0].mxu0 %v948
  %v2484 = vpop.f32.mrb[0].mxu0
  %v2485 = vadd.f32 %v2388, %v2484
  %v2486 = vpop.f32.mrb[0].mxu0
  %v2487 = vpop.f32.mrb[0].mxu0
  %v2488 = vadd.f32 %v2391, %v2487
  %v2489 = vpop.f32.mrb[0].mxu0
  %2490 = vmatprep.mubr.bf16.mxu0 %v967
  %2491 = vmatmul.mubr.bf16.gmra.mrb[0].mxu0 %v966
  %v2492 = vpop.f32.mrb[0].mxu0
  %v2493 = vadd.f32 %v2396, %v2492
  %v2494 = vpop.f32.mrb[0].mxu0
  %v2495 = vpop.f32.mrb[0].mxu0
  %v2496 = vadd.f32 %v2399, %v2495
  %v2497 = vpop.f32.mrb[0].mxu0
  %2498 = vmatprep.mubr.bf16.mxu0 %v985
  %2499 = vmatmul.mubr.bf16.gmra.mrb[0].mxu0 %v984
  %v2500 = vpop.f32.mrb[0].mxu0
  %v2501 = vadd.f32 %v2404, %v2500
  %v2502 = vpop.f32.mrb[0].mxu0
  %v2503 = vpop.f32.mrb[0].mxu0
  %v2504 = vadd.f32 %v2407, %v2503
  %v2505 = vpop.f32.mrb[0].mxu0
  %2506 = vmatprep.mubr.bf16.mxu0 %v1003
  %2507 = vmatmul.mubr.bf16.gmra.mrb[0].mxu0 %v1002
  %v2508 = vpop.f32.mrb[0].mxu0
  %v2509 = vadd.f32 %v2412, %v2508
  %v2510 = vpop.f32.mrb[0].mxu0
  %v2511 = vpop.f32.mrb[0].mxu0
  %v2512 = vadd.f32 %v2415, %v2511
  %v2513 = vpop.f32.mrb[0].mxu0
  %2514 = vmatprep.mubr.bf16.mxu0 %v1021
  %2515 = vmatmul.mubr.bf16.gmra.mrb[0].mxu0 %v1020
  %v2516 = vpop.f32.mrb[0].mxu0
  %v2517 = vadd.f32 %v2420, %v2516
  %v2518 = vpop.f32.mrb[0].mxu0
  %v2519 = vpop.f32.mrb[0].mxu0
  %v2520 = vadd.f32 %v2423, %v2519
  %v2521 = vpop.f32.mrb[0].mxu0
  %2522 = vdwg.mxu0
  %2523 = vmatprep.subr.bf16.mxu0 0
  %2524 = vmatpush1.bf16.msra.mxu0 %v1830
  %2525 = vmatprep.subr.bf16.mxu0 0
  %2526 = vmatpush1.bf16.msra.mxu0 %v1831
  %2527 = vmatprep.subr.bf16.mxu0 0
  %2528 = vmatpush1.bf16.msra.mxu0 %v1832
  %2529 = vmatprep.subr.bf16.mxu0 0
  %2530 = vmatpush1.bf16.msra.mxu0 %v1833
  %2531 = vmatprep.subr.bf16.mxu0 0
  %2532 = vmatpush1.bf16.msra.mxu0 %v1834
  %2533 = vmatprep.subr.bf16.mxu0 0
  %2534 = vmatpush1.bf16.msra.mxu0 %v1835
  %2535 = vmatprep.subr.bf16.mxu0 0
  %2536 = vmatpush1.bf16.msra.mxu0 %v1836
  %2537 = vmatprep.subr.bf16.mxu0 0
  %2538 = vmatpush1.bf16.msra.mxu0 %v1837
  %2539 = vmatprep.subr.bf16.mxu0 0
  %2540 = vmatpush1.bf16.msra.mxu0 %v1838
  %2541 = vmatprep.subr.bf16.mxu0 0
  %2542 = vmatpush1.bf16.msra.mxu0 %v1839
  %2543 = vmatprep.subr.bf16.mxu0 0
  %2544 = vmatpush1.bf16.msra.mxu0 %v1840
  %2545 = vmatprep.subr.bf16.mxu0 0
  %2546 = vmatpush1.bf16.msra.mxu0 %v1841
  %2547 = vmatprep.subr.bf16.mxu0 0
  %2548 = vmatpush1.bf16.msra.mxu0 %v1842
  %2549 = vmatprep.subr.bf16.mxu0 0
  %2550 = vmatpush1.bf16.msra.mxu0 %v1843
  %2551 = vmatprep.subr.bf16.mxu0 0
  %2552 = vmatpush1.bf16.msra.mxu0 %v1844
  %2553 = vmatprep.subr.bf16.mxu0 0
  %2554 = vmatpush1.bf16.msra.mxu0 %v1845
  %2555 = vmatprep.mubr.bf16.mxu0 %v897
  %2556 = vmatmul.mubr.bf16.gmra.mrb[0].mxu0 %v896
  %v2557 = vpop.f32.mrb[0].mxu0
  %v2558 = vadd.f32 %v2461, %v2557
  %v2559 = vpop.f32.mrb[0].mxu0
  %v2560 = vpop.f32.mrb[0].mxu0
  %v2561 = vadd.f32 %v2464, %v2560
  %v2562 = vpop.f32.mrb[0].mxu0
  %2563 = vmatprep.mubr.bf16.mxu0 %v915
  %2564 = vmatmul.mubr.bf16.gmra.mrb[0].mxu0 %v914
  %v2565 = vpop.f32.mrb[0].mxu0
  %v2566 = vadd.f32 %v2469, %v2565
  %v2567 = vpop.f32.mrb[0].mxu0
  %v2568 = vpop.f32.mrb[0].mxu0
  %v2569 = vadd.f32 %v2472, %v2568
  %v2570 = vpop.f32.mrb[0].mxu0
  %2571 = vmatprep.mubr.bf16.mxu0 %v933
  %2572 = vmatmul.mubr.bf16.gmra.mrb[0].mxu0 %v932
  %v2573 = vpop.f32.mrb[0].mxu0
  %v2574 = vadd.f32 %v2477, %v2573
  %v2575 = vpop.f32.mrb[0].mxu0
  %v2576 = vpop.f32.mrb[0].mxu0
  %v2577 = vadd.f32 %v2480, %v2576
  %v2578 = vpop.f32.mrb[0].mxu0
  %2579 = vmatprep.mubr.bf16.mxu0 %v951
  %2580 = vmatmul.mubr.bf16.gmra.mrb[0].mxu0 %v950
  %v2581 = vpop.f32.mrb[0].mxu0
  %v2582 = vadd.f32 %v2485, %v2581
  %v2583 = vpop.f32.mrb[0].mxu0
  %v2584 = vpop.f32.mrb[0].mxu0
  %v2585 = vadd.f32 %v2488, %v2584
  %v2586 = vpop.f32.mrb[0].mxu0
  %2587 = vmatprep.mubr.bf16.mxu0 %v969
  %2588 = vmatmul.mubr.bf16.gmra.mrb[0].mxu0 %v968
  %v2589 = vpop.f32.mrb[0].mxu0
  %v2590 = vadd.f32 %v2493, %v2589
  %v2591 = vpop.f32.mrb[0].mxu0
  %v2592 = vpop.f32.mrb[0].mxu0
  %v2593 = vadd.f32 %v2496, %v2592
  %v2594 = vpop.f32.mrb[0].mxu0
  %2595 = vmatprep.mubr.bf16.mxu0 %v987
  %2596 = vmatmul.mubr.bf16.gmra.mrb[0].mxu0 %v986
  %v2597 = vpop.f32.mrb[0].mxu0
  %v2598 = vadd.f32 %v2501, %v2597
  %v2599 = vpop.f32.mrb[0].mxu0
  %v2600 = vpop.f32.mrb[0].mxu0
  %v2601 = vadd.f32 %v2504, %v2600
  %v2602 = vpop.f32.mrb[0].mxu0
  %2603 = vmatprep.mubr.bf16.mxu0 %v1005
  %2604 = vmatmul.mubr.bf16.gmra.mrb[0].mxu0 %v1004
  %v2605 = vpop.f32.mrb[0].mxu0
  %v2606 = vadd.f32 %v2509, %v2605
  %v2607 = vpop.f32.mrb[0].mxu0
  %v2608 = vpop.f32.mrb[0].mxu0
  %v2609 = vadd.f32 %v2512, %v2608
  %v2610 = vpop.f32.mrb[0].mxu0
  %2611 = vmatprep.mubr.bf16.mxu0 %v1023
  %2612 = vmatmul.mubr.bf16.gmra.mrb[0].mxu0 %v1022
  %v2613 = vpop.f32.mrb[0].mxu0
  %v2614 = vadd.f32 %v2517, %v2613
  %v2615 = vpop.f32.mrb[0].mxu0
  %v2616 = vpop.f32.mrb[0].mxu0
  %v2617 = vadd.f32 %v2520, %v2616
  %v2618 = vpop.f32.mrb[0].mxu0
  %2619 = vdwg.mxu0
  %2620 = vmatprep.subr.bf16.mxu0 0
  %2621 = vmatpush1.bf16.msra.mxu0 %v1846
  %2622 = vmatprep.subr.bf16.mxu0 0
  %2623 = vmatpush1.bf16.msra.mxu0 %v1847
  %2624 = vmatprep.subr.bf16.mxu0 0
  %2625 = vmatpush1.bf16.msra.mxu0 %v1848
  %2626 = vmatprep.subr.bf16.mxu0 0
  %2627 = vmatpush1.bf16.msra.mxu0 %v1849
  %2628 = vmatprep.subr.bf16.mxu0 0
  %2629 = vmatpush1.bf16.msra.mxu0 %v1850
  %2630 = vmatprep.subr.bf16.mxu0 0
  %2631 = vmatpush1.bf16.msra.mxu0 %v1851
  %2632 = vmatprep.subr.bf16.mxu0 0
  %2633 = vmatpush1.bf16.msra.mxu0 %v1852
  %2634 = vmatprep.subr.bf16.mxu0 0
  %2635 = vmatpush1.bf16.msra.mxu0 %v1853
  %2636 = vmatprep.subr.bf16.mxu0 0
  %2637 = vmatpush1.bf16.msra.mxu0 %v1854
  %2638 = vmatprep.subr.bf16.mxu0 0
  %2639 = vmatpush1.bf16.msra.mxu0 %v1855
  %2640 = vmatprep.subr.bf16.mxu0 0
  %2641 = vmatpush1.bf16.msra.mxu0 %v1856
  %2642 = vmatprep.subr.bf16.mxu0 0
  %2643 = vmatpush1.bf16.msra.mxu0 %v1857
  %2644 = vmatprep.subr.bf16.mxu0 0
  %2645 = vmatpush1.bf16.msra.mxu0 %v1858
  %2646 = vmatprep.subr.bf16.mxu0 0
  %2647 = vmatpush1.bf16.msra.mxu0 %v1859
  %2648 = vmatprep.subr.bf16.mxu0 0
  %2649 = vmatpush1.bf16.msra.mxu0 %v1860
  %2650 = vmatprep.subr.bf16.mxu0 0
  %2651 = vmatpush1.bf16.msra.mxu0 %v1861
  %2652 = vmatprep.mubr.bf16.mxu0 %v899
  %2653 = vmatmul.mubr.bf16.gmra.mrb[0].mxu0 %v898
  %v2654 = vpop.f32.mrb[0].mxu0
  %v2655 = vadd.f32 %v2558, %v2654
  %v2656 = vpop.f32.mrb[0].mxu0
  %v2657 = vpop.f32.mrb[0].mxu0
  %v2658 = vadd.f32 %v2561, %v2657
  %v2659 = vpop.f32.mrb[0].mxu0
  %2660 = vmatprep.mubr.bf16.mxu0 %v917
  %2661 = vmatmul.mubr.bf16.gmra.mrb[0].mxu0 %v916
  %v2662 = vpop.f32.mrb[0].mxu0
  %v2663 = vadd.f32 %v2566, %v2662
  %v2664 = vpop.f32.mrb[0].mxu0
  %v2665 = vpop.f32.mrb[0].mxu0
  %v2666 = vadd.f32 %v2569, %v2665
  %v2667 = vpop.f32.mrb[0].mxu0
  %2668 = vmatprep.mubr.bf16.mxu0 %v935
  %2669 = vmatmul.mubr.bf16.gmra.mrb[0].mxu0 %v934
  %v2670 = vpop.f32.mrb[0].mxu0
  %v2671 = vadd.f32 %v2574, %v2670
  %v2672 = vpop.f32.mrb[0].mxu0
  %v2673 = vpop.f32.mrb[0].mxu0
  %v2674 = vadd.f32 %v2577, %v2673
  %v2675 = vpop.f32.mrb[0].mxu0
  %2676 = vmatprep.mubr.bf16.mxu0 %v953
  %2677 = vmatmul.mubr.bf16.gmra.mrb[0].mxu0 %v952
  %v2678 = vpop.f32.mrb[0].mxu0
  %v2679 = vadd.f32 %v2582, %v2678
  %v2680 = vpop.f32.mrb[0].mxu0
  %v2681 = vpop.f32.mrb[0].mxu0
  %v2682 = vadd.f32 %v2585, %v2681
  %v2683 = vpop.f32.mrb[0].mxu0
  %2684 = vmatprep.mubr.bf16.mxu0 %v971
  %2685 = vmatmul.mubr.bf16.gmra.mrb[0].mxu0 %v970
  %v2686 = vpop.f32.mrb[0].mxu0
  %v2687 = vadd.f32 %v2590, %v2686
  %v2688 = vpop.f32.mrb[0].mxu0
  %v2689 = vpop.f32.mrb[0].mxu0
  %v2690 = vadd.f32 %v2593, %v2689
  %v2691 = vpop.f32.mrb[0].mxu0
  %2692 = vmatprep.mubr.bf16.mxu0 %v989
  %2693 = vmatmul.mubr.bf16.gmra.mrb[0].mxu0 %v988
  %v2694 = vpop.f32.mrb[0].mxu0
  %v2695 = vadd.f32 %v2598, %v2694
  %v2696 = vpop.f32.mrb[0].mxu0
  %v2697 = vpop.f32.mrb[0].mxu0
  %v2698 = vadd.f32 %v2601, %v2697
  %v2699 = vpop.f32.mrb[0].mxu0
  %2700 = vmatprep.mubr.bf16.mxu0 %v1007
  %2701 = vmatmul.mubr.bf16.gmra.mrb[0].mxu0 %v1006
  %v2702 = vpop.f32.mrb[0].mxu0
  %v2703 = vadd.f32 %v2606, %v2702
  %v2704 = vpop.f32.mrb[0].mxu0
  %v2705 = vpop.f32.mrb[0].mxu0
  %v2706 = vadd.f32 %v2609, %v2705
  %v2707 = vpop.f32.mrb[0].mxu0
  %2708 = vmatprep.mubr.bf16.mxu0 %v1025
  %2709 = vmatmul.mubr.bf16.gmra.mrb[0].mxu0 %v1024
  %v2710 = vpop.f32.mrb[0].mxu0
  %v2711 = vadd.f32 %v2614, %v2710
  %v2712 = vpop.f32.mrb[0].mxu0
  %v2713 = vpop.f32.mrb[0].mxu0
  %v2714 = vadd.f32 %v2617, %v2713
  %v2715 = vpop.f32.mrb[0].mxu0
  %2716 = vdwg.mxu0
  %2717 = vmatprep.subr.bf16.mxu0 0
  %2718 = vmatpush1.bf16.msra.mxu0 %v1862
  %2719 = vmatprep.subr.bf16.mxu0 0
  %2720 = vmatpush1.bf16.msra.mxu0 %v1863
  %2721 = vmatprep.subr.bf16.mxu0 0
  %2722 = vmatpush1.bf16.msra.mxu0 %v1864
  %2723 = vmatprep.subr.bf16.mxu0 0
  %2724 = vmatpush1.bf16.msra.mxu0 %v1865
  %2725 = vmatprep.subr.bf16.mxu0 0
  %2726 = vmatpush1.bf16.msra.mxu0 %v1866
  %2727 = vmatprep.subr.bf16.mxu0 0
  %2728 = vmatpush1.bf16.msra.mxu0 %v1867
  %2729 = vmatprep.subr.bf16.mxu0 0
  %2730 = vmatpush1.bf16.msra.mxu0 %v1868
  %2731 = vmatprep.subr.bf16.mxu0 0
  %2732 = vmatpush1.bf16.msra.mxu0 %v1869
  %2733 = vmatprep.subr.bf16.mxu0 0
  %2734 = vmatpush1.bf16.msra.mxu0 %v1870
  %2735 = vmatprep.subr.bf16.mxu0 0
  %2736 = vmatpush1.bf16.msra.mxu0 %v1871
  %2737 = vmatprep.subr.bf16.mxu0 0
  %2738 = vmatpush1.bf16.msra.mxu0 %v1872
  %2739 = vmatprep.subr.bf16.mxu0 0
  %2740 = vmatpush1.bf16.msra.mxu0 %v1873
  %2741 = vmatprep.subr.bf16.mxu0 0
  %2742 = vmatpush1.bf16.msra.mxu0 %v1874
  %2743 = vmatprep.subr.bf16.mxu0 0
  %2744 = vmatpush1.bf16.msra.mxu0 %v1875
  %2745 = vmatprep.subr.bf16.mxu0 0
  %2746 = vmatpush1.bf16.msra.mxu0 %v1876
  %2747 = vmatprep.subr.bf16.mxu0 0
  %2748 = vmatpush1.bf16.msra.mxu0 %v1877
  %2749 = vmatprep.mubr.bf16.mxu0 %v901
  %2750 = vmatmul.mubr.bf16.gmra.mrb[0].mxu0 %v900
  %v2751 = vpop.f32.mrb[0].mxu0
  %v2752 = vadd.f32 %v2655, %v2751
  %v2753 = vpop.f32.mrb[0].mxu0
  %v2754 = vpop.f32.mrb[0].mxu0
  %v2755 = vadd.f32 %v2658, %v2754
  %v2756 = vpop.f32.mrb[0].mxu0
  %2757 = vmatprep.mubr.bf16.mxu0 %v919
  %2758 = vmatmul.mubr.bf16.gmra.mrb[0].mxu0 %v918
  %v2759 = vpop.f32.mrb[0].mxu0
  %v2760 = vadd.f32 %v2663, %v2759
  %v2761 = vpop.f32.mrb[0].mxu0
  %v2762 = vpop.f32.mrb[0].mxu0
  %v2763 = vadd.f32 %v2666, %v2762
  %v2764 = vpop.f32.mrb[0].mxu0
  %2765 = vmatprep.mubr.bf16.mxu0 %v937
  %2766 = vmatmul.mubr.bf16.gmra.mrb[0].mxu0 %v936
  %v2767 = vpop.f32.mrb[0].mxu0
  %v2768 = vadd.f32 %v2671, %v2767
  %v2769 = vpop.f32.mrb[0].mxu0
  %v2770 = vpop.f32.mrb[0].mxu0
  %v2771 = vadd.f32 %v2674, %v2770
  %v2772 = vpop.f32.mrb[0].mxu0
  %2773 = vmatprep.mubr.bf16.mxu0 %v955
  %2774 = vmatmul.mubr.bf16.gmra.mrb[0].mxu0 %v954
  %v2775 = vpop.f32.mrb[0].mxu0
  %v2776 = vadd.f32 %v2679, %v2775
  %v2777 = vpop.f32.mrb[0].mxu0
  %v2778 = vpop.f32.mrb[0].mxu0
  %v2779 = vadd.f32 %v2682, %v2778
  %v2780 = vpop.f32.mrb[0].mxu0
  %2781 = vmatprep.mubr.bf16.mxu0 %v973
  %2782 = vmatmul.mubr.bf16.gmra.mrb[0].mxu0 %v972
  %v2783 = vpop.f32.mrb[0].mxu0
  %v2784 = vadd.f32 %v2687, %v2783
  %v2785 = vpop.f32.mrb[0].mxu0
  %v2786 = vpop.f32.mrb[0].mxu0
  %v2787 = vadd.f32 %v2690, %v2786
  %v2788 = vpop.f32.mrb[0].mxu0
  %2789 = vmatprep.mubr.bf16.mxu0 %v991
  %2790 = vmatmul.mubr.bf16.gmra.mrb[0].mxu0 %v990
  %v2791 = vpop.f32.mrb[0].mxu0
  %v2792 = vadd.f32 %v2695, %v2791
  %v2793 = vpop.f32.mrb[0].mxu0
  %v2794 = vpop.f32.mrb[0].mxu0
  %v2795 = vadd.f32 %v2698, %v2794
  %v2796 = vpop.f32.mrb[0].mxu0
  %2797 = vmatprep.mubr.bf16.mxu0 %v1009
  %2798 = vmatmul.mubr.bf16.gmra.mrb[0].mxu0 %v1008
  %v2799 = vpop.f32.mrb[0].mxu0
  %v2800 = vadd.f32 %v2703, %v2799
  %v2801 = vpop.f32.mrb[0].mxu0
  %v2802 = vpop.f32.mrb[0].mxu0
  %v2803 = vadd.f32 %v2706, %v2802
  %v2804 = vpop.f32.mrb[0].mxu0
  %2805 = vmatprep.mubr.bf16.mxu0 %v1027
  %2806 = vmatmul.mubr.bf16.gmra.mrb[0].mxu0 %v1026
  %v2807 = vpop.f32.mrb[0].mxu0
  %v2808 = vadd.f32 %v2711, %v2807
  %v2809 = vpop.f32.mrb[0].mxu0
  %v2810 = vpop.f32.mrb[0].mxu0
  %v2811 = vadd.f32 %v2714, %v2810
  %v2812 = vpop.f32.mrb[0].mxu0
  %2813 = vdwg.mxu0
  %2814 = vmatprep.subr.bf16.mxu0 0
  %2815 = vmatpush1.bf16.msra.mxu0 %v1878
  %2816 = vmatprep.subr.bf16.mxu0 0
  %2817 = vmatpush1.bf16.msra.mxu0 %v1879
  %2818 = vmatprep.subr.bf16.mxu0 0
  %2819 = vmatpush1.bf16.msra.mxu0 %v1880
  %2820 = vmatprep.subr.bf16.mxu0 0
  %2821 = vmatpush1.bf16.msra.mxu0 %v1881
  %2822 = vmatprep.subr.bf16.mxu0 0
  %2823 = vmatpush1.bf16.msra.mxu0 %v1882
  %2824 = vmatprep.subr.bf16.mxu0 0
  %2825 = vmatpush1.bf16.msra.mxu0 %v1883
  %2826 = vmatprep.subr.bf16.mxu0 0
  %2827 = vmatpush1.bf16.msra.mxu0 %v1884
  %2828 = vmatprep.subr.bf16.mxu0 0
  %2829 = vmatpush1.bf16.msra.mxu0 %v1885
  %2830 = vmatprep.subr.bf16.mxu0 0
  %2831 = vmatpush1.bf16.msra.mxu0 %v1886
  %2832 = vmatprep.subr.bf16.mxu0 0
  %2833 = vmatpush1.bf16.msra.mxu0 %v1887
  %2834 = vmatprep.subr.bf16.mxu0 0
  %2835 = vmatpush1.bf16.msra.mxu0 %v1888
  %2836 = vmatprep.subr.bf16.mxu0 0
  %2837 = vmatpush1.bf16.msra.mxu0 %v1889
  %2838 = vmatprep.subr.bf16.mxu0 0
  %2839 = vmatpush1.bf16.msra.mxu0 %v1890
  %2840 = vmatprep.subr.bf16.mxu0 0
  %2841 = vmatpush1.bf16.msra.mxu0 %v1891
  %2842 = vmatprep.subr.bf16.mxu0 0
  %2843 = vmatpush1.bf16.msra.mxu0 %v1892
  %2844 = vmatprep.subr.bf16.mxu0 0
  %2845 = vmatpush1.bf16.msra.mxu0 %v1893
  %2846 = vmatprep.mubr.bf16.mxu0 %v903
  %2847 = vmatmul.mubr.bf16.gmra.mrb[0].mxu0 %v902
  %v2848 = vpop.f32.mrb[0].mxu0
  %v2849 = vadd.f32 %v2752, %v2848
  %v2850 = vpop.f32.mrb[0].mxu0
  %v2851 = vpop.f32.mrb[0].mxu0
  %v2852 = vadd.f32 %v2755, %v2851
  %v2853 = vpop.f32.mrb[0].mxu0
  %2854 = vmatprep.mubr.bf16.mxu0 %v921
  %2855 = vmatmul.mubr.bf16.gmra.mrb[0].mxu0 %v920
  %v2856 = vpop.f32.mrb[0].mxu0
  %v2857 = vadd.f32 %v2760, %v2856
  %v2858 = vpop.f32.mrb[0].mxu0
  %v2859 = vpop.f32.mrb[0].mxu0
  %v2860 = vadd.f32 %v2763, %v2859
  %v2861 = vpop.f32.mrb[0].mxu0
  %2862 = vmatprep.mubr.bf16.mxu0 %v939
  %2863 = vmatmul.mubr.bf16.gmra.mrb[0].mxu0 %v938
  %v2864 = vpop.f32.mrb[0].mxu0
  %v2865 = vadd.f32 %v2768, %v2864
  %v2866 = vpop.f32.mrb[0].mxu0
  %v2867 = vpop.f32.mrb[0].mxu0
  %v2868 = vadd.f32 %v2771, %v2867
  %v2869 = vpop.f32.mrb[0].mxu0
  %2870 = vmatprep.mubr.bf16.mxu0 %v957
  %2871 = vmatmul.mubr.bf16.gmra.mrb[0].mxu0 %v956
  %v2872 = vpop.f32.mrb[0].mxu0
  %v2873 = vadd.f32 %v2776, %v2872
  %v2874 = vpop.f32.mrb[0].mxu0
  %v2875 = vpop.f32.mrb[0].mxu0
  %v2876 = vadd.f32 %v2779, %v2875
  %v2877 = vpop.f32.mrb[0].mxu0
  %2878 = vmatprep.mubr.bf16.mxu0 %v975
  %2879 = vmatmul.mubr.bf16.gmra.mrb[0].mxu0 %v974
  %v2880 = vpop.f32.mrb[0].mxu0
  %v2881 = vadd.f32 %v2784, %v2880
  %v2882 = vpop.f32.mrb[0].mxu0
  %v2883 = vpop.f32.mrb[0].mxu0
  %v2884 = vadd.f32 %v2787, %v2883
  %v2885 = vpop.f32.mrb[0].mxu0
  %2886 = vmatprep.mubr.bf16.mxu0 %v993
  %2887 = vmatmul.mubr.bf16.gmra.mrb[0].mxu0 %v992
  %v2888 = vpop.f32.mrb[0].mxu0
  %v2889 = vadd.f32 %v2792, %v2888
  %v2890 = vpop.f32.mrb[0].mxu0
  %v2891 = vpop.f32.mrb[0].mxu0
  %v2892 = vadd.f32 %v2795, %v2891
  %v2893 = vpop.f32.mrb[0].mxu0
  %2894 = vmatprep.mubr.bf16.mxu0 %v1011
  %2895 = vmatmul.mubr.bf16.gmra.mrb[0].mxu0 %v1010
  %v2896 = vpop.f32.mrb[0].mxu0
  %v2897 = vadd.f32 %v2800, %v2896
  %v2898 = vpop.f32.mrb[0].mxu0
  %v2899 = vpop.f32.mrb[0].mxu0
  %v2900 = vadd.f32 %v2803, %v2899
  %v2901 = vpop.f32.mrb[0].mxu0
  %2902 = vmatprep.mubr.bf16.mxu0 %v1029
  %2903 = vmatmul.mubr.bf16.gmra.mrb[0].mxu0 %v1028
  %v2904 = vpop.f32.mrb[0].mxu0
  %v2905 = vadd.f32 %v2808, %v2904
  %v2906 = vpop.f32.mrb[0].mxu0
  %v2907 = vpop.f32.mrb[0].mxu0
  %v2908 = vadd.f32 %v2811, %v2907
  %v2909 = vpop.f32.mrb[0].mxu0
  %2910 = vdwg.mxu0
  %v2911 = vmax.f32 %v2849, 0.0
  %v2912 = vmax.f32 %v2852, 0.0
  %v2913 = vmax.f32 %v2857, 0.0
  %v2914 = vmax.f32 %v2860, 0.0
  %v2915 = vmax.f32 %v2865, 0.0
  %v2916 = vmax.f32 %v2868, 0.0
  %v2917 = vmax.f32 %v2873, 0.0
  %v2918 = vmax.f32 %v2876, 0.0
  %v2919 = vmax.f32 %v2881, 0.0
  %v2920 = vmax.f32 %v2884, 0.0
  %v2921 = vmax.f32 %v2889, 0.0
  %v2922 = vmax.f32 %v2892, 0.0
  %v2923 = vmax.f32 %v2897, 0.0
  %v2924 = vmax.f32 %v2900, 0.0
  %v2925 = vmax.f32 %v2905, 0.0
  %v2926 = vmax.f32 %v2908, 0.0
  %v2927 = vpack.c.bf16 %v2912, %v2911
  %v2928 = vpack.c.bf16 %v2914, %v2913
  %v2929 = vpack.c.bf16 %v2916, %v2915
  %v2930 = vpack.c.bf16 %v2918, %v2917
  %v2931 = vpack.c.bf16 %v2920, %v2919
  %v2932 = vpack.c.bf16 %v2922, %v2921
  %v2933 = vpack.c.bf16 %v2924, %v2923
  %v2934 = vpack.c.bf16 %v2926, %v2925
  %v2943 = vunpack.c.l.b16 %v2927
  %v2944 = vunpack.c.h.b16 %v2927
  %v2945 = vunpack.c.l.b16 %v2928
  %v2946 = vunpack.c.h.b16 %v2928
  %v2947 = vunpack.c.l.b16 %v2929
  %v2948 = vunpack.c.h.b16 %v2929
  %v2949 = vunpack.c.l.b16 %v2930
  %v2950 = vunpack.c.h.b16 %v2930
  %v2951 = vunpack.c.l.b16 %v2931
  %v2952 = vunpack.c.h.b16 %v2931
  %v2953 = vunpack.c.l.b16 %v2932
  %v2954 = vunpack.c.h.b16 %v2932
  %v2955 = vunpack.c.l.b16 %v2933
  %v2956 = vunpack.c.h.b16 %v2933
  %v2957 = vunpack.c.l.b16 %v2934
  %v2958 = vunpack.c.h.b16 %v2934
  %v2959 = vpack.c.b16 %v2943, %v2943
  %v2960 = vpack.c.b16 %v2944, %v2944
  %v2961 = vpack.c.b16 %v2945, %v2945
  %v2962 = vpack.c.b16 %v2946, %v2946
  %v2963 = vpack.c.b16 %v2947, %v2947
  %v2964 = vpack.c.b16 %v2948, %v2948
  %v2965 = vpack.c.b16 %v2949, %v2949
  %v2966 = vpack.c.b16 %v2950, %v2950
  %v2967 = vpack.c.b16 %v2951, %v2951
  %v2968 = vpack.c.b16 %v2952, %v2952
  %v2969 = vpack.c.b16 %v2953, %v2953
  %v2970 = vpack.c.b16 %v2954, %v2954
  %v2971 = vpack.c.b16 %v2955, %v2955
  %v2972 = vpack.c.b16 %v2956, %v2956
  %v2973 = vpack.c.b16 %v2957, %v2957
  %v2974 = vpack.c.b16 %v2958, %v2958
  %2991 = vst [vmem:[%s3] sm:$0xf] %v2959
  %2992 = vst [vmem:[%s3 + $0x4] sm:$0xf] %v2960
  %2993 = vst [vmem:[%s3 + $0x8] sm:$0xf] %v2961
  %2994 = vst [vmem:[%s3 + $0xc] sm:$0xf] %v2962
  %2995 = vst [vmem:[%s3 + $0x10] sm:$0xf] %v2963
  %2996 = vst [vmem:[%s3 + $0x14] sm:$0xf] %v2964
  %2997 = vst [vmem:[%s3 + $0x18] sm:$0xf] %v2965
  %2998 = vst [vmem:[%s3 + $0x1c] sm:$0xf] %v2966
  %2999 = vst [vmem:[%s3 + $0x20] sm:$0xf] %v2967
  %3000 = vst [vmem:[%s3 + $0x24] sm:$0xf] %v2968
  %3001 = vst [vmem:[%s3 + $0x28] sm:$0xf] %v2969
  %3002 = vst [vmem:[%s3 + $0x2c] sm:$0xf] %v2970
  %3003 = vst [vmem:[%s3 + $0x30] sm:$0xf] %v2971
  %3004 = vst [vmem:[%s3 + $0x34] sm:$0xf] %v2972
  %3005 = vst [vmem:[%s3 + $0x38] sm:$0xf] %v2973
  %3006 = vst [vmem:[%s3 + $0x3c] sm:$0xf] %v2974
  // Predicated region
  $region14: #{coanet_forward.10} parent=0 // pred_check
    _
  $region15: #{coanet_forward.10} parent=0 // pred_check_branch
    %3008 = sbr.rel (0) target = $region17
  $region16: #{coanet_forward.10} parent=0 // pred_region
    _
  $region17: #{coanet_forward.10} parent=0 // pred_fallthru
    _
  // Predicated region
  $region18: #{coanet_forward.10} parent=0 // pred_check
    _
  $region19: #{coanet_forward.10} parent=0 // pred_check_branch
    %3010 = sbr.rel (0) target = $region21
  $region20: #{coanet_forward.10} parent=0 // pred_region
    _
  $region21: #{coanet_forward.10} parent=0 // pred_fallthru
    _

</llo_original>
